<compile_context>
chip_gen: v7x
topology: tpu7x:2x2x1
jax: 0.10.0
libtpu: 0.0.40
codegen_flags: <defaults>
</compile_context>

<pallas_src>
import functools

import jax
import jax.numpy as jnp
import numpy as np
from jax.experimental import pallas as pl
from jax.experimental.pallas import tpu as pltpu

KH = 4                             # conv kernel height (fixed by the module)
C_OUT = 20                         # output channels of every conv branch
C_PAD = 256                        # channel lane padding (full 128/256-wide MXU columns)
KWS = (2, 3, 4, 5, 6, 7, 8, 9)     # cnn1..cnn8 kernel widths


def _fused_kernel(x_ref, w_ref, m_ref, o_ref, *, mp_s, h_out, J, P, c_pad):
    """One MXU matmul (all 8 convs + bias) -> aligned-lane maxpool -> ReLU -> mask -> L2 norm."""
    x = x_ref[...]                 # (tn, L)              flattened input rows (+ ones lane)
    wt = w_ref[...]                # (L, h_out*J*c_pad)   shift-structured fused weights
    conv = jax.lax.dot_general(    # (tn, h_out*J*c_pad), lanes ordered (row, pos, channel)
        x, wt,
        dimension_numbers=(((1,), (0,)), ((), ())),
        preferred_element_type=jnp.float32,
        precision=jax.lax.Precision.HIGHEST)

    rows = []
    for i in range(h_out):
        base = i * J * c_pad
        seg = conv[:, base:base + P * c_pad]
        for m in range(1, mp_s):   # 256-lane-aligned slices -> plain vreg maxima, no relayout
            seg = jnp.maximum(seg, conv[:, base + m * c_pad:base + (m + P) * c_pad])
        rows.append(seg)
    pooled = rows[0] if h_out == 1 else jnp.concatenate(rows, axis=-1)
    # ReLU commutes with max; mask zeroes invalid pool positions / padded channels.
    pooled = jnp.maximum(pooled, 0.0) * m_ref[...]

    # F.normalize(x, p=2, dim=1, eps=1e-12)  ==  x * rsqrt(max(||x||^2, eps^2))
    ss = jnp.sum(pooled * pooled, axis=-1, keepdims=True)
    inv = jax.lax.rsqrt(jnp.maximum(ss, 1e-24))
    o_ref[...] = pooled * inv


def _build_toeplitz(params, H, W):
    """Host-side fused weight matrix:
       Wt[h*W + wp, (i*J + j)*C_PAD + b*C_OUT + c] = weight_b[c, 0, h-i, wp-j]  (when in range)
       with the per-channel bias folded into the constant-one input lane (row H*W)."""
    kws = [int(w.shape[-1]) for (w, _) in params]
    kw_min = min(kws)
    h_out = H - KH + 1
    J = W - kw_min + 1
    L = H * W + 1                              # flattened input + one constant-1 lane (bias)
    L_pad = ((L + 7) // 8) * 8
    wt = np.zeros((L_pad, h_out * J * C_PAD), np.float32)
    for b, (w, bias) in enumerate(params):
        kw = kws[b]
        w_np = np.asarray(w, np.float32).reshape(C_OUT, KH, kw)
        b_np = np.asarray(bias, np.float32)
        for i in range(h_out):
            for j in range(J):
                col0 = (i * J + j) * C_PAD + b * C_OUT
                ncols = min(kw, W - j)         # taps that stay inside the row
                for dh in range(KH):
                    row0 = (i + dh) * W + j
                    wt[row0:row0 + ncols, col0:col0 + C_OUT] = w_np[:, dh, :ncols].T
                wt[H * W, col0:col0 + C_OUT] = b_np
    return jnp.asarray(wt), h_out, J, L_pad


def _build_mask(p_outs, h_out, P):
    """(1, h_out*P*C_PAD) lane mask: 1.0 only for valid (branch, channel, pool-pos) lanes."""
    mask = np.zeros((1, h_out * P * C_PAD), np.float32)
    for i in range(h_out):
        for b, p_out in enumerate(p_outs):
            for p in range(p_out):
                col0 = (i * P + p) * C_PAD + b * C_OUT
                mask[0, col0:col0 + C_OUT] = 1.0
    return jnp.asarray(mask)


def _pick_tile(n, d_slab):
    """Batch tile: large enough to amortize per-step overhead, >=2 tiles when possible
    (v7x megacore), multiple of 8, and capped so the output block stays a few MiB."""
    cap = max(8, (4 * 1024 * 1024) // (4 * d_slab) // 8 * 8)
    if n >= 256:
        base = 128
    else:
        base = max(8, min(128, (((n + 1) // 2) + 7) // 8 * 8))
    return max(8, min(base, cap))


def cnn2_kmer_mp_8(x, params, mp_s):
    """x: (N, 1, H, W) float; params: list of 8 (weight (20,1,4,kw), bias (20,)), kw = 2..9."""
    n, cin, H, W = x.shape
    assert cin == 1, "module is defined with in_channels=1"
    assert H >= KH, "need H >= 4"
    kws = tuple(int(w.shape[-1]) for (w, _) in params)
    kw_max = max(kws)
    assert W - kw_max + 1 - mp_s + 1 >= 1, "W too small for this kw / mp_s combination"

    p_outs = tuple(W - kw - mp_s + 2 for kw in kws)
    P = max(p_outs)

    wt, h_out, J, L_pad = _build_toeplitz(params, H, W)
    # TODO(synk): tile the width axis (shared shift-invariant weight block + halo) for very long
    # sequences; the single-block fused weight matrix targets k-mer-scale widths.
    assert wt.size * 4 <= 16 * 1024 * 1024, "sequence too long for the single-block fused weights"
    mask = _build_mask(p_outs, h_out, P)

    d_slab = h_out * P * C_PAD
    xaug = jnp.concatenate(
        [x.reshape(n, H * W).astype(jnp.float32),
         jnp.ones((n, 1), jnp.float32),
         jnp.zeros((n, L_pad - H * W - 1), jnp.float32)], axis=1)

    tn = _pick_tile(n, d_slab)
    n_pad = (-n) % tn
    if n_pad:
        xaug = jnp.pad(xaug, ((0, n_pad), (0, 0)))
    grid = ((n + n_pad) // tn,)

    kernel = functools.partial(_fused_kernel, mp_s=mp_s, h_out=h_out, J=J, P=P, c_pad=C_PAD)
    slab = pl.pallas_call(
        kernel,
        out_shape=jax.ShapeDtypeStruct((n + n_pad, d_slab), jnp.float32),
        grid_spec=pltpu.PrefetchScalarGridSpec(
            num_scalar_prefetch=0,
            grid=grid,
            in_specs=[
                pl.BlockSpec((tn, L_pad), lambda i: (i, 0)),
                pl.BlockSpec((L_pad, wt.shape[1]), lambda i: (0, 0)),  # resident across steps
                pl.BlockSpec((1, d_slab), lambda i: (0, 0)),           # resident across steps
            ],
            out_specs=pl.BlockSpec((tn, d_slab), lambda i: (i, 0)),
        ),
        compiler_params=pltpu.CompilerParams(dimension_semantics=("parallel",)),
    )(xaug, wt, mask)

    # Wrapper-side reorder of the lane-dense slab into the exact PyTorch
    # (branch -> channel -> row -> col) flatten/concat layout (pure layout plumbing).
    slab = slab[:n].reshape(n, h_out, P, C_PAD)
    parts = []
    for b, p_out in enumerate(p_outs):
        blk = slab[:, :, :p_out, b * C_OUT:(b + 1) * C_OUT]            # (n, h_out, p_out, 20)
        parts.append(jnp.transpose(blk, (0, 3, 1, 2)).reshape(n, C_OUT * h_out * p_out))
    return jnp.concatenate(parts, axis=1)


def init_params(key):
    """Deterministic PyTorch-style Conv2d init: U(-1/sqrt(fan_in), 1/sqrt(fan_in))."""
    params = []
    for i, kw in enumerate(KWS):
        kwt, kb = jax.random.split(jax.random.fold_in(key, i))
        fan_in = 1 * KH * kw
        bound = 1.0 / (fan_in ** 0.5)
        wt = jax.random.uniform(kwt, (C_OUT, 1, KH, kw), jnp.float32, -bound, bound)
        b = jax.random.uniform(kb, (C_OUT,), jnp.float32, -bound, bound)
        params.append((wt, b))
    return params


def reference_forward(x, params, mp_s):
    """Pure-JAX reference mirroring the PyTorch forward (independent of the kernel path)."""
    outs = []
    for wt, b in params:
        conv = jax.lax.conv_general_dilated(
            x, wt, window_strides=(1, 1), padding='VALID',
            dimension_numbers=('NCHW', 'OIHW', 'NCHW'),
            precision=jax.lax.Precision.HIGHEST)
        conv = jnp.maximum(conv + b[None, :, None, None], 0.0)
        pooled = jax.lax.reduce_window(
            conv, -jnp.inf, jax.lax.max, (1, 1, 1, mp_s), (1, 1, 1, 1), 'VALID')
        outs.append(pooled.reshape(x.shape[0], -1))
    cat = jnp.concatenate(outs, axis=1)
    norm = jnp.maximum(jnp.sqrt(jnp.sum(cat * cat, axis=1, keepdims=True)), 1e-12)
    return cat / norm


if __name__ == "__main__":
    key = jax.random.PRNGKey(0)
    kx, kp = jax.random.split(key)

    mp_s = 3
    # k-mer style input: batch=2, 1 channel, 4 one-hot rows, sequence length 16
    # (W must satisfy W >= kw_max + mp_s - 1 = 11).
    x = jax.random.normal(kx, (2, 1, 4, 16), jnp.float32)
    params = init_params(kp)

    out = cnn2_kmer_mp_8(x, params, mp_s)
    out = jax.block_until_ready(out)

    ref = reference_forward(x, params, mp_s)
    assert out.shape == ref.shape, (out.shape, ref.shape)
    assert bool(jnp.allclose(out, ref, atol=2e-5, rtol=2e-5)), \
        float(jnp.max(jnp.abs(out - ref)))

    print("KERNEL_OK")
</pallas_src>

<mosaic_0001>
module attributes {stable_mosaic.version = 11 : i64} {
  func.func @_fused_kernel(%arg0: i32, %arg1: memref<8x72xf32, #tpu.memory_space<vmem>>, %arg2: memref<72x3840xf32, #tpu.memory_space<vmem>>, %arg3: memref<1x3328xf32, #tpu.memory_space<vmem>>, %arg4: memref<8x3328xf32, #tpu.memory_space<vmem>>) attributes {dimension_semantics = [#tpu.dimension_semantics<parallel>], iteration_bounds = array<i64: 1>, scalar_prefetch = 0 : i64, scratch_operands = 0 : i64, tpu.core_type = #tpu.core_type<tc>, window_params = [{transform_indices = @transform_0, window_bounds = array<i64: 8, 72>}, {pipeline_mode = #tpu.pipeline_mode<synchronous>, transform_indices = @transform_1, window_bounds = array<i64: 72, 3840>}, {pipeline_mode = #tpu.pipeline_mode<synchronous>, transform_indices = @transform_2, window_bounds = array<i64: 1, 3328>}, {transform_indices = @transform_3, window_bounds = array<i64: 8, 3328>}]} {
    %c0 = arith.constant 0 : index
    %c0_0 = arith.constant 0 : index
    %0 = vector.load %arg1[%c0, %c0_0] : memref<8x72xf32, #tpu.memory_space<vmem>>, vector<8x72xf32>
    %c0_1 = arith.constant 0 : index
    %c0_2 = arith.constant 0 : index
    %1 = vector.load %arg2[%c0_1, %c0_2] : memref<72x3840xf32, #tpu.memory_space<vmem>>, vector<72x3840xf32>
    %cst = arith.constant dense<0.000000e+00> : vector<8x3840xf32>
    %2 = tpu.matmul %0, %1, %cst {dimension_numbers = #tpu.dot_dimension_numbers<[1], [0], [0], [1], [0, 0, 1, 1], [], []>, precision = #tpu.contract_precision<fp32>} : vector<8x72xf32>, vector<72x3840xf32>, vector<8x3840xf32> -> vector<8x3840xf32>
    %3 = vector.extract_strided_slice %2 {offsets = [0, 0], sizes = [8, 3328], strides = [1, 1]} : vector<8x3840xf32> to vector<8x3328xf32>
    %4 = vector.extract_strided_slice %2 {offsets = [0, 256], sizes = [8, 3328], strides = [1, 1]} : vector<8x3840xf32> to vector<8x3328xf32>
    %5 = arith.maximumf %3, %4 : vector<8x3328xf32>
    %6 = vector.extract_strided_slice %2 {offsets = [0, 512], sizes = [8, 3328], strides = [1, 1]} : vector<8x3840xf32> to vector<8x3328xf32>
    %7 = arith.maximumf %5, %6 : vector<8x3328xf32>
    %cst_3 = arith.constant 0.000000e+00 : f32
    %8 = vector.broadcast %cst_3 : f32 to vector<8x3328xf32>
    %9 = arith.maximumf %7, %8 : vector<8x3328xf32>
    %c0_4 = arith.constant 0 : index
    %c0_5 = arith.constant 0 : index
    %10 = vector.load %arg3[%c0_4, %c0_5] : memref<1x3328xf32, #tpu.memory_space<vmem>>, vector<1x3328xf32>
    %11 = vector.broadcast %10 : vector<1x3328xf32> to vector<8x3328xf32>
    %12 = arith.mulf %9, %11 : vector<8x3328xf32>
    %13 = arith.mulf %12, %12 : vector<8x3328xf32>
    %cst_6 = arith.constant dense<0.000000e+00> : vector<8xf32>
    %14 = vector.multi_reduction <add>, %13, %cst_6 [1] : vector<8x3328xf32> to vector<8xf32>
    %15 = vector.shape_cast %14 : vector<8xf32> to vector<8x1xf32>
    %cst_7 = arith.constant 1.000000e-24 : f32
    %16 = vector.broadcast %cst_7 : f32 to vector<8x1xf32>
    %17 = arith.maximumf %15, %16 : vector<8x1xf32>
    %18 = math.rsqrt %17 : vector<8x1xf32>
    %19 = vector.broadcast %18 : vector<8x1xf32> to vector<8x3328xf32>
    %20 = arith.mulf %12, %19 : vector<8x3328xf32>
    %c0_8 = arith.constant 0 : index
    %c0_9 = arith.constant 0 : index
    %21 = vector.load %arg4[%c0_8, %c0_9] : memref<8x3328xf32, #tpu.memory_space<vmem>>, vector<8x3328xf32>
    tpu.vector_store %arg4[%c0_8, %c0_9], %20 {strides = array<i32>} : memref<8x3328xf32, #tpu.memory_space<vmem>>, vector<8x3328xf32>,
    return
  }
  func.func @transform_0(%arg0: i32) -> (i32, i32) {
    %c0_i32 = arith.constant 0 : i32
    %c0_i32_0 = arith.constant 0 : i32
    return %arg0, %c0_i32 : i32, i32
  }
  func.func @transform_1(%arg0: i32) -> (i32, i32) {
    %c0_i32 = arith.constant 0 : i32
    %c0_i32_0 = arith.constant 0 : i32
    %c0_i32_1 = arith.constant 0 : i32
    return %c0_i32, %c0_i32_0 : i32, i32
  }
  func.func @transform_2(%arg0: i32) -> (i32, i32) {
    %c0_i32 = arith.constant 0 : i32
    %c0_i32_0 = arith.constant 0 : i32
    %c0_i32_1 = arith.constant 0 : i32
    return %c0_i32, %c0_i32_0 : i32, i32
  }
  func.func @transform_3(%arg0: i32) -> (i32, i32) {
    %c0_i32 = arith.constant 0 : i32
    %c0_i32_0 = arith.constant 0 : i32
    return %arg0, %c0_i32 : i32, i32
  }
}

</mosaic_0001>

<llo_original>
// kernel: tpu_custom_call.1
$region0: #{tpu_custom_call.1}
  #allocation0 [shape = 'u32[]', space=smem, size = 0x4, offset = 0x4, fixed_abs, tag = 'smem constant byte address 0x4 - core index']
  #allocation1 [shape = 'u32[144,128]{1,0:T(1,128)}', space=vmem, size = 0x12000, scoped, tag = 'internal scratch']
  %s0 = inlined_call_operand.hbm [shape: f32[8,72], index: 0, kind: input, shape index: {}]
  %s1 = inlined_call_operand.hbm [shape: f32[72,3840], index: 1, kind: input, shape index: {}]
  %s2 = inlined_call_operand.hbm [shape: f32[1,3328], index: 2, kind: input, shape index: {}]
  %s3 = inlined_call_operand.hbm [shape: f32[8,3328], index: 3, kind: output, shape index: {}]
  %s4 = sld [smem:[#allocation0]]
  $region34: #{tpu_custom_call.1} parent=0
    _
  %s6 = ssub.s32 1, %s4
  %s7 = scalar_select 0, %s6, %s4
  $region1: #{tpu_custom_call.1} parent=0
    #allocation2 [shape = 'u8[4096]{0}', space=vmem, size = 0x1000, scoped, tag = 'input window, operand 0, single buffered']
    #allocation3 [shape = 's32[1]{0}', space=sflag, size = 0x4, scoped, tag = 'scoped memory for tpu_custom_call.1']
    #allocation4 [shape = 's32[1]{0}', space=sflag, size = 0x4, scoped, tag = 'scoped memory for tpu_custom_call.1']
    #allocation5 [shape = 'u8[1105920]{0}', space=vmem, size = 0x10e000, scoped, tag = 'input window, operand 1, single buffered']
    #allocation6 [shape = 's32[1]{0}', space=sflag, size = 0x4, scoped, tag = 'scoped memory for tpu_custom_call.1']
    #allocation7 [shape = 'u8[13312]{0}', space=vmem, size = 0x3400, scoped, tag = 'input window, operand 2, single buffered']
    #allocation8 [shape = 'u8[106496]{0}', space=vmem, size = 0x1a000, scoped, tag = 'output window, operand 0, single buffered']
    %8 = vsyncpa [#allocation3], 0
    %9 = vsyncpa [#allocation6], 0
    %10 = vsyncpa [#allocation4], 0
    // Predicated region
    $region2: #{tpu_custom_call.1} parent=1 // pred_check
      _
    $region3: #{tpu_custom_call.1} parent=1 // pred_check_branch
      %12 = sbr.rel (0) target = $region5
    $region4: #{tpu_custom_call.1} parent=1 // pred_region
      %s14 = ssub.s32 128, 128
      %15 = vsyncadd [#allocation3], %s14
      %s17 = sshll.u32 [#allocation2], 4
      %s18 = int_to_ptr.vmem [resolvable:$true] %s17
      %20 = dma.hbm_to_vmem [thread:$0]  %s0, 128, %s18, [#allocation3]
    $region5: #{tpu_custom_call.1} parent=1 // pred_fallthru
      _
    // Predicated region
    $region6: #{tpu_custom_call.1} parent=1 // pred_check
      _
    $region7: #{tpu_custom_call.1} parent=1 // pred_check_branch
      %22 = sbr.rel (0) target = $region9
    $region8: #{tpu_custom_call.1} parent=1 // pred_region
      %s24 = ssub.s32 34560, 34560
      %25 = vsyncadd [#allocation6], %s24
      %s26 = sshll.u32 [#allocation5], 4
      %s27 = int_to_ptr.vmem [resolvable:$true] %s26
      %32 = dma.hbm_to_vmem [thread:$0]  %s1, 34560, %s27, [#allocation6], 3840, 3840, 240
    $region9: #{tpu_custom_call.1} parent=1 // pred_fallthru
      _
    // Predicated region
    $region10: #{tpu_custom_call.1} parent=1 // pred_check
      _
    $region11: #{tpu_custom_call.1} parent=1 // pred_check_branch
      %34 = sbr.rel (0) target = $region13
    $region12: #{tpu_custom_call.1} parent=1 // pred_region
      %s36 = ssub.s32 416, 416
      %37 = vsyncadd [#allocation6], %s36
      %s39 = sshll.u32 [#allocation7], 4
      %s40 = int_to_ptr.vmem [resolvable:$true] %s39
      %42 = dma.hbm_to_vmem [thread:$0]  %s2, 416, %s40, [#allocation6]
    $region13: #{tpu_custom_call.1} parent=1 // pred_fallthru
      _
    // Predicated region
    $region14: #{tpu_custom_call.1} parent=1 // pred_check
      _
    $region15: #{tpu_custom_call.1} parent=1 // pred_check_branch
      %44 = sbr.rel (0) target = $region17
    $region16: #{tpu_custom_call.1} parent=1 // pred_region
      %45 = dma.done [#allocation3], 128
    $region17: #{tpu_custom_call.1} parent=1 // pred_fallthru
      _
    // Predicated region
    $region18: #{tpu_custom_call.1} parent=1 // pred_check
      _
    $region19: #{tpu_custom_call.1} parent=1 // pred_check_branch
      %47 = sbr.rel (0) target = $region21
    $region20: #{tpu_custom_call.1} parent=1 // pred_region
      %48 = dma.done [#allocation6], 34560
    $region21: #{tpu_custom_call.1} parent=1 // pred_fallthru
      _
    // Predicated region
    $region22: #{tpu_custom_call.1} parent=1 // pred_check
      _
    $region23: #{tpu_custom_call.1} parent=1 // pred_check_branch
      %50 = sbr.rel (0) target = $region25
    $region24: #{tpu_custom_call.1} parent=1 // pred_region
      %51 = dma.done [#allocation6], 416
    $region25: #{tpu_custom_call.1} parent=1 // pred_fallthru
      _
    %v52 = vld [vmem:[#allocation2] sm:$0xff]
    %v53 = vld [vmem:[#allocation5] sm:$0xff]
    %v54 = vld [vmem:[#allocation5 + $0x8] sm:$0xff]
    %v55 = vld [vmem:[#allocation5 + $0x10] sm:$0xff]
    %v56 = vld [vmem:[#allocation5 + $0x18] sm:$0xff]
    %v57 = vld [vmem:[#allocation5 + $0x20] sm:$0xff]
    %v58 = vld [vmem:[#allocation5 + $0x28] sm:$0xff]
    %v59 = vld [vmem:[#allocation5 + $0x30] sm:$0xff]
    %v60 = vld [vmem:[#allocation5 + $0x38] sm:$0xff]
    %v61 = vld [vmem:[#allocation5 + $0x40] sm:$0xff]
    %v62 = vld [vmem:[#allocation5 + $0x48] sm:$0xff]
    %v63 = vld [vmem:[#allocation5 + $0x50] sm:$0xff]
    %v64 = vld [vmem:[#allocation5 + $0x58] sm:$0xff]
    %v65 = vld [vmem:[#allocation5 + $0x60] sm:$0xff]
    %v66 = vld [vmem:[#allocation5 + $0x68] sm:$0xff]
    %v67 = vld [vmem:[#allocation5 + $0x70] sm:$0xff]
    %v68 = vld [vmem:[#allocation5 + $0x78] sm:$0xff]
    %v69 = vld [vmem:[#allocation5 + $0x80] sm:$0xff]
    %v70 = vld [vmem:[#allocation5 + $0x88] sm:$0xff]
    %v71 = vld [vmem:[#allocation5 + $0x90] sm:$0xff]
    %v72 = vld [vmem:[#allocation5 + $0x98] sm:$0xff]
    %v73 = vld [vmem:[#allocation5 + $0xa0] sm:$0xff]
    %v74 = vld [vmem:[#allocation5 + $0xa8] sm:$0xff]
    %v75 = vld [vmem:[#allocation5 + $0xb0] sm:$0xff]
    %v76 = vld [vmem:[#allocation5 + $0xb8] sm:$0xff]
    %v77 = vld [vmem:[#allocation5 + $0xc0] sm:$0xff]
    %v78 = vld [vmem:[#allocation5 + $0xc8] sm:$0xff]
    %v79 = vld [vmem:[#allocation5 + $0xd0] sm:$0xff]
    %v80 = vld [vmem:[#allocation5 + $0xd8] sm:$0xff]
    %v81 = vld [vmem:[#allocation5 + $0xe0] sm:$0xff]
    %v82 = vld [vmem:[#allocation5 + $0xe8] sm:$0xff]
    %v83 = vld [vmem:[#allocation5 + $0xf0] sm:$0xff]
    %v84 = vld [vmem:[#allocation5 + $0xf8] sm:$0xff]
    %v85 = vld [vmem:[#allocation5 + $0x100] sm:$0xff]
    %v86 = vld [vmem:[#allocation5 + $0x108] sm:$0xff]
    %v87 = vld [vmem:[#allocation5 + $0x110] sm:$0xff]
    %v88 = vld [vmem:[#allocation5 + $0x118] sm:$0xff]
    %v89 = vld [vmem:[#allocation5 + $0x120] sm:$0xff]
    %v90 = vld [vmem:[#allocation5 + $0x128] sm:$0xff]
    %v91 = vld [vmem:[#allocation5 + $0x130] sm:$0xff]
    %v92 = vld [vmem:[#allocation5 + $0x138] sm:$0xff]
    %v93 = vld [vmem:[#allocation5 + $0x140] sm:$0xff]
    %v94 = vld [vmem:[#allocation5 + $0x148] sm:$0xff]
    %v95 = vld [vmem:[#allocation5 + $0x150] sm:$0xff]
    %v96 = vld [vmem:[#allocation5 + $0x158] sm:$0xff]
    %v97 = vld [vmem:[#allocation5 + $0x160] sm:$0xff]
    %v98 = vld [vmem:[#allocation5 + $0x168] sm:$0xff]
    %v99 = vld [vmem:[#allocation5 + $0x170] sm:$0xff]
    %v100 = vld [vmem:[#allocation5 + $0x178] sm:$0xff]
    %v101 = vld [vmem:[#allocation5 + $0x180] sm:$0xff]
    %v102 = vld [vmem:[#allocation5 + $0x188] sm:$0xff]
    %v103 = vld [vmem:[#allocation5 + $0x190] sm:$0xff]
    %v104 = vld [vmem:[#allocation5 + $0x198] sm:$0xff]
    %v105 = vld [vmem:[#allocation5 + $0x1a0] sm:$0xff]
    %v106 = vld [vmem:[#allocation5 + $0x1a8] sm:$0xff]
    %v107 = vld [vmem:[#allocation5 + $0x1b0] sm:$0xff]
    %v108 = vld [vmem:[#allocation5 + $0x1b8] sm:$0xff]
    %v109 = vld [vmem:[#allocation5 + $0x1c0] sm:$0xff]
    %v110 = vld [vmem:[#allocation5 + $0x1c8] sm:$0xff]
    %v111 = vld [vmem:[#allocation5 + $0x1d0] sm:$0xff]
    %v112 = vld [vmem:[#allocation5 + $0x1d8] sm:$0xff]
    %v113 = vld [vmem:[#allocation5 + $0x1e0] sm:$0xff]
    %v114 = vld [vmem:[#allocation5 + $0x1e8] sm:$0xff]
    %v115 = vld [vmem:[#allocation5 + $0x1f0] sm:$0xff]
    %v116 = vld [vmem:[#allocation5 + $0x1f8] sm:$0xff]
    %v117 = vld [vmem:[#allocation5 + $0x200] sm:$0xff]
    %v118 = vld [vmem:[#allocation5 + $0x208] sm:$0xff]
    %v119 = vld [vmem:[#allocation5 + $0x210] sm:$0xff]
    %v120 = vld [vmem:[#allocation5 + $0x218] sm:$0xff]
    %v121 = vld [vmem:[#allocation5 + $0x220] sm:$0xff]
    %v122 = vld [vmem:[#allocation5 + $0x228] sm:$0xff]
    %v123 = vld [vmem:[#allocation5 + $0x230] sm:$0xff]
    %v124 = vld [vmem:[#allocation5 + $0x238] sm:$0xff]
    %v125 = vld [vmem:[#allocation5 + $0x240] sm:$0xff]
    %v126 = vld [vmem:[#allocation5 + $0x248] sm:$0xff]
    %v127 = vld [vmem:[#allocation5 + $0x250] sm:$0xff]
    %v128 = vld [vmem:[#allocation5 + $0x258] sm:$0xff]
    %v129 = vld [vmem:[#allocation5 + $0x260] sm:$0xff]
    %v130 = vld [vmem:[#allocation5 + $0x268] sm:$0xff]
    %v131 = vld [vmem:[#allocation5 + $0x270] sm:$0xff]
    %v132 = vld [vmem:[#allocation5 + $0x278] sm:$0xff]
    %v133 = vld [vmem:[#allocation5 + $0x280] sm:$0xff]
    %v134 = vld [vmem:[#allocation5 + $0x288] sm:$0xff]
    %v135 = vld [vmem:[#allocation5 + $0x290] sm:$0xff]
    %v136 = vld [vmem:[#allocation5 + $0x298] sm:$0xff]
    %v137 = vld [vmem:[#allocation5 + $0x2a0] sm:$0xff]
    %v138 = vld [vmem:[#allocation5 + $0x2a8] sm:$0xff]
    %v139 = vld [vmem:[#allocation5 + $0x2b0] sm:$0xff]
    %v140 = vld [vmem:[#allocation5 + $0x2b8] sm:$0xff]
    %v141 = vld [vmem:[#allocation5 + $0x2c0] sm:$0xff]
    %v142 = vld [vmem:[#allocation5 + $0x2c8] sm:$0xff]
    %v143 = vld [vmem:[#allocation5 + $0x2d0] sm:$0xff]
    %v144 = vld [vmem:[#allocation5 + $0x2d8] sm:$0xff]
    %v145 = vld [vmem:[#allocation5 + $0x2e0] sm:$0xff]
    %v146 = vld [vmem:[#allocation5 + $0x2e8] sm:$0xff]
    %v147 = vld [vmem:[#allocation5 + $0x2f0] sm:$0xff]
    %v148 = vld [vmem:[#allocation5 + $0x2f8] sm:$0xff]
    %v149 = vld [vmem:[#allocation5 + $0x300] sm:$0xff]
    %v150 = vld [vmem:[#allocation5 + $0x308] sm:$0xff]
    %v151 = vld [vmem:[#allocation5 + $0x310] sm:$0xff]
    %v152 = vld [vmem:[#allocation5 + $0x318] sm:$0xff]
    %v153 = vld [vmem:[#allocation5 + $0x320] sm:$0xff]
    %v154 = vld [vmem:[#allocation5 + $0x328] sm:$0xff]
    %v155 = vld [vmem:[#allocation5 + $0x330] sm:$0xff]
    %v156 = vld [vmem:[#allocation5 + $0x338] sm:$0xff]
    %v157 = vld [vmem:[#allocation5 + $0x340] sm:$0xff]
    %v158 = vld [vmem:[#allocation5 + $0x348] sm:$0xff]
    %v159 = vld [vmem:[#allocation5 + $0x350] sm:$0xff]
    %v160 = vld [vmem:[#allocation5 + $0x358] sm:$0xff]
    %v161 = vld [vmem:[#allocation5 + $0x360] sm:$0xff]
    %v162 = vld [vmem:[#allocation5 + $0x368] sm:$0xff]
    %v163 = vld [vmem:[#allocation5 + $0x370] sm:$0xff]
    %v164 = vld [vmem:[#allocation5 + $0x378] sm:$0xff]
    %v165 = vld [vmem:[#allocation5 + $0x380] sm:$0xff]
    %v166 = vld [vmem:[#allocation5 + $0x388] sm:$0xff]
    %v167 = vld [vmem:[#allocation5 + $0x390] sm:$0xff]
    %v168 = vld [vmem:[#allocation5 + $0x398] sm:$0xff]
    %v169 = vld [vmem:[#allocation5 + $0x3a0] sm:$0xff]
    %v170 = vld [vmem:[#allocation5 + $0x3a8] sm:$0xff]
    %v171 = vld [vmem:[#allocation5 + $0x3b0] sm:$0xff]
    %v172 = vld [vmem:[#allocation5 + $0x3b8] sm:$0xff]
    %v173 = vld [vmem:[#allocation5 + $0x3c0] sm:$0xff]
    %v174 = vld [vmem:[#allocation5 + $0x3c8] sm:$0xff]
    %v175 = vld [vmem:[#allocation5 + $0x3d0] sm:$0xff]
    %v176 = vld [vmem:[#allocation5 + $0x3d8] sm:$0xff]
    %v177 = vld [vmem:[#allocation5 + $0x3e0] sm:$0xff]
    %v178 = vld [vmem:[#allocation5 + $0x3e8] sm:$0xff]
    %v179 = vld [vmem:[#allocation5 + $0x3f0] sm:$0xff]
    %v180 = vld [vmem:[#allocation5 + $0x3f8] sm:$0xff]
    %v181 = vld [vmem:[#allocation5 + $0x400] sm:$0xff]
    %v182 = vld [vmem:[#allocation5 + $0x408] sm:$0xff]
    %v183 = vld [vmem:[#allocation5 + $0x410] sm:$0xff]
    %v184 = vld [vmem:[#allocation5 + $0x418] sm:$0xff]
    %v185 = vld [vmem:[#allocation5 + $0x420] sm:$0xff]
    %v186 = vld [vmem:[#allocation5 + $0x428] sm:$0xff]
    %v187 = vld [vmem:[#allocation5 + $0x430] sm:$0xff]
    %v188 = vld [vmem:[#allocation5 + $0x438] sm:$0xff]
    %v189 = vld [vmem:[#allocation5 + $0x440] sm:$0xff]
    %v190 = vld [vmem:[#allocation5 + $0x448] sm:$0xff]
    %v191 = vld [vmem:[#allocation5 + $0x450] sm:$0xff]
    %v192 = vld [vmem:[#allocation5 + $0x458] sm:$0xff]
    %v193 = vld [vmem:[#allocation5 + $0x460] sm:$0xff]
    %v194 = vld [vmem:[#allocation5 + $0x468] sm:$0xff]
    %v195 = vld [vmem:[#allocation5 + $0x470] sm:$0xff]
    %v196 = vld [vmem:[#allocation5 + $0x478] sm:$0xff]
    %v197 = vld [vmem:[#allocation5 + $0x480] sm:$0xff]
    %v198 = vld [vmem:[#allocation5 + $0x488] sm:$0xff]
    %v199 = vld [vmem:[#allocation5 + $0x490] sm:$0xff]
    %v200 = vld [vmem:[#allocation5 + $0x498] sm:$0xff]
    %v201 = vld [vmem:[#allocation5 + $0x4a0] sm:$0xff]
    %v202 = vld [vmem:[#allocation5 + $0x4a8] sm:$0xff]
    %v203 = vld [vmem:[#allocation5 + $0x4b0] sm:$0xff]
    %v204 = vld [vmem:[#allocation5 + $0x4b8] sm:$0xff]
    %v205 = vld [vmem:[#allocation5 + $0x4c0] sm:$0xff]
    %v206 = vld [vmem:[#allocation5 + $0x4c8] sm:$0xff]
    %v207 = vld [vmem:[#allocation5 + $0x4d0] sm:$0xff]
    %v208 = vld [vmem:[#allocation5 + $0x4d8] sm:$0xff]
    %v209 = vld [vmem:[#allocation5 + $0x4e0] sm:$0xff]
    %v210 = vld [vmem:[#allocation5 + $0x4e8] sm:$0xff]
    %v211 = vld [vmem:[#allocation5 + $0x4f0] sm:$0xff]
    %v212 = vld [vmem:[#allocation5 + $0x4f8] sm:$0xff]
    %v213 = vld [vmem:[#allocation5 + $0x500] sm:$0xff]
    %v214 = vld [vmem:[#allocation5 + $0x508] sm:$0xff]
    %v215 = vld [vmem:[#allocation5 + $0x510] sm:$0xff]
    %v216 = vld [vmem:[#allocation5 + $0x518] sm:$0xff]
    %v217 = vld [vmem:[#allocation5 + $0x520] sm:$0xff]
    %v218 = vld [vmem:[#allocation5 + $0x528] sm:$0xff]
    %v219 = vld [vmem:[#allocation5 + $0x530] sm:$0xff]
    %v220 = vld [vmem:[#allocation5 + $0x538] sm:$0xff]
    %v221 = vld [vmem:[#allocation5 + $0x540] sm:$0xff]
    %v222 = vld [vmem:[#allocation5 + $0x548] sm:$0xff]
    %v223 = vld [vmem:[#allocation5 + $0x550] sm:$0xff]
    %v224 = vld [vmem:[#allocation5 + $0x558] sm:$0xff]
    %v225 = vld [vmem:[#allocation5 + $0x560] sm:$0xff]
    %v226 = vld [vmem:[#allocation5 + $0x568] sm:$0xff]
    %v227 = vld [vmem:[#allocation5 + $0x570] sm:$0xff]
    %v228 = vld [vmem:[#allocation5 + $0x578] sm:$0xff]
    %v229 = vld [vmem:[#allocation5 + $0x580] sm:$0xff]
    %v230 = vld [vmem:[#allocation5 + $0x588] sm:$0xff]
    %v231 = vld [vmem:[#allocation5 + $0x590] sm:$0xff]
    %v232 = vld [vmem:[#allocation5 + $0x598] sm:$0xff]
    %v233 = vld [vmem:[#allocation5 + $0x5a0] sm:$0xff]
    %v234 = vld [vmem:[#allocation5 + $0x5a8] sm:$0xff]
    %v235 = vld [vmem:[#allocation5 + $0x5b0] sm:$0xff]
    %v236 = vld [vmem:[#allocation5 + $0x5b8] sm:$0xff]
    %v237 = vld [vmem:[#allocation5 + $0x5c0] sm:$0xff]
    %v238 = vld [vmem:[#allocation5 + $0x5c8] sm:$0xff]
    %v239 = vld [vmem:[#allocation5 + $0x5d0] sm:$0xff]
    %v240 = vld [vmem:[#allocation5 + $0x5d8] sm:$0xff]
    %v241 = vld [vmem:[#allocation5 + $0x5e0] sm:$0xff]
    %v242 = vld [vmem:[#allocation5 + $0x5e8] sm:$0xff]
    %v243 = vld [vmem:[#allocation5 + $0x5f0] sm:$0xff]
    %v244 = vld [vmem:[#allocation5 + $0x5f8] sm:$0xff]
    %v245 = vld [vmem:[#allocation5 + $0x600] sm:$0xff]
    %v246 = vld [vmem:[#allocation5 + $0x608] sm:$0xff]
    %v247 = vld [vmem:[#allocation5 + $0x610] sm:$0xff]
    %v248 = vld [vmem:[#allocation5 + $0x618] sm:$0xff]
    %v249 = vld [vmem:[#allocation5 + $0x620] sm:$0xff]
    %v250 = vld [vmem:[#allocation5 + $0x628] sm:$0xff]
    %v251 = vld [vmem:[#allocation5 + $0x630] sm:$0xff]
    %v252 = vld [vmem:[#allocation5 + $0x638] sm:$0xff]
    %v253 = vld [vmem:[#allocation5 + $0x640] sm:$0xff]
    %v254 = vld [vmem:[#allocation5 + $0x648] sm:$0xff]
    %v255 = vld [vmem:[#allocation5 + $0x650] sm:$0xff]
    %v256 = vld [vmem:[#allocation5 + $0x658] sm:$0xff]
    %v257 = vld [vmem:[#allocation5 + $0x660] sm:$0xff]
    %v258 = vld [vmem:[#allocation5 + $0x668] sm:$0xff]
    %v259 = vld [vmem:[#allocation5 + $0x670] sm:$0xff]
    %v260 = vld [vmem:[#allocation5 + $0x678] sm:$0xff]
    %v261 = vld [vmem:[#allocation5 + $0x680] sm:$0xff]
    %v262 = vld [vmem:[#allocation5 + $0x688] sm:$0xff]
    %v263 = vld [vmem:[#allocation5 + $0x690] sm:$0xff]
    %v264 = vld [vmem:[#allocation5 + $0x698] sm:$0xff]
    %v265 = vld [vmem:[#allocation5 + $0x6a0] sm:$0xff]
    %v266 = vld [vmem:[#allocation5 + $0x6a8] sm:$0xff]
    %v267 = vld [vmem:[#allocation5 + $0x6b0] sm:$0xff]
    %v268 = vld [vmem:[#allocation5 + $0x6b8] sm:$0xff]
    %v269 = vld [vmem:[#allocation5 + $0x6c0] sm:$0xff]
    %v270 = vld [vmem:[#allocation5 + $0x6c8] sm:$0xff]
    %v271 = vld [vmem:[#allocation5 + $0x6d0] sm:$0xff]
    %v272 = vld [vmem:[#allocation5 + $0x6d8] sm:$0xff]
    %v273 = vld [vmem:[#allocation5 + $0x6e0] sm:$0xff]
    %v274 = vld [vmem:[#allocation5 + $0x6e8] sm:$0xff]
    %v275 = vld [vmem:[#allocation5 + $0x6f0] sm:$0xff]
    %v276 = vld [vmem:[#allocation5 + $0x6f8] sm:$0xff]
    %v277 = vld [vmem:[#allocation5 + $0x700] sm:$0xff]
    %v278 = vld [vmem:[#allocation5 + $0x708] sm:$0xff]
    %v279 = vld [vmem:[#allocation5 + $0x710] sm:$0xff]
    %v280 = vld [vmem:[#allocation5 + $0x718] sm:$0xff]
    %v281 = vld [vmem:[#allocation5 + $0x720] sm:$0xff]
    %v282 = vld [vmem:[#allocation5 + $0x728] sm:$0xff]
    %v283 = vld [vmem:[#allocation5 + $0x730] sm:$0xff]
    %v284 = vld [vmem:[#allocation5 + $0x738] sm:$0xff]
    %v285 = vld [vmem:[#allocation5 + $0x740] sm:$0xff]
    %v286 = vld [vmem:[#allocation5 + $0x748] sm:$0xff]
    %v287 = vld [vmem:[#allocation5 + $0x750] sm:$0xff]
    %v288 = vld [vmem:[#allocation5 + $0x758] sm:$0xff]
    %v289 = vld [vmem:[#allocation5 + $0x760] sm:$0xff]
    %v290 = vld [vmem:[#allocation5 + $0x768] sm:$0xff]
    %v291 = vld [vmem:[#allocation5 + $0x770] sm:$0xff]
    %v292 = vld [vmem:[#allocation5 + $0x778] sm:$0xff]
    %v293 = vld [vmem:[#allocation5 + $0x780] sm:$0xff]
    %v294 = vld [vmem:[#allocation5 + $0x788] sm:$0xff]
    %v295 = vld [vmem:[#allocation5 + $0x790] sm:$0xff]
    %v296 = vld [vmem:[#allocation5 + $0x798] sm:$0xff]
    %v297 = vld [vmem:[#allocation5 + $0x7a0] sm:$0xff]
    %v298 = vld [vmem:[#allocation5 + $0x7a8] sm:$0xff]
    %v299 = vld [vmem:[#allocation5 + $0x7b0] sm:$0xff]
    %v300 = vld [vmem:[#allocation5 + $0x7b8] sm:$0xff]
    %v301 = vld [vmem:[#allocation5 + $0x7c0] sm:$0xff]
    %v302 = vld [vmem:[#allocation5 + $0x7c8] sm:$0xff]
    %v303 = vld [vmem:[#allocation5 + $0x7d0] sm:$0xff]
    %v304 = vld [vmem:[#allocation5 + $0x7d8] sm:$0xff]
    %v305 = vld [vmem:[#allocation5 + $0x7e0] sm:$0xff]
    %v306 = vld [vmem:[#allocation5 + $0x7e8] sm:$0xff]
    %v307 = vld [vmem:[#allocation5 + $0x7f0] sm:$0xff]
    %v308 = vld [vmem:[#allocation5 + $0x7f8] sm:$0xff]
    %v309 = vld [vmem:[#allocation5 + $0x800] sm:$0xff]
    %v310 = vld [vmem:[#allocation5 + $0x808] sm:$0xff]
    %v311 = vld [vmem:[#allocation5 + $0x810] sm:$0xff]
    %v312 = vld [vmem:[#allocation5 + $0x818] sm:$0xff]
    %v313 = vld [vmem:[#allocation5 + $0x820] sm:$0xff]
    %v314 = vld [vmem:[#allocation5 + $0x828] sm:$0xff]
    %v315 = vld [vmem:[#allocation5 + $0x830] sm:$0xff]
    %v316 = vld [vmem:[#allocation5 + $0x838] sm:$0xff]
    %v317 = vld [vmem:[#allocation5 + $0x840] sm:$0xff]
    %v318 = vld [vmem:[#allocation5 + $0x848] sm:$0xff]
    %v319 = vld [vmem:[#allocation5 + $0x850] sm:$0xff]
    %v320 = vld [vmem:[#allocation5 + $0x858] sm:$0xff]
    %v321 = vld [vmem:[#allocation5 + $0x860] sm:$0xff]
    %v322 = vld [vmem:[#allocation5 + $0x868] sm:$0xff]
    %vm323 = vcmask 588800
    %v325 = vsel %vm323, %v52, 0
    %v327 = vand.u32 %v54, 4294901760
    %328 = vmatprep.subr.mxu0 %v327
    %v329 = vand.u32 %v53, 4294901760
    %330 = vmatpush1.msra.mxu0 %v329
    %v331 = vand.u32 %v84, 4294901760
    %332 = vmatprep.subr.mxu0 %v331
    %v333 = vand.u32 %v83, 4294901760
    %334 = vmatpush1.msra.mxu0 %v333
    %v335 = vand.u32 %v114, 4294901760
    %336 = vmatprep.subr.mxu0 %v335
    %v337 = vand.u32 %v113, 4294901760
    %338 = vmatpush1.msra.mxu0 %v337
    %v339 = vand.u32 %v144, 4294901760
    %340 = vmatprep.subr.mxu0 %v339
    %v341 = vand.u32 %v143, 4294901760
    %342 = vmatpush1.msra.mxu0 %v341
    %v343 = vand.u32 %v174, 4294901760
    %344 = vmatprep.subr.mxu0 %v343
    %v345 = vand.u32 %v173, 4294901760
    %346 = vmatpush1.msra.mxu0 %v345
    %v347 = vand.u32 %v204, 4294901760
    %348 = vmatprep.subr.mxu0 %v347
    %v349 = vand.u32 %v203, 4294901760
    %350 = vmatpush1.msra.mxu0 %v349
    %v351 = vand.u32 %v234, 4294901760
    %352 = vmatprep.subr.mxu0 %v351
    %v353 = vand.u32 %v233, 4294901760
    %354 = vmatpush1.msra.mxu0 %v353
    %v355 = vand.u32 %v264, 4294901760
    %356 = vmatprep.subr.mxu0 %v355
    %v357 = vand.u32 %v263, 4294901760
    %358 = vmatpush1.msra.mxu0 %v357
    %v359 = vand.u32 %v294, 4294901760
    %360 = vmatprep.subr.mxu0 %v359
    %v361 = vand.u32 %v293, 4294901760
    %362 = vmatpush1.msra.mxu0 %v361
    %363 = vmatprep.subr.mxu0 0.0
    %364 = vmatpush1.msra.mxu0 0.0
    %365 = vmatprep.subr.mxu0 0.0
    %366 = vmatpush1.msra.mxu0 0.0
    %367 = vmatprep.subr.mxu0 0.0
    %368 = vmatpush1.msra.mxu0 0.0
    %369 = vmatprep.subr.mxu0 0.0
    %370 = vmatpush1.msra.mxu0 0.0
    %371 = vmatprep.subr.mxu0 0.0
    %372 = vmatpush1.msra.mxu0 0.0
    %373 = vmatprep.subr.mxu0 0.0
    %374 = vmatpush1.msra.mxu0 0.0
    %375 = vmatprep.subr.mxu0 0.0
    %376 = vmatpush1.msra.mxu0 0.0
    %377 = vmatprep.subr.mxu0 0.0
    %378 = vmatpush1.msra.mxu0 0.0
    %379 = vmatprep.subr.mxu0 0.0
    %380 = vmatpush1.msra.mxu0 0.0
    %381 = vmatprep.subr.mxu0 0.0
    %382 = vmatpush1.msra.mxu0 0.0
    %383 = vmatprep.subr.mxu0 0.0
    %384 = vmatpush1.msra.mxu0 0.0
    %385 = vmatprep.subr.mxu0 0.0
    %386 = vmatpush1.msra.mxu0 0.0
    %387 = vmatprep.subr.mxu0 0.0
    %388 = vmatpush1.msra.mxu0 0.0
    %389 = vmatprep.subr.mxu0 0.0
    %390 = vmatpush1.msra.mxu0 0.0
    %391 = vmatprep.subr.mxu0 0.0
    %392 = vmatpush1.msra.mxu0 0.0
    %393 = vmatprep.subr.mxu0 0.0
    %394 = vmatpush1.msra.mxu0 0.0
    %395 = vmatprep.subr.mxu0 0.0
    %396 = vmatpush1.msra.mxu0 0.0
    %397 = vmatprep.subr.mxu0 0.0
    %398 = vmatpush1.msra.mxu0 0.0
    %399 = vmatprep.subr.mxu0 0.0
    %400 = vmatpush1.msra.mxu0 0.0
    %401 = vmatprep.subr.mxu0 0.0
    %402 = vmatpush1.msra.mxu0 0.0
    %403 = vmatprep.subr.mxu0 0.0
    %404 = vmatpush1.msra.mxu0 0.0
    %405 = vmatprep.subr.mxu0 0.0
    %406 = vmatpush1.msra.mxu0 0.0
    %407 = vmatprep.subr.mxu0 0.0
    %408 = vmatpush1.msra.mxu0 0.0
    %409 = vmatprep.mubr.f32.mxu0 0.0
    %v410 = vand.u32 %v325, 4294901760
    %v411 = vsub.f32 %v325, %v410
    %v412 = vand.u32 %v411, 4294901760
    %v413 = vsub.f32 %v411, %v412
    %v414 = vand.u32 %v413, 4294901760
    %415 = vmatmul.mubr.f32.gmra.mrb[0].mxu0 %v414
    %v416 = vpop.f32.mrb[0].mxu0
    %v417 = vadd.f32 0.0, %v416
    %v418 = vpop.f32.mrb[0].mxu0
    %v419 = vadd.f32 0.0, %v418
    %420 = vdwg.mxu0
    %v421 = vand.u32 %v54, 4294901760
    %v422 = vsub.f32 %v54, %v421
    %v423 = vand.u32 %v422, 4294901760
    %v424 = vsub.f32 %v422, %v423
    %v425 = vand.u32 %v424, 4294901760
    %426 = vmatprep.subr.mxu0 %v425
    %v427 = vand.u32 %v53, 4294901760
    %v428 = vsub.f32 %v53, %v427
    %v429 = vand.u32 %v428, 4294901760
    %v430 = vsub.f32 %v428, %v429
    %v431 = vand.u32 %v430, 4294901760
    %432 = vmatpush1.msra.mxu0 %v431
    %v433 = vand.u32 %v84, 4294901760
    %v434 = vsub.f32 %v84, %v433
    %v435 = vand.u32 %v434, 4294901760
    %v436 = vsub.f32 %v434, %v435
    %v437 = vand.u32 %v436, 4294901760
    %438 = vmatprep.subr.mxu0 %v437
    %v439 = vand.u32 %v83, 4294901760
    %v440 = vsub.f32 %v83, %v439
    %v441 = vand.u32 %v440, 4294901760
    %v442 = vsub.f32 %v440, %v441
    %v443 = vand.u32 %v442, 4294901760
    %444 = vmatpush1.msra.mxu0 %v443
    %v445 = vand.u32 %v114, 4294901760
    %v446 = vsub.f32 %v114, %v445
    %v447 = vand.u32 %v446, 4294901760
    %v448 = vsub.f32 %v446, %v447
    %v449 = vand.u32 %v448, 4294901760
    %450 = vmatprep.subr.mxu0 %v449
    %v451 = vand.u32 %v113, 4294901760
    %v452 = vsub.f32 %v113, %v451
    %v453 = vand.u32 %v452, 4294901760
    %v454 = vsub.f32 %v452, %v453
    %v455 = vand.u32 %v454, 4294901760
    %456 = vmatpush1.msra.mxu0 %v455
    %v457 = vand.u32 %v144, 4294901760
    %v458 = vsub.f32 %v144, %v457
    %v459 = vand.u32 %v458, 4294901760
    %v460 = vsub.f32 %v458, %v459
    %v461 = vand.u32 %v460, 4294901760
    %462 = vmatprep.subr.mxu0 %v461
    %v463 = vand.u32 %v143, 4294901760
    %v464 = vsub.f32 %v143, %v463
    %v465 = vand.u32 %v464, 4294901760
    %v466 = vsub.f32 %v464, %v465
    %v467 = vand.u32 %v466, 4294901760
    %468 = vmatpush1.msra.mxu0 %v467
    %v469 = vand.u32 %v174, 4294901760
    %v470 = vsub.f32 %v174, %v469
    %v471 = vand.u32 %v470, 4294901760
    %v472 = vsub.f32 %v470, %v471
    %v473 = vand.u32 %v472, 4294901760
    %474 = vmatprep.subr.mxu0 %v473
    %v475 = vand.u32 %v173, 4294901760
    %v476 = vsub.f32 %v173, %v475
    %v477 = vand.u32 %v476, 4294901760
    %v478 = vsub.f32 %v476, %v477
    %v479 = vand.u32 %v478, 4294901760
    %480 = vmatpush1.msra.mxu0 %v479
    %v481 = vand.u32 %v204, 4294901760
    %v482 = vsub.f32 %v204, %v481
    %v483 = vand.u32 %v482, 4294901760
    %v484 = vsub.f32 %v482, %v483
    %v485 = vand.u32 %v484, 4294901760
    %486 = vmatprep.subr.mxu0 %v485
    %v487 = vand.u32 %v203, 4294901760
    %v488 = vsub.f32 %v203, %v487
    %v489 = vand.u32 %v488, 4294901760
    %v490 = vsub.f32 %v488, %v489
    %v491 = vand.u32 %v490, 4294901760
    %492 = vmatpush1.msra.mxu0 %v491
    %v493 = vand.u32 %v234, 4294901760
    %v494 = vsub.f32 %v234, %v493
    %v495 = vand.u32 %v494, 4294901760
    %v496 = vsub.f32 %v494, %v495
    %v497 = vand.u32 %v496, 4294901760
    %498 = vmatprep.subr.mxu0 %v497
    %v499 = vand.u32 %v233, 4294901760
    %v500 = vsub.f32 %v233, %v499
    %v501 = vand.u32 %v500, 4294901760
    %v502 = vsub.f32 %v500, %v501
    %v503 = vand.u32 %v502, 4294901760
    %504 = vmatpush1.msra.mxu0 %v503
    %v505 = vand.u32 %v264, 4294901760
    %v506 = vsub.f32 %v264, %v505
    %v507 = vand.u32 %v506, 4294901760
    %v508 = vsub.f32 %v506, %v507
    %v509 = vand.u32 %v508, 4294901760
    %510 = vmatprep.subr.mxu0 %v509
    %v511 = vand.u32 %v263, 4294901760
    %v512 = vsub.f32 %v263, %v511
    %v513 = vand.u32 %v512, 4294901760
    %v514 = vsub.f32 %v512, %v513
    %v515 = vand.u32 %v514, 4294901760
    %516 = vmatpush1.msra.mxu0 %v515
    %v517 = vand.u32 %v294, 4294901760
    %v518 = vsub.f32 %v294, %v517
    %v519 = vand.u32 %v518, 4294901760
    %v520 = vsub.f32 %v518, %v519
    %v521 = vand.u32 %v520, 4294901760
    %522 = vmatprep.subr.mxu0 %v521
    %v523 = vand.u32 %v293, 4294901760
    %v524 = vsub.f32 %v293, %v523
    %v525 = vand.u32 %v524, 4294901760
    %v526 = vsub.f32 %v524, %v525
    %v527 = vand.u32 %v526, 4294901760
    %528 = vmatpush1.msra.mxu0 %v527
    %529 = vmatprep.subr.mxu0 0.0
    %530 = vmatpush1.msra.mxu0 0.0
    %531 = vmatprep.subr.mxu0 0.0
    %532 = vmatpush1.msra.mxu0 0.0
    %533 = vmatprep.subr.mxu0 0.0
    %534 = vmatpush1.msra.mxu0 0.0
    %535 = vmatprep.subr.mxu0 0.0
    %536 = vmatpush1.msra.mxu0 0.0
    %537 = vmatprep.subr.mxu0 0.0
    %538 = vmatpush1.msra.mxu0 0.0
    %539 = vmatprep.subr.mxu0 0.0
    %540 = vmatpush1.msra.mxu0 0.0
    %541 = vmatprep.subr.mxu0 0.0
    %542 = vmatpush1.msra.mxu0 0.0
    %543 = vmatprep.subr.mxu0 0.0
    %544 = vmatpush1.msra.mxu0 0.0
    %545 = vmatprep.subr.mxu0 0.0
    %546 = vmatpush1.msra.mxu0 0.0
    %547 = vmatprep.subr.mxu0 0.0
    %548 = vmatpush1.msra.mxu0 0.0
    %549 = vmatprep.subr.mxu0 0.0
    %550 = vmatpush1.msra.mxu0 0.0
    %551 = vmatprep.subr.mxu0 0.0
    %552 = vmatpush1.msra.mxu0 0.0
    %553 = vmatprep.subr.mxu0 0.0
    %554 = vmatpush1.msra.mxu0 0.0
    %555 = vmatprep.subr.mxu0 0.0
    %556 = vmatpush1.msra.mxu0 0.0
    %557 = vmatprep.subr.mxu0 0.0
    %558 = vmatpush1.msra.mxu0 0.0
    %559 = vmatprep.subr.mxu0 0.0
    %560 = vmatpush1.msra.mxu0 0.0
    %561 = vmatprep.subr.mxu0 0.0
    %562 = vmatpush1.msra.mxu0 0.0
    %563 = vmatprep.subr.mxu0 0.0
    %564 = vmatpush1.msra.mxu0 0.0
    %565 = vmatprep.subr.mxu0 0.0
    %566 = vmatpush1.msra.mxu0 0.0
    %567 = vmatprep.subr.mxu0 0.0
    %568 = vmatpush1.msra.mxu0 0.0
    %569 = vmatprep.subr.mxu0 0.0
    %570 = vmatpush1.msra.mxu0 0.0
    %571 = vmatprep.subr.mxu0 0.0
    %572 = vmatpush1.msra.mxu0 0.0
    %573 = vmatprep.subr.mxu0 0.0
    %574 = vmatpush1.msra.mxu0 0.0
    %575 = vmatprep.mubr.f32.mxu0 0.0
    %v576 = vand.u32 %v325, 4294901760
    %577 = vmatmul.mubr.f32.gmra.mrb[0].mxu0 %v576
    %v578 = vpop.f32.mrb[0].mxu0
    %v579 = vadd.f32 %v417, %v578
    %v580 = vpop.f32.mrb[0].mxu0
    %v581 = vadd.f32 %v419, %v580
    %582 = vdwg.mxu0
    %v583 = vand.u32 %v54, 4294901760
    %v584 = vsub.f32 %v54, %v583
    %585 = vmatprep.subr.mxu0 %v584
    %v586 = vand.u32 %v53, 4294901760
    %v587 = vsub.f32 %v53, %v586
    %588 = vmatpush1.msra.mxu0 %v587
    %v589 = vand.u32 %v84, 4294901760
    %v590 = vsub.f32 %v84, %v589
    %591 = vmatprep.subr.mxu0 %v590
    %v592 = vand.u32 %v83, 4294901760
    %v593 = vsub.f32 %v83, %v592
    %594 = vmatpush1.msra.mxu0 %v593
    %v595 = vand.u32 %v114, 4294901760
    %v596 = vsub.f32 %v114, %v595
    %597 = vmatprep.subr.mxu0 %v596
    %v598 = vand.u32 %v113, 4294901760
    %v599 = vsub.f32 %v113, %v598
    %600 = vmatpush1.msra.mxu0 %v599
    %v601 = vand.u32 %v144, 4294901760
    %v602 = vsub.f32 %v144, %v601
    %603 = vmatprep.subr.mxu0 %v602
    %v604 = vand.u32 %v143, 4294901760
    %v605 = vsub.f32 %v143, %v604
    %606 = vmatpush1.msra.mxu0 %v605
    %v607 = vand.u32 %v174, 4294901760
    %v608 = vsub.f32 %v174, %v607
    %609 = vmatprep.subr.mxu0 %v608
    %v610 = vand.u32 %v173, 4294901760
    %v611 = vsub.f32 %v173, %v610
    %612 = vmatpush1.msra.mxu0 %v611
    %v613 = vand.u32 %v204, 4294901760
    %v614 = vsub.f32 %v204, %v613
    %615 = vmatprep.subr.mxu0 %v614
    %v616 = vand.u32 %v203, 4294901760
    %v617 = vsub.f32 %v203, %v616
    %618 = vmatpush1.msra.mxu0 %v617
    %v619 = vand.u32 %v234, 4294901760
    %v620 = vsub.f32 %v234, %v619
    %621 = vmatprep.subr.mxu0 %v620
    %v622 = vand.u32 %v233, 4294901760
    %v623 = vsub.f32 %v233, %v622
    %624 = vmatpush1.msra.mxu0 %v623
    %v625 = vand.u32 %v264, 4294901760
    %v626 = vsub.f32 %v264, %v625
    %627 = vmatprep.subr.mxu0 %v626
    %v628 = vand.u32 %v263, 4294901760
    %v629 = vsub.f32 %v263, %v628
    %630 = vmatpush1.msra.mxu0 %v629
    %v631 = vand.u32 %v294, 4294901760
    %v632 = vsub.f32 %v294, %v631
    %633 = vmatprep.subr.mxu0 %v632
    %v634 = vand.u32 %v293, 4294901760
    %v635 = vsub.f32 %v293, %v634
    %636 = vmatpush1.msra.mxu0 %v635
    %637 = vmatprep.subr.mxu0 0.0
    %638 = vmatpush1.msra.mxu0 0.0
    %639 = vmatprep.subr.mxu0 0.0
    %640 = vmatpush1.msra.mxu0 0.0
    %641 = vmatprep.subr.mxu0 0.0
    %642 = vmatpush1.msra.mxu0 0.0
    %643 = vmatprep.subr.mxu0 0.0
    %644 = vmatpush1.msra.mxu0 0.0
    %645 = vmatprep.subr.mxu0 0.0
    %646 = vmatpush1.msra.mxu0 0.0
    %647 = vmatprep.subr.mxu0 0.0
    %648 = vmatpush1.msra.mxu0 0.0
    %649 = vmatprep.subr.mxu0 0.0
    %650 = vmatpush1.msra.mxu0 0.0
    %651 = vmatprep.subr.mxu0 0.0
    %652 = vmatpush1.msra.mxu0 0.0
    %653 = vmatprep.subr.mxu0 0.0
    %654 = vmatpush1.msra.mxu0 0.0
    %655 = vmatprep.subr.mxu0 0.0
    %656 = vmatpush1.msra.mxu0 0.0
    %657 = vmatprep.subr.mxu0 0.0
    %658 = vmatpush1.msra.mxu0 0.0
    %659 = vmatprep.subr.mxu0 0.0
    %660 = vmatpush1.msra.mxu0 0.0
    %661 = vmatprep.subr.mxu0 0.0
    %662 = vmatpush1.msra.mxu0 0.0
    %663 = vmatprep.subr.mxu0 0.0
    %664 = vmatpush1.msra.mxu0 0.0
    %665 = vmatprep.subr.mxu0 0.0
    %666 = vmatpush1.msra.mxu0 0.0
    %667 = vmatprep.subr.mxu0 0.0
    %668 = vmatpush1.msra.mxu0 0.0
    %669 = vmatprep.subr.mxu0 0.0
    %670 = vmatpush1.msra.mxu0 0.0
    %671 = vmatprep.subr.mxu0 0.0
    %672 = vmatpush1.msra.mxu0 0.0
    %673 = vmatprep.subr.mxu0 0.0
    %674 = vmatpush1.msra.mxu0 0.0
    %675 = vmatprep.subr.mxu0 0.0
    %676 = vmatpush1.msra.mxu0 0.0
    %677 = vmatprep.subr.mxu0 0.0
    %678 = vmatpush1.msra.mxu0 0.0
    %679 = vmatprep.subr.mxu0 0.0
    %680 = vmatpush1.msra.mxu0 0.0
    %681 = vmatprep.subr.mxu0 0.0
    %682 = vmatpush1.msra.mxu0 0.0
    %683 = vmatprep.mubr.f32.mxu0 0.0
    %v684 = vand.u32 %v325, 4294901760
    %v685 = vsub.f32 %v325, %v684
    %686 = vmatmul.mubr.f32.gmra.mrb[0].mxu0 %v685
    %v687 = vpop.f32.mrb[0].mxu0
    %v688 = vadd.f32 %v579, %v687
    %v689 = vpop.f32.mrb[0].mxu0
    %v690 = vadd.f32 %v581, %v689
    %691 = vdwg.mxu0
    %v692 = vand.u32 %v54, 4294901760
    %693 = vmatprep.subr.mxu0 %v692
    %v694 = vand.u32 %v53, 4294901760
    %695 = vmatpush1.msra.mxu0 %v694
    %v696 = vand.u32 %v84, 4294901760
    %697 = vmatprep.subr.mxu0 %v696
    %v698 = vand.u32 %v83, 4294901760
    %699 = vmatpush1.msra.mxu0 %v698
    %v700 = vand.u32 %v114, 4294901760
    %701 = vmatprep.subr.mxu0 %v700
    %v702 = vand.u32 %v113, 4294901760
    %703 = vmatpush1.msra.mxu0 %v702
    %v704 = vand.u32 %v144, 4294901760
    %705 = vmatprep.subr.mxu0 %v704
    %v706 = vand.u32 %v143, 4294901760
    %707 = vmatpush1.msra.mxu0 %v706
    %v708 = vand.u32 %v174, 4294901760
    %709 = vmatprep.subr.mxu0 %v708
    %v710 = vand.u32 %v173, 4294901760
    %711 = vmatpush1.msra.mxu0 %v710
    %v712 = vand.u32 %v204, 4294901760
    %713 = vmatprep.subr.mxu0 %v712
    %v714 = vand.u32 %v203, 4294901760
    %715 = vmatpush1.msra.mxu0 %v714
    %v716 = vand.u32 %v234, 4294901760
    %717 = vmatprep.subr.mxu0 %v716
    %v718 = vand.u32 %v233, 4294901760
    %719 = vmatpush1.msra.mxu0 %v718
    %v720 = vand.u32 %v264, 4294901760
    %721 = vmatprep.subr.mxu0 %v720
    %v722 = vand.u32 %v263, 4294901760
    %723 = vmatpush1.msra.mxu0 %v722
    %v724 = vand.u32 %v294, 4294901760
    %725 = vmatprep.subr.mxu0 %v724
    %v726 = vand.u32 %v293, 4294901760
    %727 = vmatpush1.msra.mxu0 %v726
    %728 = vmatprep.subr.mxu0 0.0
    %729 = vmatpush1.msra.mxu0 0.0
    %730 = vmatprep.subr.mxu0 0.0
    %731 = vmatpush1.msra.mxu0 0.0
    %732 = vmatprep.subr.mxu0 0.0
    %733 = vmatpush1.msra.mxu0 0.0
    %734 = vmatprep.subr.mxu0 0.0
    %735 = vmatpush1.msra.mxu0 0.0
    %736 = vmatprep.subr.mxu0 0.0
    %737 = vmatpush1.msra.mxu0 0.0
    %738 = vmatprep.subr.mxu0 0.0
    %739 = vmatpush1.msra.mxu0 0.0
    %740 = vmatprep.subr.mxu0 0.0
    %741 = vmatpush1.msra.mxu0 0.0
    %742 = vmatprep.subr.mxu0 0.0
    %743 = vmatpush1.msra.mxu0 0.0
    %744 = vmatprep.subr.mxu0 0.0
    %745 = vmatpush1.msra.mxu0 0.0
    %746 = vmatprep.subr.mxu0 0.0
    %747 = vmatpush1.msra.mxu0 0.0
    %748 = vmatprep.subr.mxu0 0.0
    %749 = vmatpush1.msra.mxu0 0.0
    %750 = vmatprep.subr.mxu0 0.0
    %751 = vmatpush1.msra.mxu0 0.0
    %752 = vmatprep.subr.mxu0 0.0
    %753 = vmatpush1.msra.mxu0 0.0
    %754 = vmatprep.subr.mxu0 0.0
    %755 = vmatpush1.msra.mxu0 0.0
    %756 = vmatprep.subr.mxu0 0.0
    %757 = vmatpush1.msra.mxu0 0.0
    %758 = vmatprep.subr.mxu0 0.0
    %759 = vmatpush1.msra.mxu0 0.0
    %760 = vmatprep.subr.mxu0 0.0
    %761 = vmatpush1.msra.mxu0 0.0
    %762 = vmatprep.subr.mxu0 0.0
    %763 = vmatpush1.msra.mxu0 0.0
    %764 = vmatprep.subr.mxu0 0.0
    %765 = vmatpush1.msra.mxu0 0.0
    %766 = vmatprep.subr.mxu0 0.0
    %767 = vmatpush1.msra.mxu0 0.0
    %768 = vmatprep.subr.mxu0 0.0
    %769 = vmatpush1.msra.mxu0 0.0
    %770 = vmatprep.subr.mxu0 0.0
    %771 = vmatpush1.msra.mxu0 0.0
    %772 = vmatprep.subr.mxu0 0.0
    %773 = vmatpush1.msra.mxu0 0.0
    %774 = vmatprep.mubr.f32.mxu0 0.0
    %v775 = vand.u32 %v325, 4294901760
    %v776 = vsub.f32 %v325, %v775
    %v777 = vand.u32 %v776, 4294901760
    %778 = vmatmul.mubr.f32.gmra.mrb[0].mxu0 %v777
    %v779 = vpop.f32.mrb[0].mxu0
    %v780 = vadd.f32 %v688, %v779
    %v781 = vpop.f32.mrb[0].mxu0
    %v782 = vadd.f32 %v690, %v781
    %783 = vdwg.mxu0
    %v784 = vand.u32 %v54, 4294901760
    %v785 = vsub.f32 %v54, %v784
    %v786 = vand.u32 %v785, 4294901760
    %787 = vmatprep.subr.mxu0 %v786
    %v788 = vand.u32 %v53, 4294901760
    %v789 = vsub.f32 %v53, %v788
    %v790 = vand.u32 %v789, 4294901760
    %791 = vmatpush1.msra.mxu0 %v790
    %v792 = vand.u32 %v84, 4294901760
    %v793 = vsub.f32 %v84, %v792
    %v794 = vand.u32 %v793, 4294901760
    %795 = vmatprep.subr.mxu0 %v794
    %v796 = vand.u32 %v83, 4294901760
    %v797 = vsub.f32 %v83, %v796
    %v798 = vand.u32 %v797, 4294901760
    %799 = vmatpush1.msra.mxu0 %v798
    %v800 = vand.u32 %v114, 4294901760
    %v801 = vsub.f32 %v114, %v800
    %v802 = vand.u32 %v801, 4294901760
    %803 = vmatprep.subr.mxu0 %v802
    %v804 = vand.u32 %v113, 4294901760
    %v805 = vsub.f32 %v113, %v804
    %v806 = vand.u32 %v805, 4294901760
    %807 = vmatpush1.msra.mxu0 %v806
    %v808 = vand.u32 %v144, 4294901760
    %v809 = vsub.f32 %v144, %v808
    %v810 = vand.u32 %v809, 4294901760
    %811 = vmatprep.subr.mxu0 %v810
    %v812 = vand.u32 %v143, 4294901760
    %v813 = vsub.f32 %v143, %v812
    %v814 = vand.u32 %v813, 4294901760
    %815 = vmatpush1.msra.mxu0 %v814
    %v816 = vand.u32 %v174, 4294901760
    %v817 = vsub.f32 %v174, %v816
    %v818 = vand.u32 %v817, 4294901760
    %819 = vmatprep.subr.mxu0 %v818
    %v820 = vand.u32 %v173, 4294901760
    %v821 = vsub.f32 %v173, %v820
    %v822 = vand.u32 %v821, 4294901760
    %823 = vmatpush1.msra.mxu0 %v822
    %v824 = vand.u32 %v204, 4294901760
    %v825 = vsub.f32 %v204, %v824
    %v826 = vand.u32 %v825, 4294901760
    %827 = vmatprep.subr.mxu0 %v826
    %v828 = vand.u32 %v203, 4294901760
    %v829 = vsub.f32 %v203, %v828
    %v830 = vand.u32 %v829, 4294901760
    %831 = vmatpush1.msra.mxu0 %v830
    %v832 = vand.u32 %v234, 4294901760
    %v833 = vsub.f32 %v234, %v832
    %v834 = vand.u32 %v833, 4294901760
    %835 = vmatprep.subr.mxu0 %v834
    %v836 = vand.u32 %v233, 4294901760
    %v837 = vsub.f32 %v233, %v836
    %v838 = vand.u32 %v837, 4294901760
    %839 = vmatpush1.msra.mxu0 %v838
    %v840 = vand.u32 %v264, 4294901760
    %v841 = vsub.f32 %v264, %v840
    %v842 = vand.u32 %v841, 4294901760
    %843 = vmatprep.subr.mxu0 %v842
    %v844 = vand.u32 %v263, 4294901760
    %v845 = vsub.f32 %v263, %v844
    %v846 = vand.u32 %v845, 4294901760
    %847 = vmatpush1.msra.mxu0 %v846
    %v848 = vand.u32 %v294, 4294901760
    %v849 = vsub.f32 %v294, %v848
    %v850 = vand.u32 %v849, 4294901760
    %851 = vmatprep.subr.mxu0 %v850
    %v852 = vand.u32 %v293, 4294901760
    %v853 = vsub.f32 %v293, %v852
    %v854 = vand.u32 %v853, 4294901760
    %855 = vmatpush1.msra.mxu0 %v854
    %856 = vmatprep.subr.mxu0 0.0
    %857 = vmatpush1.msra.mxu0 0.0
    %858 = vmatprep.subr.mxu0 0.0
    %859 = vmatpush1.msra.mxu0 0.0
    %860 = vmatprep.subr.mxu0 0.0
    %861 = vmatpush1.msra.mxu0 0.0
    %862 = vmatprep.subr.mxu0 0.0
    %863 = vmatpush1.msra.mxu0 0.0
    %864 = vmatprep.subr.mxu0 0.0
    %865 = vmatpush1.msra.mxu0 0.0
    %866 = vmatprep.subr.mxu0 0.0
    %867 = vmatpush1.msra.mxu0 0.0
    %868 = vmatprep.subr.mxu0 0.0
    %869 = vmatpush1.msra.mxu0 0.0
    %870 = vmatprep.subr.mxu0 0.0
    %871 = vmatpush1.msra.mxu0 0.0
    %872 = vmatprep.subr.mxu0 0.0
    %873 = vmatpush1.msra.mxu0 0.0
    %874 = vmatprep.subr.mxu0 0.0
    %875 = vmatpush1.msra.mxu0 0.0
    %876 = vmatprep.subr.mxu0 0.0
    %877 = vmatpush1.msra.mxu0 0.0
    %878 = vmatprep.subr.mxu0 0.0
    %879 = vmatpush1.msra.mxu0 0.0
    %880 = vmatprep.subr.mxu0 0.0
    %881 = vmatpush1.msra.mxu0 0.0
    %882 = vmatprep.subr.mxu0 0.0
    %883 = vmatpush1.msra.mxu0 0.0
    %884 = vmatprep.subr.mxu0 0.0
    %885 = vmatpush1.msra.mxu0 0.0
    %886 = vmatprep.subr.mxu0 0.0
    %887 = vmatpush1.msra.mxu0 0.0
    %888 = vmatprep.subr.mxu0 0.0
    %889 = vmatpush1.msra.mxu0 0.0
    %890 = vmatprep.subr.mxu0 0.0
    %891 = vmatpush1.msra.mxu0 0.0
    %892 = vmatprep.subr.mxu0 0.0
    %893 = vmatpush1.msra.mxu0 0.0
    %894 = vmatprep.subr.mxu0 0.0
    %895 = vmatpush1.msra.mxu0 0.0
    %896 = vmatprep.subr.mxu0 0.0
    %897 = vmatpush1.msra.mxu0 0.0
    %898 = vmatprep.subr.mxu0 0.0
    %899 = vmatpush1.msra.mxu0 0.0
    %900 = vmatprep.subr.mxu0 0.0
    %901 = vmatpush1.msra.mxu0 0.0
    %902 = vmatprep.mubr.f32.mxu0 0.0
    %v903 = vand.u32 %v325, 4294901760
    %904 = vmatmul.mubr.f32.gmra.mrb[0].mxu0 %v903
    %v905 = vpop.f32.mrb[0].mxu0
    %v906 = vadd.f32 %v780, %v905
    %v907 = vpop.f32.mrb[0].mxu0
    %v908 = vadd.f32 %v782, %v907
    %909 = vdwg.mxu0
    %v910 = vand.u32 %v54, 4294901760
    %911 = vmatprep.subr.mxu0 %v910
    %v912 = vand.u32 %v53, 4294901760
    %913 = vmatpush1.msra.mxu0 %v912
    %v914 = vand.u32 %v84, 4294901760
    %915 = vmatprep.subr.mxu0 %v914
    %v916 = vand.u32 %v83, 4294901760
    %917 = vmatpush1.msra.mxu0 %v916
    %v918 = vand.u32 %v114, 4294901760
    %919 = vmatprep.subr.mxu0 %v918
    %v920 = vand.u32 %v113, 4294901760
    %921 = vmatpush1.msra.mxu0 %v920
    %v922 = vand.u32 %v144, 4294901760
    %923 = vmatprep.subr.mxu0 %v922
    %v924 = vand.u32 %v143, 4294901760
    %925 = vmatpush1.msra.mxu0 %v924
    %v926 = vand.u32 %v174, 4294901760
    %927 = vmatprep.subr.mxu0 %v926
    %v928 = vand.u32 %v173, 4294901760
    %929 = vmatpush1.msra.mxu0 %v928
    %v930 = vand.u32 %v204, 4294901760
    %931 = vmatprep.subr.mxu0 %v930
    %v932 = vand.u32 %v203, 4294901760
    %933 = vmatpush1.msra.mxu0 %v932
    %v934 = vand.u32 %v234, 4294901760
    %935 = vmatprep.subr.mxu0 %v934
    %v936 = vand.u32 %v233, 4294901760
    %937 = vmatpush1.msra.mxu0 %v936
    %v938 = vand.u32 %v264, 4294901760
    %939 = vmatprep.subr.mxu0 %v938
    %v940 = vand.u32 %v263, 4294901760
    %941 = vmatpush1.msra.mxu0 %v940
    %v942 = vand.u32 %v294, 4294901760
    %943 = vmatprep.subr.mxu0 %v942
    %v944 = vand.u32 %v293, 4294901760
    %945 = vmatpush1.msra.mxu0 %v944
    %946 = vmatprep.subr.mxu0 0.0
    %947 = vmatpush1.msra.mxu0 0.0
    %948 = vmatprep.subr.mxu0 0.0
    %949 = vmatpush1.msra.mxu0 0.0
    %950 = vmatprep.subr.mxu0 0.0
    %951 = vmatpush1.msra.mxu0 0.0
    %952 = vmatprep.subr.mxu0 0.0
    %953 = vmatpush1.msra.mxu0 0.0
    %954 = vmatprep.subr.mxu0 0.0
    %955 = vmatpush1.msra.mxu0 0.0
    %956 = vmatprep.subr.mxu0 0.0
    %957 = vmatpush1.msra.mxu0 0.0
    %958 = vmatprep.subr.mxu0 0.0
    %959 = vmatpush1.msra.mxu0 0.0
    %960 = vmatprep.subr.mxu0 0.0
    %961 = vmatpush1.msra.mxu0 0.0
    %962 = vmatprep.subr.mxu0 0.0
    %963 = vmatpush1.msra.mxu0 0.0
    %964 = vmatprep.subr.mxu0 0.0
    %965 = vmatpush1.msra.mxu0 0.0
    %966 = vmatprep.subr.mxu0 0.0
    %967 = vmatpush1.msra.mxu0 0.0
    %968 = vmatprep.subr.mxu0 0.0
    %969 = vmatpush1.msra.mxu0 0.0
    %970 = vmatprep.subr.mxu0 0.0
    %971 = vmatpush1.msra.mxu0 0.0
    %972 = vmatprep.subr.mxu0 0.0
    %973 = vmatpush1.msra.mxu0 0.0
    %974 = vmatprep.subr.mxu0 0.0
    %975 = vmatpush1.msra.mxu0 0.0
    %976 = vmatprep.subr.mxu0 0.0
    %977 = vmatpush1.msra.mxu0 0.0
    %978 = vmatprep.subr.mxu0 0.0
    %979 = vmatpush1.msra.mxu0 0.0
    %980 = vmatprep.subr.mxu0 0.0
    %981 = vmatpush1.msra.mxu0 0.0
    %982 = vmatprep.subr.mxu0 0.0
    %983 = vmatpush1.msra.mxu0 0.0
    %984 = vmatprep.subr.mxu0 0.0
    %985 = vmatpush1.msra.mxu0 0.0
    %986 = vmatprep.subr.mxu0 0.0
    %987 = vmatpush1.msra.mxu0 0.0
    %988 = vmatprep.subr.mxu0 0.0
    %989 = vmatpush1.msra.mxu0 0.0
    %990 = vmatprep.subr.mxu0 0.0
    %991 = vmatpush1.msra.mxu0 0.0
    %992 = vmatprep.mubr.f32.mxu0 0.0
    %v993 = vand.u32 %v325, 4294901760
    %994 = vmatmul.mubr.f32.gmra.mrb[0].mxu0 %v993
    %v995 = vpop.f32.mrb[0].mxu0
    %v996 = vadd.f32 %v906, %v995
    %v997 = vpop.f32.mrb[0].mxu0
    %v998 = vadd.f32 %v908, %v997
    %999 = vdwg.mxu0
    %v1000 = vand.u32 %v56, 4294901760
    %1001 = vmatprep.subr.mxu0 %v1000
    %v1002 = vand.u32 %v55, 4294901760
    %1003 = vmatpush1.msra.mxu0 %v1002
    %v1004 = vand.u32 %v86, 4294901760
    %1005 = vmatprep.subr.mxu0 %v1004
    %v1006 = vand.u32 %v85, 4294901760
    %1007 = vmatpush1.msra.mxu0 %v1006
    %v1008 = vand.u32 %v116, 4294901760
    %1009 = vmatprep.subr.mxu0 %v1008
    %v1010 = vand.u32 %v115, 4294901760
    %1011 = vmatpush1.msra.mxu0 %v1010
    %v1012 = vand.u32 %v146, 4294901760
    %1013 = vmatprep.subr.mxu0 %v1012
    %v1014 = vand.u32 %v145, 4294901760
    %1015 = vmatpush1.msra.mxu0 %v1014
    %v1016 = vand.u32 %v176, 4294901760
    %1017 = vmatprep.subr.mxu0 %v1016
    %v1018 = vand.u32 %v175, 4294901760
    %1019 = vmatpush1.msra.mxu0 %v1018
    %v1020 = vand.u32 %v206, 4294901760
    %1021 = vmatprep.subr.mxu0 %v1020
    %v1022 = vand.u32 %v205, 4294901760
    %1023 = vmatpush1.msra.mxu0 %v1022
    %v1024 = vand.u32 %v236, 4294901760
    %1025 = vmatprep.subr.mxu0 %v1024
    %v1026 = vand.u32 %v235, 4294901760
    %1027 = vmatpush1.msra.mxu0 %v1026
    %v1028 = vand.u32 %v266, 4294901760
    %1029 = vmatprep.subr.mxu0 %v1028
    %v1030 = vand.u32 %v265, 4294901760
    %1031 = vmatpush1.msra.mxu0 %v1030
    %v1032 = vand.u32 %v296, 4294901760
    %1033 = vmatprep.subr.mxu0 %v1032
    %v1034 = vand.u32 %v295, 4294901760
    %1035 = vmatpush1.msra.mxu0 %v1034
    %1036 = vmatprep.subr.mxu0 0.0
    %1037 = vmatpush1.msra.mxu0 0.0
    %1038 = vmatprep.subr.mxu0 0.0
    %1039 = vmatpush1.msra.mxu0 0.0
    %1040 = vmatprep.subr.mxu0 0.0
    %1041 = vmatpush1.msra.mxu0 0.0
    %1042 = vmatprep.subr.mxu0 0.0
    %1043 = vmatpush1.msra.mxu0 0.0
    %1044 = vmatprep.subr.mxu0 0.0
    %1045 = vmatpush1.msra.mxu0 0.0
    %1046 = vmatprep.subr.mxu0 0.0
    %1047 = vmatpush1.msra.mxu0 0.0
    %1048 = vmatprep.subr.mxu0 0.0
    %1049 = vmatpush1.msra.mxu0 0.0
    %1050 = vmatprep.subr.mxu0 0.0
    %1051 = vmatpush1.msra.mxu0 0.0
    %1052 = vmatprep.subr.mxu0 0.0
    %1053 = vmatpush1.msra.mxu0 0.0
    %1054 = vmatprep.subr.mxu0 0.0
    %1055 = vmatpush1.msra.mxu0 0.0
    %1056 = vmatprep.subr.mxu0 0.0
    %1057 = vmatpush1.msra.mxu0 0.0
    %1058 = vmatprep.subr.mxu0 0.0
    %1059 = vmatpush1.msra.mxu0 0.0
    %1060 = vmatprep.subr.mxu0 0.0
    %1061 = vmatpush1.msra.mxu0 0.0
    %1062 = vmatprep.subr.mxu0 0.0
    %1063 = vmatpush1.msra.mxu0 0.0
    %1064 = vmatprep.subr.mxu0 0.0
    %1065 = vmatpush1.msra.mxu0 0.0
    %1066 = vmatprep.subr.mxu0 0.0
    %1067 = vmatpush1.msra.mxu0 0.0
    %1068 = vmatprep.subr.mxu0 0.0
    %1069 = vmatpush1.msra.mxu0 0.0
    %1070 = vmatprep.subr.mxu0 0.0
    %1071 = vmatpush1.msra.mxu0 0.0
    %1072 = vmatprep.subr.mxu0 0.0
    %1073 = vmatpush1.msra.mxu0 0.0
    %1074 = vmatprep.subr.mxu0 0.0
    %1075 = vmatpush1.msra.mxu0 0.0
    %1076 = vmatprep.subr.mxu0 0.0
    %1077 = vmatpush1.msra.mxu0 0.0
    %1078 = vmatprep.subr.mxu0 0.0
    %1079 = vmatpush1.msra.mxu0 0.0
    %1080 = vmatprep.subr.mxu0 0.0
    %1081 = vmatpush1.msra.mxu0 0.0
    %1082 = vmatprep.mubr.f32.mxu0 0.0
    %v1083 = vand.u32 %v325, 4294901760
    %v1084 = vsub.f32 %v325, %v1083
    %v1085 = vand.u32 %v1084, 4294901760
    %v1086 = vsub.f32 %v1084, %v1085
    %v1087 = vand.u32 %v1086, 4294901760
    %1088 = vmatmul.mubr.f32.gmra.mrb[0].mxu0 %v1087
    %v1089 = vpop.f32.mrb[0].mxu0
    %v1090 = vadd.f32 0.0, %v1089
    %v1091 = vpop.f32.mrb[0].mxu0
    %v1092 = vadd.f32 0.0, %v1091
    %1093 = vdwg.mxu0
    %v1094 = vand.u32 %v56, 4294901760
    %v1095 = vsub.f32 %v56, %v1094
    %v1096 = vand.u32 %v1095, 4294901760
    %v1097 = vsub.f32 %v1095, %v1096
    %v1098 = vand.u32 %v1097, 4294901760
    %1099 = vmatprep.subr.mxu0 %v1098
    %v1100 = vand.u32 %v55, 4294901760
    %v1101 = vsub.f32 %v55, %v1100
    %v1102 = vand.u32 %v1101, 4294901760
    %v1103 = vsub.f32 %v1101, %v1102
    %v1104 = vand.u32 %v1103, 4294901760
    %1105 = vmatpush1.msra.mxu0 %v1104
    %v1106 = vand.u32 %v86, 4294901760
    %v1107 = vsub.f32 %v86, %v1106
    %v1108 = vand.u32 %v1107, 4294901760
    %v1109 = vsub.f32 %v1107, %v1108
    %v1110 = vand.u32 %v1109, 4294901760
    %1111 = vmatprep.subr.mxu0 %v1110
    %v1112 = vand.u32 %v85, 4294901760
    %v1113 = vsub.f32 %v85, %v1112
    %v1114 = vand.u32 %v1113, 4294901760
    %v1115 = vsub.f32 %v1113, %v1114
    %v1116 = vand.u32 %v1115, 4294901760
    %1117 = vmatpush1.msra.mxu0 %v1116
    %v1118 = vand.u32 %v116, 4294901760
    %v1119 = vsub.f32 %v116, %v1118
    %v1120 = vand.u32 %v1119, 4294901760
    %v1121 = vsub.f32 %v1119, %v1120
    %v1122 = vand.u32 %v1121, 4294901760
    %1123 = vmatprep.subr.mxu0 %v1122
    %v1124 = vand.u32 %v115, 4294901760
    %v1125 = vsub.f32 %v115, %v1124
    %v1126 = vand.u32 %v1125, 4294901760
    %v1127 = vsub.f32 %v1125, %v1126
    %v1128 = vand.u32 %v1127, 4294901760
    %1129 = vmatpush1.msra.mxu0 %v1128
    %v1130 = vand.u32 %v146, 4294901760
    %v1131 = vsub.f32 %v146, %v1130
    %v1132 = vand.u32 %v1131, 4294901760
    %v1133 = vsub.f32 %v1131, %v1132
    %v1134 = vand.u32 %v1133, 4294901760
    %1135 = vmatprep.subr.mxu0 %v1134
    %v1136 = vand.u32 %v145, 4294901760
    %v1137 = vsub.f32 %v145, %v1136
    %v1138 = vand.u32 %v1137, 4294901760
    %v1139 = vsub.f32 %v1137, %v1138
    %v1140 = vand.u32 %v1139, 4294901760
    %1141 = vmatpush1.msra.mxu0 %v1140
    %v1142 = vand.u32 %v176, 4294901760
    %v1143 = vsub.f32 %v176, %v1142
    %v1144 = vand.u32 %v1143, 4294901760
    %v1145 = vsub.f32 %v1143, %v1144
    %v1146 = vand.u32 %v1145, 4294901760
    %1147 = vmatprep.subr.mxu0 %v1146
    %v1148 = vand.u32 %v175, 4294901760
    %v1149 = vsub.f32 %v175, %v1148
    %v1150 = vand.u32 %v1149, 4294901760
    %v1151 = vsub.f32 %v1149, %v1150
    %v1152 = vand.u32 %v1151, 4294901760
    %1153 = vmatpush1.msra.mxu0 %v1152
    %v1154 = vand.u32 %v206, 4294901760
    %v1155 = vsub.f32 %v206, %v1154
    %v1156 = vand.u32 %v1155, 4294901760
    %v1157 = vsub.f32 %v1155, %v1156
    %v1158 = vand.u32 %v1157, 4294901760
    %1159 = vmatprep.subr.mxu0 %v1158
    %v1160 = vand.u32 %v205, 4294901760
    %v1161 = vsub.f32 %v205, %v1160
    %v1162 = vand.u32 %v1161, 4294901760
    %v1163 = vsub.f32 %v1161, %v1162
    %v1164 = vand.u32 %v1163, 4294901760
    %1165 = vmatpush1.msra.mxu0 %v1164
    %v1166 = vand.u32 %v236, 4294901760
    %v1167 = vsub.f32 %v236, %v1166
    %v1168 = vand.u32 %v1167, 4294901760
    %v1169 = vsub.f32 %v1167, %v1168
    %v1170 = vand.u32 %v1169, 4294901760
    %1171 = vmatprep.subr.mxu0 %v1170
    %v1172 = vand.u32 %v235, 4294901760
    %v1173 = vsub.f32 %v235, %v1172
    %v1174 = vand.u32 %v1173, 4294901760
    %v1175 = vsub.f32 %v1173, %v1174
    %v1176 = vand.u32 %v1175, 4294901760
    %1177 = vmatpush1.msra.mxu0 %v1176
    %v1178 = vand.u32 %v266, 4294901760
    %v1179 = vsub.f32 %v266, %v1178
    %v1180 = vand.u32 %v1179, 4294901760
    %v1181 = vsub.f32 %v1179, %v1180
    %v1182 = vand.u32 %v1181, 4294901760
    %1183 = vmatprep.subr.mxu0 %v1182
    %v1184 = vand.u32 %v265, 4294901760
    %v1185 = vsub.f32 %v265, %v1184
    %v1186 = vand.u32 %v1185, 4294901760
    %v1187 = vsub.f32 %v1185, %v1186
    %v1188 = vand.u32 %v1187, 4294901760
    %1189 = vmatpush1.msra.mxu0 %v1188
    %v1190 = vand.u32 %v296, 4294901760
    %v1191 = vsub.f32 %v296, %v1190
    %v1192 = vand.u32 %v1191, 4294901760
    %v1193 = vsub.f32 %v1191, %v1192
    %v1194 = vand.u32 %v1193, 4294901760
    %1195 = vmatprep.subr.mxu0 %v1194
    %v1196 = vand.u32 %v295, 4294901760
    %v1197 = vsub.f32 %v295, %v1196
    %v1198 = vand.u32 %v1197, 4294901760
    %v1199 = vsub.f32 %v1197, %v1198
    %v1200 = vand.u32 %v1199, 4294901760
    %1201 = vmatpush1.msra.mxu0 %v1200
    %1202 = vmatprep.subr.mxu0 0.0
    %1203 = vmatpush1.msra.mxu0 0.0
    %1204 = vmatprep.subr.mxu0 0.0
    %1205 = vmatpush1.msra.mxu0 0.0
    %1206 = vmatprep.subr.mxu0 0.0
    %1207 = vmatpush1.msra.mxu0 0.0
    %1208 = vmatprep.subr.mxu0 0.0
    %1209 = vmatpush1.msra.mxu0 0.0
    %1210 = vmatprep.subr.mxu0 0.0
    %1211 = vmatpush1.msra.mxu0 0.0
    %1212 = vmatprep.subr.mxu0 0.0
    %1213 = vmatpush1.msra.mxu0 0.0
    %1214 = vmatprep.subr.mxu0 0.0
    %1215 = vmatpush1.msra.mxu0 0.0
    %1216 = vmatprep.subr.mxu0 0.0
    %1217 = vmatpush1.msra.mxu0 0.0
    %1218 = vmatprep.subr.mxu0 0.0
    %1219 = vmatpush1.msra.mxu0 0.0
    %1220 = vmatprep.subr.mxu0 0.0
    %1221 = vmatpush1.msra.mxu0 0.0
    %1222 = vmatprep.subr.mxu0 0.0
    %1223 = vmatpush1.msra.mxu0 0.0
    %1224 = vmatprep.subr.mxu0 0.0
    %1225 = vmatpush1.msra.mxu0 0.0
    %1226 = vmatprep.subr.mxu0 0.0
    %1227 = vmatpush1.msra.mxu0 0.0
    %1228 = vmatprep.subr.mxu0 0.0
    %1229 = vmatpush1.msra.mxu0 0.0
    %1230 = vmatprep.subr.mxu0 0.0
    %1231 = vmatpush1.msra.mxu0 0.0
    %1232 = vmatprep.subr.mxu0 0.0
    %1233 = vmatpush1.msra.mxu0 0.0
    %1234 = vmatprep.subr.mxu0 0.0
    %1235 = vmatpush1.msra.mxu0 0.0
    %1236 = vmatprep.subr.mxu0 0.0
    %1237 = vmatpush1.msra.mxu0 0.0
    %1238 = vmatprep.subr.mxu0 0.0
    %1239 = vmatpush1.msra.mxu0 0.0
    %1240 = vmatprep.subr.mxu0 0.0
    %1241 = vmatpush1.msra.mxu0 0.0
    %1242 = vmatprep.subr.mxu0 0.0
    %1243 = vmatpush1.msra.mxu0 0.0
    %1244 = vmatprep.subr.mxu0 0.0
    %1245 = vmatpush1.msra.mxu0 0.0
    %1246 = vmatprep.subr.mxu0 0.0
    %1247 = vmatpush1.msra.mxu0 0.0
    %1248 = vmatprep.mubr.f32.mxu0 0.0
    %v1249 = vand.u32 %v325, 4294901760
    %1250 = vmatmul.mubr.f32.gmra.mrb[0].mxu0 %v1249
    %v1251 = vpop.f32.mrb[0].mxu0
    %v1252 = vadd.f32 %v1090, %v1251
    %v1253 = vpop.f32.mrb[0].mxu0
    %v1254 = vadd.f32 %v1092, %v1253
    %1255 = vdwg.mxu0
    %v1256 = vand.u32 %v56, 4294901760
    %v1257 = vsub.f32 %v56, %v1256
    %1258 = vmatprep.subr.mxu0 %v1257
    %v1259 = vand.u32 %v55, 4294901760
    %v1260 = vsub.f32 %v55, %v1259
    %1261 = vmatpush1.msra.mxu0 %v1260
    %v1262 = vand.u32 %v86, 4294901760
    %v1263 = vsub.f32 %v86, %v1262
    %1264 = vmatprep.subr.mxu0 %v1263
    %v1265 = vand.u32 %v85, 4294901760
    %v1266 = vsub.f32 %v85, %v1265
    %1267 = vmatpush1.msra.mxu0 %v1266
    %v1268 = vand.u32 %v116, 4294901760
    %v1269 = vsub.f32 %v116, %v1268
    %1270 = vmatprep.subr.mxu0 %v1269
    %v1271 = vand.u32 %v115, 4294901760
    %v1272 = vsub.f32 %v115, %v1271
    %1273 = vmatpush1.msra.mxu0 %v1272
    %v1274 = vand.u32 %v146, 4294901760
    %v1275 = vsub.f32 %v146, %v1274
    %1276 = vmatprep.subr.mxu0 %v1275
    %v1277 = vand.u32 %v145, 4294901760
    %v1278 = vsub.f32 %v145, %v1277
    %1279 = vmatpush1.msra.mxu0 %v1278
    %v1280 = vand.u32 %v176, 4294901760
    %v1281 = vsub.f32 %v176, %v1280
    %1282 = vmatprep.subr.mxu0 %v1281
    %v1283 = vand.u32 %v175, 4294901760
    %v1284 = vsub.f32 %v175, %v1283
    %1285 = vmatpush1.msra.mxu0 %v1284
    %v1286 = vand.u32 %v206, 4294901760
    %v1287 = vsub.f32 %v206, %v1286
    %1288 = vmatprep.subr.mxu0 %v1287
    %v1289 = vand.u32 %v205, 4294901760
    %v1290 = vsub.f32 %v205, %v1289
    %1291 = vmatpush1.msra.mxu0 %v1290
    %v1292 = vand.u32 %v236, 4294901760
    %v1293 = vsub.f32 %v236, %v1292
    %1294 = vmatprep.subr.mxu0 %v1293
    %v1295 = vand.u32 %v235, 4294901760
    %v1296 = vsub.f32 %v235, %v1295
    %1297 = vmatpush1.msra.mxu0 %v1296
    %v1298 = vand.u32 %v266, 4294901760
    %v1299 = vsub.f32 %v266, %v1298
    %1300 = vmatprep.subr.mxu0 %v1299
    %v1301 = vand.u32 %v265, 4294901760
    %v1302 = vsub.f32 %v265, %v1301
    %1303 = vmatpush1.msra.mxu0 %v1302
    %v1304 = vand.u32 %v296, 4294901760
    %v1305 = vsub.f32 %v296, %v1304
    %1306 = vmatprep.subr.mxu0 %v1305
    %v1307 = vand.u32 %v295, 4294901760
    %v1308 = vsub.f32 %v295, %v1307
    %1309 = vmatpush1.msra.mxu0 %v1308
    %1310 = vmatprep.subr.mxu0 0.0
    %1311 = vmatpush1.msra.mxu0 0.0
    %1312 = vmatprep.subr.mxu0 0.0
    %1313 = vmatpush1.msra.mxu0 0.0
    %1314 = vmatprep.subr.mxu0 0.0
    %1315 = vmatpush1.msra.mxu0 0.0
    %1316 = vmatprep.subr.mxu0 0.0
    %1317 = vmatpush1.msra.mxu0 0.0
    %1318 = vmatprep.subr.mxu0 0.0
    %1319 = vmatpush1.msra.mxu0 0.0
    %1320 = vmatprep.subr.mxu0 0.0
    %1321 = vmatpush1.msra.mxu0 0.0
    %1322 = vmatprep.subr.mxu0 0.0
    %1323 = vmatpush1.msra.mxu0 0.0
    %1324 = vmatprep.subr.mxu0 0.0
    %1325 = vmatpush1.msra.mxu0 0.0
    %1326 = vmatprep.subr.mxu0 0.0
    %1327 = vmatpush1.msra.mxu0 0.0
    %1328 = vmatprep.subr.mxu0 0.0
    %1329 = vmatpush1.msra.mxu0 0.0
    %1330 = vmatprep.subr.mxu0 0.0
    %1331 = vmatpush1.msra.mxu0 0.0
    %1332 = vmatprep.subr.mxu0 0.0
    %1333 = vmatpush1.msra.mxu0 0.0
    %1334 = vmatprep.subr.mxu0 0.0
    %1335 = vmatpush1.msra.mxu0 0.0
    %1336 = vmatprep.subr.mxu0 0.0
    %1337 = vmatpush1.msra.mxu0 0.0
    %1338 = vmatprep.subr.mxu0 0.0
    %1339 = vmatpush1.msra.mxu0 0.0
    %1340 = vmatprep.subr.mxu0 0.0
    %1341 = vmatpush1.msra.mxu0 0.0
    %1342 = vmatprep.subr.mxu0 0.0
    %1343 = vmatpush1.msra.mxu0 0.0
    %1344 = vmatprep.subr.mxu0 0.0
    %1345 = vmatpush1.msra.mxu0 0.0
    %1346 = vmatprep.subr.mxu0 0.0
    %1347 = vmatpush1.msra.mxu0 0.0
    %1348 = vmatprep.subr.mxu0 0.0
    %1349 = vmatpush1.msra.mxu0 0.0
    %1350 = vmatprep.subr.mxu0 0.0
    %1351 = vmatpush1.msra.mxu0 0.0
    %1352 = vmatprep.subr.mxu0 0.0
    %1353 = vmatpush1.msra.mxu0 0.0
    %1354 = vmatprep.subr.mxu0 0.0
    %1355 = vmatpush1.msra.mxu0 0.0
    %1356 = vmatprep.mubr.f32.mxu0 0.0
    %v1357 = vand.u32 %v325, 4294901760
    %v1358 = vsub.f32 %v325, %v1357
    %1359 = vmatmul.mubr.f32.gmra.mrb[0].mxu0 %v1358
    %v1360 = vpop.f32.mrb[0].mxu0
    %v1361 = vadd.f32 %v1252, %v1360
    %v1362 = vpop.f32.mrb[0].mxu0
    %v1363 = vadd.f32 %v1254, %v1362
    %1364 = vdwg.mxu0
    %v1365 = vand.u32 %v56, 4294901760
    %1366 = vmatprep.subr.mxu0 %v1365
    %v1367 = vand.u32 %v55, 4294901760
    %1368 = vmatpush1.msra.mxu0 %v1367
    %v1369 = vand.u32 %v86, 4294901760
    %1370 = vmatprep.subr.mxu0 %v1369
    %v1371 = vand.u32 %v85, 4294901760
    %1372 = vmatpush1.msra.mxu0 %v1371
    %v1373 = vand.u32 %v116, 4294901760
    %1374 = vmatprep.subr.mxu0 %v1373
    %v1375 = vand.u32 %v115, 4294901760
    %1376 = vmatpush1.msra.mxu0 %v1375
    %v1377 = vand.u32 %v146, 4294901760
    %1378 = vmatprep.subr.mxu0 %v1377
    %v1379 = vand.u32 %v145, 4294901760
    %1380 = vmatpush1.msra.mxu0 %v1379
    %v1381 = vand.u32 %v176, 4294901760
    %1382 = vmatprep.subr.mxu0 %v1381
    %v1383 = vand.u32 %v175, 4294901760
    %1384 = vmatpush1.msra.mxu0 %v1383
    %v1385 = vand.u32 %v206, 4294901760
    %1386 = vmatprep.subr.mxu0 %v1385
    %v1387 = vand.u32 %v205, 4294901760
    %1388 = vmatpush1.msra.mxu0 %v1387
    %v1389 = vand.u32 %v236, 4294901760
    %1390 = vmatprep.subr.mxu0 %v1389
    %v1391 = vand.u32 %v235, 4294901760
    %1392 = vmatpush1.msra.mxu0 %v1391
    %v1393 = vand.u32 %v266, 4294901760
    %1394 = vmatprep.subr.mxu0 %v1393
    %v1395 = vand.u32 %v265, 4294901760
    %1396 = vmatpush1.msra.mxu0 %v1395
    %v1397 = vand.u32 %v296, 4294901760
    %1398 = vmatprep.subr.mxu0 %v1397
    %v1399 = vand.u32 %v295, 4294901760
    %1400 = vmatpush1.msra.mxu0 %v1399
    %1401 = vmatprep.subr.mxu0 0.0
    %1402 = vmatpush1.msra.mxu0 0.0
    %1403 = vmatprep.subr.mxu0 0.0
    %1404 = vmatpush1.msra.mxu0 0.0
    %1405 = vmatprep.subr.mxu0 0.0
    %1406 = vmatpush1.msra.mxu0 0.0
    %1407 = vmatprep.subr.mxu0 0.0
    %1408 = vmatpush1.msra.mxu0 0.0
    %1409 = vmatprep.subr.mxu0 0.0
    %1410 = vmatpush1.msra.mxu0 0.0
    %1411 = vmatprep.subr.mxu0 0.0
    %1412 = vmatpush1.msra.mxu0 0.0
    %1413 = vmatprep.subr.mxu0 0.0
    %1414 = vmatpush1.msra.mxu0 0.0
    %1415 = vmatprep.subr.mxu0 0.0
    %1416 = vmatpush1.msra.mxu0 0.0
    %1417 = vmatprep.subr.mxu0 0.0
    %1418 = vmatpush1.msra.mxu0 0.0
    %1419 = vmatprep.subr.mxu0 0.0
    %1420 = vmatpush1.msra.mxu0 0.0
    %1421 = vmatprep.subr.mxu0 0.0
    %1422 = vmatpush1.msra.mxu0 0.0
    %1423 = vmatprep.subr.mxu0 0.0
    %1424 = vmatpush1.msra.mxu0 0.0
    %1425 = vmatprep.subr.mxu0 0.0
    %1426 = vmatpush1.msra.mxu0 0.0
    %1427 = vmatprep.subr.mxu0 0.0
    %1428 = vmatpush1.msra.mxu0 0.0
    %1429 = vmatprep.subr.mxu0 0.0
    %1430 = vmatpush1.msra.mxu0 0.0
    %1431 = vmatprep.subr.mxu0 0.0
    %1432 = vmatpush1.msra.mxu0 0.0
    %1433 = vmatprep.subr.mxu0 0.0
    %1434 = vmatpush1.msra.mxu0 0.0
    %1435 = vmatprep.subr.mxu0 0.0
    %1436 = vmatpush1.msra.mxu0 0.0
    %1437 = vmatprep.subr.mxu0 0.0
    %1438 = vmatpush1.msra.mxu0 0.0
    %1439 = vmatprep.subr.mxu0 0.0
    %1440 = vmatpush1.msra.mxu0 0.0
    %1441 = vmatprep.subr.mxu0 0.0
    %1442 = vmatpush1.msra.mxu0 0.0
    %1443 = vmatprep.subr.mxu0 0.0
    %1444 = vmatpush1.msra.mxu0 0.0
    %1445 = vmatprep.subr.mxu0 0.0
    %1446 = vmatpush1.msra.mxu0 0.0
    %1447 = vmatprep.mubr.f32.mxu0 0.0
    %v1448 = vand.u32 %v325, 4294901760
    %v1449 = vsub.f32 %v325, %v1448
    %v1450 = vand.u32 %v1449, 4294901760
    %1451 = vmatmul.mubr.f32.gmra.mrb[0].mxu0 %v1450
    %v1452 = vpop.f32.mrb[0].mxu0
    %v1453 = vadd.f32 %v1361, %v1452
    %v1454 = vpop.f32.mrb[0].mxu0
    %v1455 = vadd.f32 %v1363, %v1454
    %1456 = vdwg.mxu0
    %v1457 = vand.u32 %v56, 4294901760
    %v1458 = vsub.f32 %v56, %v1457
    %v1459 = vand.u32 %v1458, 4294901760
    %1460 = vmatprep.subr.mxu0 %v1459
    %v1461 = vand.u32 %v55, 4294901760
    %v1462 = vsub.f32 %v55, %v1461
    %v1463 = vand.u32 %v1462, 4294901760
    %1464 = vmatpush1.msra.mxu0 %v1463
    %v1465 = vand.u32 %v86, 4294901760
    %v1466 = vsub.f32 %v86, %v1465
    %v1467 = vand.u32 %v1466, 4294901760
    %1468 = vmatprep.subr.mxu0 %v1467
    %v1469 = vand.u32 %v85, 4294901760
    %v1470 = vsub.f32 %v85, %v1469
    %v1471 = vand.u32 %v1470, 4294901760
    %1472 = vmatpush1.msra.mxu0 %v1471
    %v1473 = vand.u32 %v116, 4294901760
    %v1474 = vsub.f32 %v116, %v1473
    %v1475 = vand.u32 %v1474, 4294901760
    %1476 = vmatprep.subr.mxu0 %v1475
    %v1477 = vand.u32 %v115, 4294901760
    %v1478 = vsub.f32 %v115, %v1477
    %v1479 = vand.u32 %v1478, 4294901760
    %1480 = vmatpush1.msra.mxu0 %v1479
    %v1481 = vand.u32 %v146, 4294901760
    %v1482 = vsub.f32 %v146, %v1481
    %v1483 = vand.u32 %v1482, 4294901760
    %1484 = vmatprep.subr.mxu0 %v1483
    %v1485 = vand.u32 %v145, 4294901760
    %v1486 = vsub.f32 %v145, %v1485
    %v1487 = vand.u32 %v1486, 4294901760
    %1488 = vmatpush1.msra.mxu0 %v1487
    %v1489 = vand.u32 %v176, 4294901760
    %v1490 = vsub.f32 %v176, %v1489
    %v1491 = vand.u32 %v1490, 4294901760
    %1492 = vmatprep.subr.mxu0 %v1491
    %v1493 = vand.u32 %v175, 4294901760
    %v1494 = vsub.f32 %v175, %v1493
    %v1495 = vand.u32 %v1494, 4294901760
    %1496 = vmatpush1.msra.mxu0 %v1495
    %v1497 = vand.u32 %v206, 4294901760
    %v1498 = vsub.f32 %v206, %v1497
    %v1499 = vand.u32 %v1498, 4294901760
    %1500 = vmatprep.subr.mxu0 %v1499
    %v1501 = vand.u32 %v205, 4294901760
    %v1502 = vsub.f32 %v205, %v1501
    %v1503 = vand.u32 %v1502, 4294901760
    %1504 = vmatpush1.msra.mxu0 %v1503
    %v1505 = vand.u32 %v236, 4294901760
    %v1506 = vsub.f32 %v236, %v1505
    %v1507 = vand.u32 %v1506, 4294901760
    %1508 = vmatprep.subr.mxu0 %v1507
    %v1509 = vand.u32 %v235, 4294901760
    %v1510 = vsub.f32 %v235, %v1509
    %v1511 = vand.u32 %v1510, 4294901760
    %1512 = vmatpush1.msra.mxu0 %v1511
    %v1513 = vand.u32 %v266, 4294901760
    %v1514 = vsub.f32 %v266, %v1513
    %v1515 = vand.u32 %v1514, 4294901760
    %1516 = vmatprep.subr.mxu0 %v1515
    %v1517 = vand.u32 %v265, 4294901760
    %v1518 = vsub.f32 %v265, %v1517
    %v1519 = vand.u32 %v1518, 4294901760
    %1520 = vmatpush1.msra.mxu0 %v1519
    %v1521 = vand.u32 %v296, 4294901760
    %v1522 = vsub.f32 %v296, %v1521
    %v1523 = vand.u32 %v1522, 4294901760
    %1524 = vmatprep.subr.mxu0 %v1523
    %v1525 = vand.u32 %v295, 4294901760
    %v1526 = vsub.f32 %v295, %v1525
    %v1527 = vand.u32 %v1526, 4294901760
    %1528 = vmatpush1.msra.mxu0 %v1527
    %1529 = vmatprep.subr.mxu0 0.0
    %1530 = vmatpush1.msra.mxu0 0.0
    %1531 = vmatprep.subr.mxu0 0.0
    %1532 = vmatpush1.msra.mxu0 0.0
    %1533 = vmatprep.subr.mxu0 0.0
    %1534 = vmatpush1.msra.mxu0 0.0
    %1535 = vmatprep.subr.mxu0 0.0
    %1536 = vmatpush1.msra.mxu0 0.0
    %1537 = vmatprep.subr.mxu0 0.0
    %1538 = vmatpush1.msra.mxu0 0.0
    %1539 = vmatprep.subr.mxu0 0.0
    %1540 = vmatpush1.msra.mxu0 0.0
    %1541 = vmatprep.subr.mxu0 0.0
    %1542 = vmatpush1.msra.mxu0 0.0
    %1543 = vmatprep.subr.mxu0 0.0
    %1544 = vmatpush1.msra.mxu0 0.0
    %1545 = vmatprep.subr.mxu0 0.0
    %1546 = vmatpush1.msra.mxu0 0.0
    %1547 = vmatprep.subr.mxu0 0.0
    %1548 = vmatpush1.msra.mxu0 0.0
    %1549 = vmatprep.subr.mxu0 0.0
    %1550 = vmatpush1.msra.mxu0 0.0
    %1551 = vmatprep.subr.mxu0 0.0
    %1552 = vmatpush1.msra.mxu0 0.0
    %1553 = vmatprep.subr.mxu0 0.0
    %1554 = vmatpush1.msra.mxu0 0.0
    %1555 = vmatprep.subr.mxu0 0.0
    %1556 = vmatpush1.msra.mxu0 0.0
    %1557 = vmatprep.subr.mxu0 0.0
    %1558 = vmatpush1.msra.mxu0 0.0
    %1559 = vmatprep.subr.mxu0 0.0
    %1560 = vmatpush1.msra.mxu0 0.0
    %1561 = vmatprep.subr.mxu0 0.0
    %1562 = vmatpush1.msra.mxu0 0.0
    %1563 = vmatprep.subr.mxu0 0.0
    %1564 = vmatpush1.msra.mxu0 0.0
    %1565 = vmatprep.subr.mxu0 0.0
    %1566 = vmatpush1.msra.mxu0 0.0
    %1567 = vmatprep.subr.mxu0 0.0
    %1568 = vmatpush1.msra.mxu0 0.0
    %1569 = vmatprep.subr.mxu0 0.0
    %1570 = vmatpush1.msra.mxu0 0.0
    %1571 = vmatprep.subr.mxu0 0.0
    %1572 = vmatpush1.msra.mxu0 0.0
    %1573 = vmatprep.subr.mxu0 0.0
    %1574 = vmatpush1.msra.mxu0 0.0
    %1575 = vmatprep.mubr.f32.mxu0 0.0
    %v1576 = vand.u32 %v325, 4294901760
    %1577 = vmatmul.mubr.f32.gmra.mrb[0].mxu0 %v1576
    %v1578 = vpop.f32.mrb[0].mxu0
    %v1579 = vadd.f32 %v1453, %v1578
    %v1580 = vpop.f32.mrb[0].mxu0
    %v1581 = vadd.f32 %v1455, %v1580
    %1582 = vdwg.mxu0
    %v1583 = vand.u32 %v56, 4294901760
    %1584 = vmatprep.subr.mxu0 %v1583
    %v1585 = vand.u32 %v55, 4294901760
    %1586 = vmatpush1.msra.mxu0 %v1585
    %v1587 = vand.u32 %v86, 4294901760
    %1588 = vmatprep.subr.mxu0 %v1587
    %v1589 = vand.u32 %v85, 4294901760
    %1590 = vmatpush1.msra.mxu0 %v1589
    %v1591 = vand.u32 %v116, 4294901760
    %1592 = vmatprep.subr.mxu0 %v1591
    %v1593 = vand.u32 %v115, 4294901760
    %1594 = vmatpush1.msra.mxu0 %v1593
    %v1595 = vand.u32 %v146, 4294901760
    %1596 = vmatprep.subr.mxu0 %v1595
    %v1597 = vand.u32 %v145, 4294901760
    %1598 = vmatpush1.msra.mxu0 %v1597
    %v1599 = vand.u32 %v176, 4294901760
    %1600 = vmatprep.subr.mxu0 %v1599
    %v1601 = vand.u32 %v175, 4294901760
    %1602 = vmatpush1.msra.mxu0 %v1601
    %v1603 = vand.u32 %v206, 4294901760
    %1604 = vmatprep.subr.mxu0 %v1603
    %v1605 = vand.u32 %v205, 4294901760
    %1606 = vmatpush1.msra.mxu0 %v1605
    %v1607 = vand.u32 %v236, 4294901760
    %1608 = vmatprep.subr.mxu0 %v1607
    %v1609 = vand.u32 %v235, 4294901760
    %1610 = vmatpush1.msra.mxu0 %v1609
    %v1611 = vand.u32 %v266, 4294901760
    %1612 = vmatprep.subr.mxu0 %v1611
    %v1613 = vand.u32 %v265, 4294901760
    %1614 = vmatpush1.msra.mxu0 %v1613
    %v1615 = vand.u32 %v296, 4294901760
    %1616 = vmatprep.subr.mxu0 %v1615
    %v1617 = vand.u32 %v295, 4294901760
    %1618 = vmatpush1.msra.mxu0 %v1617
    %1619 = vmatprep.subr.mxu0 0.0
    %1620 = vmatpush1.msra.mxu0 0.0
    %1621 = vmatprep.subr.mxu0 0.0
    %1622 = vmatpush1.msra.mxu0 0.0
    %1623 = vmatprep.subr.mxu0 0.0
    %1624 = vmatpush1.msra.mxu0 0.0
    %1625 = vmatprep.subr.mxu0 0.0
    %1626 = vmatpush1.msra.mxu0 0.0
    %1627 = vmatprep.subr.mxu0 0.0
    %1628 = vmatpush1.msra.mxu0 0.0
    %1629 = vmatprep.subr.mxu0 0.0
    %1630 = vmatpush1.msra.mxu0 0.0
    %1631 = vmatprep.subr.mxu0 0.0
    %1632 = vmatpush1.msra.mxu0 0.0
    %1633 = vmatprep.subr.mxu0 0.0
    %1634 = vmatpush1.msra.mxu0 0.0
    %1635 = vmatprep.subr.mxu0 0.0
    %1636 = vmatpush1.msra.mxu0 0.0
    %1637 = vmatprep.subr.mxu0 0.0
    %1638 = vmatpush1.msra.mxu0 0.0
    %1639 = vmatprep.subr.mxu0 0.0
    %1640 = vmatpush1.msra.mxu0 0.0
    %1641 = vmatprep.subr.mxu0 0.0
    %1642 = vmatpush1.msra.mxu0 0.0
    %1643 = vmatprep.subr.mxu0 0.0
    %1644 = vmatpush1.msra.mxu0 0.0
    %1645 = vmatprep.subr.mxu0 0.0
    %1646 = vmatpush1.msra.mxu0 0.0
    %1647 = vmatprep.subr.mxu0 0.0
    %1648 = vmatpush1.msra.mxu0 0.0
    %1649 = vmatprep.subr.mxu0 0.0
    %1650 = vmatpush1.msra.mxu0 0.0
    %1651 = vmatprep.subr.mxu0 0.0
    %1652 = vmatpush1.msra.mxu0 0.0
    %1653 = vmatprep.subr.mxu0 0.0
    %1654 = vmatpush1.msra.mxu0 0.0
    %1655 = vmatprep.subr.mxu0 0.0
    %1656 = vmatpush1.msra.mxu0 0.0
    %1657 = vmatprep.subr.mxu0 0.0
    %1658 = vmatpush1.msra.mxu0 0.0
    %1659 = vmatprep.subr.mxu0 0.0
    %1660 = vmatpush1.msra.mxu0 0.0
    %1661 = vmatprep.subr.mxu0 0.0
    %1662 = vmatpush1.msra.mxu0 0.0
    %1663 = vmatprep.subr.mxu0 0.0
    %1664 = vmatpush1.msra.mxu0 0.0
    %1665 = vmatprep.mubr.f32.mxu0 0.0
    %v1666 = vand.u32 %v325, 4294901760
    %1667 = vmatmul.mubr.f32.gmra.mrb[0].mxu0 %v1666
    %v1668 = vpop.f32.mrb[0].mxu0
    %v1669 = vadd.f32 %v1579, %v1668
    %v1670 = vpop.f32.mrb[0].mxu0
    %v1671 = vadd.f32 %v1581, %v1670
    %1672 = vdwg.mxu0
    %v1673 = vand.u32 %v58, 4294901760
    %1674 = vmatprep.subr.mxu0 %v1673
    %v1675 = vand.u32 %v57, 4294901760
    %1676 = vmatpush1.msra.mxu0 %v1675
    %v1677 = vand.u32 %v88, 4294901760
    %1678 = vmatprep.subr.mxu0 %v1677
    %v1679 = vand.u32 %v87, 4294901760
    %1680 = vmatpush1.msra.mxu0 %v1679
    %v1681 = vand.u32 %v118, 4294901760
    %1682 = vmatprep.subr.mxu0 %v1681
    %v1683 = vand.u32 %v117, 4294901760
    %1684 = vmatpush1.msra.mxu0 %v1683
    %v1685 = vand.u32 %v148, 4294901760
    %1686 = vmatprep.subr.mxu0 %v1685
    %v1687 = vand.u32 %v147, 4294901760
    %1688 = vmatpush1.msra.mxu0 %v1687
    %v1689 = vand.u32 %v178, 4294901760
    %1690 = vmatprep.subr.mxu0 %v1689
    %v1691 = vand.u32 %v177, 4294901760
    %1692 = vmatpush1.msra.mxu0 %v1691
    %v1693 = vand.u32 %v208, 4294901760
    %1694 = vmatprep.subr.mxu0 %v1693
    %v1695 = vand.u32 %v207, 4294901760
    %1696 = vmatpush1.msra.mxu0 %v1695
    %v1697 = vand.u32 %v238, 4294901760
    %1698 = vmatprep.subr.mxu0 %v1697
    %v1699 = vand.u32 %v237, 4294901760
    %1700 = vmatpush1.msra.mxu0 %v1699
    %v1701 = vand.u32 %v268, 4294901760
    %1702 = vmatprep.subr.mxu0 %v1701
    %v1703 = vand.u32 %v267, 4294901760
    %1704 = vmatpush1.msra.mxu0 %v1703
    %v1705 = vand.u32 %v298, 4294901760
    %1706 = vmatprep.subr.mxu0 %v1705
    %v1707 = vand.u32 %v297, 4294901760
    %1708 = vmatpush1.msra.mxu0 %v1707
    %1709 = vmatprep.subr.mxu0 0.0
    %1710 = vmatpush1.msra.mxu0 0.0
    %1711 = vmatprep.subr.mxu0 0.0
    %1712 = vmatpush1.msra.mxu0 0.0
    %1713 = vmatprep.subr.mxu0 0.0
    %1714 = vmatpush1.msra.mxu0 0.0
    %1715 = vmatprep.subr.mxu0 0.0
    %1716 = vmatpush1.msra.mxu0 0.0
    %1717 = vmatprep.subr.mxu0 0.0
    %1718 = vmatpush1.msra.mxu0 0.0
    %1719 = vmatprep.subr.mxu0 0.0
    %1720 = vmatpush1.msra.mxu0 0.0
    %1721 = vmatprep.subr.mxu0 0.0
    %1722 = vmatpush1.msra.mxu0 0.0
    %1723 = vmatprep.subr.mxu0 0.0
    %1724 = vmatpush1.msra.mxu0 0.0
    %1725 = vmatprep.subr.mxu0 0.0
    %1726 = vmatpush1.msra.mxu0 0.0
    %1727 = vmatprep.subr.mxu0 0.0
    %1728 = vmatpush1.msra.mxu0 0.0
    %1729 = vmatprep.subr.mxu0 0.0
    %1730 = vmatpush1.msra.mxu0 0.0
    %1731 = vmatprep.subr.mxu0 0.0
    %1732 = vmatpush1.msra.mxu0 0.0
    %1733 = vmatprep.subr.mxu0 0.0
    %1734 = vmatpush1.msra.mxu0 0.0
    %1735 = vmatprep.subr.mxu0 0.0
    %1736 = vmatpush1.msra.mxu0 0.0
    %1737 = vmatprep.subr.mxu0 0.0
    %1738 = vmatpush1.msra.mxu0 0.0
    %1739 = vmatprep.subr.mxu0 0.0
    %1740 = vmatpush1.msra.mxu0 0.0
    %1741 = vmatprep.subr.mxu0 0.0
    %1742 = vmatpush1.msra.mxu0 0.0
    %1743 = vmatprep.subr.mxu0 0.0
    %1744 = vmatpush1.msra.mxu0 0.0
    %1745 = vmatprep.subr.mxu0 0.0
    %1746 = vmatpush1.msra.mxu0 0.0
    %1747 = vmatprep.subr.mxu0 0.0
    %1748 = vmatpush1.msra.mxu0 0.0
    %1749 = vmatprep.subr.mxu0 0.0
    %1750 = vmatpush1.msra.mxu0 0.0
    %1751 = vmatprep.subr.mxu0 0.0
    %1752 = vmatpush1.msra.mxu0 0.0
    %1753 = vmatprep.subr.mxu0 0.0
    %1754 = vmatpush1.msra.mxu0 0.0
    %1755 = vmatprep.mubr.f32.mxu0 0.0
    %v1756 = vand.u32 %v325, 4294901760
    %v1757 = vsub.f32 %v325, %v1756
    %v1758 = vand.u32 %v1757, 4294901760
    %v1759 = vsub.f32 %v1757, %v1758
    %v1760 = vand.u32 %v1759, 4294901760
    %1761 = vmatmul.mubr.f32.gmra.mrb[0].mxu0 %v1760
    %v1762 = vpop.f32.mrb[0].mxu0
    %v1763 = vadd.f32 0.0, %v1762
    %v1764 = vpop.f32.mrb[0].mxu0
    %v1765 = vadd.f32 0.0, %v1764
    %1766 = vdwg.mxu0
    %v1767 = vand.u32 %v58, 4294901760
    %v1768 = vsub.f32 %v58, %v1767
    %v1769 = vand.u32 %v1768, 4294901760
    %v1770 = vsub.f32 %v1768, %v1769
    %v1771 = vand.u32 %v1770, 4294901760
    %1772 = vmatprep.subr.mxu0 %v1771
    %v1773 = vand.u32 %v57, 4294901760
    %v1774 = vsub.f32 %v57, %v1773
    %v1775 = vand.u32 %v1774, 4294901760
    %v1776 = vsub.f32 %v1774, %v1775
    %v1777 = vand.u32 %v1776, 4294901760
    %1778 = vmatpush1.msra.mxu0 %v1777
    %v1779 = vand.u32 %v88, 4294901760
    %v1780 = vsub.f32 %v88, %v1779
    %v1781 = vand.u32 %v1780, 4294901760
    %v1782 = vsub.f32 %v1780, %v1781
    %v1783 = vand.u32 %v1782, 4294901760
    %1784 = vmatprep.subr.mxu0 %v1783
    %v1785 = vand.u32 %v87, 4294901760
    %v1786 = vsub.f32 %v87, %v1785
    %v1787 = vand.u32 %v1786, 4294901760
    %v1788 = vsub.f32 %v1786, %v1787
    %v1789 = vand.u32 %v1788, 4294901760
    %1790 = vmatpush1.msra.mxu0 %v1789
    %v1791 = vand.u32 %v118, 4294901760
    %v1792 = vsub.f32 %v118, %v1791
    %v1793 = vand.u32 %v1792, 4294901760
    %v1794 = vsub.f32 %v1792, %v1793
    %v1795 = vand.u32 %v1794, 4294901760
    %1796 = vmatprep.subr.mxu0 %v1795
    %v1797 = vand.u32 %v117, 4294901760
    %v1798 = vsub.f32 %v117, %v1797
    %v1799 = vand.u32 %v1798, 4294901760
    %v1800 = vsub.f32 %v1798, %v1799
    %v1801 = vand.u32 %v1800, 4294901760
    %1802 = vmatpush1.msra.mxu0 %v1801
    %v1803 = vand.u32 %v148, 4294901760
    %v1804 = vsub.f32 %v148, %v1803
    %v1805 = vand.u32 %v1804, 4294901760
    %v1806 = vsub.f32 %v1804, %v1805
    %v1807 = vand.u32 %v1806, 4294901760
    %1808 = vmatprep.subr.mxu0 %v1807
    %v1809 = vand.u32 %v147, 4294901760
    %v1810 = vsub.f32 %v147, %v1809
    %v1811 = vand.u32 %v1810, 4294901760
    %v1812 = vsub.f32 %v1810, %v1811
    %v1813 = vand.u32 %v1812, 4294901760
    %1814 = vmatpush1.msra.mxu0 %v1813
    %v1815 = vand.u32 %v178, 4294901760
    %v1816 = vsub.f32 %v178, %v1815
    %v1817 = vand.u32 %v1816, 4294901760
    %v1818 = vsub.f32 %v1816, %v1817
    %v1819 = vand.u32 %v1818, 4294901760
    %1820 = vmatprep.subr.mxu0 %v1819
    %v1821 = vand.u32 %v177, 4294901760
    %v1822 = vsub.f32 %v177, %v1821
    %v1823 = vand.u32 %v1822, 4294901760
    %v1824 = vsub.f32 %v1822, %v1823
    %v1825 = vand.u32 %v1824, 4294901760
    %1826 = vmatpush1.msra.mxu0 %v1825
    %v1827 = vand.u32 %v208, 4294901760
    %v1828 = vsub.f32 %v208, %v1827
    %v1829 = vand.u32 %v1828, 4294901760
    %v1830 = vsub.f32 %v1828, %v1829
    %v1831 = vand.u32 %v1830, 4294901760
    %1832 = vmatprep.subr.mxu0 %v1831
    %v1833 = vand.u32 %v207, 4294901760
    %v1834 = vsub.f32 %v207, %v1833
    %v1835 = vand.u32 %v1834, 4294901760
    %v1836 = vsub.f32 %v1834, %v1835
    %v1837 = vand.u32 %v1836, 4294901760
    %1838 = vmatpush1.msra.mxu0 %v1837
    %v1839 = vand.u32 %v238, 4294901760
    %v1840 = vsub.f32 %v238, %v1839
    %v1841 = vand.u32 %v1840, 4294901760
    %v1842 = vsub.f32 %v1840, %v1841
    %v1843 = vand.u32 %v1842, 4294901760
    %1844 = vmatprep.subr.mxu0 %v1843
    %v1845 = vand.u32 %v237, 4294901760
    %v1846 = vsub.f32 %v237, %v1845
    %v1847 = vand.u32 %v1846, 4294901760
    %v1848 = vsub.f32 %v1846, %v1847
    %v1849 = vand.u32 %v1848, 4294901760
    %1850 = vmatpush1.msra.mxu0 %v1849
    %v1851 = vand.u32 %v268, 4294901760
    %v1852 = vsub.f32 %v268, %v1851
    %v1853 = vand.u32 %v1852, 4294901760
    %v1854 = vsub.f32 %v1852, %v1853
    %v1855 = vand.u32 %v1854, 4294901760
    %1856 = vmatprep.subr.mxu0 %v1855
    %v1857 = vand.u32 %v267, 4294901760
    %v1858 = vsub.f32 %v267, %v1857
    %v1859 = vand.u32 %v1858, 4294901760
    %v1860 = vsub.f32 %v1858, %v1859
    %v1861 = vand.u32 %v1860, 4294901760
    %1862 = vmatpush1.msra.mxu0 %v1861
    %v1863 = vand.u32 %v298, 4294901760
    %v1864 = vsub.f32 %v298, %v1863
    %v1865 = vand.u32 %v1864, 4294901760
    %v1866 = vsub.f32 %v1864, %v1865
    %v1867 = vand.u32 %v1866, 4294901760
    %1868 = vmatprep.subr.mxu0 %v1867
    %v1869 = vand.u32 %v297, 4294901760
    %v1870 = vsub.f32 %v297, %v1869
    %v1871 = vand.u32 %v1870, 4294901760
    %v1872 = vsub.f32 %v1870, %v1871
    %v1873 = vand.u32 %v1872, 4294901760
    %1874 = vmatpush1.msra.mxu0 %v1873
    %1875 = vmatprep.subr.mxu0 0.0
    %1876 = vmatpush1.msra.mxu0 0.0
    %1877 = vmatprep.subr.mxu0 0.0
    %1878 = vmatpush1.msra.mxu0 0.0
    %1879 = vmatprep.subr.mxu0 0.0
    %1880 = vmatpush1.msra.mxu0 0.0
    %1881 = vmatprep.subr.mxu0 0.0
    %1882 = vmatpush1.msra.mxu0 0.0
    %1883 = vmatprep.subr.mxu0 0.0
    %1884 = vmatpush1.msra.mxu0 0.0
    %1885 = vmatprep.subr.mxu0 0.0
    %1886 = vmatpush1.msra.mxu0 0.0
    %1887 = vmatprep.subr.mxu0 0.0
    %1888 = vmatpush1.msra.mxu0 0.0
    %1889 = vmatprep.subr.mxu0 0.0
    %1890 = vmatpush1.msra.mxu0 0.0
    %1891 = vmatprep.subr.mxu0 0.0
    %1892 = vmatpush1.msra.mxu0 0.0
    %1893 = vmatprep.subr.mxu0 0.0
    %1894 = vmatpush1.msra.mxu0 0.0
    %1895 = vmatprep.subr.mxu0 0.0
    %1896 = vmatpush1.msra.mxu0 0.0
    %1897 = vmatprep.subr.mxu0 0.0
    %1898 = vmatpush1.msra.mxu0 0.0
    %1899 = vmatprep.subr.mxu0 0.0
    %1900 = vmatpush1.msra.mxu0 0.0
    %1901 = vmatprep.subr.mxu0 0.0
    %1902 = vmatpush1.msra.mxu0 0.0
    %1903 = vmatprep.subr.mxu0 0.0
    %1904 = vmatpush1.msra.mxu0 0.0
    %1905 = vmatprep.subr.mxu0 0.0
    %1906 = vmatpush1.msra.mxu0 0.0
    %1907 = vmatprep.subr.mxu0 0.0
    %1908 = vmatpush1.msra.mxu0 0.0
    %1909 = vmatprep.subr.mxu0 0.0
    %1910 = vmatpush1.msra.mxu0 0.0
    %1911 = vmatprep.subr.mxu0 0.0
    %1912 = vmatpush1.msra.mxu0 0.0
    %1913 = vmatprep.subr.mxu0 0.0
    %1914 = vmatpush1.msra.mxu0 0.0
    %1915 = vmatprep.subr.mxu0 0.0
    %1916 = vmatpush1.msra.mxu0 0.0
    %1917 = vmatprep.subr.mxu0 0.0
    %1918 = vmatpush1.msra.mxu0 0.0
    %1919 = vmatprep.subr.mxu0 0.0
    %1920 = vmatpush1.msra.mxu0 0.0
    %1921 = vmatprep.mubr.f32.mxu0 0.0
    %v1922 = vand.u32 %v325, 4294901760
    %1923 = vmatmul.mubr.f32.gmra.mrb[0].mxu0 %v1922
    %v1924 = vpop.f32.mrb[0].mxu0
    %v1925 = vadd.f32 %v1763, %v1924
    %v1926 = vpop.f32.mrb[0].mxu0
    %v1927 = vadd.f32 %v1765, %v1926
    %1928 = vdwg.mxu0
    %v1929 = vand.u32 %v58, 4294901760
    %v1930 = vsub.f32 %v58, %v1929
    %1931 = vmatprep.subr.mxu0 %v1930
    %v1932 = vand.u32 %v57, 4294901760
    %v1933 = vsub.f32 %v57, %v1932
    %1934 = vmatpush1.msra.mxu0 %v1933
    %v1935 = vand.u32 %v88, 4294901760
    %v1936 = vsub.f32 %v88, %v1935
    %1937 = vmatprep.subr.mxu0 %v1936
    %v1938 = vand.u32 %v87, 4294901760
    %v1939 = vsub.f32 %v87, %v1938
    %1940 = vmatpush1.msra.mxu0 %v1939
    %v1941 = vand.u32 %v118, 4294901760
    %v1942 = vsub.f32 %v118, %v1941
    %1943 = vmatprep.subr.mxu0 %v1942
    %v1944 = vand.u32 %v117, 4294901760
    %v1945 = vsub.f32 %v117, %v1944
    %1946 = vmatpush1.msra.mxu0 %v1945
    %v1947 = vand.u32 %v148, 4294901760
    %v1948 = vsub.f32 %v148, %v1947
    %1949 = vmatprep.subr.mxu0 %v1948
    %v1950 = vand.u32 %v147, 4294901760
    %v1951 = vsub.f32 %v147, %v1950
    %1952 = vmatpush1.msra.mxu0 %v1951
    %v1953 = vand.u32 %v178, 4294901760
    %v1954 = vsub.f32 %v178, %v1953
    %1955 = vmatprep.subr.mxu0 %v1954
    %v1956 = vand.u32 %v177, 4294901760
    %v1957 = vsub.f32 %v177, %v1956
    %1958 = vmatpush1.msra.mxu0 %v1957
    %v1959 = vand.u32 %v208, 4294901760
    %v1960 = vsub.f32 %v208, %v1959
    %1961 = vmatprep.subr.mxu0 %v1960
    %v1962 = vand.u32 %v207, 4294901760
    %v1963 = vsub.f32 %v207, %v1962
    %1964 = vmatpush1.msra.mxu0 %v1963
    %v1965 = vand.u32 %v238, 4294901760
    %v1966 = vsub.f32 %v238, %v1965
    %1967 = vmatprep.subr.mxu0 %v1966
    %v1968 = vand.u32 %v237, 4294901760
    %v1969 = vsub.f32 %v237, %v1968
    %1970 = vmatpush1.msra.mxu0 %v1969
    %v1971 = vand.u32 %v268, 4294901760
    %v1972 = vsub.f32 %v268, %v1971
    %1973 = vmatprep.subr.mxu0 %v1972
    %v1974 = vand.u32 %v267, 4294901760
    %v1975 = vsub.f32 %v267, %v1974
    %1976 = vmatpush1.msra.mxu0 %v1975
    %v1977 = vand.u32 %v298, 4294901760
    %v1978 = vsub.f32 %v298, %v1977
    %1979 = vmatprep.subr.mxu0 %v1978
    %v1980 = vand.u32 %v297, 4294901760
    %v1981 = vsub.f32 %v297, %v1980
    %1982 = vmatpush1.msra.mxu0 %v1981
    %1983 = vmatprep.subr.mxu0 0.0
    %1984 = vmatpush1.msra.mxu0 0.0
    %1985 = vmatprep.subr.mxu0 0.0
    %1986 = vmatpush1.msra.mxu0 0.0
    %1987 = vmatprep.subr.mxu0 0.0
    %1988 = vmatpush1.msra.mxu0 0.0
    %1989 = vmatprep.subr.mxu0 0.0
    %1990 = vmatpush1.msra.mxu0 0.0
    %1991 = vmatprep.subr.mxu0 0.0
    %1992 = vmatpush1.msra.mxu0 0.0
    %1993 = vmatprep.subr.mxu0 0.0
    %1994 = vmatpush1.msra.mxu0 0.0
    %1995 = vmatprep.subr.mxu0 0.0
    %1996 = vmatpush1.msra.mxu0 0.0
    %1997 = vmatprep.subr.mxu0 0.0
    %1998 = vmatpush1.msra.mxu0 0.0
    %1999 = vmatprep.subr.mxu0 0.0
    %2000 = vmatpush1.msra.mxu0 0.0
    %2001 = vmatprep.subr.mxu0 0.0
    %2002 = vmatpush1.msra.mxu0 0.0
    %2003 = vmatprep.subr.mxu0 0.0
    %2004 = vmatpush1.msra.mxu0 0.0
    %2005 = vmatprep.subr.mxu0 0.0
    %2006 = vmatpush1.msra.mxu0 0.0
    %2007 = vmatprep.subr.mxu0 0.0
    %2008 = vmatpush1.msra.mxu0 0.0
    %2009 = vmatprep.subr.mxu0 0.0
    %2010 = vmatpush1.msra.mxu0 0.0
    %2011 = vmatprep.subr.mxu0 0.0
    %2012 = vmatpush1.msra.mxu0 0.0
    %2013 = vmatprep.subr.mxu0 0.0
    %2014 = vmatpush1.msra.mxu0 0.0
    %2015 = vmatprep.subr.mxu0 0.0
    %2016 = vmatpush1.msra.mxu0 0.0
    %2017 = vmatprep.subr.mxu0 0.0
    %2018 = vmatpush1.msra.mxu0 0.0
    %2019 = vmatprep.subr.mxu0 0.0
    %2020 = vmatpush1.msra.mxu0 0.0
    %2021 = vmatprep.subr.mxu0 0.0
    %2022 = vmatpush1.msra.mxu0 0.0
    %2023 = vmatprep.subr.mxu0 0.0
    %2024 = vmatpush1.msra.mxu0 0.0
    %2025 = vmatprep.subr.mxu0 0.0
    %2026 = vmatpush1.msra.mxu0 0.0
    %2027 = vmatprep.subr.mxu0 0.0
    %2028 = vmatpush1.msra.mxu0 0.0
    %2029 = vmatprep.mubr.f32.mxu0 0.0
    %v2030 = vand.u32 %v325, 4294901760
    %v2031 = vsub.f32 %v325, %v2030
    %2032 = vmatmul.mubr.f32.gmra.mrb[0].mxu0 %v2031
    %v2033 = vpop.f32.mrb[0].mxu0
    %v2034 = vadd.f32 %v1925, %v2033
    %v2035 = vpop.f32.mrb[0].mxu0
    %v2036 = vadd.f32 %v1927, %v2035
    %2037 = vdwg.mxu0
    %v2038 = vand.u32 %v58, 4294901760
    %2039 = vmatprep.subr.mxu0 %v2038
    %v2040 = vand.u32 %v57, 4294901760
    %2041 = vmatpush1.msra.mxu0 %v2040
    %v2042 = vand.u32 %v88, 4294901760
    %2043 = vmatprep.subr.mxu0 %v2042
    %v2044 = vand.u32 %v87, 4294901760
    %2045 = vmatpush1.msra.mxu0 %v2044
    %v2046 = vand.u32 %v118, 4294901760
    %2047 = vmatprep.subr.mxu0 %v2046
    %v2048 = vand.u32 %v117, 4294901760
    %2049 = vmatpush1.msra.mxu0 %v2048
    %v2050 = vand.u32 %v148, 4294901760
    %2051 = vmatprep.subr.mxu0 %v2050
    %v2052 = vand.u32 %v147, 4294901760
    %2053 = vmatpush1.msra.mxu0 %v2052
    %v2054 = vand.u32 %v178, 4294901760
    %2055 = vmatprep.subr.mxu0 %v2054
    %v2056 = vand.u32 %v177, 4294901760
    %2057 = vmatpush1.msra.mxu0 %v2056
    %v2058 = vand.u32 %v208, 4294901760
    %2059 = vmatprep.subr.mxu0 %v2058
    %v2060 = vand.u32 %v207, 4294901760
    %2061 = vmatpush1.msra.mxu0 %v2060
    %v2062 = vand.u32 %v238, 4294901760
    %2063 = vmatprep.subr.mxu0 %v2062
    %v2064 = vand.u32 %v237, 4294901760
    %2065 = vmatpush1.msra.mxu0 %v2064
    %v2066 = vand.u32 %v268, 4294901760
    %2067 = vmatprep.subr.mxu0 %v2066
    %v2068 = vand.u32 %v267, 4294901760
    %2069 = vmatpush1.msra.mxu0 %v2068
    %v2070 = vand.u32 %v298, 4294901760
    %2071 = vmatprep.subr.mxu0 %v2070
    %v2072 = vand.u32 %v297, 4294901760
    %2073 = vmatpush1.msra.mxu0 %v2072
    %2074 = vmatprep.subr.mxu0 0.0
    %2075 = vmatpush1.msra.mxu0 0.0
    %2076 = vmatprep.subr.mxu0 0.0
    %2077 = vmatpush1.msra.mxu0 0.0
    %2078 = vmatprep.subr.mxu0 0.0
    %2079 = vmatpush1.msra.mxu0 0.0
    %2080 = vmatprep.subr.mxu0 0.0
    %2081 = vmatpush1.msra.mxu0 0.0
    %2082 = vmatprep.subr.mxu0 0.0
    %2083 = vmatpush1.msra.mxu0 0.0
    %2084 = vmatprep.subr.mxu0 0.0
    %2085 = vmatpush1.msra.mxu0 0.0
    %2086 = vmatprep.subr.mxu0 0.0
    %2087 = vmatpush1.msra.mxu0 0.0
    %2088 = vmatprep.subr.mxu0 0.0
    %2089 = vmatpush1.msra.mxu0 0.0
    %2090 = vmatprep.subr.mxu0 0.0
    %2091 = vmatpush1.msra.mxu0 0.0
    %2092 = vmatprep.subr.mxu0 0.0
    %2093 = vmatpush1.msra.mxu0 0.0
    %2094 = vmatprep.subr.mxu0 0.0
    %2095 = vmatpush1.msra.mxu0 0.0
    %2096 = vmatprep.subr.mxu0 0.0
    %2097 = vmatpush1.msra.mxu0 0.0
    %2098 = vmatprep.subr.mxu0 0.0
    %2099 = vmatpush1.msra.mxu0 0.0
    %2100 = vmatprep.subr.mxu0 0.0
    %2101 = vmatpush1.msra.mxu0 0.0
    %2102 = vmatprep.subr.mxu0 0.0
    %2103 = vmatpush1.msra.mxu0 0.0
    %2104 = vmatprep.subr.mxu0 0.0
    %2105 = vmatpush1.msra.mxu0 0.0
    %2106 = vmatprep.subr.mxu0 0.0
    %2107 = vmatpush1.msra.mxu0 0.0
    %2108 = vmatprep.subr.mxu0 0.0
    %2109 = vmatpush1.msra.mxu0 0.0
    %2110 = vmatprep.subr.mxu0 0.0
    %2111 = vmatpush1.msra.mxu0 0.0
    %2112 = vmatprep.subr.mxu0 0.0
    %2113 = vmatpush1.msra.mxu0 0.0
    %2114 = vmatprep.subr.mxu0 0.0
    %2115 = vmatpush1.msra.mxu0 0.0
    %2116 = vmatprep.subr.mxu0 0.0
    %2117 = vmatpush1.msra.mxu0 0.0
    %2118 = vmatprep.subr.mxu0 0.0
    %2119 = vmatpush1.msra.mxu0 0.0
    %2120 = vmatprep.mubr.f32.mxu0 0.0
    %v2121 = vand.u32 %v325, 4294901760
    %v2122 = vsub.f32 %v325, %v2121
    %v2123 = vand.u32 %v2122, 4294901760
    %2124 = vmatmul.mubr.f32.gmra.mrb[0].mxu0 %v2123
    %v2125 = vpop.f32.mrb[0].mxu0
    %v2126 = vadd.f32 %v2034, %v2125
    %v2127 = vpop.f32.mrb[0].mxu0
    %v2128 = vadd.f32 %v2036, %v2127
    %2129 = vdwg.mxu0
    %v2130 = vand.u32 %v58, 4294901760
    %v2131 = vsub.f32 %v58, %v2130
    %v2132 = vand.u32 %v2131, 4294901760
    %2133 = vmatprep.subr.mxu0 %v2132
    %v2134 = vand.u32 %v57, 4294901760
    %v2135 = vsub.f32 %v57, %v2134
    %v2136 = vand.u32 %v2135, 4294901760
    %2137 = vmatpush1.msra.mxu0 %v2136
    %v2138 = vand.u32 %v88, 4294901760
    %v2139 = vsub.f32 %v88, %v2138
    %v2140 = vand.u32 %v2139, 4294901760
    %2141 = vmatprep.subr.mxu0 %v2140
    %v2142 = vand.u32 %v87, 4294901760
    %v2143 = vsub.f32 %v87, %v2142
    %v2144 = vand.u32 %v2143, 4294901760
    %2145 = vmatpush1.msra.mxu0 %v2144
    %v2146 = vand.u32 %v118, 4294901760
    %v2147 = vsub.f32 %v118, %v2146
    %v2148 = vand.u32 %v2147, 4294901760
    %2149 = vmatprep.subr.mxu0 %v2148
    %v2150 = vand.u32 %v117, 4294901760
    %v2151 = vsub.f32 %v117, %v2150
    %v2152 = vand.u32 %v2151, 4294901760
    %2153 = vmatpush1.msra.mxu0 %v2152
    %v2154 = vand.u32 %v148, 4294901760
    %v2155 = vsub.f32 %v148, %v2154
    %v2156 = vand.u32 %v2155, 4294901760
    %2157 = vmatprep.subr.mxu0 %v2156
    %v2158 = vand.u32 %v147, 4294901760
    %v2159 = vsub.f32 %v147, %v2158
    %v2160 = vand.u32 %v2159, 4294901760
    %2161 = vmatpush1.msra.mxu0 %v2160
    %v2162 = vand.u32 %v178, 4294901760
    %v2163 = vsub.f32 %v178, %v2162
    %v2164 = vand.u32 %v2163, 4294901760
    %2165 = vmatprep.subr.mxu0 %v2164
    %v2166 = vand.u32 %v177, 4294901760
    %v2167 = vsub.f32 %v177, %v2166
    %v2168 = vand.u32 %v2167, 4294901760
    %2169 = vmatpush1.msra.mxu0 %v2168
    %v2170 = vand.u32 %v208, 4294901760
    %v2171 = vsub.f32 %v208, %v2170
    %v2172 = vand.u32 %v2171, 4294901760
    %2173 = vmatprep.subr.mxu0 %v2172
    %v2174 = vand.u32 %v207, 4294901760
    %v2175 = vsub.f32 %v207, %v2174
    %v2176 = vand.u32 %v2175, 4294901760
    %2177 = vmatpush1.msra.mxu0 %v2176
    %v2178 = vand.u32 %v238, 4294901760
    %v2179 = vsub.f32 %v238, %v2178
    %v2180 = vand.u32 %v2179, 4294901760
    %2181 = vmatprep.subr.mxu0 %v2180
    %v2182 = vand.u32 %v237, 4294901760
    %v2183 = vsub.f32 %v237, %v2182
    %v2184 = vand.u32 %v2183, 4294901760
    %2185 = vmatpush1.msra.mxu0 %v2184
    %v2186 = vand.u32 %v268, 4294901760
    %v2187 = vsub.f32 %v268, %v2186
    %v2188 = vand.u32 %v2187, 4294901760
    %2189 = vmatprep.subr.mxu0 %v2188
    %v2190 = vand.u32 %v267, 4294901760
    %v2191 = vsub.f32 %v267, %v2190
    %v2192 = vand.u32 %v2191, 4294901760
    %2193 = vmatpush1.msra.mxu0 %v2192
    %v2194 = vand.u32 %v298, 4294901760
    %v2195 = vsub.f32 %v298, %v2194
    %v2196 = vand.u32 %v2195, 4294901760
    %2197 = vmatprep.subr.mxu0 %v2196
    %v2198 = vand.u32 %v297, 4294901760
    %v2199 = vsub.f32 %v297, %v2198
    %v2200 = vand.u32 %v2199, 4294901760
    %2201 = vmatpush1.msra.mxu0 %v2200
    %2202 = vmatprep.subr.mxu0 0.0
    %2203 = vmatpush1.msra.mxu0 0.0
    %2204 = vmatprep.subr.mxu0 0.0
    %2205 = vmatpush1.msra.mxu0 0.0
    %2206 = vmatprep.subr.mxu0 0.0
    %2207 = vmatpush1.msra.mxu0 0.0
    %2208 = vmatprep.subr.mxu0 0.0
    %2209 = vmatpush1.msra.mxu0 0.0
    %2210 = vmatprep.subr.mxu0 0.0
    %2211 = vmatpush1.msra.mxu0 0.0
    %2212 = vmatprep.subr.mxu0 0.0
    %2213 = vmatpush1.msra.mxu0 0.0
    %2214 = vmatprep.subr.mxu0 0.0
    %2215 = vmatpush1.msra.mxu0 0.0
    %2216 = vmatprep.subr.mxu0 0.0
    %2217 = vmatpush1.msra.mxu0 0.0
    %2218 = vmatprep.subr.mxu0 0.0
    %2219 = vmatpush1.msra.mxu0 0.0
    %2220 = vmatprep.subr.mxu0 0.0
    %2221 = vmatpush1.msra.mxu0 0.0
    %2222 = vmatprep.subr.mxu0 0.0
    %2223 = vmatpush1.msra.mxu0 0.0
    %2224 = vmatprep.subr.mxu0 0.0
    %2225 = vmatpush1.msra.mxu0 0.0
    %2226 = vmatprep.subr.mxu0 0.0
    %2227 = vmatpush1.msra.mxu0 0.0
    %2228 = vmatprep.subr.mxu0 0.0
    %2229 = vmatpush1.msra.mxu0 0.0
    %2230 = vmatprep.subr.mxu0 0.0
    %2231 = vmatpush1.msra.mxu0 0.0
    %2232 = vmatprep.subr.mxu0 0.0
    %2233 = vmatpush1.msra.mxu0 0.0
    %2234 = vmatprep.subr.mxu0 0.0
    %2235 = vmatpush1.msra.mxu0 0.0
    %2236 = vmatprep.subr.mxu0 0.0
    %2237 = vmatpush1.msra.mxu0 0.0
    %2238 = vmatprep.subr.mxu0 0.0
    %2239 = vmatpush1.msra.mxu0 0.0
    %2240 = vmatprep.subr.mxu0 0.0
    %2241 = vmatpush1.msra.mxu0 0.0
    %2242 = vmatprep.subr.mxu0 0.0
    %2243 = vmatpush1.msra.mxu0 0.0
    %2244 = vmatprep.subr.mxu0 0.0
    %2245 = vmatpush1.msra.mxu0 0.0
    %2246 = vmatprep.subr.mxu0 0.0
    %2247 = vmatpush1.msra.mxu0 0.0
    %2248 = vmatprep.mubr.f32.mxu0 0.0
    %v2249 = vand.u32 %v325, 4294901760
    %2250 = vmatmul.mubr.f32.gmra.mrb[0].mxu0 %v2249
    %v2251 = vpop.f32.mrb[0].mxu0
    %v2252 = vadd.f32 %v2126, %v2251
    %v2253 = vpop.f32.mrb[0].mxu0
    %v2254 = vadd.f32 %v2128, %v2253
    %2255 = vdwg.mxu0
    %v2256 = vand.u32 %v58, 4294901760
    %2257 = vmatprep.subr.mxu0 %v2256
    %v2258 = vand.u32 %v57, 4294901760
    %2259 = vmatpush1.msra.mxu0 %v2258
    %v2260 = vand.u32 %v88, 4294901760
    %2261 = vmatprep.subr.mxu0 %v2260
    %v2262 = vand.u32 %v87, 4294901760
    %2263 = vmatpush1.msra.mxu0 %v2262
    %v2264 = vand.u32 %v118, 4294901760
    %2265 = vmatprep.subr.mxu0 %v2264
    %v2266 = vand.u32 %v117, 4294901760
    %2267 = vmatpush1.msra.mxu0 %v2266
    %v2268 = vand.u32 %v148, 4294901760
    %2269 = vmatprep.subr.mxu0 %v2268
    %v2270 = vand.u32 %v147, 4294901760
    %2271 = vmatpush1.msra.mxu0 %v2270
    %v2272 = vand.u32 %v178, 4294901760
    %2273 = vmatprep.subr.mxu0 %v2272
    %v2274 = vand.u32 %v177, 4294901760
    %2275 = vmatpush1.msra.mxu0 %v2274
    %v2276 = vand.u32 %v208, 4294901760
    %2277 = vmatprep.subr.mxu0 %v2276
    %v2278 = vand.u32 %v207, 4294901760
    %2279 = vmatpush1.msra.mxu0 %v2278
    %v2280 = vand.u32 %v238, 4294901760
    %2281 = vmatprep.subr.mxu0 %v2280
    %v2282 = vand.u32 %v237, 4294901760
    %2283 = vmatpush1.msra.mxu0 %v2282
    %v2284 = vand.u32 %v268, 4294901760
    %2285 = vmatprep.subr.mxu0 %v2284
    %v2286 = vand.u32 %v267, 4294901760
    %2287 = vmatpush1.msra.mxu0 %v2286
    %v2288 = vand.u32 %v298, 4294901760
    %2289 = vmatprep.subr.mxu0 %v2288
    %v2290 = vand.u32 %v297, 4294901760
    %2291 = vmatpush1.msra.mxu0 %v2290
    %2292 = vmatprep.subr.mxu0 0.0
    %2293 = vmatpush1.msra.mxu0 0.0
    %2294 = vmatprep.subr.mxu0 0.0
    %2295 = vmatpush1.msra.mxu0 0.0
    %2296 = vmatprep.subr.mxu0 0.0
    %2297 = vmatpush1.msra.mxu0 0.0
    %2298 = vmatprep.subr.mxu0 0.0
    %2299 = vmatpush1.msra.mxu0 0.0
    %2300 = vmatprep.subr.mxu0 0.0
    %2301 = vmatpush1.msra.mxu0 0.0
    %2302 = vmatprep.subr.mxu0 0.0
    %2303 = vmatpush1.msra.mxu0 0.0
    %2304 = vmatprep.subr.mxu0 0.0
    %2305 = vmatpush1.msra.mxu0 0.0
    %2306 = vmatprep.subr.mxu0 0.0
    %2307 = vmatpush1.msra.mxu0 0.0
    %2308 = vmatprep.subr.mxu0 0.0
    %2309 = vmatpush1.msra.mxu0 0.0
    %2310 = vmatprep.subr.mxu0 0.0
    %2311 = vmatpush1.msra.mxu0 0.0
    %2312 = vmatprep.subr.mxu0 0.0
    %2313 = vmatpush1.msra.mxu0 0.0
    %2314 = vmatprep.subr.mxu0 0.0
    %2315 = vmatpush1.msra.mxu0 0.0
    %2316 = vmatprep.subr.mxu0 0.0
    %2317 = vmatpush1.msra.mxu0 0.0
    %2318 = vmatprep.subr.mxu0 0.0
    %2319 = vmatpush1.msra.mxu0 0.0
    %2320 = vmatprep.subr.mxu0 0.0
    %2321 = vmatpush1.msra.mxu0 0.0
    %2322 = vmatprep.subr.mxu0 0.0
    %2323 = vmatpush1.msra.mxu0 0.0
    %2324 = vmatprep.subr.mxu0 0.0
    %2325 = vmatpush1.msra.mxu0 0.0
    %2326 = vmatprep.subr.mxu0 0.0
    %2327 = vmatpush1.msra.mxu0 0.0
    %2328 = vmatprep.subr.mxu0 0.0
    %2329 = vmatpush1.msra.mxu0 0.0
    %2330 = vmatprep.subr.mxu0 0.0
    %2331 = vmatpush1.msra.mxu0 0.0
    %2332 = vmatprep.subr.mxu0 0.0
    %2333 = vmatpush1.msra.mxu0 0.0
    %2334 = vmatprep.subr.mxu0 0.0
    %2335 = vmatpush1.msra.mxu0 0.0
    %2336 = vmatprep.subr.mxu0 0.0
    %2337 = vmatpush1.msra.mxu0 0.0
    %2338 = vmatprep.mubr.f32.mxu0 0.0
    %v2339 = vand.u32 %v325, 4294901760
    %2340 = vmatmul.mubr.f32.gmra.mrb[0].mxu0 %v2339
    %v2341 = vpop.f32.mrb[0].mxu0
    %v2342 = vadd.f32 %v2252, %v2341
    %v2343 = vpop.f32.mrb[0].mxu0
    %v2344 = vadd.f32 %v2254, %v2343
    %2345 = vdwg.mxu0
    %v2346 = vand.u32 %v60, 4294901760
    %2347 = vmatprep.subr.mxu0 %v2346
    %v2348 = vand.u32 %v59, 4294901760
    %2349 = vmatpush1.msra.mxu0 %v2348
    %v2350 = vand.u32 %v90, 4294901760
    %2351 = vmatprep.subr.mxu0 %v2350
    %v2352 = vand.u32 %v89, 4294901760
    %2353 = vmatpush1.msra.mxu0 %v2352
    %v2354 = vand.u32 %v120, 4294901760
    %2355 = vmatprep.subr.mxu0 %v2354
    %v2356 = vand.u32 %v119, 4294901760
    %2357 = vmatpush1.msra.mxu0 %v2356
    %v2358 = vand.u32 %v150, 4294901760
    %2359 = vmatprep.subr.mxu0 %v2358
    %v2360 = vand.u32 %v149, 4294901760
    %2361 = vmatpush1.msra.mxu0 %v2360
    %v2362 = vand.u32 %v180, 4294901760
    %2363 = vmatprep.subr.mxu0 %v2362
    %v2364 = vand.u32 %v179, 4294901760
    %2365 = vmatpush1.msra.mxu0 %v2364
    %v2366 = vand.u32 %v210, 4294901760
    %2367 = vmatprep.subr.mxu0 %v2366
    %v2368 = vand.u32 %v209, 4294901760
    %2369 = vmatpush1.msra.mxu0 %v2368
    %v2370 = vand.u32 %v240, 4294901760
    %2371 = vmatprep.subr.mxu0 %v2370
    %v2372 = vand.u32 %v239, 4294901760
    %2373 = vmatpush1.msra.mxu0 %v2372
    %v2374 = vand.u32 %v270, 4294901760
    %2375 = vmatprep.subr.mxu0 %v2374
    %v2376 = vand.u32 %v269, 4294901760
    %2377 = vmatpush1.msra.mxu0 %v2376
    %v2378 = vand.u32 %v300, 4294901760
    %2379 = vmatprep.subr.mxu0 %v2378
    %v2380 = vand.u32 %v299, 4294901760
    %2381 = vmatpush1.msra.mxu0 %v2380
    %2382 = vmatprep.subr.mxu0 0.0
    %2383 = vmatpush1.msra.mxu0 0.0
    %2384 = vmatprep.subr.mxu0 0.0
    %2385 = vmatpush1.msra.mxu0 0.0
    %2386 = vmatprep.subr.mxu0 0.0
    %2387 = vmatpush1.msra.mxu0 0.0
    %2388 = vmatprep.subr.mxu0 0.0
    %2389 = vmatpush1.msra.mxu0 0.0
    %2390 = vmatprep.subr.mxu0 0.0
    %2391 = vmatpush1.msra.mxu0 0.0
    %2392 = vmatprep.subr.mxu0 0.0
    %2393 = vmatpush1.msra.mxu0 0.0
    %2394 = vmatprep.subr.mxu0 0.0
    %2395 = vmatpush1.msra.mxu0 0.0
    %2396 = vmatprep.subr.mxu0 0.0
    %2397 = vmatpush1.msra.mxu0 0.0
    %2398 = vmatprep.subr.mxu0 0.0
    %2399 = vmatpush1.msra.mxu0 0.0
    %2400 = vmatprep.subr.mxu0 0.0
    %2401 = vmatpush1.msra.mxu0 0.0
    %2402 = vmatprep.subr.mxu0 0.0
    %2403 = vmatpush1.msra.mxu0 0.0
    %2404 = vmatprep.subr.mxu0 0.0
    %2405 = vmatpush1.msra.mxu0 0.0
    %2406 = vmatprep.subr.mxu0 0.0
    %2407 = vmatpush1.msra.mxu0 0.0
    %2408 = vmatprep.subr.mxu0 0.0
    %2409 = vmatpush1.msra.mxu0 0.0
    %2410 = vmatprep.subr.mxu0 0.0
    %2411 = vmatpush1.msra.mxu0 0.0
    %2412 = vmatprep.subr.mxu0 0.0
    %2413 = vmatpush1.msra.mxu0 0.0
    %2414 = vmatprep.subr.mxu0 0.0
    %2415 = vmatpush1.msra.mxu0 0.0
    %2416 = vmatprep.subr.mxu0 0.0
    %2417 = vmatpush1.msra.mxu0 0.0
    %2418 = vmatprep.subr.mxu0 0.0
    %2419 = vmatpush1.msra.mxu0 0.0
    %2420 = vmatprep.subr.mxu0 0.0
    %2421 = vmatpush1.msra.mxu0 0.0
    %2422 = vmatprep.subr.mxu0 0.0
    %2423 = vmatpush1.msra.mxu0 0.0
    %2424 = vmatprep.subr.mxu0 0.0
    %2425 = vmatpush1.msra.mxu0 0.0
    %2426 = vmatprep.subr.mxu0 0.0
    %2427 = vmatpush1.msra.mxu0 0.0
    %2428 = vmatprep.mubr.f32.mxu0 0.0
    %v2429 = vand.u32 %v325, 4294901760
    %v2430 = vsub.f32 %v325, %v2429
    %v2431 = vand.u32 %v2430, 4294901760
    %v2432 = vsub.f32 %v2430, %v2431
    %v2433 = vand.u32 %v2432, 4294901760
    %2434 = vmatmul.mubr.f32.gmra.mrb[0].mxu0 %v2433
    %v2435 = vpop.f32.mrb[0].mxu0
    %v2436 = vadd.f32 0.0, %v2435
    %v2437 = vpop.f32.mrb[0].mxu0
    %v2438 = vadd.f32 0.0, %v2437
    %2439 = vdwg.mxu0
    %v2440 = vand.u32 %v60, 4294901760
    %v2441 = vsub.f32 %v60, %v2440
    %v2442 = vand.u32 %v2441, 4294901760
    %v2443 = vsub.f32 %v2441, %v2442
    %v2444 = vand.u32 %v2443, 4294901760
    %2445 = vmatprep.subr.mxu0 %v2444
    %v2446 = vand.u32 %v59, 4294901760
    %v2447 = vsub.f32 %v59, %v2446
    %v2448 = vand.u32 %v2447, 4294901760
    %v2449 = vsub.f32 %v2447, %v2448
    %v2450 = vand.u32 %v2449, 4294901760
    %2451 = vmatpush1.msra.mxu0 %v2450
    %v2452 = vand.u32 %v90, 4294901760
    %v2453 = vsub.f32 %v90, %v2452
    %v2454 = vand.u32 %v2453, 4294901760
    %v2455 = vsub.f32 %v2453, %v2454
    %v2456 = vand.u32 %v2455, 4294901760
    %2457 = vmatprep.subr.mxu0 %v2456
    %v2458 = vand.u32 %v89, 4294901760
    %v2459 = vsub.f32 %v89, %v2458
    %v2460 = vand.u32 %v2459, 4294901760
    %v2461 = vsub.f32 %v2459, %v2460
    %v2462 = vand.u32 %v2461, 4294901760
    %2463 = vmatpush1.msra.mxu0 %v2462
    %v2464 = vand.u32 %v120, 4294901760
    %v2465 = vsub.f32 %v120, %v2464
    %v2466 = vand.u32 %v2465, 4294901760
    %v2467 = vsub.f32 %v2465, %v2466
    %v2468 = vand.u32 %v2467, 4294901760
    %2469 = vmatprep.subr.mxu0 %v2468
    %v2470 = vand.u32 %v119, 4294901760
    %v2471 = vsub.f32 %v119, %v2470
    %v2472 = vand.u32 %v2471, 4294901760
    %v2473 = vsub.f32 %v2471, %v2472
    %v2474 = vand.u32 %v2473, 4294901760
    %2475 = vmatpush1.msra.mxu0 %v2474
    %v2476 = vand.u32 %v150, 4294901760
    %v2477 = vsub.f32 %v150, %v2476
    %v2478 = vand.u32 %v2477, 4294901760
    %v2479 = vsub.f32 %v2477, %v2478
    %v2480 = vand.u32 %v2479, 4294901760
    %2481 = vmatprep.subr.mxu0 %v2480
    %v2482 = vand.u32 %v149, 4294901760
    %v2483 = vsub.f32 %v149, %v2482
    %v2484 = vand.u32 %v2483, 4294901760
    %v2485 = vsub.f32 %v2483, %v2484
    %v2486 = vand.u32 %v2485, 4294901760
    %2487 = vmatpush1.msra.mxu0 %v2486
    %v2488 = vand.u32 %v180, 4294901760
    %v2489 = vsub.f32 %v180, %v2488
    %v2490 = vand.u32 %v2489, 4294901760
    %v2491 = vsub.f32 %v2489, %v2490
    %v2492 = vand.u32 %v2491, 4294901760
    %2493 = vmatprep.subr.mxu0 %v2492
    %v2494 = vand.u32 %v179, 4294901760
    %v2495 = vsub.f32 %v179, %v2494
    %v2496 = vand.u32 %v2495, 4294901760
    %v2497 = vsub.f32 %v2495, %v2496
    %v2498 = vand.u32 %v2497, 4294901760
    %2499 = vmatpush1.msra.mxu0 %v2498
    %v2500 = vand.u32 %v210, 4294901760
    %v2501 = vsub.f32 %v210, %v2500
    %v2502 = vand.u32 %v2501, 4294901760
    %v2503 = vsub.f32 %v2501, %v2502
    %v2504 = vand.u32 %v2503, 4294901760
    %2505 = vmatprep.subr.mxu0 %v2504
    %v2506 = vand.u32 %v209, 4294901760
    %v2507 = vsub.f32 %v209, %v2506
    %v2508 = vand.u32 %v2507, 4294901760
    %v2509 = vsub.f32 %v2507, %v2508
    %v2510 = vand.u32 %v2509, 4294901760
    %2511 = vmatpush1.msra.mxu0 %v2510
    %v2512 = vand.u32 %v240, 4294901760
    %v2513 = vsub.f32 %v240, %v2512
    %v2514 = vand.u32 %v2513, 4294901760
    %v2515 = vsub.f32 %v2513, %v2514
    %v2516 = vand.u32 %v2515, 4294901760
    %2517 = vmatprep.subr.mxu0 %v2516
    %v2518 = vand.u32 %v239, 4294901760
    %v2519 = vsub.f32 %v239, %v2518
    %v2520 = vand.u32 %v2519, 4294901760
    %v2521 = vsub.f32 %v2519, %v2520
    %v2522 = vand.u32 %v2521, 4294901760
    %2523 = vmatpush1.msra.mxu0 %v2522
    %v2524 = vand.u32 %v270, 4294901760
    %v2525 = vsub.f32 %v270, %v2524
    %v2526 = vand.u32 %v2525, 4294901760
    %v2527 = vsub.f32 %v2525, %v2526
    %v2528 = vand.u32 %v2527, 4294901760
    %2529 = vmatprep.subr.mxu0 %v2528
    %v2530 = vand.u32 %v269, 4294901760
    %v2531 = vsub.f32 %v269, %v2530
    %v2532 = vand.u32 %v2531, 4294901760
    %v2533 = vsub.f32 %v2531, %v2532
    %v2534 = vand.u32 %v2533, 4294901760
    %2535 = vmatpush1.msra.mxu0 %v2534
    %v2536 = vand.u32 %v300, 4294901760
    %v2537 = vsub.f32 %v300, %v2536
    %v2538 = vand.u32 %v2537, 4294901760
    %v2539 = vsub.f32 %v2537, %v2538
    %v2540 = vand.u32 %v2539, 4294901760
    %2541 = vmatprep.subr.mxu0 %v2540
    %v2542 = vand.u32 %v299, 4294901760
    %v2543 = vsub.f32 %v299, %v2542
    %v2544 = vand.u32 %v2543, 4294901760
    %v2545 = vsub.f32 %v2543, %v2544
    %v2546 = vand.u32 %v2545, 4294901760
    %2547 = vmatpush1.msra.mxu0 %v2546
    %2548 = vmatprep.subr.mxu0 0.0
    %2549 = vmatpush1.msra.mxu0 0.0
    %2550 = vmatprep.subr.mxu0 0.0
    %2551 = vmatpush1.msra.mxu0 0.0
    %2552 = vmatprep.subr.mxu0 0.0
    %2553 = vmatpush1.msra.mxu0 0.0
    %2554 = vmatprep.subr.mxu0 0.0
    %2555 = vmatpush1.msra.mxu0 0.0
    %2556 = vmatprep.subr.mxu0 0.0
    %2557 = vmatpush1.msra.mxu0 0.0
    %2558 = vmatprep.subr.mxu0 0.0
    %2559 = vmatpush1.msra.mxu0 0.0
    %2560 = vmatprep.subr.mxu0 0.0
    %2561 = vmatpush1.msra.mxu0 0.0
    %2562 = vmatprep.subr.mxu0 0.0
    %2563 = vmatpush1.msra.mxu0 0.0
    %2564 = vmatprep.subr.mxu0 0.0
    %2565 = vmatpush1.msra.mxu0 0.0
    %2566 = vmatprep.subr.mxu0 0.0
    %2567 = vmatpush1.msra.mxu0 0.0
    %2568 = vmatprep.subr.mxu0 0.0
    %2569 = vmatpush1.msra.mxu0 0.0
    %2570 = vmatprep.subr.mxu0 0.0
    %2571 = vmatpush1.msra.mxu0 0.0
    %2572 = vmatprep.subr.mxu0 0.0
    %2573 = vmatpush1.msra.mxu0 0.0
    %2574 = vmatprep.subr.mxu0 0.0
    %2575 = vmatpush1.msra.mxu0 0.0
    %2576 = vmatprep.subr.mxu0 0.0
    %2577 = vmatpush1.msra.mxu0 0.0
    %2578 = vmatprep.subr.mxu0 0.0
    %2579 = vmatpush1.msra.mxu0 0.0
    %2580 = vmatprep.subr.mxu0 0.0
    %2581 = vmatpush1.msra.mxu0 0.0
    %2582 = vmatprep.subr.mxu0 0.0
    %2583 = vmatpush1.msra.mxu0 0.0
    %2584 = vmatprep.subr.mxu0 0.0
    %2585 = vmatpush1.msra.mxu0 0.0
    %2586 = vmatprep.subr.mxu0 0.0
    %2587 = vmatpush1.msra.mxu0 0.0
    %2588 = vmatprep.subr.mxu0 0.0
    %2589 = vmatpush1.msra.mxu0 0.0
    %2590 = vmatprep.subr.mxu0 0.0
    %2591 = vmatpush1.msra.mxu0 0.0
    %2592 = vmatprep.subr.mxu0 0.0
    %2593 = vmatpush1.msra.mxu0 0.0
    %2594 = vmatprep.mubr.f32.mxu0 0.0
    %v2595 = vand.u32 %v325, 4294901760
    %2596 = vmatmul.mubr.f32.gmra.mrb[0].mxu0 %v2595
    %v2597 = vpop.f32.mrb[0].mxu0
    %v2598 = vadd.f32 %v2436, %v2597
    %v2599 = vpop.f32.mrb[0].mxu0
    %v2600 = vadd.f32 %v2438, %v2599
    %2601 = vdwg.mxu0
    %v2602 = vand.u32 %v60, 4294901760
    %v2603 = vsub.f32 %v60, %v2602
    %2604 = vmatprep.subr.mxu0 %v2603
    %v2605 = vand.u32 %v59, 4294901760
    %v2606 = vsub.f32 %v59, %v2605
    %2607 = vmatpush1.msra.mxu0 %v2606
    %v2608 = vand.u32 %v90, 4294901760
    %v2609 = vsub.f32 %v90, %v2608
    %2610 = vmatprep.subr.mxu0 %v2609
    %v2611 = vand.u32 %v89, 4294901760
    %v2612 = vsub.f32 %v89, %v2611
    %2613 = vmatpush1.msra.mxu0 %v2612
    %v2614 = vand.u32 %v120, 4294901760
    %v2615 = vsub.f32 %v120, %v2614
    %2616 = vmatprep.subr.mxu0 %v2615
    %v2617 = vand.u32 %v119, 4294901760
    %v2618 = vsub.f32 %v119, %v2617
    %2619 = vmatpush1.msra.mxu0 %v2618
    %v2620 = vand.u32 %v150, 4294901760
    %v2621 = vsub.f32 %v150, %v2620
    %2622 = vmatprep.subr.mxu0 %v2621
    %v2623 = vand.u32 %v149, 4294901760
    %v2624 = vsub.f32 %v149, %v2623
    %2625 = vmatpush1.msra.mxu0 %v2624
    %v2626 = vand.u32 %v180, 4294901760
    %v2627 = vsub.f32 %v180, %v2626
    %2628 = vmatprep.subr.mxu0 %v2627
    %v2629 = vand.u32 %v179, 4294901760
    %v2630 = vsub.f32 %v179, %v2629
    %2631 = vmatpush1.msra.mxu0 %v2630
    %v2632 = vand.u32 %v210, 4294901760
    %v2633 = vsub.f32 %v210, %v2632
    %2634 = vmatprep.subr.mxu0 %v2633
    %v2635 = vand.u32 %v209, 4294901760
    %v2636 = vsub.f32 %v209, %v2635
    %2637 = vmatpush1.msra.mxu0 %v2636
    %v2638 = vand.u32 %v240, 4294901760
    %v2639 = vsub.f32 %v240, %v2638
    %2640 = vmatprep.subr.mxu0 %v2639
    %v2641 = vand.u32 %v239, 4294901760
    %v2642 = vsub.f32 %v239, %v2641
    %2643 = vmatpush1.msra.mxu0 %v2642
    %v2644 = vand.u32 %v270, 4294901760
    %v2645 = vsub.f32 %v270, %v2644
    %2646 = vmatprep.subr.mxu0 %v2645
    %v2647 = vand.u32 %v269, 4294901760
    %v2648 = vsub.f32 %v269, %v2647
    %2649 = vmatpush1.msra.mxu0 %v2648
    %v2650 = vand.u32 %v300, 4294901760
    %v2651 = vsub.f32 %v300, %v2650
    %2652 = vmatprep.subr.mxu0 %v2651
    %v2653 = vand.u32 %v299, 4294901760
    %v2654 = vsub.f32 %v299, %v2653
    %2655 = vmatpush1.msra.mxu0 %v2654
    %2656 = vmatprep.subr.mxu0 0.0
    %2657 = vmatpush1.msra.mxu0 0.0
    %2658 = vmatprep.subr.mxu0 0.0
    %2659 = vmatpush1.msra.mxu0 0.0
    %2660 = vmatprep.subr.mxu0 0.0
    %2661 = vmatpush1.msra.mxu0 0.0
    %2662 = vmatprep.subr.mxu0 0.0
    %2663 = vmatpush1.msra.mxu0 0.0
    %2664 = vmatprep.subr.mxu0 0.0
    %2665 = vmatpush1.msra.mxu0 0.0
    %2666 = vmatprep.subr.mxu0 0.0
    %2667 = vmatpush1.msra.mxu0 0.0
    %2668 = vmatprep.subr.mxu0 0.0
    %2669 = vmatpush1.msra.mxu0 0.0
    %2670 = vmatprep.subr.mxu0 0.0
    %2671 = vmatpush1.msra.mxu0 0.0
    %2672 = vmatprep.subr.mxu0 0.0
    %2673 = vmatpush1.msra.mxu0 0.0
    %2674 = vmatprep.subr.mxu0 0.0
    %2675 = vmatpush1.msra.mxu0 0.0
    %2676 = vmatprep.subr.mxu0 0.0
    %2677 = vmatpush1.msra.mxu0 0.0
    %2678 = vmatprep.subr.mxu0 0.0
    %2679 = vmatpush1.msra.mxu0 0.0
    %2680 = vmatprep.subr.mxu0 0.0
    %2681 = vmatpush1.msra.mxu0 0.0
    %2682 = vmatprep.subr.mxu0 0.0
    %2683 = vmatpush1.msra.mxu0 0.0
    %2684 = vmatprep.subr.mxu0 0.0
    %2685 = vmatpush1.msra.mxu0 0.0
    %2686 = vmatprep.subr.mxu0 0.0
    %2687 = vmatpush1.msra.mxu0 0.0
    %2688 = vmatprep.subr.mxu0 0.0
    %2689 = vmatpush1.msra.mxu0 0.0
    %2690 = vmatprep.subr.mxu0 0.0
    %2691 = vmatpush1.msra.mxu0 0.0
    %2692 = vmatprep.subr.mxu0 0.0
    %2693 = vmatpush1.msra.mxu0 0.0
    %2694 = vmatprep.subr.mxu0 0.0
    %2695 = vmatpush1.msra.mxu0 0.0
    %2696 = vmatprep.subr.mxu0 0.0
    %2697 = vmatpush1.msra.mxu0 0.0
    %2698 = vmatprep.subr.mxu0 0.0
    %2699 = vmatpush1.msra.mxu0 0.0
    %2700 = vmatprep.subr.mxu0 0.0
    %2701 = vmatpush1.msra.mxu0 0.0
    %2702 = vmatprep.mubr.f32.mxu0 0.0
    %v2703 = vand.u32 %v325, 4294901760
    %v2704 = vsub.f32 %v325, %v2703
    %2705 = vmatmul.mubr.f32.gmra.mrb[0].mxu0 %v2704
    %v2706 = vpop.f32.mrb[0].mxu0
    %v2707 = vadd.f32 %v2598, %v2706
    %v2708 = vpop.f32.mrb[0].mxu0
    %v2709 = vadd.f32 %v2600, %v2708
    %2710 = vdwg.mxu0
    %v2711 = vand.u32 %v60, 4294901760
    %2712 = vmatprep.subr.mxu0 %v2711
    %v2713 = vand.u32 %v59, 4294901760
    %2714 = vmatpush1.msra.mxu0 %v2713
    %v2715 = vand.u32 %v90, 4294901760
    %2716 = vmatprep.subr.mxu0 %v2715
    %v2717 = vand.u32 %v89, 4294901760
    %2718 = vmatpush1.msra.mxu0 %v2717
    %v2719 = vand.u32 %v120, 4294901760
    %2720 = vmatprep.subr.mxu0 %v2719
    %v2721 = vand.u32 %v119, 4294901760
    %2722 = vmatpush1.msra.mxu0 %v2721
    %v2723 = vand.u32 %v150, 4294901760
    %2724 = vmatprep.subr.mxu0 %v2723
    %v2725 = vand.u32 %v149, 4294901760
    %2726 = vmatpush1.msra.mxu0 %v2725
    %v2727 = vand.u32 %v180, 4294901760
    %2728 = vmatprep.subr.mxu0 %v2727
    %v2729 = vand.u32 %v179, 4294901760
    %2730 = vmatpush1.msra.mxu0 %v2729
    %v2731 = vand.u32 %v210, 4294901760
    %2732 = vmatprep.subr.mxu0 %v2731
    %v2733 = vand.u32 %v209, 4294901760
    %2734 = vmatpush1.msra.mxu0 %v2733
    %v2735 = vand.u32 %v240, 4294901760
    %2736 = vmatprep.subr.mxu0 %v2735
    %v2737 = vand.u32 %v239, 4294901760
    %2738 = vmatpush1.msra.mxu0 %v2737
    %v2739 = vand.u32 %v270, 4294901760
    %2740 = vmatprep.subr.mxu0 %v2739
    %v2741 = vand.u32 %v269, 4294901760
    %2742 = vmatpush1.msra.mxu0 %v2741
    %v2743 = vand.u32 %v300, 4294901760
    %2744 = vmatprep.subr.mxu0 %v2743
    %v2745 = vand.u32 %v299, 4294901760
    %2746 = vmatpush1.msra.mxu0 %v2745
    %2747 = vmatprep.subr.mxu0 0.0
    %2748 = vmatpush1.msra.mxu0 0.0
    %2749 = vmatprep.subr.mxu0 0.0
    %2750 = vmatpush1.msra.mxu0 0.0
    %2751 = vmatprep.subr.mxu0 0.0
    %2752 = vmatpush1.msra.mxu0 0.0
    %2753 = vmatprep.subr.mxu0 0.0
    %2754 = vmatpush1.msra.mxu0 0.0
    %2755 = vmatprep.subr.mxu0 0.0
    %2756 = vmatpush1.msra.mxu0 0.0
    %2757 = vmatprep.subr.mxu0 0.0
    %2758 = vmatpush1.msra.mxu0 0.0
    %2759 = vmatprep.subr.mxu0 0.0
    %2760 = vmatpush1.msra.mxu0 0.0
    %2761 = vmatprep.subr.mxu0 0.0
    %2762 = vmatpush1.msra.mxu0 0.0
    %2763 = vmatprep.subr.mxu0 0.0
    %2764 = vmatpush1.msra.mxu0 0.0
    %2765 = vmatprep.subr.mxu0 0.0
    %2766 = vmatpush1.msra.mxu0 0.0
    %2767 = vmatprep.subr.mxu0 0.0
    %2768 = vmatpush1.msra.mxu0 0.0
    %2769 = vmatprep.subr.mxu0 0.0
    %2770 = vmatpush1.msra.mxu0 0.0
    %2771 = vmatprep.subr.mxu0 0.0
    %2772 = vmatpush1.msra.mxu0 0.0
    %2773 = vmatprep.subr.mxu0 0.0
    %2774 = vmatpush1.msra.mxu0 0.0
    %2775 = vmatprep.subr.mxu0 0.0
    %2776 = vmatpush1.msra.mxu0 0.0
    %2777 = vmatprep.subr.mxu0 0.0
    %2778 = vmatpush1.msra.mxu0 0.0
    %2779 = vmatprep.subr.mxu0 0.0
    %2780 = vmatpush1.msra.mxu0 0.0
    %2781 = vmatprep.subr.mxu0 0.0
    %2782 = vmatpush1.msra.mxu0 0.0
    %2783 = vmatprep.subr.mxu0 0.0
    %2784 = vmatpush1.msra.mxu0 0.0
    %2785 = vmatprep.subr.mxu0 0.0
    %2786 = vmatpush1.msra.mxu0 0.0
    %2787 = vmatprep.subr.mxu0 0.0
    %2788 = vmatpush1.msra.mxu0 0.0
    %2789 = vmatprep.subr.mxu0 0.0
    %2790 = vmatpush1.msra.mxu0 0.0
    %2791 = vmatprep.subr.mxu0 0.0
    %2792 = vmatpush1.msra.mxu0 0.0
    %2793 = vmatprep.mubr.f32.mxu0 0.0
    %v2794 = vand.u32 %v325, 4294901760
    %v2795 = vsub.f32 %v325, %v2794
    %v2796 = vand.u32 %v2795, 4294901760
    %2797 = vmatmul.mubr.f32.gmra.mrb[0].mxu0 %v2796
    %v2798 = vpop.f32.mrb[0].mxu0
    %v2799 = vadd.f32 %v2707, %v2798
    %v2800 = vpop.f32.mrb[0].mxu0
    %v2801 = vadd.f32 %v2709, %v2800
    %2802 = vdwg.mxu0
    %v2803 = vand.u32 %v60, 4294901760
    %v2804 = vsub.f32 %v60, %v2803
    %v2805 = vand.u32 %v2804, 4294901760
    %2806 = vmatprep.subr.mxu0 %v2805
    %v2807 = vand.u32 %v59, 4294901760
    %v2808 = vsub.f32 %v59, %v2807
    %v2809 = vand.u32 %v2808, 4294901760
    %2810 = vmatpush1.msra.mxu0 %v2809
    %v2811 = vand.u32 %v90, 4294901760
    %v2812 = vsub.f32 %v90, %v2811
    %v2813 = vand.u32 %v2812, 4294901760
    %2814 = vmatprep.subr.mxu0 %v2813
    %v2815 = vand.u32 %v89, 4294901760
    %v2816 = vsub.f32 %v89, %v2815
    %v2817 = vand.u32 %v2816, 4294901760
    %2818 = vmatpush1.msra.mxu0 %v2817
    %v2819 = vand.u32 %v120, 4294901760
    %v2820 = vsub.f32 %v120, %v2819
    %v2821 = vand.u32 %v2820, 4294901760
    %2822 = vmatprep.subr.mxu0 %v2821
    %v2823 = vand.u32 %v119, 4294901760
    %v2824 = vsub.f32 %v119, %v2823
    %v2825 = vand.u32 %v2824, 4294901760
    %2826 = vmatpush1.msra.mxu0 %v2825
    %v2827 = vand.u32 %v150, 4294901760
    %v2828 = vsub.f32 %v150, %v2827
    %v2829 = vand.u32 %v2828, 4294901760
    %2830 = vmatprep.subr.mxu0 %v2829
    %v2831 = vand.u32 %v149, 4294901760
    %v2832 = vsub.f32 %v149, %v2831
    %v2833 = vand.u32 %v2832, 4294901760
    %2834 = vmatpush1.msra.mxu0 %v2833
    %v2835 = vand.u32 %v180, 4294901760
    %v2836 = vsub.f32 %v180, %v2835
    %v2837 = vand.u32 %v2836, 4294901760
    %2838 = vmatprep.subr.mxu0 %v2837
    %v2839 = vand.u32 %v179, 4294901760
    %v2840 = vsub.f32 %v179, %v2839
    %v2841 = vand.u32 %v2840, 4294901760
    %2842 = vmatpush1.msra.mxu0 %v2841
    %v2843 = vand.u32 %v210, 4294901760
    %v2844 = vsub.f32 %v210, %v2843
    %v2845 = vand.u32 %v2844, 4294901760
    %2846 = vmatprep.subr.mxu0 %v2845
    %v2847 = vand.u32 %v209, 4294901760
    %v2848 = vsub.f32 %v209, %v2847
    %v2849 = vand.u32 %v2848, 4294901760
    %2850 = vmatpush1.msra.mxu0 %v2849
    %v2851 = vand.u32 %v240, 4294901760
    %v2852 = vsub.f32 %v240, %v2851
    %v2853 = vand.u32 %v2852, 4294901760
    %2854 = vmatprep.subr.mxu0 %v2853
    %v2855 = vand.u32 %v239, 4294901760
    %v2856 = vsub.f32 %v239, %v2855
    %v2857 = vand.u32 %v2856, 4294901760
    %2858 = vmatpush1.msra.mxu0 %v2857
    %v2859 = vand.u32 %v270, 4294901760
    %v2860 = vsub.f32 %v270, %v2859
    %v2861 = vand.u32 %v2860, 4294901760
    %2862 = vmatprep.subr.mxu0 %v2861
    %v2863 = vand.u32 %v269, 4294901760
    %v2864 = vsub.f32 %v269, %v2863
    %v2865 = vand.u32 %v2864, 4294901760
    %2866 = vmatpush1.msra.mxu0 %v2865
    %v2867 = vand.u32 %v300, 4294901760
    %v2868 = vsub.f32 %v300, %v2867
    %v2869 = vand.u32 %v2868, 4294901760
    %2870 = vmatprep.subr.mxu0 %v2869
    %v2871 = vand.u32 %v299, 4294901760
    %v2872 = vsub.f32 %v299, %v2871
    %v2873 = vand.u32 %v2872, 4294901760
    %2874 = vmatpush1.msra.mxu0 %v2873
    %2875 = vmatprep.subr.mxu0 0.0
    %2876 = vmatpush1.msra.mxu0 0.0
    %2877 = vmatprep.subr.mxu0 0.0
    %2878 = vmatpush1.msra.mxu0 0.0
    %2879 = vmatprep.subr.mxu0 0.0
    %2880 = vmatpush1.msra.mxu0 0.0
    %2881 = vmatprep.subr.mxu0 0.0
    %2882 = vmatpush1.msra.mxu0 0.0
    %2883 = vmatprep.subr.mxu0 0.0
    %2884 = vmatpush1.msra.mxu0 0.0
    %2885 = vmatprep.subr.mxu0 0.0
    %2886 = vmatpush1.msra.mxu0 0.0
    %2887 = vmatprep.subr.mxu0 0.0
    %2888 = vmatpush1.msra.mxu0 0.0
    %2889 = vmatprep.subr.mxu0 0.0
    %2890 = vmatpush1.msra.mxu0 0.0
    %2891 = vmatprep.subr.mxu0 0.0
    %2892 = vmatpush1.msra.mxu0 0.0
    %2893 = vmatprep.subr.mxu0 0.0
    %2894 = vmatpush1.msra.mxu0 0.0
    %2895 = vmatprep.subr.mxu0 0.0
    %2896 = vmatpush1.msra.mxu0 0.0
    %2897 = vmatprep.subr.mxu0 0.0
    %2898 = vmatpush1.msra.mxu0 0.0
    %2899 = vmatprep.subr.mxu0 0.0
    %2900 = vmatpush1.msra.mxu0 0.0
    %2901 = vmatprep.subr.mxu0 0.0
    %2902 = vmatpush1.msra.mxu0 0.0
    %2903 = vmatprep.subr.mxu0 0.0
    %2904 = vmatpush1.msra.mxu0 0.0
    %2905 = vmatprep.subr.mxu0 0.0
    %2906 = vmatpush1.msra.mxu0 0.0
    %2907 = vmatprep.subr.mxu0 0.0
    %2908 = vmatpush1.msra.mxu0 0.0
    %2909 = vmatprep.subr.mxu0 0.0
    %2910 = vmatpush1.msra.mxu0 0.0
    %2911 = vmatprep.subr.mxu0 0.0
    %2912 = vmatpush1.msra.mxu0 0.0
    %2913 = vmatprep.subr.mxu0 0.0
    %2914 = vmatpush1.msra.mxu0 0.0
    %2915 = vmatprep.subr.mxu0 0.0
    %2916 = vmatpush1.msra.mxu0 0.0
    %2917 = vmatprep.subr.mxu0 0.0
    %2918 = vmatpush1.msra.mxu0 0.0
    %2919 = vmatprep.subr.mxu0 0.0
    %2920 = vmatpush1.msra.mxu0 0.0
    %2921 = vmatprep.mubr.f32.mxu0 0.0
    %v2922 = vand.u32 %v325, 4294901760
    %2923 = vmatmul.mubr.f32.gmra.mrb[0].mxu0 %v2922
    %v2924 = vpop.f32.mrb[0].mxu0
    %v2925 = vadd.f32 %v2799, %v2924
    %v2926 = vpop.f32.mrb[0].mxu0
    %v2927 = vadd.f32 %v2801, %v2926
    %2928 = vdwg.mxu0
    %v2929 = vand.u32 %v60, 4294901760
    %2930 = vmatprep.subr.mxu0 %v2929
    %v2931 = vand.u32 %v59, 4294901760
    %2932 = vmatpush1.msra.mxu0 %v2931
    %v2933 = vand.u32 %v90, 4294901760
    %2934 = vmatprep.subr.mxu0 %v2933
    %v2935 = vand.u32 %v89, 4294901760
    %2936 = vmatpush1.msra.mxu0 %v2935
    %v2937 = vand.u32 %v120, 4294901760
    %2938 = vmatprep.subr.mxu0 %v2937
    %v2939 = vand.u32 %v119, 4294901760
    %2940 = vmatpush1.msra.mxu0 %v2939
    %v2941 = vand.u32 %v150, 4294901760
    %2942 = vmatprep.subr.mxu0 %v2941
    %v2943 = vand.u32 %v149, 4294901760
    %2944 = vmatpush1.msra.mxu0 %v2943
    %v2945 = vand.u32 %v180, 4294901760
    %2946 = vmatprep.subr.mxu0 %v2945
    %v2947 = vand.u32 %v179, 4294901760
    %2948 = vmatpush1.msra.mxu0 %v2947
    %v2949 = vand.u32 %v210, 4294901760
    %2950 = vmatprep.subr.mxu0 %v2949
    %v2951 = vand.u32 %v209, 4294901760
    %2952 = vmatpush1.msra.mxu0 %v2951
    %v2953 = vand.u32 %v240, 4294901760
    %2954 = vmatprep.subr.mxu0 %v2953
    %v2955 = vand.u32 %v239, 4294901760
    %2956 = vmatpush1.msra.mxu0 %v2955
    %v2957 = vand.u32 %v270, 4294901760
    %2958 = vmatprep.subr.mxu0 %v2957
    %v2959 = vand.u32 %v269, 4294901760
    %2960 = vmatpush1.msra.mxu0 %v2959
    %v2961 = vand.u32 %v300, 4294901760
    %2962 = vmatprep.subr.mxu0 %v2961
    %v2963 = vand.u32 %v299, 4294901760
    %2964 = vmatpush1.msra.mxu0 %v2963
    %2965 = vmatprep.subr.mxu0 0.0
    %2966 = vmatpush1.msra.mxu0 0.0
    %2967 = vmatprep.subr.mxu0 0.0
    %2968 = vmatpush1.msra.mxu0 0.0
    %2969 = vmatprep.subr.mxu0 0.0
    %2970 = vmatpush1.msra.mxu0 0.0
    %2971 = vmatprep.subr.mxu0 0.0
    %2972 = vmatpush1.msra.mxu0 0.0
    %2973 = vmatprep.subr.mxu0 0.0
    %2974 = vmatpush1.msra.mxu0 0.0
    %2975 = vmatprep.subr.mxu0 0.0
    %2976 = vmatpush1.msra.mxu0 0.0
    %2977 = vmatprep.subr.mxu0 0.0
    %2978 = vmatpush1.msra.mxu0 0.0
    %2979 = vmatprep.subr.mxu0 0.0
    %2980 = vmatpush1.msra.mxu0 0.0
    %2981 = vmatprep.subr.mxu0 0.0
    %2982 = vmatpush1.msra.mxu0 0.0
    %2983 = vmatprep.subr.mxu0 0.0
    %2984 = vmatpush1.msra.mxu0 0.0
    %2985 = vmatprep.subr.mxu0 0.0
    %2986 = vmatpush1.msra.mxu0 0.0
    %2987 = vmatprep.subr.mxu0 0.0
    %2988 = vmatpush1.msra.mxu0 0.0
    %2989 = vmatprep.subr.mxu0 0.0
    %2990 = vmatpush1.msra.mxu0 0.0
    %2991 = vmatprep.subr.mxu0 0.0
    %2992 = vmatpush1.msra.mxu0 0.0
    %2993 = vmatprep.subr.mxu0 0.0
    %2994 = vmatpush1.msra.mxu0 0.0
    %2995 = vmatprep.subr.mxu0 0.0
    %2996 = vmatpush1.msra.mxu0 0.0
    %2997 = vmatprep.subr.mxu0 0.0
    %2998 = vmatpush1.msra.mxu0 0.0
    %2999 = vmatprep.subr.mxu0 0.0
    %3000 = vmatpush1.msra.mxu0 0.0
    %3001 = vmatprep.subr.mxu0 0.0
    %3002 = vmatpush1.msra.mxu0 0.0
    %3003 = vmatprep.subr.mxu0 0.0
    %3004 = vmatpush1.msra.mxu0 0.0
    %3005 = vmatprep.subr.mxu0 0.0
    %3006 = vmatpush1.msra.mxu0 0.0
    %3007 = vmatprep.subr.mxu0 0.0
    %3008 = vmatpush1.msra.mxu0 0.0
    %3009 = vmatprep.subr.mxu0 0.0
    %3010 = vmatpush1.msra.mxu0 0.0
    %3011 = vmatprep.mubr.f32.mxu0 0.0
    %v3012 = vand.u32 %v325, 4294901760
    %3013 = vmatmul.mubr.f32.gmra.mrb[0].mxu0 %v3012
    %v3014 = vpop.f32.mrb[0].mxu0
    %v3015 = vadd.f32 %v2925, %v3014
    %v3016 = vpop.f32.mrb[0].mxu0
    %v3017 = vadd.f32 %v2927, %v3016
    %3018 = vdwg.mxu0
    %v3019 = vand.u32 %v62, 4294901760
    %3020 = vmatprep.subr.mxu0 %v3019
    %v3021 = vand.u32 %v61, 4294901760
    %3022 = vmatpush1.msra.mxu0 %v3021
    %v3023 = vand.u32 %v92, 4294901760
    %3024 = vmatprep.subr.mxu0 %v3023
    %v3025 = vand.u32 %v91, 4294901760
    %3026 = vmatpush1.msra.mxu0 %v3025
    %v3027 = vand.u32 %v122, 4294901760
    %3028 = vmatprep.subr.mxu0 %v3027
    %v3029 = vand.u32 %v121, 4294901760
    %3030 = vmatpush1.msra.mxu0 %v3029
    %v3031 = vand.u32 %v152, 4294901760
    %3032 = vmatprep.subr.mxu0 %v3031
    %v3033 = vand.u32 %v151, 4294901760
    %3034 = vmatpush1.msra.mxu0 %v3033
    %v3035 = vand.u32 %v182, 4294901760
    %3036 = vmatprep.subr.mxu0 %v3035
    %v3037 = vand.u32 %v181, 4294901760
    %3038 = vmatpush1.msra.mxu0 %v3037
    %v3039 = vand.u32 %v212, 4294901760
    %3040 = vmatprep.subr.mxu0 %v3039
    %v3041 = vand.u32 %v211, 4294901760
    %3042 = vmatpush1.msra.mxu0 %v3041
    %v3043 = vand.u32 %v242, 4294901760
    %3044 = vmatprep.subr.mxu0 %v3043
    %v3045 = vand.u32 %v241, 4294901760
    %3046 = vmatpush1.msra.mxu0 %v3045
    %v3047 = vand.u32 %v272, 4294901760
    %3048 = vmatprep.subr.mxu0 %v3047
    %v3049 = vand.u32 %v271, 4294901760
    %3050 = vmatpush1.msra.mxu0 %v3049
    %v3051 = vand.u32 %v302, 4294901760
    %3052 = vmatprep.subr.mxu0 %v3051
    %v3053 = vand.u32 %v301, 4294901760
    %3054 = vmatpush1.msra.mxu0 %v3053
    %3055 = vmatprep.subr.mxu0 0.0
    %3056 = vmatpush1.msra.mxu0 0.0
    %3057 = vmatprep.subr.mxu0 0.0
    %3058 = vmatpush1.msra.mxu0 0.0
    %3059 = vmatprep.subr.mxu0 0.0
    %3060 = vmatpush1.msra.mxu0 0.0
    %3061 = vmatprep.subr.mxu0 0.0
    %3062 = vmatpush1.msra.mxu0 0.0
    %3063 = vmatprep.subr.mxu0 0.0
    %3064 = vmatpush1.msra.mxu0 0.0
    %3065 = vmatprep.subr.mxu0 0.0
    %3066 = vmatpush1.msra.mxu0 0.0
    %3067 = vmatprep.subr.mxu0 0.0
    %3068 = vmatpush1.msra.mxu0 0.0
    %3069 = vmatprep.subr.mxu0 0.0
    %3070 = vmatpush1.msra.mxu0 0.0
    %3071 = vmatprep.subr.mxu0 0.0
    %3072 = vmatpush1.msra.mxu0 0.0
    %3073 = vmatprep.subr.mxu0 0.0
    %3074 = vmatpush1.msra.mxu0 0.0
    %3075 = vmatprep.subr.mxu0 0.0
    %3076 = vmatpush1.msra.mxu0 0.0
    %3077 = vmatprep.subr.mxu0 0.0
    %3078 = vmatpush1.msra.mxu0 0.0
    %3079 = vmatprep.subr.mxu0 0.0
    %3080 = vmatpush1.msra.mxu0 0.0
    %3081 = vmatprep.subr.mxu0 0.0
    %3082 = vmatpush1.msra.mxu0 0.0
    %3083 = vmatprep.subr.mxu0 0.0
    %3084 = vmatpush1.msra.mxu0 0.0
    %3085 = vmatprep.subr.mxu0 0.0
    %3086 = vmatpush1.msra.mxu0 0.0
    %3087 = vmatprep.subr.mxu0 0.0
    %3088 = vmatpush1.msra.mxu0 0.0
    %3089 = vmatprep.subr.mxu0 0.0
    %3090 = vmatpush1.msra.mxu0 0.0
    %3091 = vmatprep.subr.mxu0 0.0
    %3092 = vmatpush1.msra.mxu0 0.0
    %3093 = vmatprep.subr.mxu0 0.0
    %3094 = vmatpush1.msra.mxu0 0.0
    %3095 = vmatprep.subr.mxu0 0.0
    %3096 = vmatpush1.msra.mxu0 0.0
    %3097 = vmatprep.subr.mxu0 0.0
    %3098 = vmatpush1.msra.mxu0 0.0
    %3099 = vmatprep.subr.mxu0 0.0
    %3100 = vmatpush1.msra.mxu0 0.0
    %3101 = vmatprep.mubr.f32.mxu0 0.0
    %v3102 = vand.u32 %v325, 4294901760
    %v3103 = vsub.f32 %v325, %v3102
    %v3104 = vand.u32 %v3103, 4294901760
    %v3105 = vsub.f32 %v3103, %v3104
    %v3106 = vand.u32 %v3105, 4294901760
    %3107 = vmatmul.mubr.f32.gmra.mrb[0].mxu0 %v3106
    %v3108 = vpop.f32.mrb[0].mxu0
    %v3109 = vadd.f32 0.0, %v3108
    %v3110 = vpop.f32.mrb[0].mxu0
    %v3111 = vadd.f32 0.0, %v3110
    %3112 = vdwg.mxu0
    %v3113 = vand.u32 %v62, 4294901760
    %v3114 = vsub.f32 %v62, %v3113
    %v3115 = vand.u32 %v3114, 4294901760
    %v3116 = vsub.f32 %v3114, %v3115
    %v3117 = vand.u32 %v3116, 4294901760
    %3118 = vmatprep.subr.mxu0 %v3117
    %v3119 = vand.u32 %v61, 4294901760
    %v3120 = vsub.f32 %v61, %v3119
    %v3121 = vand.u32 %v3120, 4294901760
    %v3122 = vsub.f32 %v3120, %v3121
    %v3123 = vand.u32 %v3122, 4294901760
    %3124 = vmatpush1.msra.mxu0 %v3123
    %v3125 = vand.u32 %v92, 4294901760
    %v3126 = vsub.f32 %v92, %v3125
    %v3127 = vand.u32 %v3126, 4294901760
    %v3128 = vsub.f32 %v3126, %v3127
    %v3129 = vand.u32 %v3128, 4294901760
    %3130 = vmatprep.subr.mxu0 %v3129
    %v3131 = vand.u32 %v91, 4294901760
    %v3132 = vsub.f32 %v91, %v3131
    %v3133 = vand.u32 %v3132, 4294901760
    %v3134 = vsub.f32 %v3132, %v3133
    %v3135 = vand.u32 %v3134, 4294901760
    %3136 = vmatpush1.msra.mxu0 %v3135
    %v3137 = vand.u32 %v122, 4294901760
    %v3138 = vsub.f32 %v122, %v3137
    %v3139 = vand.u32 %v3138, 4294901760
    %v3140 = vsub.f32 %v3138, %v3139
    %v3141 = vand.u32 %v3140, 4294901760
    %3142 = vmatprep.subr.mxu0 %v3141
    %v3143 = vand.u32 %v121, 4294901760
    %v3144 = vsub.f32 %v121, %v3143
    %v3145 = vand.u32 %v3144, 4294901760
    %v3146 = vsub.f32 %v3144, %v3145
    %v3147 = vand.u32 %v3146, 4294901760
    %3148 = vmatpush1.msra.mxu0 %v3147
    %v3149 = vand.u32 %v152, 4294901760
    %v3150 = vsub.f32 %v152, %v3149
    %v3151 = vand.u32 %v3150, 4294901760
    %v3152 = vsub.f32 %v3150, %v3151
    %v3153 = vand.u32 %v3152, 4294901760
    %3154 = vmatprep.subr.mxu0 %v3153
    %v3155 = vand.u32 %v151, 4294901760
    %v3156 = vsub.f32 %v151, %v3155
    %v3157 = vand.u32 %v3156, 4294901760
    %v3158 = vsub.f32 %v3156, %v3157
    %v3159 = vand.u32 %v3158, 4294901760
    %3160 = vmatpush1.msra.mxu0 %v3159
    %v3161 = vand.u32 %v182, 4294901760
    %v3162 = vsub.f32 %v182, %v3161
    %v3163 = vand.u32 %v3162, 4294901760
    %v3164 = vsub.f32 %v3162, %v3163
    %v3165 = vand.u32 %v3164, 4294901760
    %3166 = vmatprep.subr.mxu0 %v3165
    %v3167 = vand.u32 %v181, 4294901760
    %v3168 = vsub.f32 %v181, %v3167
    %v3169 = vand.u32 %v3168, 4294901760
    %v3170 = vsub.f32 %v3168, %v3169
    %v3171 = vand.u32 %v3170, 4294901760
    %3172 = vmatpush1.msra.mxu0 %v3171
    %v3173 = vand.u32 %v212, 4294901760
    %v3174 = vsub.f32 %v212, %v3173
    %v3175 = vand.u32 %v3174, 4294901760
    %v3176 = vsub.f32 %v3174, %v3175
    %v3177 = vand.u32 %v3176, 4294901760
    %3178 = vmatprep.subr.mxu0 %v3177
    %v3179 = vand.u32 %v211, 4294901760
    %v3180 = vsub.f32 %v211, %v3179
    %v3181 = vand.u32 %v3180, 4294901760
    %v3182 = vsub.f32 %v3180, %v3181
    %v3183 = vand.u32 %v3182, 4294901760
    %3184 = vmatpush1.msra.mxu0 %v3183
    %v3185 = vand.u32 %v242, 4294901760
    %v3186 = vsub.f32 %v242, %v3185
    %v3187 = vand.u32 %v3186, 4294901760
    %v3188 = vsub.f32 %v3186, %v3187
    %v3189 = vand.u32 %v3188, 4294901760
    %3190 = vmatprep.subr.mxu0 %v3189
    %v3191 = vand.u32 %v241, 4294901760
    %v3192 = vsub.f32 %v241, %v3191
    %v3193 = vand.u32 %v3192, 4294901760
    %v3194 = vsub.f32 %v3192, %v3193
    %v3195 = vand.u32 %v3194, 4294901760
    %3196 = vmatpush1.msra.mxu0 %v3195
    %v3197 = vand.u32 %v272, 4294901760
    %v3198 = vsub.f32 %v272, %v3197
    %v3199 = vand.u32 %v3198, 4294901760
    %v3200 = vsub.f32 %v3198, %v3199
    %v3201 = vand.u32 %v3200, 4294901760
    %3202 = vmatprep.subr.mxu0 %v3201
    %v3203 = vand.u32 %v271, 4294901760
    %v3204 = vsub.f32 %v271, %v3203
    %v3205 = vand.u32 %v3204, 4294901760
    %v3206 = vsub.f32 %v3204, %v3205
    %v3207 = vand.u32 %v3206, 4294901760
    %3208 = vmatpush1.msra.mxu0 %v3207
    %v3209 = vand.u32 %v302, 4294901760
    %v3210 = vsub.f32 %v302, %v3209
    %v3211 = vand.u32 %v3210, 4294901760
    %v3212 = vsub.f32 %v3210, %v3211
    %v3213 = vand.u32 %v3212, 4294901760
    %3214 = vmatprep.subr.mxu0 %v3213
    %v3215 = vand.u32 %v301, 4294901760
    %v3216 = vsub.f32 %v301, %v3215
    %v3217 = vand.u32 %v3216, 4294901760
    %v3218 = vsub.f32 %v3216, %v3217
    %v3219 = vand.u32 %v3218, 4294901760
    %3220 = vmatpush1.msra.mxu0 %v3219
    %3221 = vmatprep.subr.mxu0 0.0
    %3222 = vmatpush1.msra.mxu0 0.0
    %3223 = vmatprep.subr.mxu0 0.0
    %3224 = vmatpush1.msra.mxu0 0.0
    %3225 = vmatprep.subr.mxu0 0.0
    %3226 = vmatpush1.msra.mxu0 0.0
    %3227 = vmatprep.subr.mxu0 0.0
    %3228 = vmatpush1.msra.mxu0 0.0
    %3229 = vmatprep.subr.mxu0 0.0
    %3230 = vmatpush1.msra.mxu0 0.0
    %3231 = vmatprep.subr.mxu0 0.0
    %3232 = vmatpush1.msra.mxu0 0.0
    %3233 = vmatprep.subr.mxu0 0.0
    %3234 = vmatpush1.msra.mxu0 0.0
    %3235 = vmatprep.subr.mxu0 0.0
    %3236 = vmatpush1.msra.mxu0 0.0
    %3237 = vmatprep.subr.mxu0 0.0
    %3238 = vmatpush1.msra.mxu0 0.0
    %3239 = vmatprep.subr.mxu0 0.0
    %3240 = vmatpush1.msra.mxu0 0.0
    %3241 = vmatprep.subr.mxu0 0.0
    %3242 = vmatpush1.msra.mxu0 0.0
    %3243 = vmatprep.subr.mxu0 0.0
    %3244 = vmatpush1.msra.mxu0 0.0
    %3245 = vmatprep.subr.mxu0 0.0
    %3246 = vmatpush1.msra.mxu0 0.0
    %3247 = vmatprep.subr.mxu0 0.0
    %3248 = vmatpush1.msra.mxu0 0.0
    %3249 = vmatprep.subr.mxu0 0.0
    %3250 = vmatpush1.msra.mxu0 0.0
    %3251 = vmatprep.subr.mxu0 0.0
    %3252 = vmatpush1.msra.mxu0 0.0
    %3253 = vmatprep.subr.mxu0 0.0
    %3254 = vmatpush1.msra.mxu0 0.0
    %3255 = vmatprep.subr.mxu0 0.0
    %3256 = vmatpush1.msra.mxu0 0.0
    %3257 = vmatprep.subr.mxu0 0.0
    %3258 = vmatpush1.msra.mxu0 0.0
    %3259 = vmatprep.subr.mxu0 0.0
    %3260 = vmatpush1.msra.mxu0 0.0
    %3261 = vmatprep.subr.mxu0 0.0
    %3262 = vmatpush1.msra.mxu0 0.0
    %3263 = vmatprep.subr.mxu0 0.0
    %3264 = vmatpush1.msra.mxu0 0.0
    %3265 = vmatprep.subr.mxu0 0.0
    %3266 = vmatpush1.msra.mxu0 0.0
    %3267 = vmatprep.mubr.f32.mxu0 0.0
    %v3268 = vand.u32 %v325, 4294901760
    %3269 = vmatmul.mubr.f32.gmra.mrb[0].mxu0 %v3268
    %v3270 = vpop.f32.mrb[0].mxu0
    %v3271 = vadd.f32 %v3109, %v3270
    %v3272 = vpop.f32.mrb[0].mxu0
    %v3273 = vadd.f32 %v3111, %v3272
    %3274 = vdwg.mxu0
    %v3275 = vand.u32 %v62, 4294901760
    %v3276 = vsub.f32 %v62, %v3275
    %3277 = vmatprep.subr.mxu0 %v3276
    %v3278 = vand.u32 %v61, 4294901760
    %v3279 = vsub.f32 %v61, %v3278
    %3280 = vmatpush1.msra.mxu0 %v3279
    %v3281 = vand.u32 %v92, 4294901760
    %v3282 = vsub.f32 %v92, %v3281
    %3283 = vmatprep.subr.mxu0 %v3282
    %v3284 = vand.u32 %v91, 4294901760
    %v3285 = vsub.f32 %v91, %v3284
    %3286 = vmatpush1.msra.mxu0 %v3285
    %v3287 = vand.u32 %v122, 4294901760
    %v3288 = vsub.f32 %v122, %v3287
    %3289 = vmatprep.subr.mxu0 %v3288
    %v3290 = vand.u32 %v121, 4294901760
    %v3291 = vsub.f32 %v121, %v3290
    %3292 = vmatpush1.msra.mxu0 %v3291
    %v3293 = vand.u32 %v152, 4294901760
    %v3294 = vsub.f32 %v152, %v3293
    %3295 = vmatprep.subr.mxu0 %v3294
    %v3296 = vand.u32 %v151, 4294901760
    %v3297 = vsub.f32 %v151, %v3296
    %3298 = vmatpush1.msra.mxu0 %v3297
    %v3299 = vand.u32 %v182, 4294901760
    %v3300 = vsub.f32 %v182, %v3299
    %3301 = vmatprep.subr.mxu0 %v3300
    %v3302 = vand.u32 %v181, 4294901760
    %v3303 = vsub.f32 %v181, %v3302
    %3304 = vmatpush1.msra.mxu0 %v3303
    %v3305 = vand.u32 %v212, 4294901760
    %v3306 = vsub.f32 %v212, %v3305
    %3307 = vmatprep.subr.mxu0 %v3306
    %v3308 = vand.u32 %v211, 4294901760
    %v3309 = vsub.f32 %v211, %v3308
    %3310 = vmatpush1.msra.mxu0 %v3309
    %v3311 = vand.u32 %v242, 4294901760
    %v3312 = vsub.f32 %v242, %v3311
    %3313 = vmatprep.subr.mxu0 %v3312
    %v3314 = vand.u32 %v241, 4294901760
    %v3315 = vsub.f32 %v241, %v3314
    %3316 = vmatpush1.msra.mxu0 %v3315
    %v3317 = vand.u32 %v272, 4294901760
    %v3318 = vsub.f32 %v272, %v3317
    %3319 = vmatprep.subr.mxu0 %v3318
    %v3320 = vand.u32 %v271, 4294901760
    %v3321 = vsub.f32 %v271, %v3320
    %3322 = vmatpush1.msra.mxu0 %v3321
    %v3323 = vand.u32 %v302, 4294901760
    %v3324 = vsub.f32 %v302, %v3323
    %3325 = vmatprep.subr.mxu0 %v3324
    %v3326 = vand.u32 %v301, 4294901760
    %v3327 = vsub.f32 %v301, %v3326
    %3328 = vmatpush1.msra.mxu0 %v3327
    %3329 = vmatprep.subr.mxu0 0.0
    %3330 = vmatpush1.msra.mxu0 0.0
    %3331 = vmatprep.subr.mxu0 0.0
    %3332 = vmatpush1.msra.mxu0 0.0
    %3333 = vmatprep.subr.mxu0 0.0
    %3334 = vmatpush1.msra.mxu0 0.0
    %3335 = vmatprep.subr.mxu0 0.0
    %3336 = vmatpush1.msra.mxu0 0.0
    %3337 = vmatprep.subr.mxu0 0.0
    %3338 = vmatpush1.msra.mxu0 0.0
    %3339 = vmatprep.subr.mxu0 0.0
    %3340 = vmatpush1.msra.mxu0 0.0
    %3341 = vmatprep.subr.mxu0 0.0
    %3342 = vmatpush1.msra.mxu0 0.0
    %3343 = vmatprep.subr.mxu0 0.0
    %3344 = vmatpush1.msra.mxu0 0.0
    %3345 = vmatprep.subr.mxu0 0.0
    %3346 = vmatpush1.msra.mxu0 0.0
    %3347 = vmatprep.subr.mxu0 0.0
    %3348 = vmatpush1.msra.mxu0 0.0
    %3349 = vmatprep.subr.mxu0 0.0
    %3350 = vmatpush1.msra.mxu0 0.0
    %3351 = vmatprep.subr.mxu0 0.0
    %3352 = vmatpush1.msra.mxu0 0.0
    %3353 = vmatprep.subr.mxu0 0.0
    %3354 = vmatpush1.msra.mxu0 0.0
    %3355 = vmatprep.subr.mxu0 0.0
    %3356 = vmatpush1.msra.mxu0 0.0
    %3357 = vmatprep.subr.mxu0 0.0
    %3358 = vmatpush1.msra.mxu0 0.0
    %3359 = vmatprep.subr.mxu0 0.0
    %3360 = vmatpush1.msra.mxu0 0.0
    %3361 = vmatprep.subr.mxu0 0.0
    %3362 = vmatpush1.msra.mxu0 0.0
    %3363 = vmatprep.subr.mxu0 0.0
    %3364 = vmatpush1.msra.mxu0 0.0
    %3365 = vmatprep.subr.mxu0 0.0
    %3366 = vmatpush1.msra.mxu0 0.0
    %3367 = vmatprep.subr.mxu0 0.0
    %3368 = vmatpush1.msra.mxu0 0.0
    %3369 = vmatprep.subr.mxu0 0.0
    %3370 = vmatpush1.msra.mxu0 0.0
    %3371 = vmatprep.subr.mxu0 0.0
    %3372 = vmatpush1.msra.mxu0 0.0
    %3373 = vmatprep.subr.mxu0 0.0
    %3374 = vmatpush1.msra.mxu0 0.0
    %3375 = vmatprep.mubr.f32.mxu0 0.0
    %v3376 = vand.u32 %v325, 4294901760
    %v3377 = vsub.f32 %v325, %v3376
    %3378 = vmatmul.mubr.f32.gmra.mrb[0].mxu0 %v3377
    %v3379 = vpop.f32.mrb[0].mxu0
    %v3380 = vadd.f32 %v3271, %v3379
    %v3381 = vpop.f32.mrb[0].mxu0
    %v3382 = vadd.f32 %v3273, %v3381
    %3383 = vdwg.mxu0
    %v3384 = vand.u32 %v62, 4294901760
    %3385 = vmatprep.subr.mxu0 %v3384
    %v3386 = vand.u32 %v61, 4294901760
    %3387 = vmatpush1.msra.mxu0 %v3386
    %v3388 = vand.u32 %v92, 4294901760
    %3389 = vmatprep.subr.mxu0 %v3388
    %v3390 = vand.u32 %v91, 4294901760
    %3391 = vmatpush1.msra.mxu0 %v3390
    %v3392 = vand.u32 %v122, 4294901760
    %3393 = vmatprep.subr.mxu0 %v3392
    %v3394 = vand.u32 %v121, 4294901760
    %3395 = vmatpush1.msra.mxu0 %v3394
    %v3396 = vand.u32 %v152, 4294901760
    %3397 = vmatprep.subr.mxu0 %v3396
    %v3398 = vand.u32 %v151, 4294901760
    %3399 = vmatpush1.msra.mxu0 %v3398
    %v3400 = vand.u32 %v182, 4294901760
    %3401 = vmatprep.subr.mxu0 %v3400
    %v3402 = vand.u32 %v181, 4294901760
    %3403 = vmatpush1.msra.mxu0 %v3402
    %v3404 = vand.u32 %v212, 4294901760
    %3405 = vmatprep.subr.mxu0 %v3404
    %v3406 = vand.u32 %v211, 4294901760
    %3407 = vmatpush1.msra.mxu0 %v3406
    %v3408 = vand.u32 %v242, 4294901760
    %3409 = vmatprep.subr.mxu0 %v3408
    %v3410 = vand.u32 %v241, 4294901760
    %3411 = vmatpush1.msra.mxu0 %v3410
    %v3412 = vand.u32 %v272, 4294901760
    %3413 = vmatprep.subr.mxu0 %v3412
    %v3414 = vand.u32 %v271, 4294901760
    %3415 = vmatpush1.msra.mxu0 %v3414
    %v3416 = vand.u32 %v302, 4294901760
    %3417 = vmatprep.subr.mxu0 %v3416
    %v3418 = vand.u32 %v301, 4294901760
    %3419 = vmatpush1.msra.mxu0 %v3418
    %3420 = vmatprep.subr.mxu0 0.0
    %3421 = vmatpush1.msra.mxu0 0.0
    %3422 = vmatprep.subr.mxu0 0.0
    %3423 = vmatpush1.msra.mxu0 0.0
    %3424 = vmatprep.subr.mxu0 0.0
    %3425 = vmatpush1.msra.mxu0 0.0
    %3426 = vmatprep.subr.mxu0 0.0
    %3427 = vmatpush1.msra.mxu0 0.0
    %3428 = vmatprep.subr.mxu0 0.0
    %3429 = vmatpush1.msra.mxu0 0.0
    %3430 = vmatprep.subr.mxu0 0.0
    %3431 = vmatpush1.msra.mxu0 0.0
    %3432 = vmatprep.subr.mxu0 0.0
    %3433 = vmatpush1.msra.mxu0 0.0
    %3434 = vmatprep.subr.mxu0 0.0
    %3435 = vmatpush1.msra.mxu0 0.0
    %3436 = vmatprep.subr.mxu0 0.0
    %3437 = vmatpush1.msra.mxu0 0.0
    %3438 = vmatprep.subr.mxu0 0.0
    %3439 = vmatpush1.msra.mxu0 0.0
    %3440 = vmatprep.subr.mxu0 0.0
    %3441 = vmatpush1.msra.mxu0 0.0
    %3442 = vmatprep.subr.mxu0 0.0
    %3443 = vmatpush1.msra.mxu0 0.0
    %3444 = vmatprep.subr.mxu0 0.0
    %3445 = vmatpush1.msra.mxu0 0.0
    %3446 = vmatprep.subr.mxu0 0.0
    %3447 = vmatpush1.msra.mxu0 0.0
    %3448 = vmatprep.subr.mxu0 0.0
    %3449 = vmatpush1.msra.mxu0 0.0
    %3450 = vmatprep.subr.mxu0 0.0
    %3451 = vmatpush1.msra.mxu0 0.0
    %3452 = vmatprep.subr.mxu0 0.0
    %3453 = vmatpush1.msra.mxu0 0.0
    %3454 = vmatprep.subr.mxu0 0.0
    %3455 = vmatpush1.msra.mxu0 0.0
    %3456 = vmatprep.subr.mxu0 0.0
    %3457 = vmatpush1.msra.mxu0 0.0
    %3458 = vmatprep.subr.mxu0 0.0
    %3459 = vmatpush1.msra.mxu0 0.0
    %3460 = vmatprep.subr.mxu0 0.0
    %3461 = vmatpush1.msra.mxu0 0.0
    %3462 = vmatprep.subr.mxu0 0.0
    %3463 = vmatpush1.msra.mxu0 0.0
    %3464 = vmatprep.subr.mxu0 0.0
    %3465 = vmatpush1.msra.mxu0 0.0
    %3466 = vmatprep.mubr.f32.mxu0 0.0
    %v3467 = vand.u32 %v325, 4294901760
    %v3468 = vsub.f32 %v325, %v3467
    %v3469 = vand.u32 %v3468, 4294901760
    %3470 = vmatmul.mubr.f32.gmra.mrb[0].mxu0 %v3469
    %v3471 = vpop.f32.mrb[0].mxu0
    %v3472 = vadd.f32 %v3380, %v3471
    %v3473 = vpop.f32.mrb[0].mxu0
    %v3474 = vadd.f32 %v3382, %v3473
    %3475 = vdwg.mxu0
    %v3476 = vand.u32 %v62, 4294901760
    %v3477 = vsub.f32 %v62, %v3476
    %v3478 = vand.u32 %v3477, 4294901760
    %3479 = vmatprep.subr.mxu0 %v3478
    %v3480 = vand.u32 %v61, 4294901760
    %v3481 = vsub.f32 %v61, %v3480
    %v3482 = vand.u32 %v3481, 4294901760
    %3483 = vmatpush1.msra.mxu0 %v3482
    %v3484 = vand.u32 %v92, 4294901760
    %v3485 = vsub.f32 %v92, %v3484
    %v3486 = vand.u32 %v3485, 4294901760
    %3487 = vmatprep.subr.mxu0 %v3486
    %v3488 = vand.u32 %v91, 4294901760
    %v3489 = vsub.f32 %v91, %v3488
    %v3490 = vand.u32 %v3489, 4294901760
    %3491 = vmatpush1.msra.mxu0 %v3490
    %v3492 = vand.u32 %v122, 4294901760
    %v3493 = vsub.f32 %v122, %v3492
    %v3494 = vand.u32 %v3493, 4294901760
    %3495 = vmatprep.subr.mxu0 %v3494
    %v3496 = vand.u32 %v121, 4294901760
    %v3497 = vsub.f32 %v121, %v3496
    %v3498 = vand.u32 %v3497, 4294901760
    %3499 = vmatpush1.msra.mxu0 %v3498
    %v3500 = vand.u32 %v152, 4294901760
    %v3501 = vsub.f32 %v152, %v3500
    %v3502 = vand.u32 %v3501, 4294901760
    %3503 = vmatprep.subr.mxu0 %v3502
    %v3504 = vand.u32 %v151, 4294901760
    %v3505 = vsub.f32 %v151, %v3504
    %v3506 = vand.u32 %v3505, 4294901760
    %3507 = vmatpush1.msra.mxu0 %v3506
    %v3508 = vand.u32 %v182, 4294901760
    %v3509 = vsub.f32 %v182, %v3508
    %v3510 = vand.u32 %v3509, 4294901760
    %3511 = vmatprep.subr.mxu0 %v3510
    %v3512 = vand.u32 %v181, 4294901760
    %v3513 = vsub.f32 %v181, %v3512
    %v3514 = vand.u32 %v3513, 4294901760
    %3515 = vmatpush1.msra.mxu0 %v3514
    %v3516 = vand.u32 %v212, 4294901760
    %v3517 = vsub.f32 %v212, %v3516
    %v3518 = vand.u32 %v3517, 4294901760
    %3519 = vmatprep.subr.mxu0 %v3518
    %v3520 = vand.u32 %v211, 4294901760
    %v3521 = vsub.f32 %v211, %v3520
    %v3522 = vand.u32 %v3521, 4294901760
    %3523 = vmatpush1.msra.mxu0 %v3522
    %v3524 = vand.u32 %v242, 4294901760
    %v3525 = vsub.f32 %v242, %v3524
    %v3526 = vand.u32 %v3525, 4294901760
    %3527 = vmatprep.subr.mxu0 %v3526
    %v3528 = vand.u32 %v241, 4294901760
    %v3529 = vsub.f32 %v241, %v3528
    %v3530 = vand.u32 %v3529, 4294901760
    %3531 = vmatpush1.msra.mxu0 %v3530
    %v3532 = vand.u32 %v272, 4294901760
    %v3533 = vsub.f32 %v272, %v3532
    %v3534 = vand.u32 %v3533, 4294901760
    %3535 = vmatprep.subr.mxu0 %v3534
    %v3536 = vand.u32 %v271, 4294901760
    %v3537 = vsub.f32 %v271, %v3536
    %v3538 = vand.u32 %v3537, 4294901760
    %3539 = vmatpush1.msra.mxu0 %v3538
    %v3540 = vand.u32 %v302, 4294901760
    %v3541 = vsub.f32 %v302, %v3540
    %v3542 = vand.u32 %v3541, 4294901760
    %3543 = vmatprep.subr.mxu0 %v3542
    %v3544 = vand.u32 %v301, 4294901760
    %v3545 = vsub.f32 %v301, %v3544
    %v3546 = vand.u32 %v3545, 4294901760
    %3547 = vmatpush1.msra.mxu0 %v3546
    %3548 = vmatprep.subr.mxu0 0.0
    %3549 = vmatpush1.msra.mxu0 0.0
    %3550 = vmatprep.subr.mxu0 0.0
    %3551 = vmatpush1.msra.mxu0 0.0
    %3552 = vmatprep.subr.mxu0 0.0
    %3553 = vmatpush1.msra.mxu0 0.0
    %3554 = vmatprep.subr.mxu0 0.0
    %3555 = vmatpush1.msra.mxu0 0.0
    %3556 = vmatprep.subr.mxu0 0.0
    %3557 = vmatpush1.msra.mxu0 0.0
    %3558 = vmatprep.subr.mxu0 0.0
    %3559 = vmatpush1.msra.mxu0 0.0
    %3560 = vmatprep.subr.mxu0 0.0
    %3561 = vmatpush1.msra.mxu0 0.0
    %3562 = vmatprep.subr.mxu0 0.0
    %3563 = vmatpush1.msra.mxu0 0.0
    %3564 = vmatprep.subr.mxu0 0.0
    %3565 = vmatpush1.msra.mxu0 0.0
    %3566 = vmatprep.subr.mxu0 0.0
    %3567 = vmatpush1.msra.mxu0 0.0
    %3568 = vmatprep.subr.mxu0 0.0
    %3569 = vmatpush1.msra.mxu0 0.0
    %3570 = vmatprep.subr.mxu0 0.0
    %3571 = vmatpush1.msra.mxu0 0.0
    %3572 = vmatprep.subr.mxu0 0.0
    %3573 = vmatpush1.msra.mxu0 0.0
    %3574 = vmatprep.subr.mxu0 0.0
    %3575 = vmatpush1.msra.mxu0 0.0
    %3576 = vmatprep.subr.mxu0 0.0
    %3577 = vmatpush1.msra.mxu0 0.0
    %3578 = vmatprep.subr.mxu0 0.0
    %3579 = vmatpush1.msra.mxu0 0.0
    %3580 = vmatprep.subr.mxu0 0.0
    %3581 = vmatpush1.msra.mxu0 0.0
    %3582 = vmatprep.subr.mxu0 0.0
    %3583 = vmatpush1.msra.mxu0 0.0
    %3584 = vmatprep.subr.mxu0 0.0
    %3585 = vmatpush1.msra.mxu0 0.0
    %3586 = vmatprep.subr.mxu0 0.0
    %3587 = vmatpush1.msra.mxu0 0.0
    %3588 = vmatprep.subr.mxu0 0.0
    %3589 = vmatpush1.msra.mxu0 0.0
    %3590 = vmatprep.subr.mxu0 0.0
    %3591 = vmatpush1.msra.mxu0 0.0
    %3592 = vmatprep.subr.mxu0 0.0
    %3593 = vmatpush1.msra.mxu0 0.0
    %3594 = vmatprep.mubr.f32.mxu0 0.0
    %v3595 = vand.u32 %v325, 4294901760
    %3596 = vmatmul.mubr.f32.gmra.mrb[0].mxu0 %v3595
    %v3597 = vpop.f32.mrb[0].mxu0
    %v3598 = vadd.f32 %v3472, %v3597
    %v3599 = vpop.f32.mrb[0].mxu0
    %v3600 = vadd.f32 %v3474, %v3599
    %3601 = vdwg.mxu0
    %v3602 = vand.u32 %v62, 4294901760
    %3603 = vmatprep.subr.mxu0 %v3602
    %v3604 = vand.u32 %v61, 4294901760
    %3605 = vmatpush1.msra.mxu0 %v3604
    %v3606 = vand.u32 %v92, 4294901760
    %3607 = vmatprep.subr.mxu0 %v3606
    %v3608 = vand.u32 %v91, 4294901760
    %3609 = vmatpush1.msra.mxu0 %v3608
    %v3610 = vand.u32 %v122, 4294901760
    %3611 = vmatprep.subr.mxu0 %v3610
    %v3612 = vand.u32 %v121, 4294901760
    %3613 = vmatpush1.msra.mxu0 %v3612
    %v3614 = vand.u32 %v152, 4294901760
    %3615 = vmatprep.subr.mxu0 %v3614
    %v3616 = vand.u32 %v151, 4294901760
    %3617 = vmatpush1.msra.mxu0 %v3616
    %v3618 = vand.u32 %v182, 4294901760
    %3619 = vmatprep.subr.mxu0 %v3618
    %v3620 = vand.u32 %v181, 4294901760
    %3621 = vmatpush1.msra.mxu0 %v3620
    %v3622 = vand.u32 %v212, 4294901760
    %3623 = vmatprep.subr.mxu0 %v3622
    %v3624 = vand.u32 %v211, 4294901760
    %3625 = vmatpush1.msra.mxu0 %v3624
    %v3626 = vand.u32 %v242, 4294901760
    %3627 = vmatprep.subr.mxu0 %v3626
    %v3628 = vand.u32 %v241, 4294901760
    %3629 = vmatpush1.msra.mxu0 %v3628
    %v3630 = vand.u32 %v272, 4294901760
    %3631 = vmatprep.subr.mxu0 %v3630
    %v3632 = vand.u32 %v271, 4294901760
    %3633 = vmatpush1.msra.mxu0 %v3632
    %v3634 = vand.u32 %v302, 4294901760
    %3635 = vmatprep.subr.mxu0 %v3634
    %v3636 = vand.u32 %v301, 4294901760
    %3637 = vmatpush1.msra.mxu0 %v3636
    %3638 = vmatprep.subr.mxu0 0.0
    %3639 = vmatpush1.msra.mxu0 0.0
    %3640 = vmatprep.subr.mxu0 0.0
    %3641 = vmatpush1.msra.mxu0 0.0
    %3642 = vmatprep.subr.mxu0 0.0
    %3643 = vmatpush1.msra.mxu0 0.0
    %3644 = vmatprep.subr.mxu0 0.0
    %3645 = vmatpush1.msra.mxu0 0.0
    %3646 = vmatprep.subr.mxu0 0.0
    %3647 = vmatpush1.msra.mxu0 0.0
    %3648 = vmatprep.subr.mxu0 0.0
    %3649 = vmatpush1.msra.mxu0 0.0
    %3650 = vmatprep.subr.mxu0 0.0
    %3651 = vmatpush1.msra.mxu0 0.0
    %3652 = vmatprep.subr.mxu0 0.0
    %3653 = vmatpush1.msra.mxu0 0.0
    %3654 = vmatprep.subr.mxu0 0.0
    %3655 = vmatpush1.msra.mxu0 0.0
    %3656 = vmatprep.subr.mxu0 0.0
    %3657 = vmatpush1.msra.mxu0 0.0
    %3658 = vmatprep.subr.mxu0 0.0
    %3659 = vmatpush1.msra.mxu0 0.0
    %3660 = vmatprep.subr.mxu0 0.0
    %3661 = vmatpush1.msra.mxu0 0.0
    %3662 = vmatprep.subr.mxu0 0.0
    %3663 = vmatpush1.msra.mxu0 0.0
    %3664 = vmatprep.subr.mxu0 0.0
    %3665 = vmatpush1.msra.mxu0 0.0
    %3666 = vmatprep.subr.mxu0 0.0
    %3667 = vmatpush1.msra.mxu0 0.0
    %3668 = vmatprep.subr.mxu0 0.0
    %3669 = vmatpush1.msra.mxu0 0.0
    %3670 = vmatprep.subr.mxu0 0.0
    %3671 = vmatpush1.msra.mxu0 0.0
    %3672 = vmatprep.subr.mxu0 0.0
    %3673 = vmatpush1.msra.mxu0 0.0
    %3674 = vmatprep.subr.mxu0 0.0
    %3675 = vmatpush1.msra.mxu0 0.0
    %3676 = vmatprep.subr.mxu0 0.0
    %3677 = vmatpush1.msra.mxu0 0.0
    %3678 = vmatprep.subr.mxu0 0.0
    %3679 = vmatpush1.msra.mxu0 0.0
    %3680 = vmatprep.subr.mxu0 0.0
    %3681 = vmatpush1.msra.mxu0 0.0
    %3682 = vmatprep.subr.mxu0 0.0
    %3683 = vmatpush1.msra.mxu0 0.0
    %3684 = vmatprep.mubr.f32.mxu0 0.0
    %v3685 = vand.u32 %v325, 4294901760
    %3686 = vmatmul.mubr.f32.gmra.mrb[0].mxu0 %v3685
    %v3687 = vpop.f32.mrb[0].mxu0
    %v3688 = vadd.f32 %v3598, %v3687
    %v3689 = vpop.f32.mrb[0].mxu0
    %v3690 = vadd.f32 %v3600, %v3689
    %3691 = vdwg.mxu0
    %v3692 = vand.u32 %v64, 4294901760
    %3693 = vmatprep.subr.mxu0 %v3692
    %v3694 = vand.u32 %v63, 4294901760
    %3695 = vmatpush1.msra.mxu0 %v3694
    %v3696 = vand.u32 %v94, 4294901760
    %3697 = vmatprep.subr.mxu0 %v3696
    %v3698 = vand.u32 %v93, 4294901760
    %3699 = vmatpush1.msra.mxu0 %v3698
    %v3700 = vand.u32 %v124, 4294901760
    %3701 = vmatprep.subr.mxu0 %v3700
    %v3702 = vand.u32 %v123, 4294901760
    %3703 = vmatpush1.msra.mxu0 %v3702
    %v3704 = vand.u32 %v154, 4294901760
    %3705 = vmatprep.subr.mxu0 %v3704
    %v3706 = vand.u32 %v153, 4294901760
    %3707 = vmatpush1.msra.mxu0 %v3706
    %v3708 = vand.u32 %v184, 4294901760
    %3709 = vmatprep.subr.mxu0 %v3708
    %v3710 = vand.u32 %v183, 4294901760
    %3711 = vmatpush1.msra.mxu0 %v3710
    %v3712 = vand.u32 %v214, 4294901760
    %3713 = vmatprep.subr.mxu0 %v3712
    %v3714 = vand.u32 %v213, 4294901760
    %3715 = vmatpush1.msra.mxu0 %v3714
    %v3716 = vand.u32 %v244, 4294901760
    %3717 = vmatprep.subr.mxu0 %v3716
    %v3718 = vand.u32 %v243, 4294901760
    %3719 = vmatpush1.msra.mxu0 %v3718
    %v3720 = vand.u32 %v274, 4294901760
    %3721 = vmatprep.subr.mxu0 %v3720
    %v3722 = vand.u32 %v273, 4294901760
    %3723 = vmatpush1.msra.mxu0 %v3722
    %v3724 = vand.u32 %v304, 4294901760
    %3725 = vmatprep.subr.mxu0 %v3724
    %v3726 = vand.u32 %v303, 4294901760
    %3727 = vmatpush1.msra.mxu0 %v3726
    %3728 = vmatprep.subr.mxu0 0.0
    %3729 = vmatpush1.msra.mxu0 0.0
    %3730 = vmatprep.subr.mxu0 0.0
    %3731 = vmatpush1.msra.mxu0 0.0
    %3732 = vmatprep.subr.mxu0 0.0
    %3733 = vmatpush1.msra.mxu0 0.0
    %3734 = vmatprep.subr.mxu0 0.0
    %3735 = vmatpush1.msra.mxu0 0.0
    %3736 = vmatprep.subr.mxu0 0.0
    %3737 = vmatpush1.msra.mxu0 0.0
    %3738 = vmatprep.subr.mxu0 0.0
    %3739 = vmatpush1.msra.mxu0 0.0
    %3740 = vmatprep.subr.mxu0 0.0
    %3741 = vmatpush1.msra.mxu0 0.0
    %3742 = vmatprep.subr.mxu0 0.0
    %3743 = vmatpush1.msra.mxu0 0.0
    %3744 = vmatprep.subr.mxu0 0.0
    %3745 = vmatpush1.msra.mxu0 0.0
    %3746 = vmatprep.subr.mxu0 0.0
    %3747 = vmatpush1.msra.mxu0 0.0
    %3748 = vmatprep.subr.mxu0 0.0
    %3749 = vmatpush1.msra.mxu0 0.0
    %3750 = vmatprep.subr.mxu0 0.0
    %3751 = vmatpush1.msra.mxu0 0.0
    %3752 = vmatprep.subr.mxu0 0.0
    %3753 = vmatpush1.msra.mxu0 0.0
    %3754 = vmatprep.subr.mxu0 0.0
    %3755 = vmatpush1.msra.mxu0 0.0
    %3756 = vmatprep.subr.mxu0 0.0
    %3757 = vmatpush1.msra.mxu0 0.0
    %3758 = vmatprep.subr.mxu0 0.0
    %3759 = vmatpush1.msra.mxu0 0.0
    %3760 = vmatprep.subr.mxu0 0.0
    %3761 = vmatpush1.msra.mxu0 0.0
    %3762 = vmatprep.subr.mxu0 0.0
    %3763 = vmatpush1.msra.mxu0 0.0
    %3764 = vmatprep.subr.mxu0 0.0
    %3765 = vmatpush1.msra.mxu0 0.0
    %3766 = vmatprep.subr.mxu0 0.0
    %3767 = vmatpush1.msra.mxu0 0.0
    %3768 = vmatprep.subr.mxu0 0.0
    %3769 = vmatpush1.msra.mxu0 0.0
    %3770 = vmatprep.subr.mxu0 0.0
    %3771 = vmatpush1.msra.mxu0 0.0
    %3772 = vmatprep.subr.mxu0 0.0
    %3773 = vmatpush1.msra.mxu0 0.0
    %3774 = vmatprep.mubr.f32.mxu0 0.0
    %v3775 = vand.u32 %v325, 4294901760
    %v3776 = vsub.f32 %v325, %v3775
    %v3777 = vand.u32 %v3776, 4294901760
    %v3778 = vsub.f32 %v3776, %v3777
    %v3779 = vand.u32 %v3778, 4294901760
    %3780 = vmatmul.mubr.f32.gmra.mrb[0].mxu0 %v3779
    %v3781 = vpop.f32.mrb[0].mxu0
    %v3782 = vadd.f32 0.0, %v3781
    %v3783 = vpop.f32.mrb[0].mxu0
    %v3784 = vadd.f32 0.0, %v3783
    %3785 = vdwg.mxu0
    %v3786 = vand.u32 %v64, 4294901760
    %v3787 = vsub.f32 %v64, %v3786
    %v3788 = vand.u32 %v3787, 4294901760
    %v3789 = vsub.f32 %v3787, %v3788
    %v3790 = vand.u32 %v3789, 4294901760
    %3791 = vmatprep.subr.mxu0 %v3790
    %v3792 = vand.u32 %v63, 4294901760
    %v3793 = vsub.f32 %v63, %v3792
    %v3794 = vand.u32 %v3793, 4294901760
    %v3795 = vsub.f32 %v3793, %v3794
    %v3796 = vand.u32 %v3795, 4294901760
    %3797 = vmatpush1.msra.mxu0 %v3796
    %v3798 = vand.u32 %v94, 4294901760
    %v3799 = vsub.f32 %v94, %v3798
    %v3800 = vand.u32 %v3799, 4294901760
    %v3801 = vsub.f32 %v3799, %v3800
    %v3802 = vand.u32 %v3801, 4294901760
    %3803 = vmatprep.subr.mxu0 %v3802
    %v3804 = vand.u32 %v93, 4294901760
    %v3805 = vsub.f32 %v93, %v3804
    %v3806 = vand.u32 %v3805, 4294901760
    %v3807 = vsub.f32 %v3805, %v3806
    %v3808 = vand.u32 %v3807, 4294901760
    %3809 = vmatpush1.msra.mxu0 %v3808
    %v3810 = vand.u32 %v124, 4294901760
    %v3811 = vsub.f32 %v124, %v3810
    %v3812 = vand.u32 %v3811, 4294901760
    %v3813 = vsub.f32 %v3811, %v3812
    %v3814 = vand.u32 %v3813, 4294901760
    %3815 = vmatprep.subr.mxu0 %v3814
    %v3816 = vand.u32 %v123, 4294901760
    %v3817 = vsub.f32 %v123, %v3816
    %v3818 = vand.u32 %v3817, 4294901760
    %v3819 = vsub.f32 %v3817, %v3818
    %v3820 = vand.u32 %v3819, 4294901760
    %3821 = vmatpush1.msra.mxu0 %v3820
    %v3822 = vand.u32 %v154, 4294901760
    %v3823 = vsub.f32 %v154, %v3822
    %v3824 = vand.u32 %v3823, 4294901760
    %v3825 = vsub.f32 %v3823, %v3824
    %v3826 = vand.u32 %v3825, 4294901760
    %3827 = vmatprep.subr.mxu0 %v3826
    %v3828 = vand.u32 %v153, 4294901760
    %v3829 = vsub.f32 %v153, %v3828
    %v3830 = vand.u32 %v3829, 4294901760
    %v3831 = vsub.f32 %v3829, %v3830
    %v3832 = vand.u32 %v3831, 4294901760
    %3833 = vmatpush1.msra.mxu0 %v3832
    %v3834 = vand.u32 %v184, 4294901760
    %v3835 = vsub.f32 %v184, %v3834
    %v3836 = vand.u32 %v3835, 4294901760
    %v3837 = vsub.f32 %v3835, %v3836
    %v3838 = vand.u32 %v3837, 4294901760
    %3839 = vmatprep.subr.mxu0 %v3838
    %v3840 = vand.u32 %v183, 4294901760
    %v3841 = vsub.f32 %v183, %v3840
    %v3842 = vand.u32 %v3841, 4294901760
    %v3843 = vsub.f32 %v3841, %v3842
    %v3844 = vand.u32 %v3843, 4294901760
    %3845 = vmatpush1.msra.mxu0 %v3844
    %v3846 = vand.u32 %v214, 4294901760
    %v3847 = vsub.f32 %v214, %v3846
    %v3848 = vand.u32 %v3847, 4294901760
    %v3849 = vsub.f32 %v3847, %v3848
    %v3850 = vand.u32 %v3849, 4294901760
    %3851 = vmatprep.subr.mxu0 %v3850
    %v3852 = vand.u32 %v213, 4294901760
    %v3853 = vsub.f32 %v213, %v3852
    %v3854 = vand.u32 %v3853, 4294901760
    %v3855 = vsub.f32 %v3853, %v3854
    %v3856 = vand.u32 %v3855, 4294901760
    %3857 = vmatpush1.msra.mxu0 %v3856
    %v3858 = vand.u32 %v244, 4294901760
    %v3859 = vsub.f32 %v244, %v3858
    %v3860 = vand.u32 %v3859, 4294901760
    %v3861 = vsub.f32 %v3859, %v3860
    %v3862 = vand.u32 %v3861, 4294901760
    %3863 = vmatprep.subr.mxu0 %v3862
    %v3864 = vand.u32 %v243, 4294901760
    %v3865 = vsub.f32 %v243, %v3864
    %v3866 = vand.u32 %v3865, 4294901760
    %v3867 = vsub.f32 %v3865, %v3866
    %v3868 = vand.u32 %v3867, 4294901760
    %3869 = vmatpush1.msra.mxu0 %v3868
    %v3870 = vand.u32 %v274, 4294901760
    %v3871 = vsub.f32 %v274, %v3870
    %v3872 = vand.u32 %v3871, 4294901760
    %v3873 = vsub.f32 %v3871, %v3872
    %v3874 = vand.u32 %v3873, 4294901760
    %3875 = vmatprep.subr.mxu0 %v3874
    %v3876 = vand.u32 %v273, 4294901760
    %v3877 = vsub.f32 %v273, %v3876
    %v3878 = vand.u32 %v3877, 4294901760
    %v3879 = vsub.f32 %v3877, %v3878
    %v3880 = vand.u32 %v3879, 4294901760
    %3881 = vmatpush1.msra.mxu0 %v3880
    %v3882 = vand.u32 %v304, 4294901760
    %v3883 = vsub.f32 %v304, %v3882
    %v3884 = vand.u32 %v3883, 4294901760
    %v3885 = vsub.f32 %v3883, %v3884
    %v3886 = vand.u32 %v3885, 4294901760
    %3887 = vmatprep.subr.mxu0 %v3886
    %v3888 = vand.u32 %v303, 4294901760
    %v3889 = vsub.f32 %v303, %v3888
    %v3890 = vand.u32 %v3889, 4294901760
    %v3891 = vsub.f32 %v3889, %v3890
    %v3892 = vand.u32 %v3891, 4294901760
    %3893 = vmatpush1.msra.mxu0 %v3892
    %3894 = vmatprep.subr.mxu0 0.0
    %3895 = vmatpush1.msra.mxu0 0.0
    %3896 = vmatprep.subr.mxu0 0.0
    %3897 = vmatpush1.msra.mxu0 0.0
    %3898 = vmatprep.subr.mxu0 0.0
    %3899 = vmatpush1.msra.mxu0 0.0
    %3900 = vmatprep.subr.mxu0 0.0
    %3901 = vmatpush1.msra.mxu0 0.0
    %3902 = vmatprep.subr.mxu0 0.0
    %3903 = vmatpush1.msra.mxu0 0.0
    %3904 = vmatprep.subr.mxu0 0.0
    %3905 = vmatpush1.msra.mxu0 0.0
    %3906 = vmatprep.subr.mxu0 0.0
    %3907 = vmatpush1.msra.mxu0 0.0
    %3908 = vmatprep.subr.mxu0 0.0
    %3909 = vmatpush1.msra.mxu0 0.0
    %3910 = vmatprep.subr.mxu0 0.0
    %3911 = vmatpush1.msra.mxu0 0.0
    %3912 = vmatprep.subr.mxu0 0.0
    %3913 = vmatpush1.msra.mxu0 0.0
    %3914 = vmatprep.subr.mxu0 0.0
    %3915 = vmatpush1.msra.mxu0 0.0
    %3916 = vmatprep.subr.mxu0 0.0
    %3917 = vmatpush1.msra.mxu0 0.0
    %3918 = vmatprep.subr.mxu0 0.0
    %3919 = vmatpush1.msra.mxu0 0.0
    %3920 = vmatprep.subr.mxu0 0.0
    %3921 = vmatpush1.msra.mxu0 0.0
    %3922 = vmatprep.subr.mxu0 0.0
    %3923 = vmatpush1.msra.mxu0 0.0
    %3924 = vmatprep.subr.mxu0 0.0
    %3925 = vmatpush1.msra.mxu0 0.0
    %3926 = vmatprep.subr.mxu0 0.0
    %3927 = vmatpush1.msra.mxu0 0.0
    %3928 = vmatprep.subr.mxu0 0.0
    %3929 = vmatpush1.msra.mxu0 0.0
    %3930 = vmatprep.subr.mxu0 0.0
    %3931 = vmatpush1.msra.mxu0 0.0
    %3932 = vmatprep.subr.mxu0 0.0
    %3933 = vmatpush1.msra.mxu0 0.0
    %3934 = vmatprep.subr.mxu0 0.0
    %3935 = vmatpush1.msra.mxu0 0.0
    %3936 = vmatprep.subr.mxu0 0.0
    %3937 = vmatpush1.msra.mxu0 0.0
    %3938 = vmatprep.subr.mxu0 0.0
    %3939 = vmatpush1.msra.mxu0 0.0
    %3940 = vmatprep.mubr.f32.mxu0 0.0
    %v3941 = vand.u32 %v325, 4294901760
    %3942 = vmatmul.mubr.f32.gmra.mrb[0].mxu0 %v3941
    %v3943 = vpop.f32.mrb[0].mxu0
    %v3944 = vadd.f32 %v3782, %v3943
    %v3945 = vpop.f32.mrb[0].mxu0
    %v3946 = vadd.f32 %v3784, %v3945
    %3947 = vdwg.mxu0
    %v3948 = vand.u32 %v64, 4294901760
    %v3949 = vsub.f32 %v64, %v3948
    %3950 = vmatprep.subr.mxu0 %v3949
    %v3951 = vand.u32 %v63, 4294901760
    %v3952 = vsub.f32 %v63, %v3951
    %3953 = vmatpush1.msra.mxu0 %v3952
    %v3954 = vand.u32 %v94, 4294901760
    %v3955 = vsub.f32 %v94, %v3954
    %3956 = vmatprep.subr.mxu0 %v3955
    %v3957 = vand.u32 %v93, 4294901760
    %v3958 = vsub.f32 %v93, %v3957
    %3959 = vmatpush1.msra.mxu0 %v3958
    %v3960 = vand.u32 %v124, 4294901760
    %v3961 = vsub.f32 %v124, %v3960
    %3962 = vmatprep.subr.mxu0 %v3961
    %v3963 = vand.u32 %v123, 4294901760
    %v3964 = vsub.f32 %v123, %v3963
    %3965 = vmatpush1.msra.mxu0 %v3964
    %v3966 = vand.u32 %v154, 4294901760
    %v3967 = vsub.f32 %v154, %v3966
    %3968 = vmatprep.subr.mxu0 %v3967
    %v3969 = vand.u32 %v153, 4294901760
    %v3970 = vsub.f32 %v153, %v3969
    %3971 = vmatpush1.msra.mxu0 %v3970
    %v3972 = vand.u32 %v184, 4294901760
    %v3973 = vsub.f32 %v184, %v3972
    %3974 = vmatprep.subr.mxu0 %v3973
    %v3975 = vand.u32 %v183, 4294901760
    %v3976 = vsub.f32 %v183, %v3975
    %3977 = vmatpush1.msra.mxu0 %v3976
    %v3978 = vand.u32 %v214, 4294901760
    %v3979 = vsub.f32 %v214, %v3978
    %3980 = vmatprep.subr.mxu0 %v3979
    %v3981 = vand.u32 %v213, 4294901760
    %v3982 = vsub.f32 %v213, %v3981
    %3983 = vmatpush1.msra.mxu0 %v3982
    %v3984 = vand.u32 %v244, 4294901760
    %v3985 = vsub.f32 %v244, %v3984
    %3986 = vmatprep.subr.mxu0 %v3985
    %v3987 = vand.u32 %v243, 4294901760
    %v3988 = vsub.f32 %v243, %v3987
    %3989 = vmatpush1.msra.mxu0 %v3988
    %v3990 = vand.u32 %v274, 4294901760
    %v3991 = vsub.f32 %v274, %v3990
    %3992 = vmatprep.subr.mxu0 %v3991
    %v3993 = vand.u32 %v273, 4294901760
    %v3994 = vsub.f32 %v273, %v3993
    %3995 = vmatpush1.msra.mxu0 %v3994
    %v3996 = vand.u32 %v304, 4294901760
    %v3997 = vsub.f32 %v304, %v3996
    %3998 = vmatprep.subr.mxu0 %v3997
    %v3999 = vand.u32 %v303, 4294901760
    %v4000 = vsub.f32 %v303, %v3999
    %4001 = vmatpush1.msra.mxu0 %v4000
    %4002 = vmatprep.subr.mxu0 0.0
    %4003 = vmatpush1.msra.mxu0 0.0
    %4004 = vmatprep.subr.mxu0 0.0
    %4005 = vmatpush1.msra.mxu0 0.0
    %4006 = vmatprep.subr.mxu0 0.0
    %4007 = vmatpush1.msra.mxu0 0.0
    %4008 = vmatprep.subr.mxu0 0.0
    %4009 = vmatpush1.msra.mxu0 0.0
    %4010 = vmatprep.subr.mxu0 0.0
    %4011 = vmatpush1.msra.mxu0 0.0
    %4012 = vmatprep.subr.mxu0 0.0
    %4013 = vmatpush1.msra.mxu0 0.0
    %4014 = vmatprep.subr.mxu0 0.0
    %4015 = vmatpush1.msra.mxu0 0.0
    %4016 = vmatprep.subr.mxu0 0.0
    %4017 = vmatpush1.msra.mxu0 0.0
    %4018 = vmatprep.subr.mxu0 0.0
    %4019 = vmatpush1.msra.mxu0 0.0
    %4020 = vmatprep.subr.mxu0 0.0
    %4021 = vmatpush1.msra.mxu0 0.0
    %4022 = vmatprep.subr.mxu0 0.0
    %4023 = vmatpush1.msra.mxu0 0.0
    %4024 = vmatprep.subr.mxu0 0.0
    %4025 = vmatpush1.msra.mxu0 0.0
    %4026 = vmatprep.subr.mxu0 0.0
    %4027 = vmatpush1.msra.mxu0 0.0
    %4028 = vmatprep.subr.mxu0 0.0
    %4029 = vmatpush1.msra.mxu0 0.0
    %4030 = vmatprep.subr.mxu0 0.0
    %4031 = vmatpush1.msra.mxu0 0.0
    %4032 = vmatprep.subr.mxu0 0.0
    %4033 = vmatpush1.msra.mxu0 0.0
    %4034 = vmatprep.subr.mxu0 0.0
    %4035 = vmatpush1.msra.mxu0 0.0
    %4036 = vmatprep.subr.mxu0 0.0
    %4037 = vmatpush1.msra.mxu0 0.0
    %4038 = vmatprep.subr.mxu0 0.0
    %4039 = vmatpush1.msra.mxu0 0.0
    %4040 = vmatprep.subr.mxu0 0.0
    %4041 = vmatpush1.msra.mxu0 0.0
    %4042 = vmatprep.subr.mxu0 0.0
    %4043 = vmatpush1.msra.mxu0 0.0
    %4044 = vmatprep.subr.mxu0 0.0
    %4045 = vmatpush1.msra.mxu0 0.0
    %4046 = vmatprep.subr.mxu0 0.0
    %4047 = vmatpush1.msra.mxu0 0.0
    %4048 = vmatprep.mubr.f32.mxu0 0.0
    %v4049 = vand.u32 %v325, 4294901760
    %v4050 = vsub.f32 %v325, %v4049
    %4051 = vmatmul.mubr.f32.gmra.mrb[0].mxu0 %v4050
    %v4052 = vpop.f32.mrb[0].mxu0
    %v4053 = vadd.f32 %v3944, %v4052
    %v4054 = vpop.f32.mrb[0].mxu0
    %v4055 = vadd.f32 %v3946, %v4054
    %4056 = vdwg.mxu0
    %v4057 = vand.u32 %v64, 4294901760
    %4058 = vmatprep.subr.mxu0 %v4057
    %v4059 = vand.u32 %v63, 4294901760
    %4060 = vmatpush1.msra.mxu0 %v4059
    %v4061 = vand.u32 %v94, 4294901760
    %4062 = vmatprep.subr.mxu0 %v4061
    %v4063 = vand.u32 %v93, 4294901760
    %4064 = vmatpush1.msra.mxu0 %v4063
    %v4065 = vand.u32 %v124, 4294901760
    %4066 = vmatprep.subr.mxu0 %v4065
    %v4067 = vand.u32 %v123, 4294901760
    %4068 = vmatpush1.msra.mxu0 %v4067
    %v4069 = vand.u32 %v154, 4294901760
    %4070 = vmatprep.subr.mxu0 %v4069
    %v4071 = vand.u32 %v153, 4294901760
    %4072 = vmatpush1.msra.mxu0 %v4071
    %v4073 = vand.u32 %v184, 4294901760
    %4074 = vmatprep.subr.mxu0 %v4073
    %v4075 = vand.u32 %v183, 4294901760
    %4076 = vmatpush1.msra.mxu0 %v4075
    %v4077 = vand.u32 %v214, 4294901760
    %4078 = vmatprep.subr.mxu0 %v4077
    %v4079 = vand.u32 %v213, 4294901760
    %4080 = vmatpush1.msra.mxu0 %v4079
    %v4081 = vand.u32 %v244, 4294901760
    %4082 = vmatprep.subr.mxu0 %v4081
    %v4083 = vand.u32 %v243, 4294901760
    %4084 = vmatpush1.msra.mxu0 %v4083
    %v4085 = vand.u32 %v274, 4294901760
    %4086 = vmatprep.subr.mxu0 %v4085
    %v4087 = vand.u32 %v273, 4294901760
    %4088 = vmatpush1.msra.mxu0 %v4087
    %v4089 = vand.u32 %v304, 4294901760
    %4090 = vmatprep.subr.mxu0 %v4089
    %v4091 = vand.u32 %v303, 4294901760
    %4092 = vmatpush1.msra.mxu0 %v4091
    %4093 = vmatprep.subr.mxu0 0.0
    %4094 = vmatpush1.msra.mxu0 0.0
    %4095 = vmatprep.subr.mxu0 0.0
    %4096 = vmatpush1.msra.mxu0 0.0
    %4097 = vmatprep.subr.mxu0 0.0
    %4098 = vmatpush1.msra.mxu0 0.0
    %4099 = vmatprep.subr.mxu0 0.0
    %4100 = vmatpush1.msra.mxu0 0.0
    %4101 = vmatprep.subr.mxu0 0.0
    %4102 = vmatpush1.msra.mxu0 0.0
    %4103 = vmatprep.subr.mxu0 0.0
    %4104 = vmatpush1.msra.mxu0 0.0
    %4105 = vmatprep.subr.mxu0 0.0
    %4106 = vmatpush1.msra.mxu0 0.0
    %4107 = vmatprep.subr.mxu0 0.0
    %4108 = vmatpush1.msra.mxu0 0.0
    %4109 = vmatprep.subr.mxu0 0.0
    %4110 = vmatpush1.msra.mxu0 0.0
    %4111 = vmatprep.subr.mxu0 0.0
    %4112 = vmatpush1.msra.mxu0 0.0
    %4113 = vmatprep.subr.mxu0 0.0
    %4114 = vmatpush1.msra.mxu0 0.0
    %4115 = vmatprep.subr.mxu0 0.0
    %4116 = vmatpush1.msra.mxu0 0.0
    %4117 = vmatprep.subr.mxu0 0.0
    %4118 = vmatpush1.msra.mxu0 0.0
    %4119 = vmatprep.subr.mxu0 0.0
    %4120 = vmatpush1.msra.mxu0 0.0
    %4121 = vmatprep.subr.mxu0 0.0
    %4122 = vmatpush1.msra.mxu0 0.0
    %4123 = vmatprep.subr.mxu0 0.0
    %4124 = vmatpush1.msra.mxu0 0.0
    %4125 = vmatprep.subr.mxu0 0.0
    %4126 = vmatpush1.msra.mxu0 0.0
    %4127 = vmatprep.subr.mxu0 0.0
    %4128 = vmatpush1.msra.mxu0 0.0
    %4129 = vmatprep.subr.mxu0 0.0
    %4130 = vmatpush1.msra.mxu0 0.0
    %4131 = vmatprep.subr.mxu0 0.0
    %4132 = vmatpush1.msra.mxu0 0.0
    %4133 = vmatprep.subr.mxu0 0.0
    %4134 = vmatpush1.msra.mxu0 0.0
    %4135 = vmatprep.subr.mxu0 0.0
    %4136 = vmatpush1.msra.mxu0 0.0
    %4137 = vmatprep.subr.mxu0 0.0
    %4138 = vmatpush1.msra.mxu0 0.0
    %4139 = vmatprep.mubr.f32.mxu0 0.0
    %v4140 = vand.u32 %v325, 4294901760
    %v4141 = vsub.f32 %v325, %v4140
    %v4142 = vand.u32 %v4141, 4294901760
    %4143 = vmatmul.mubr.f32.gmra.mrb[0].mxu0 %v4142
    %v4144 = vpop.f32.mrb[0].mxu0
    %v4145 = vadd.f32 %v4053, %v4144
    %v4146 = vpop.f32.mrb[0].mxu0
    %v4147 = vadd.f32 %v4055, %v4146
    %4148 = vdwg.mxu0
    %v4149 = vand.u32 %v64, 4294901760
    %v4150 = vsub.f32 %v64, %v4149
    %v4151 = vand.u32 %v4150, 4294901760
    %4152 = vmatprep.subr.mxu0 %v4151
    %v4153 = vand.u32 %v63, 4294901760
    %v4154 = vsub.f32 %v63, %v4153
    %v4155 = vand.u32 %v4154, 4294901760
    %4156 = vmatpush1.msra.mxu0 %v4155
    %v4157 = vand.u32 %v94, 4294901760
    %v4158 = vsub.f32 %v94, %v4157
    %v4159 = vand.u32 %v4158, 4294901760
    %4160 = vmatprep.subr.mxu0 %v4159
    %v4161 = vand.u32 %v93, 4294901760
    %v4162 = vsub.f32 %v93, %v4161
    %v4163 = vand.u32 %v4162, 4294901760
    %4164 = vmatpush1.msra.mxu0 %v4163
    %v4165 = vand.u32 %v124, 4294901760
    %v4166 = vsub.f32 %v124, %v4165
    %v4167 = vand.u32 %v4166, 4294901760
    %4168 = vmatprep.subr.mxu0 %v4167
    %v4169 = vand.u32 %v123, 4294901760
    %v4170 = vsub.f32 %v123, %v4169
    %v4171 = vand.u32 %v4170, 4294901760
    %4172 = vmatpush1.msra.mxu0 %v4171
    %v4173 = vand.u32 %v154, 4294901760
    %v4174 = vsub.f32 %v154, %v4173
    %v4175 = vand.u32 %v4174, 4294901760
    %4176 = vmatprep.subr.mxu0 %v4175
    %v4177 = vand.u32 %v153, 4294901760
    %v4178 = vsub.f32 %v153, %v4177
    %v4179 = vand.u32 %v4178, 4294901760
    %4180 = vmatpush1.msra.mxu0 %v4179
    %v4181 = vand.u32 %v184, 4294901760
    %v4182 = vsub.f32 %v184, %v4181
    %v4183 = vand.u32 %v4182, 4294901760
    %4184 = vmatprep.subr.mxu0 %v4183
    %v4185 = vand.u32 %v183, 4294901760
    %v4186 = vsub.f32 %v183, %v4185
    %v4187 = vand.u32 %v4186, 4294901760
    %4188 = vmatpush1.msra.mxu0 %v4187
    %v4189 = vand.u32 %v214, 4294901760
    %v4190 = vsub.f32 %v214, %v4189
    %v4191 = vand.u32 %v4190, 4294901760
    %4192 = vmatprep.subr.mxu0 %v4191
    %v4193 = vand.u32 %v213, 4294901760
    %v4194 = vsub.f32 %v213, %v4193
    %v4195 = vand.u32 %v4194, 4294901760
    %4196 = vmatpush1.msra.mxu0 %v4195
    %v4197 = vand.u32 %v244, 4294901760
    %v4198 = vsub.f32 %v244, %v4197
    %v4199 = vand.u32 %v4198, 4294901760
    %4200 = vmatprep.subr.mxu0 %v4199
    %v4201 = vand.u32 %v243, 4294901760
    %v4202 = vsub.f32 %v243, %v4201
    %v4203 = vand.u32 %v4202, 4294901760
    %4204 = vmatpush1.msra.mxu0 %v4203
    %v4205 = vand.u32 %v274, 4294901760
    %v4206 = vsub.f32 %v274, %v4205
    %v4207 = vand.u32 %v4206, 4294901760
    %4208 = vmatprep.subr.mxu0 %v4207
    %v4209 = vand.u32 %v273, 4294901760
    %v4210 = vsub.f32 %v273, %v4209
    %v4211 = vand.u32 %v4210, 4294901760
    %4212 = vmatpush1.msra.mxu0 %v4211
    %v4213 = vand.u32 %v304, 4294901760
    %v4214 = vsub.f32 %v304, %v4213
    %v4215 = vand.u32 %v4214, 4294901760
    %4216 = vmatprep.subr.mxu0 %v4215
    %v4217 = vand.u32 %v303, 4294901760
    %v4218 = vsub.f32 %v303, %v4217
    %v4219 = vand.u32 %v4218, 4294901760
    %4220 = vmatpush1.msra.mxu0 %v4219
    %4221 = vmatprep.subr.mxu0 0.0
    %4222 = vmatpush1.msra.mxu0 0.0
    %4223 = vmatprep.subr.mxu0 0.0
    %4224 = vmatpush1.msra.mxu0 0.0
    %4225 = vmatprep.subr.mxu0 0.0
    %4226 = vmatpush1.msra.mxu0 0.0
    %4227 = vmatprep.subr.mxu0 0.0
    %4228 = vmatpush1.msra.mxu0 0.0
    %4229 = vmatprep.subr.mxu0 0.0
    %4230 = vmatpush1.msra.mxu0 0.0
    %4231 = vmatprep.subr.mxu0 0.0
    %4232 = vmatpush1.msra.mxu0 0.0
    %4233 = vmatprep.subr.mxu0 0.0
    %4234 = vmatpush1.msra.mxu0 0.0
    %4235 = vmatprep.subr.mxu0 0.0
    %4236 = vmatpush1.msra.mxu0 0.0
    %4237 = vmatprep.subr.mxu0 0.0
    %4238 = vmatpush1.msra.mxu0 0.0
    %4239 = vmatprep.subr.mxu0 0.0
    %4240 = vmatpush1.msra.mxu0 0.0
    %4241 = vmatprep.subr.mxu0 0.0
    %4242 = vmatpush1.msra.mxu0 0.0
    %4243 = vmatprep.subr.mxu0 0.0
    %4244 = vmatpush1.msra.mxu0 0.0
    %4245 = vmatprep.subr.mxu0 0.0
    %4246 = vmatpush1.msra.mxu0 0.0
    %4247 = vmatprep.subr.mxu0 0.0
    %4248 = vmatpush1.msra.mxu0 0.0
    %4249 = vmatprep.subr.mxu0 0.0
    %4250 = vmatpush1.msra.mxu0 0.0
    %4251 = vmatprep.subr.mxu0 0.0
    %4252 = vmatpush1.msra.mxu0 0.0
    %4253 = vmatprep.subr.mxu0 0.0
    %4254 = vmatpush1.msra.mxu0 0.0
    %4255 = vmatprep.subr.mxu0 0.0
    %4256 = vmatpush1.msra.mxu0 0.0
    %4257 = vmatprep.subr.mxu0 0.0
    %4258 = vmatpush1.msra.mxu0 0.0
    %4259 = vmatprep.subr.mxu0 0.0
    %4260 = vmatpush1.msra.mxu0 0.0
    %4261 = vmatprep.subr.mxu0 0.0
    %4262 = vmatpush1.msra.mxu0 0.0
    %4263 = vmatprep.subr.mxu0 0.0
    %4264 = vmatpush1.msra.mxu0 0.0
    %4265 = vmatprep.subr.mxu0 0.0
    %4266 = vmatpush1.msra.mxu0 0.0
    %4267 = vmatprep.mubr.f32.mxu0 0.0
    %v4268 = vand.u32 %v325, 4294901760
    %4269 = vmatmul.mubr.f32.gmra.mrb[0].mxu0 %v4268
    %v4270 = vpop.f32.mrb[0].mxu0
    %v4271 = vadd.f32 %v4145, %v4270
    %v4272 = vpop.f32.mrb[0].mxu0
    %v4273 = vadd.f32 %v4147, %v4272
    %4274 = vdwg.mxu0
    %v4275 = vand.u32 %v64, 4294901760
    %4276 = vmatprep.subr.mxu0 %v4275
    %v4277 = vand.u32 %v63, 4294901760
    %4278 = vmatpush1.msra.mxu0 %v4277
    %v4279 = vand.u32 %v94, 4294901760
    %4280 = vmatprep.subr.mxu0 %v4279
    %v4281 = vand.u32 %v93, 4294901760
    %4282 = vmatpush1.msra.mxu0 %v4281
    %v4283 = vand.u32 %v124, 4294901760
    %4284 = vmatprep.subr.mxu0 %v4283
    %v4285 = vand.u32 %v123, 4294901760
    %4286 = vmatpush1.msra.mxu0 %v4285
    %v4287 = vand.u32 %v154, 4294901760
    %4288 = vmatprep.subr.mxu0 %v4287
    %v4289 = vand.u32 %v153, 4294901760
    %4290 = vmatpush1.msra.mxu0 %v4289
    %v4291 = vand.u32 %v184, 4294901760
    %4292 = vmatprep.subr.mxu0 %v4291
    %v4293 = vand.u32 %v183, 4294901760
    %4294 = vmatpush1.msra.mxu0 %v4293
    %v4295 = vand.u32 %v214, 4294901760
    %4296 = vmatprep.subr.mxu0 %v4295
    %v4297 = vand.u32 %v213, 4294901760
    %4298 = vmatpush1.msra.mxu0 %v4297
    %v4299 = vand.u32 %v244, 4294901760
    %4300 = vmatprep.subr.mxu0 %v4299
    %v4301 = vand.u32 %v243, 4294901760
    %4302 = vmatpush1.msra.mxu0 %v4301
    %v4303 = vand.u32 %v274, 4294901760
    %4304 = vmatprep.subr.mxu0 %v4303
    %v4305 = vand.u32 %v273, 4294901760
    %4306 = vmatpush1.msra.mxu0 %v4305
    %v4307 = vand.u32 %v304, 4294901760
    %4308 = vmatprep.subr.mxu0 %v4307
    %v4309 = vand.u32 %v303, 4294901760
    %4310 = vmatpush1.msra.mxu0 %v4309
    %4311 = vmatprep.subr.mxu0 0.0
    %4312 = vmatpush1.msra.mxu0 0.0
    %4313 = vmatprep.subr.mxu0 0.0
    %4314 = vmatpush1.msra.mxu0 0.0
    %4315 = vmatprep.subr.mxu0 0.0
    %4316 = vmatpush1.msra.mxu0 0.0
    %4317 = vmatprep.subr.mxu0 0.0
    %4318 = vmatpush1.msra.mxu0 0.0
    %4319 = vmatprep.subr.mxu0 0.0
    %4320 = vmatpush1.msra.mxu0 0.0
    %4321 = vmatprep.subr.mxu0 0.0
    %4322 = vmatpush1.msra.mxu0 0.0
    %4323 = vmatprep.subr.mxu0 0.0
    %4324 = vmatpush1.msra.mxu0 0.0
    %4325 = vmatprep.subr.mxu0 0.0
    %4326 = vmatpush1.msra.mxu0 0.0
    %4327 = vmatprep.subr.mxu0 0.0
    %4328 = vmatpush1.msra.mxu0 0.0
    %4329 = vmatprep.subr.mxu0 0.0
    %4330 = vmatpush1.msra.mxu0 0.0
    %4331 = vmatprep.subr.mxu0 0.0
    %4332 = vmatpush1.msra.mxu0 0.0
    %4333 = vmatprep.subr.mxu0 0.0
    %4334 = vmatpush1.msra.mxu0 0.0
    %4335 = vmatprep.subr.mxu0 0.0
    %4336 = vmatpush1.msra.mxu0 0.0
    %4337 = vmatprep.subr.mxu0 0.0
    %4338 = vmatpush1.msra.mxu0 0.0
    %4339 = vmatprep.subr.mxu0 0.0
    %4340 = vmatpush1.msra.mxu0 0.0
    %4341 = vmatprep.subr.mxu0 0.0
    %4342 = vmatpush1.msra.mxu0 0.0
    %4343 = vmatprep.subr.mxu0 0.0
    %4344 = vmatpush1.msra.mxu0 0.0
    %4345 = vmatprep.subr.mxu0 0.0
    %4346 = vmatpush1.msra.mxu0 0.0
    %4347 = vmatprep.subr.mxu0 0.0
    %4348 = vmatpush1.msra.mxu0 0.0
    %4349 = vmatprep.subr.mxu0 0.0
    %4350 = vmatpush1.msra.mxu0 0.0
    %4351 = vmatprep.subr.mxu0 0.0
    %4352 = vmatpush1.msra.mxu0 0.0
    %4353 = vmatprep.subr.mxu0 0.0
    %4354 = vmatpush1.msra.mxu0 0.0
    %4355 = vmatprep.subr.mxu0 0.0
    %4356 = vmatpush1.msra.mxu0 0.0
    %4357 = vmatprep.mubr.f32.mxu0 0.0
    %v4358 = vand.u32 %v325, 4294901760
    %4359 = vmatmul.mubr.f32.gmra.mrb[0].mxu0 %v4358
    %v4360 = vpop.f32.mrb[0].mxu0
    %v4361 = vadd.f32 %v4271, %v4360
    %v4362 = vpop.f32.mrb[0].mxu0
    %v4363 = vadd.f32 %v4273, %v4362
    %4364 = vdwg.mxu0
    %v4365 = vand.u32 %v66, 4294901760
    %4366 = vmatprep.subr.mxu0 %v4365
    %v4367 = vand.u32 %v65, 4294901760
    %4368 = vmatpush1.msra.mxu0 %v4367
    %v4369 = vand.u32 %v96, 4294901760
    %4370 = vmatprep.subr.mxu0 %v4369
    %v4371 = vand.u32 %v95, 4294901760
    %4372 = vmatpush1.msra.mxu0 %v4371
    %v4373 = vand.u32 %v126, 4294901760
    %4374 = vmatprep.subr.mxu0 %v4373
    %v4375 = vand.u32 %v125, 4294901760
    %4376 = vmatpush1.msra.mxu0 %v4375
    %v4377 = vand.u32 %v156, 4294901760
    %4378 = vmatprep.subr.mxu0 %v4377
    %v4379 = vand.u32 %v155, 4294901760
    %4380 = vmatpush1.msra.mxu0 %v4379
    %v4381 = vand.u32 %v186, 4294901760
    %4382 = vmatprep.subr.mxu0 %v4381
    %v4383 = vand.u32 %v185, 4294901760
    %4384 = vmatpush1.msra.mxu0 %v4383
    %v4385 = vand.u32 %v216, 4294901760
    %4386 = vmatprep.subr.mxu0 %v4385
    %v4387 = vand.u32 %v215, 4294901760
    %4388 = vmatpush1.msra.mxu0 %v4387
    %v4389 = vand.u32 %v246, 4294901760
    %4390 = vmatprep.subr.mxu0 %v4389
    %v4391 = vand.u32 %v245, 4294901760
    %4392 = vmatpush1.msra.mxu0 %v4391
    %v4393 = vand.u32 %v276, 4294901760
    %4394 = vmatprep.subr.mxu0 %v4393
    %v4395 = vand.u32 %v275, 4294901760
    %4396 = vmatpush1.msra.mxu0 %v4395
    %v4397 = vand.u32 %v306, 4294901760
    %4398 = vmatprep.subr.mxu0 %v4397
    %v4399 = vand.u32 %v305, 4294901760
    %4400 = vmatpush1.msra.mxu0 %v4399
    %4401 = vmatprep.subr.mxu0 0.0
    %4402 = vmatpush1.msra.mxu0 0.0
    %4403 = vmatprep.subr.mxu0 0.0
    %4404 = vmatpush1.msra.mxu0 0.0
    %4405 = vmatprep.subr.mxu0 0.0
    %4406 = vmatpush1.msra.mxu0 0.0
    %4407 = vmatprep.subr.mxu0 0.0
    %4408 = vmatpush1.msra.mxu0 0.0
    %4409 = vmatprep.subr.mxu0 0.0
    %4410 = vmatpush1.msra.mxu0 0.0
    %4411 = vmatprep.subr.mxu0 0.0
    %4412 = vmatpush1.msra.mxu0 0.0
    %4413 = vmatprep.subr.mxu0 0.0
    %4414 = vmatpush1.msra.mxu0 0.0
    %4415 = vmatprep.subr.mxu0 0.0
    %4416 = vmatpush1.msra.mxu0 0.0
    %4417 = vmatprep.subr.mxu0 0.0
    %4418 = vmatpush1.msra.mxu0 0.0
    %4419 = vmatprep.subr.mxu0 0.0
    %4420 = vmatpush1.msra.mxu0 0.0
    %4421 = vmatprep.subr.mxu0 0.0
    %4422 = vmatpush1.msra.mxu0 0.0
    %4423 = vmatprep.subr.mxu0 0.0
    %4424 = vmatpush1.msra.mxu0 0.0
    %4425 = vmatprep.subr.mxu0 0.0
    %4426 = vmatpush1.msra.mxu0 0.0
    %4427 = vmatprep.subr.mxu0 0.0
    %4428 = vmatpush1.msra.mxu0 0.0
    %4429 = vmatprep.subr.mxu0 0.0
    %4430 = vmatpush1.msra.mxu0 0.0
    %4431 = vmatprep.subr.mxu0 0.0
    %4432 = vmatpush1.msra.mxu0 0.0
    %4433 = vmatprep.subr.mxu0 0.0
    %4434 = vmatpush1.msra.mxu0 0.0
    %4435 = vmatprep.subr.mxu0 0.0
    %4436 = vmatpush1.msra.mxu0 0.0
    %4437 = vmatprep.subr.mxu0 0.0
    %4438 = vmatpush1.msra.mxu0 0.0
    %4439 = vmatprep.subr.mxu0 0.0
    %4440 = vmatpush1.msra.mxu0 0.0
    %4441 = vmatprep.subr.mxu0 0.0
    %4442 = vmatpush1.msra.mxu0 0.0
    %4443 = vmatprep.subr.mxu0 0.0
    %4444 = vmatpush1.msra.mxu0 0.0
    %4445 = vmatprep.subr.mxu0 0.0
    %4446 = vmatpush1.msra.mxu0 0.0
    %4447 = vmatprep.mubr.f32.mxu0 0.0
    %v4448 = vand.u32 %v325, 4294901760
    %v4449 = vsub.f32 %v325, %v4448
    %v4450 = vand.u32 %v4449, 4294901760
    %v4451 = vsub.f32 %v4449, %v4450
    %v4452 = vand.u32 %v4451, 4294901760
    %4453 = vmatmul.mubr.f32.gmra.mrb[0].mxu0 %v4452
    %v4454 = vpop.f32.mrb[0].mxu0
    %v4455 = vadd.f32 0.0, %v4454
    %v4456 = vpop.f32.mrb[0].mxu0
    %v4457 = vadd.f32 0.0, %v4456
    %4458 = vdwg.mxu0
    %v4459 = vand.u32 %v66, 4294901760
    %v4460 = vsub.f32 %v66, %v4459
    %v4461 = vand.u32 %v4460, 4294901760
    %v4462 = vsub.f32 %v4460, %v4461
    %v4463 = vand.u32 %v4462, 4294901760
    %4464 = vmatprep.subr.mxu0 %v4463
    %v4465 = vand.u32 %v65, 4294901760
    %v4466 = vsub.f32 %v65, %v4465
    %v4467 = vand.u32 %v4466, 4294901760
    %v4468 = vsub.f32 %v4466, %v4467
    %v4469 = vand.u32 %v4468, 4294901760
    %4470 = vmatpush1.msra.mxu0 %v4469
    %v4471 = vand.u32 %v96, 4294901760
    %v4472 = vsub.f32 %v96, %v4471
    %v4473 = vand.u32 %v4472, 4294901760
    %v4474 = vsub.f32 %v4472, %v4473
    %v4475 = vand.u32 %v4474, 4294901760
    %4476 = vmatprep.subr.mxu0 %v4475
    %v4477 = vand.u32 %v95, 4294901760
    %v4478 = vsub.f32 %v95, %v4477
    %v4479 = vand.u32 %v4478, 4294901760
    %v4480 = vsub.f32 %v4478, %v4479
    %v4481 = vand.u32 %v4480, 4294901760
    %4482 = vmatpush1.msra.mxu0 %v4481
    %v4483 = vand.u32 %v126, 4294901760
    %v4484 = vsub.f32 %v126, %v4483
    %v4485 = vand.u32 %v4484, 4294901760
    %v4486 = vsub.f32 %v4484, %v4485
    %v4487 = vand.u32 %v4486, 4294901760
    %4488 = vmatprep.subr.mxu0 %v4487
    %v4489 = vand.u32 %v125, 4294901760
    %v4490 = vsub.f32 %v125, %v4489
    %v4491 = vand.u32 %v4490, 4294901760
    %v4492 = vsub.f32 %v4490, %v4491
    %v4493 = vand.u32 %v4492, 4294901760
    %4494 = vmatpush1.msra.mxu0 %v4493
    %v4495 = vand.u32 %v156, 4294901760
    %v4496 = vsub.f32 %v156, %v4495
    %v4497 = vand.u32 %v4496, 4294901760
    %v4498 = vsub.f32 %v4496, %v4497
    %v4499 = vand.u32 %v4498, 4294901760
    %4500 = vmatprep.subr.mxu0 %v4499
    %v4501 = vand.u32 %v155, 4294901760
    %v4502 = vsub.f32 %v155, %v4501
    %v4503 = vand.u32 %v4502, 4294901760
    %v4504 = vsub.f32 %v4502, %v4503
    %v4505 = vand.u32 %v4504, 4294901760
    %4506 = vmatpush1.msra.mxu0 %v4505
    %v4507 = vand.u32 %v186, 4294901760
    %v4508 = vsub.f32 %v186, %v4507
    %v4509 = vand.u32 %v4508, 4294901760
    %v4510 = vsub.f32 %v4508, %v4509
    %v4511 = vand.u32 %v4510, 4294901760
    %4512 = vmatprep.subr.mxu0 %v4511
    %v4513 = vand.u32 %v185, 4294901760
    %v4514 = vsub.f32 %v185, %v4513
    %v4515 = vand.u32 %v4514, 4294901760
    %v4516 = vsub.f32 %v4514, %v4515
    %v4517 = vand.u32 %v4516, 4294901760
    %4518 = vmatpush1.msra.mxu0 %v4517
    %v4519 = vand.u32 %v216, 4294901760
    %v4520 = vsub.f32 %v216, %v4519
    %v4521 = vand.u32 %v4520, 4294901760
    %v4522 = vsub.f32 %v4520, %v4521
    %v4523 = vand.u32 %v4522, 4294901760
    %4524 = vmatprep.subr.mxu0 %v4523
    %v4525 = vand.u32 %v215, 4294901760
    %v4526 = vsub.f32 %v215, %v4525
    %v4527 = vand.u32 %v4526, 4294901760
    %v4528 = vsub.f32 %v4526, %v4527
    %v4529 = vand.u32 %v4528, 4294901760
    %4530 = vmatpush1.msra.mxu0 %v4529
    %v4531 = vand.u32 %v246, 4294901760
    %v4532 = vsub.f32 %v246, %v4531
    %v4533 = vand.u32 %v4532, 4294901760
    %v4534 = vsub.f32 %v4532, %v4533
    %v4535 = vand.u32 %v4534, 4294901760
    %4536 = vmatprep.subr.mxu0 %v4535
    %v4537 = vand.u32 %v245, 4294901760
    %v4538 = vsub.f32 %v245, %v4537
    %v4539 = vand.u32 %v4538, 4294901760
    %v4540 = vsub.f32 %v4538, %v4539
    %v4541 = vand.u32 %v4540, 4294901760
    %4542 = vmatpush1.msra.mxu0 %v4541
    %v4543 = vand.u32 %v276, 4294901760
    %v4544 = vsub.f32 %v276, %v4543
    %v4545 = vand.u32 %v4544, 4294901760
    %v4546 = vsub.f32 %v4544, %v4545
    %v4547 = vand.u32 %v4546, 4294901760
    %4548 = vmatprep.subr.mxu0 %v4547
    %v4549 = vand.u32 %v275, 4294901760
    %v4550 = vsub.f32 %v275, %v4549
    %v4551 = vand.u32 %v4550, 4294901760
    %v4552 = vsub.f32 %v4550, %v4551
    %v4553 = vand.u32 %v4552, 4294901760
    %4554 = vmatpush1.msra.mxu0 %v4553
    %v4555 = vand.u32 %v306, 4294901760
    %v4556 = vsub.f32 %v306, %v4555
    %v4557 = vand.u32 %v4556, 4294901760
    %v4558 = vsub.f32 %v4556, %v4557
    %v4559 = vand.u32 %v4558, 4294901760
    %4560 = vmatprep.subr.mxu0 %v4559
    %v4561 = vand.u32 %v305, 4294901760
    %v4562 = vsub.f32 %v305, %v4561
    %v4563 = vand.u32 %v4562, 4294901760
    %v4564 = vsub.f32 %v4562, %v4563
    %v4565 = vand.u32 %v4564, 4294901760
    %4566 = vmatpush1.msra.mxu0 %v4565
    %4567 = vmatprep.subr.mxu0 0.0
    %4568 = vmatpush1.msra.mxu0 0.0
    %4569 = vmatprep.subr.mxu0 0.0
    %4570 = vmatpush1.msra.mxu0 0.0
    %4571 = vmatprep.subr.mxu0 0.0
    %4572 = vmatpush1.msra.mxu0 0.0
    %4573 = vmatprep.subr.mxu0 0.0
    %4574 = vmatpush1.msra.mxu0 0.0
    %4575 = vmatprep.subr.mxu0 0.0
    %4576 = vmatpush1.msra.mxu0 0.0
    %4577 = vmatprep.subr.mxu0 0.0
    %4578 = vmatpush1.msra.mxu0 0.0
    %4579 = vmatprep.subr.mxu0 0.0
    %4580 = vmatpush1.msra.mxu0 0.0
    %4581 = vmatprep.subr.mxu0 0.0
    %4582 = vmatpush1.msra.mxu0 0.0
    %4583 = vmatprep.subr.mxu0 0.0
    %4584 = vmatpush1.msra.mxu0 0.0
    %4585 = vmatprep.subr.mxu0 0.0
    %4586 = vmatpush1.msra.mxu0 0.0
    %4587 = vmatprep.subr.mxu0 0.0
    %4588 = vmatpush1.msra.mxu0 0.0
    %4589 = vmatprep.subr.mxu0 0.0
    %4590 = vmatpush1.msra.mxu0 0.0
    %4591 = vmatprep.subr.mxu0 0.0
    %4592 = vmatpush1.msra.mxu0 0.0
    %4593 = vmatprep.subr.mxu0 0.0
    %4594 = vmatpush1.msra.mxu0 0.0
    %4595 = vmatprep.subr.mxu0 0.0
    %4596 = vmatpush1.msra.mxu0 0.0
    %4597 = vmatprep.subr.mxu0 0.0
    %4598 = vmatpush1.msra.mxu0 0.0
    %4599 = vmatprep.subr.mxu0 0.0
    %4600 = vmatpush1.msra.mxu0 0.0
    %4601 = vmatprep.subr.mxu0 0.0
    %4602 = vmatpush1.msra.mxu0 0.0
    %4603 = vmatprep.subr.mxu0 0.0
    %4604 = vmatpush1.msra.mxu0 0.0
    %4605 = vmatprep.subr.mxu0 0.0
    %4606 = vmatpush1.msra.mxu0 0.0
    %4607 = vmatprep.subr.mxu0 0.0
    %4608 = vmatpush1.msra.mxu0 0.0
    %4609 = vmatprep.subr.mxu0 0.0
    %4610 = vmatpush1.msra.mxu0 0.0
    %4611 = vmatprep.subr.mxu0 0.0
    %4612 = vmatpush1.msra.mxu0 0.0
    %4613 = vmatprep.mubr.f32.mxu0 0.0
    %v4614 = vand.u32 %v325, 4294901760
    %4615 = vmatmul.mubr.f32.gmra.mrb[0].mxu0 %v4614
    %v4616 = vpop.f32.mrb[0].mxu0
    %v4617 = vadd.f32 %v4455, %v4616
    %v4618 = vpop.f32.mrb[0].mxu0
    %v4619 = vadd.f32 %v4457, %v4618
    %4620 = vdwg.mxu0
    %v4621 = vand.u32 %v66, 4294901760
    %v4622 = vsub.f32 %v66, %v4621
    %4623 = vmatprep.subr.mxu0 %v4622
    %v4624 = vand.u32 %v65, 4294901760
    %v4625 = vsub.f32 %v65, %v4624
    %4626 = vmatpush1.msra.mxu0 %v4625
    %v4627 = vand.u32 %v96, 4294901760
    %v4628 = vsub.f32 %v96, %v4627
    %4629 = vmatprep.subr.mxu0 %v4628
    %v4630 = vand.u32 %v95, 4294901760
    %v4631 = vsub.f32 %v95, %v4630
    %4632 = vmatpush1.msra.mxu0 %v4631
    %v4633 = vand.u32 %v126, 4294901760
    %v4634 = vsub.f32 %v126, %v4633
    %4635 = vmatprep.subr.mxu0 %v4634
    %v4636 = vand.u32 %v125, 4294901760
    %v4637 = vsub.f32 %v125, %v4636
    %4638 = vmatpush1.msra.mxu0 %v4637
    %v4639 = vand.u32 %v156, 4294901760
    %v4640 = vsub.f32 %v156, %v4639
    %4641 = vmatprep.subr.mxu0 %v4640
    %v4642 = vand.u32 %v155, 4294901760
    %v4643 = vsub.f32 %v155, %v4642
    %4644 = vmatpush1.msra.mxu0 %v4643
    %v4645 = vand.u32 %v186, 4294901760
    %v4646 = vsub.f32 %v186, %v4645
    %4647 = vmatprep.subr.mxu0 %v4646
    %v4648 = vand.u32 %v185, 4294901760
    %v4649 = vsub.f32 %v185, %v4648
    %4650 = vmatpush1.msra.mxu0 %v4649
    %v4651 = vand.u32 %v216, 4294901760
    %v4652 = vsub.f32 %v216, %v4651
    %4653 = vmatprep.subr.mxu0 %v4652
    %v4654 = vand.u32 %v215, 4294901760
    %v4655 = vsub.f32 %v215, %v4654
    %4656 = vmatpush1.msra.mxu0 %v4655
    %v4657 = vand.u32 %v246, 4294901760
    %v4658 = vsub.f32 %v246, %v4657
    %4659 = vmatprep.subr.mxu0 %v4658
    %v4660 = vand.u32 %v245, 4294901760
    %v4661 = vsub.f32 %v245, %v4660
    %4662 = vmatpush1.msra.mxu0 %v4661
    %v4663 = vand.u32 %v276, 4294901760
    %v4664 = vsub.f32 %v276, %v4663
    %4665 = vmatprep.subr.mxu0 %v4664
    %v4666 = vand.u32 %v275, 4294901760
    %v4667 = vsub.f32 %v275, %v4666
    %4668 = vmatpush1.msra.mxu0 %v4667
    %v4669 = vand.u32 %v306, 4294901760
    %v4670 = vsub.f32 %v306, %v4669
    %4671 = vmatprep.subr.mxu0 %v4670
    %v4672 = vand.u32 %v305, 4294901760
    %v4673 = vsub.f32 %v305, %v4672
    %4674 = vmatpush1.msra.mxu0 %v4673
    %4675 = vmatprep.subr.mxu0 0.0
    %4676 = vmatpush1.msra.mxu0 0.0
    %4677 = vmatprep.subr.mxu0 0.0
    %4678 = vmatpush1.msra.mxu0 0.0
    %4679 = vmatprep.subr.mxu0 0.0
    %4680 = vmatpush1.msra.mxu0 0.0
    %4681 = vmatprep.subr.mxu0 0.0
    %4682 = vmatpush1.msra.mxu0 0.0
    %4683 = vmatprep.subr.mxu0 0.0
    %4684 = vmatpush1.msra.mxu0 0.0
    %4685 = vmatprep.subr.mxu0 0.0
    %4686 = vmatpush1.msra.mxu0 0.0
    %4687 = vmatprep.subr.mxu0 0.0
    %4688 = vmatpush1.msra.mxu0 0.0
    %4689 = vmatprep.subr.mxu0 0.0
    %4690 = vmatpush1.msra.mxu0 0.0
    %4691 = vmatprep.subr.mxu0 0.0
    %4692 = vmatpush1.msra.mxu0 0.0
    %4693 = vmatprep.subr.mxu0 0.0
    %4694 = vmatpush1.msra.mxu0 0.0
    %4695 = vmatprep.subr.mxu0 0.0
    %4696 = vmatpush1.msra.mxu0 0.0
    %4697 = vmatprep.subr.mxu0 0.0
    %4698 = vmatpush1.msra.mxu0 0.0
    %4699 = vmatprep.subr.mxu0 0.0
    %4700 = vmatpush1.msra.mxu0 0.0
    %4701 = vmatprep.subr.mxu0 0.0
    %4702 = vmatpush1.msra.mxu0 0.0
    %4703 = vmatprep.subr.mxu0 0.0
    %4704 = vmatpush1.msra.mxu0 0.0
    %4705 = vmatprep.subr.mxu0 0.0
    %4706 = vmatpush1.msra.mxu0 0.0
    %4707 = vmatprep.subr.mxu0 0.0
    %4708 = vmatpush1.msra.mxu0 0.0
    %4709 = vmatprep.subr.mxu0 0.0
    %4710 = vmatpush1.msra.mxu0 0.0
    %4711 = vmatprep.subr.mxu0 0.0
    %4712 = vmatpush1.msra.mxu0 0.0
    %4713 = vmatprep.subr.mxu0 0.0
    %4714 = vmatpush1.msra.mxu0 0.0
    %4715 = vmatprep.subr.mxu0 0.0
    %4716 = vmatpush1.msra.mxu0 0.0
    %4717 = vmatprep.subr.mxu0 0.0
    %4718 = vmatpush1.msra.mxu0 0.0
    %4719 = vmatprep.subr.mxu0 0.0
    %4720 = vmatpush1.msra.mxu0 0.0
    %4721 = vmatprep.mubr.f32.mxu0 0.0
    %v4722 = vand.u32 %v325, 4294901760
    %v4723 = vsub.f32 %v325, %v4722
    %4724 = vmatmul.mubr.f32.gmra.mrb[0].mxu0 %v4723
    %v4725 = vpop.f32.mrb[0].mxu0
    %v4726 = vadd.f32 %v4617, %v4725
    %v4727 = vpop.f32.mrb[0].mxu0
    %v4728 = vadd.f32 %v4619, %v4727
    %4729 = vdwg.mxu0
    %v4730 = vand.u32 %v66, 4294901760
    %4731 = vmatprep.subr.mxu0 %v4730
    %v4732 = vand.u32 %v65, 4294901760
    %4733 = vmatpush1.msra.mxu0 %v4732
    %v4734 = vand.u32 %v96, 4294901760
    %4735 = vmatprep.subr.mxu0 %v4734
    %v4736 = vand.u32 %v95, 4294901760
    %4737 = vmatpush1.msra.mxu0 %v4736
    %v4738 = vand.u32 %v126, 4294901760
    %4739 = vmatprep.subr.mxu0 %v4738
    %v4740 = vand.u32 %v125, 4294901760
    %4741 = vmatpush1.msra.mxu0 %v4740
    %v4742 = vand.u32 %v156, 4294901760
    %4743 = vmatprep.subr.mxu0 %v4742
    %v4744 = vand.u32 %v155, 4294901760
    %4745 = vmatpush1.msra.mxu0 %v4744
    %v4746 = vand.u32 %v186, 4294901760
    %4747 = vmatprep.subr.mxu0 %v4746
    %v4748 = vand.u32 %v185, 4294901760
    %4749 = vmatpush1.msra.mxu0 %v4748
    %v4750 = vand.u32 %v216, 4294901760
    %4751 = vmatprep.subr.mxu0 %v4750
    %v4752 = vand.u32 %v215, 4294901760
    %4753 = vmatpush1.msra.mxu0 %v4752
    %v4754 = vand.u32 %v246, 4294901760
    %4755 = vmatprep.subr.mxu0 %v4754
    %v4756 = vand.u32 %v245, 4294901760
    %4757 = vmatpush1.msra.mxu0 %v4756
    %v4758 = vand.u32 %v276, 4294901760
    %4759 = vmatprep.subr.mxu0 %v4758
    %v4760 = vand.u32 %v275, 4294901760
    %4761 = vmatpush1.msra.mxu0 %v4760
    %v4762 = vand.u32 %v306, 4294901760
    %4763 = vmatprep.subr.mxu0 %v4762
    %v4764 = vand.u32 %v305, 4294901760
    %4765 = vmatpush1.msra.mxu0 %v4764
    %4766 = vmatprep.subr.mxu0 0.0
    %4767 = vmatpush1.msra.mxu0 0.0
    %4768 = vmatprep.subr.mxu0 0.0
    %4769 = vmatpush1.msra.mxu0 0.0
    %4770 = vmatprep.subr.mxu0 0.0
    %4771 = vmatpush1.msra.mxu0 0.0
    %4772 = vmatprep.subr.mxu0 0.0
    %4773 = vmatpush1.msra.mxu0 0.0
    %4774 = vmatprep.subr.mxu0 0.0
    %4775 = vmatpush1.msra.mxu0 0.0
    %4776 = vmatprep.subr.mxu0 0.0
    %4777 = vmatpush1.msra.mxu0 0.0
    %4778 = vmatprep.subr.mxu0 0.0
    %4779 = vmatpush1.msra.mxu0 0.0
    %4780 = vmatprep.subr.mxu0 0.0
    %4781 = vmatpush1.msra.mxu0 0.0
    %4782 = vmatprep.subr.mxu0 0.0
    %4783 = vmatpush1.msra.mxu0 0.0
    %4784 = vmatprep.subr.mxu0 0.0
    %4785 = vmatpush1.msra.mxu0 0.0
    %4786 = vmatprep.subr.mxu0 0.0
    %4787 = vmatpush1.msra.mxu0 0.0
    %4788 = vmatprep.subr.mxu0 0.0
    %4789 = vmatpush1.msra.mxu0 0.0
    %4790 = vmatprep.subr.mxu0 0.0
    %4791 = vmatpush1.msra.mxu0 0.0
    %4792 = vmatprep.subr.mxu0 0.0
    %4793 = vmatpush1.msra.mxu0 0.0
    %4794 = vmatprep.subr.mxu0 0.0
    %4795 = vmatpush1.msra.mxu0 0.0
    %4796 = vmatprep.subr.mxu0 0.0
    %4797 = vmatpush1.msra.mxu0 0.0
    %4798 = vmatprep.subr.mxu0 0.0
    %4799 = vmatpush1.msra.mxu0 0.0
    %4800 = vmatprep.subr.mxu0 0.0
    %4801 = vmatpush1.msra.mxu0 0.0
    %4802 = vmatprep.subr.mxu0 0.0
    %4803 = vmatpush1.msra.mxu0 0.0
    %4804 = vmatprep.subr.mxu0 0.0
    %4805 = vmatpush1.msra.mxu0 0.0
    %4806 = vmatprep.subr.mxu0 0.0
    %4807 = vmatpush1.msra.mxu0 0.0
    %4808 = vmatprep.subr.mxu0 0.0
    %4809 = vmatpush1.msra.mxu0 0.0
    %4810 = vmatprep.subr.mxu0 0.0
    %4811 = vmatpush1.msra.mxu0 0.0
    %4812 = vmatprep.mubr.f32.mxu0 0.0
    %v4813 = vand.u32 %v325, 4294901760
    %v4814 = vsub.f32 %v325, %v4813
    %v4815 = vand.u32 %v4814, 4294901760
    %4816 = vmatmul.mubr.f32.gmra.mrb[0].mxu0 %v4815
    %v4817 = vpop.f32.mrb[0].mxu0
    %v4818 = vadd.f32 %v4726, %v4817
    %v4819 = vpop.f32.mrb[0].mxu0
    %v4820 = vadd.f32 %v4728, %v4819
    %4821 = vdwg.mxu0
    %v4822 = vand.u32 %v66, 4294901760
    %v4823 = vsub.f32 %v66, %v4822
    %v4824 = vand.u32 %v4823, 4294901760
    %4825 = vmatprep.subr.mxu0 %v4824
    %v4826 = vand.u32 %v65, 4294901760
    %v4827 = vsub.f32 %v65, %v4826
    %v4828 = vand.u32 %v4827, 4294901760
    %4829 = vmatpush1.msra.mxu0 %v4828
    %v4830 = vand.u32 %v96, 4294901760
    %v4831 = vsub.f32 %v96, %v4830
    %v4832 = vand.u32 %v4831, 4294901760
    %4833 = vmatprep.subr.mxu0 %v4832
    %v4834 = vand.u32 %v95, 4294901760
    %v4835 = vsub.f32 %v95, %v4834
    %v4836 = vand.u32 %v4835, 4294901760
    %4837 = vmatpush1.msra.mxu0 %v4836
    %v4838 = vand.u32 %v126, 4294901760
    %v4839 = vsub.f32 %v126, %v4838
    %v4840 = vand.u32 %v4839, 4294901760
    %4841 = vmatprep.subr.mxu0 %v4840
    %v4842 = vand.u32 %v125, 4294901760
    %v4843 = vsub.f32 %v125, %v4842
    %v4844 = vand.u32 %v4843, 4294901760
    %4845 = vmatpush1.msra.mxu0 %v4844
    %v4846 = vand.u32 %v156, 4294901760
    %v4847 = vsub.f32 %v156, %v4846
    %v4848 = vand.u32 %v4847, 4294901760
    %4849 = vmatprep.subr.mxu0 %v4848
    %v4850 = vand.u32 %v155, 4294901760
    %v4851 = vsub.f32 %v155, %v4850
    %v4852 = vand.u32 %v4851, 4294901760
    %4853 = vmatpush1.msra.mxu0 %v4852
    %v4854 = vand.u32 %v186, 4294901760
    %v4855 = vsub.f32 %v186, %v4854
    %v4856 = vand.u32 %v4855, 4294901760
    %4857 = vmatprep.subr.mxu0 %v4856
    %v4858 = vand.u32 %v185, 4294901760
    %v4859 = vsub.f32 %v185, %v4858
    %v4860 = vand.u32 %v4859, 4294901760
    %4861 = vmatpush1.msra.mxu0 %v4860
    %v4862 = vand.u32 %v216, 4294901760
    %v4863 = vsub.f32 %v216, %v4862
    %v4864 = vand.u32 %v4863, 4294901760
    %4865 = vmatprep.subr.mxu0 %v4864
    %v4866 = vand.u32 %v215, 4294901760
    %v4867 = vsub.f32 %v215, %v4866
    %v4868 = vand.u32 %v4867, 4294901760
    %4869 = vmatpush1.msra.mxu0 %v4868
    %v4870 = vand.u32 %v246, 4294901760
    %v4871 = vsub.f32 %v246, %v4870
    %v4872 = vand.u32 %v4871, 4294901760
    %4873 = vmatprep.subr.mxu0 %v4872
    %v4874 = vand.u32 %v245, 4294901760
    %v4875 = vsub.f32 %v245, %v4874
    %v4876 = vand.u32 %v4875, 4294901760
    %4877 = vmatpush1.msra.mxu0 %v4876
    %v4878 = vand.u32 %v276, 4294901760
    %v4879 = vsub.f32 %v276, %v4878
    %v4880 = vand.u32 %v4879, 4294901760
    %4881 = vmatprep.subr.mxu0 %v4880
    %v4882 = vand.u32 %v275, 4294901760
    %v4883 = vsub.f32 %v275, %v4882
    %v4884 = vand.u32 %v4883, 4294901760
    %4885 = vmatpush1.msra.mxu0 %v4884
    %v4886 = vand.u32 %v306, 4294901760
    %v4887 = vsub.f32 %v306, %v4886
    %v4888 = vand.u32 %v4887, 4294901760
    %4889 = vmatprep.subr.mxu0 %v4888
    %v4890 = vand.u32 %v305, 4294901760
    %v4891 = vsub.f32 %v305, %v4890
    %v4892 = vand.u32 %v4891, 4294901760
    %4893 = vmatpush1.msra.mxu0 %v4892
    %4894 = vmatprep.subr.mxu0 0.0
    %4895 = vmatpush1.msra.mxu0 0.0
    %4896 = vmatprep.subr.mxu0 0.0
    %4897 = vmatpush1.msra.mxu0 0.0
    %4898 = vmatprep.subr.mxu0 0.0
    %4899 = vmatpush1.msra.mxu0 0.0
    %4900 = vmatprep.subr.mxu0 0.0
    %4901 = vmatpush1.msra.mxu0 0.0
    %4902 = vmatprep.subr.mxu0 0.0
    %4903 = vmatpush1.msra.mxu0 0.0
    %4904 = vmatprep.subr.mxu0 0.0
    %4905 = vmatpush1.msra.mxu0 0.0
    %4906 = vmatprep.subr.mxu0 0.0
    %4907 = vmatpush1.msra.mxu0 0.0
    %4908 = vmatprep.subr.mxu0 0.0
    %4909 = vmatpush1.msra.mxu0 0.0
    %4910 = vmatprep.subr.mxu0 0.0
    %4911 = vmatpush1.msra.mxu0 0.0
    %4912 = vmatprep.subr.mxu0 0.0
    %4913 = vmatpush1.msra.mxu0 0.0
    %4914 = vmatprep.subr.mxu0 0.0
    %4915 = vmatpush1.msra.mxu0 0.0
    %4916 = vmatprep.subr.mxu0 0.0
    %4917 = vmatpush1.msra.mxu0 0.0
    %4918 = vmatprep.subr.mxu0 0.0
    %4919 = vmatpush1.msra.mxu0 0.0
    %4920 = vmatprep.subr.mxu0 0.0
    %4921 = vmatpush1.msra.mxu0 0.0
    %4922 = vmatprep.subr.mxu0 0.0
    %4923 = vmatpush1.msra.mxu0 0.0
    %4924 = vmatprep.subr.mxu0 0.0
    %4925 = vmatpush1.msra.mxu0 0.0
    %4926 = vmatprep.subr.mxu0 0.0
    %4927 = vmatpush1.msra.mxu0 0.0
    %4928 = vmatprep.subr.mxu0 0.0
    %4929 = vmatpush1.msra.mxu0 0.0
    %4930 = vmatprep.subr.mxu0 0.0
    %4931 = vmatpush1.msra.mxu0 0.0
    %4932 = vmatprep.subr.mxu0 0.0
    %4933 = vmatpush1.msra.mxu0 0.0
    %4934 = vmatprep.subr.mxu0 0.0
    %4935 = vmatpush1.msra.mxu0 0.0
    %4936 = vmatprep.subr.mxu0 0.0
    %4937 = vmatpush1.msra.mxu0 0.0
    %4938 = vmatprep.subr.mxu0 0.0
    %4939 = vmatpush1.msra.mxu0 0.0
    %4940 = vmatprep.mubr.f32.mxu0 0.0
    %v4941 = vand.u32 %v325, 4294901760
    %4942 = vmatmul.mubr.f32.gmra.mrb[0].mxu0 %v4941
    %v4943 = vpop.f32.mrb[0].mxu0
    %v4944 = vadd.f32 %v4818, %v4943
    %v4945 = vpop.f32.mrb[0].mxu0
    %v4946 = vadd.f32 %v4820, %v4945
    %4947 = vdwg.mxu0
    %v4948 = vand.u32 %v66, 4294901760
    %4949 = vmatprep.subr.mxu0 %v4948
    %v4950 = vand.u32 %v65, 4294901760
    %4951 = vmatpush1.msra.mxu0 %v4950
    %v4952 = vand.u32 %v96, 4294901760
    %4953 = vmatprep.subr.mxu0 %v4952
    %v4954 = vand.u32 %v95, 4294901760
    %4955 = vmatpush1.msra.mxu0 %v4954
    %v4956 = vand.u32 %v126, 4294901760
    %4957 = vmatprep.subr.mxu0 %v4956
    %v4958 = vand.u32 %v125, 4294901760
    %4959 = vmatpush1.msra.mxu0 %v4958
    %v4960 = vand.u32 %v156, 4294901760
    %4961 = vmatprep.subr.mxu0 %v4960
    %v4962 = vand.u32 %v155, 4294901760
    %4963 = vmatpush1.msra.mxu0 %v4962
    %v4964 = vand.u32 %v186, 4294901760
    %4965 = vmatprep.subr.mxu0 %v4964
    %v4966 = vand.u32 %v185, 4294901760
    %4967 = vmatpush1.msra.mxu0 %v4966
    %v4968 = vand.u32 %v216, 4294901760
    %4969 = vmatprep.subr.mxu0 %v4968
    %v4970 = vand.u32 %v215, 4294901760
    %4971 = vmatpush1.msra.mxu0 %v4970
    %v4972 = vand.u32 %v246, 4294901760
    %4973 = vmatprep.subr.mxu0 %v4972
    %v4974 = vand.u32 %v245, 4294901760
    %4975 = vmatpush1.msra.mxu0 %v4974
    %v4976 = vand.u32 %v276, 4294901760
    %4977 = vmatprep.subr.mxu0 %v4976
    %v4978 = vand.u32 %v275, 4294901760
    %4979 = vmatpush1.msra.mxu0 %v4978
    %v4980 = vand.u32 %v306, 4294901760
    %4981 = vmatprep.subr.mxu0 %v4980
    %v4982 = vand.u32 %v305, 4294901760
    %4983 = vmatpush1.msra.mxu0 %v4982
    %4984 = vmatprep.subr.mxu0 0.0
    %4985 = vmatpush1.msra.mxu0 0.0
    %4986 = vmatprep.subr.mxu0 0.0
    %4987 = vmatpush1.msra.mxu0 0.0
    %4988 = vmatprep.subr.mxu0 0.0
    %4989 = vmatpush1.msra.mxu0 0.0
    %4990 = vmatprep.subr.mxu0 0.0
    %4991 = vmatpush1.msra.mxu0 0.0
    %4992 = vmatprep.subr.mxu0 0.0
    %4993 = vmatpush1.msra.mxu0 0.0
    %4994 = vmatprep.subr.mxu0 0.0
    %4995 = vmatpush1.msra.mxu0 0.0
    %4996 = vmatprep.subr.mxu0 0.0
    %4997 = vmatpush1.msra.mxu0 0.0
    %4998 = vmatprep.subr.mxu0 0.0
    %4999 = vmatpush1.msra.mxu0 0.0
    %5000 = vmatprep.subr.mxu0 0.0
    %5001 = vmatpush1.msra.mxu0 0.0
    %5002 = vmatprep.subr.mxu0 0.0
    %5003 = vmatpush1.msra.mxu0 0.0
    %5004 = vmatprep.subr.mxu0 0.0
    %5005 = vmatpush1.msra.mxu0 0.0
    %5006 = vmatprep.subr.mxu0 0.0
    %5007 = vmatpush1.msra.mxu0 0.0
    %5008 = vmatprep.subr.mxu0 0.0
    %5009 = vmatpush1.msra.mxu0 0.0
    %5010 = vmatprep.subr.mxu0 0.0
    %5011 = vmatpush1.msra.mxu0 0.0
    %5012 = vmatprep.subr.mxu0 0.0
    %5013 = vmatpush1.msra.mxu0 0.0
    %5014 = vmatprep.subr.mxu0 0.0
    %5015 = vmatpush1.msra.mxu0 0.0
    %5016 = vmatprep.subr.mxu0 0.0
    %5017 = vmatpush1.msra.mxu0 0.0
    %5018 = vmatprep.subr.mxu0 0.0
    %5019 = vmatpush1.msra.mxu0 0.0
    %5020 = vmatprep.subr.mxu0 0.0
    %5021 = vmatpush1.msra.mxu0 0.0
    %5022 = vmatprep.subr.mxu0 0.0
    %5023 = vmatpush1.msra.mxu0 0.0
    %5024 = vmatprep.subr.mxu0 0.0
    %5025 = vmatpush1.msra.mxu0 0.0
    %5026 = vmatprep.subr.mxu0 0.0
    %5027 = vmatpush1.msra.mxu0 0.0
    %5028 = vmatprep.subr.mxu0 0.0
    %5029 = vmatpush1.msra.mxu0 0.0
    %5030 = vmatprep.mubr.f32.mxu0 0.0
    %v5031 = vand.u32 %v325, 4294901760
    %5032 = vmatmul.mubr.f32.gmra.mrb[0].mxu0 %v5031
    %v5033 = vpop.f32.mrb[0].mxu0
    %v5034 = vadd.f32 %v4944, %v5033
    %v5035 = vpop.f32.mrb[0].mxu0
    %v5036 = vadd.f32 %v4946, %v5035
    %5037 = vdwg.mxu0
    %v5038 = vand.u32 %v68, 4294901760
    %5039 = vmatprep.subr.mxu0 %v5038
    %v5040 = vand.u32 %v67, 4294901760
    %5041 = vmatpush1.msra.mxu0 %v5040
    %v5042 = vand.u32 %v98, 4294901760
    %5043 = vmatprep.subr.mxu0 %v5042
    %v5044 = vand.u32 %v97, 4294901760
    %5045 = vmatpush1.msra.mxu0 %v5044
    %v5046 = vand.u32 %v128, 4294901760
    %5047 = vmatprep.subr.mxu0 %v5046
    %v5048 = vand.u32 %v127, 4294901760
    %5049 = vmatpush1.msra.mxu0 %v5048
    %v5050 = vand.u32 %v158, 4294901760
    %5051 = vmatprep.subr.mxu0 %v5050
    %v5052 = vand.u32 %v157, 4294901760
    %5053 = vmatpush1.msra.mxu0 %v5052
    %v5054 = vand.u32 %v188, 4294901760
    %5055 = vmatprep.subr.mxu0 %v5054
    %v5056 = vand.u32 %v187, 4294901760
    %5057 = vmatpush1.msra.mxu0 %v5056
    %v5058 = vand.u32 %v218, 4294901760
    %5059 = vmatprep.subr.mxu0 %v5058
    %v5060 = vand.u32 %v217, 4294901760
    %5061 = vmatpush1.msra.mxu0 %v5060
    %v5062 = vand.u32 %v248, 4294901760
    %5063 = vmatprep.subr.mxu0 %v5062
    %v5064 = vand.u32 %v247, 4294901760
    %5065 = vmatpush1.msra.mxu0 %v5064
    %v5066 = vand.u32 %v278, 4294901760
    %5067 = vmatprep.subr.mxu0 %v5066
    %v5068 = vand.u32 %v277, 4294901760
    %5069 = vmatpush1.msra.mxu0 %v5068
    %v5070 = vand.u32 %v308, 4294901760
    %5071 = vmatprep.subr.mxu0 %v5070
    %v5072 = vand.u32 %v307, 4294901760
    %5073 = vmatpush1.msra.mxu0 %v5072
    %5074 = vmatprep.subr.mxu0 0.0
    %5075 = vmatpush1.msra.mxu0 0.0
    %5076 = vmatprep.subr.mxu0 0.0
    %5077 = vmatpush1.msra.mxu0 0.0
    %5078 = vmatprep.subr.mxu0 0.0
    %5079 = vmatpush1.msra.mxu0 0.0
    %5080 = vmatprep.subr.mxu0 0.0
    %5081 = vmatpush1.msra.mxu0 0.0
    %5082 = vmatprep.subr.mxu0 0.0
    %5083 = vmatpush1.msra.mxu0 0.0
    %5084 = vmatprep.subr.mxu0 0.0
    %5085 = vmatpush1.msra.mxu0 0.0
    %5086 = vmatprep.subr.mxu0 0.0
    %5087 = vmatpush1.msra.mxu0 0.0
    %5088 = vmatprep.subr.mxu0 0.0
    %5089 = vmatpush1.msra.mxu0 0.0
    %5090 = vmatprep.subr.mxu0 0.0
    %5091 = vmatpush1.msra.mxu0 0.0
    %5092 = vmatprep.subr.mxu0 0.0
    %5093 = vmatpush1.msra.mxu0 0.0
    %5094 = vmatprep.subr.mxu0 0.0
    %5095 = vmatpush1.msra.mxu0 0.0
    %5096 = vmatprep.subr.mxu0 0.0
    %5097 = vmatpush1.msra.mxu0 0.0
    %5098 = vmatprep.subr.mxu0 0.0
    %5099 = vmatpush1.msra.mxu0 0.0
    %5100 = vmatprep.subr.mxu0 0.0
    %5101 = vmatpush1.msra.mxu0 0.0
    %5102 = vmatprep.subr.mxu0 0.0
    %5103 = vmatpush1.msra.mxu0 0.0
    %5104 = vmatprep.subr.mxu0 0.0
    %5105 = vmatpush1.msra.mxu0 0.0
    %5106 = vmatprep.subr.mxu0 0.0
    %5107 = vmatpush1.msra.mxu0 0.0
    %5108 = vmatprep.subr.mxu0 0.0
    %5109 = vmatpush1.msra.mxu0 0.0
    %5110 = vmatprep.subr.mxu0 0.0
    %5111 = vmatpush1.msra.mxu0 0.0
    %5112 = vmatprep.subr.mxu0 0.0
    %5113 = vmatpush1.msra.mxu0 0.0
    %5114 = vmatprep.subr.mxu0 0.0
    %5115 = vmatpush1.msra.mxu0 0.0
    %5116 = vmatprep.subr.mxu0 0.0
    %5117 = vmatpush1.msra.mxu0 0.0
    %5118 = vmatprep.subr.mxu0 0.0
    %5119 = vmatpush1.msra.mxu0 0.0
    %5120 = vmatprep.mubr.f32.mxu0 0.0
    %v5121 = vand.u32 %v325, 4294901760
    %v5122 = vsub.f32 %v325, %v5121
    %v5123 = vand.u32 %v5122, 4294901760
    %v5124 = vsub.f32 %v5122, %v5123
    %v5125 = vand.u32 %v5124, 4294901760
    %5126 = vmatmul.mubr.f32.gmra.mrb[0].mxu0 %v5125
    %v5127 = vpop.f32.mrb[0].mxu0
    %v5128 = vadd.f32 0.0, %v5127
    %v5129 = vpop.f32.mrb[0].mxu0
    %v5130 = vadd.f32 0.0, %v5129
    %5131 = vdwg.mxu0
    %v5132 = vand.u32 %v68, 4294901760
    %v5133 = vsub.f32 %v68, %v5132
    %v5134 = vand.u32 %v5133, 4294901760
    %v5135 = vsub.f32 %v5133, %v5134
    %v5136 = vand.u32 %v5135, 4294901760
    %5137 = vmatprep.subr.mxu0 %v5136
    %v5138 = vand.u32 %v67, 4294901760
    %v5139 = vsub.f32 %v67, %v5138
    %v5140 = vand.u32 %v5139, 4294901760
    %v5141 = vsub.f32 %v5139, %v5140
    %v5142 = vand.u32 %v5141, 4294901760
    %5143 = vmatpush1.msra.mxu0 %v5142
    %v5144 = vand.u32 %v98, 4294901760
    %v5145 = vsub.f32 %v98, %v5144
    %v5146 = vand.u32 %v5145, 4294901760
    %v5147 = vsub.f32 %v5145, %v5146
    %v5148 = vand.u32 %v5147, 4294901760
    %5149 = vmatprep.subr.mxu0 %v5148
    %v5150 = vand.u32 %v97, 4294901760
    %v5151 = vsub.f32 %v97, %v5150
    %v5152 = vand.u32 %v5151, 4294901760
    %v5153 = vsub.f32 %v5151, %v5152
    %v5154 = vand.u32 %v5153, 4294901760
    %5155 = vmatpush1.msra.mxu0 %v5154
    %v5156 = vand.u32 %v128, 4294901760
    %v5157 = vsub.f32 %v128, %v5156
    %v5158 = vand.u32 %v5157, 4294901760
    %v5159 = vsub.f32 %v5157, %v5158
    %v5160 = vand.u32 %v5159, 4294901760
    %5161 = vmatprep.subr.mxu0 %v5160
    %v5162 = vand.u32 %v127, 4294901760
    %v5163 = vsub.f32 %v127, %v5162
    %v5164 = vand.u32 %v5163, 4294901760
    %v5165 = vsub.f32 %v5163, %v5164
    %v5166 = vand.u32 %v5165, 4294901760
    %5167 = vmatpush1.msra.mxu0 %v5166
    %v5168 = vand.u32 %v158, 4294901760
    %v5169 = vsub.f32 %v158, %v5168
    %v5170 = vand.u32 %v5169, 4294901760
    %v5171 = vsub.f32 %v5169, %v5170
    %v5172 = vand.u32 %v5171, 4294901760
    %5173 = vmatprep.subr.mxu0 %v5172
    %v5174 = vand.u32 %v157, 4294901760
    %v5175 = vsub.f32 %v157, %v5174
    %v5176 = vand.u32 %v5175, 4294901760
    %v5177 = vsub.f32 %v5175, %v5176
    %v5178 = vand.u32 %v5177, 4294901760
    %5179 = vmatpush1.msra.mxu0 %v5178
    %v5180 = vand.u32 %v188, 4294901760
    %v5181 = vsub.f32 %v188, %v5180
    %v5182 = vand.u32 %v5181, 4294901760
    %v5183 = vsub.f32 %v5181, %v5182
    %v5184 = vand.u32 %v5183, 4294901760
    %5185 = vmatprep.subr.mxu0 %v5184
    %v5186 = vand.u32 %v187, 4294901760
    %v5187 = vsub.f32 %v187, %v5186
    %v5188 = vand.u32 %v5187, 4294901760
    %v5189 = vsub.f32 %v5187, %v5188
    %v5190 = vand.u32 %v5189, 4294901760
    %5191 = vmatpush1.msra.mxu0 %v5190
    %v5192 = vand.u32 %v218, 4294901760
    %v5193 = vsub.f32 %v218, %v5192
    %v5194 = vand.u32 %v5193, 4294901760
    %v5195 = vsub.f32 %v5193, %v5194
    %v5196 = vand.u32 %v5195, 4294901760
    %5197 = vmatprep.subr.mxu0 %v5196
    %v5198 = vand.u32 %v217, 4294901760
    %v5199 = vsub.f32 %v217, %v5198
    %v5200 = vand.u32 %v5199, 4294901760
    %v5201 = vsub.f32 %v5199, %v5200
    %v5202 = vand.u32 %v5201, 4294901760
    %5203 = vmatpush1.msra.mxu0 %v5202
    %v5204 = vand.u32 %v248, 4294901760
    %v5205 = vsub.f32 %v248, %v5204
    %v5206 = vand.u32 %v5205, 4294901760
    %v5207 = vsub.f32 %v5205, %v5206
    %v5208 = vand.u32 %v5207, 4294901760
    %5209 = vmatprep.subr.mxu0 %v5208
    %v5210 = vand.u32 %v247, 4294901760
    %v5211 = vsub.f32 %v247, %v5210
    %v5212 = vand.u32 %v5211, 4294901760
    %v5213 = vsub.f32 %v5211, %v5212
    %v5214 = vand.u32 %v5213, 4294901760
    %5215 = vmatpush1.msra.mxu0 %v5214
    %v5216 = vand.u32 %v278, 4294901760
    %v5217 = vsub.f32 %v278, %v5216
    %v5218 = vand.u32 %v5217, 4294901760
    %v5219 = vsub.f32 %v5217, %v5218
    %v5220 = vand.u32 %v5219, 4294901760
    %5221 = vmatprep.subr.mxu0 %v5220
    %v5222 = vand.u32 %v277, 4294901760
    %v5223 = vsub.f32 %v277, %v5222
    %v5224 = vand.u32 %v5223, 4294901760
    %v5225 = vsub.f32 %v5223, %v5224
    %v5226 = vand.u32 %v5225, 4294901760
    %5227 = vmatpush1.msra.mxu0 %v5226
    %v5228 = vand.u32 %v308, 4294901760
    %v5229 = vsub.f32 %v308, %v5228
    %v5230 = vand.u32 %v5229, 4294901760
    %v5231 = vsub.f32 %v5229, %v5230
    %v5232 = vand.u32 %v5231, 4294901760
    %5233 = vmatprep.subr.mxu0 %v5232
    %v5234 = vand.u32 %v307, 4294901760
    %v5235 = vsub.f32 %v307, %v5234
    %v5236 = vand.u32 %v5235, 4294901760
    %v5237 = vsub.f32 %v5235, %v5236
    %v5238 = vand.u32 %v5237, 4294901760
    %5239 = vmatpush1.msra.mxu0 %v5238
    %5240 = vmatprep.subr.mxu0 0.0
    %5241 = vmatpush1.msra.mxu0 0.0
    %5242 = vmatprep.subr.mxu0 0.0
    %5243 = vmatpush1.msra.mxu0 0.0
    %5244 = vmatprep.subr.mxu0 0.0
    %5245 = vmatpush1.msra.mxu0 0.0
    %5246 = vmatprep.subr.mxu0 0.0
    %5247 = vmatpush1.msra.mxu0 0.0
    %5248 = vmatprep.subr.mxu0 0.0
    %5249 = vmatpush1.msra.mxu0 0.0
    %5250 = vmatprep.subr.mxu0 0.0
    %5251 = vmatpush1.msra.mxu0 0.0
    %5252 = vmatprep.subr.mxu0 0.0
    %5253 = vmatpush1.msra.mxu0 0.0
    %5254 = vmatprep.subr.mxu0 0.0
    %5255 = vmatpush1.msra.mxu0 0.0
    %5256 = vmatprep.subr.mxu0 0.0
    %5257 = vmatpush1.msra.mxu0 0.0
    %5258 = vmatprep.subr.mxu0 0.0
    %5259 = vmatpush1.msra.mxu0 0.0
    %5260 = vmatprep.subr.mxu0 0.0
    %5261 = vmatpush1.msra.mxu0 0.0
    %5262 = vmatprep.subr.mxu0 0.0
    %5263 = vmatpush1.msra.mxu0 0.0
    %5264 = vmatprep.subr.mxu0 0.0
    %5265 = vmatpush1.msra.mxu0 0.0
    %5266 = vmatprep.subr.mxu0 0.0
    %5267 = vmatpush1.msra.mxu0 0.0
    %5268 = vmatprep.subr.mxu0 0.0
    %5269 = vmatpush1.msra.mxu0 0.0
    %5270 = vmatprep.subr.mxu0 0.0
    %5271 = vmatpush1.msra.mxu0 0.0
    %5272 = vmatprep.subr.mxu0 0.0
    %5273 = vmatpush1.msra.mxu0 0.0
    %5274 = vmatprep.subr.mxu0 0.0
    %5275 = vmatpush1.msra.mxu0 0.0
    %5276 = vmatprep.subr.mxu0 0.0
    %5277 = vmatpush1.msra.mxu0 0.0
    %5278 = vmatprep.subr.mxu0 0.0
    %5279 = vmatpush1.msra.mxu0 0.0
    %5280 = vmatprep.subr.mxu0 0.0
    %5281 = vmatpush1.msra.mxu0 0.0
    %5282 = vmatprep.subr.mxu0 0.0
    %5283 = vmatpush1.msra.mxu0 0.0
    %5284 = vmatprep.subr.mxu0 0.0
    %5285 = vmatpush1.msra.mxu0 0.0
    %5286 = vmatprep.mubr.f32.mxu0 0.0
    %v5287 = vand.u32 %v325, 4294901760
    %5288 = vmatmul.mubr.f32.gmra.mrb[0].mxu0 %v5287
    %v5289 = vpop.f32.mrb[0].mxu0
    %v5290 = vadd.f32 %v5128, %v5289
    %v5291 = vpop.f32.mrb[0].mxu0
    %v5292 = vadd.f32 %v5130, %v5291
    %5293 = vdwg.mxu0
    %v5294 = vand.u32 %v68, 4294901760
    %v5295 = vsub.f32 %v68, %v5294
    %5296 = vmatprep.subr.mxu0 %v5295
    %v5297 = vand.u32 %v67, 4294901760
    %v5298 = vsub.f32 %v67, %v5297
    %5299 = vmatpush1.msra.mxu0 %v5298
    %v5300 = vand.u32 %v98, 4294901760
    %v5301 = vsub.f32 %v98, %v5300
    %5302 = vmatprep.subr.mxu0 %v5301
    %v5303 = vand.u32 %v97, 4294901760
    %v5304 = vsub.f32 %v97, %v5303
    %5305 = vmatpush1.msra.mxu0 %v5304
    %v5306 = vand.u32 %v128, 4294901760
    %v5307 = vsub.f32 %v128, %v5306
    %5308 = vmatprep.subr.mxu0 %v5307
    %v5309 = vand.u32 %v127, 4294901760
    %v5310 = vsub.f32 %v127, %v5309
    %5311 = vmatpush1.msra.mxu0 %v5310
    %v5312 = vand.u32 %v158, 4294901760
    %v5313 = vsub.f32 %v158, %v5312
    %5314 = vmatprep.subr.mxu0 %v5313
    %v5315 = vand.u32 %v157, 4294901760
    %v5316 = vsub.f32 %v157, %v5315
    %5317 = vmatpush1.msra.mxu0 %v5316
    %v5318 = vand.u32 %v188, 4294901760
    %v5319 = vsub.f32 %v188, %v5318
    %5320 = vmatprep.subr.mxu0 %v5319
    %v5321 = vand.u32 %v187, 4294901760
    %v5322 = vsub.f32 %v187, %v5321
    %5323 = vmatpush1.msra.mxu0 %v5322
    %v5324 = vand.u32 %v218, 4294901760
    %v5325 = vsub.f32 %v218, %v5324
    %5326 = vmatprep.subr.mxu0 %v5325
    %v5327 = vand.u32 %v217, 4294901760
    %v5328 = vsub.f32 %v217, %v5327
    %5329 = vmatpush1.msra.mxu0 %v5328
    %v5330 = vand.u32 %v248, 4294901760
    %v5331 = vsub.f32 %v248, %v5330
    %5332 = vmatprep.subr.mxu0 %v5331
    %v5333 = vand.u32 %v247, 4294901760
    %v5334 = vsub.f32 %v247, %v5333
    %5335 = vmatpush1.msra.mxu0 %v5334
    %v5336 = vand.u32 %v278, 4294901760
    %v5337 = vsub.f32 %v278, %v5336
    %5338 = vmatprep.subr.mxu0 %v5337
    %v5339 = vand.u32 %v277, 4294901760
    %v5340 = vsub.f32 %v277, %v5339
    %5341 = vmatpush1.msra.mxu0 %v5340
    %v5342 = vand.u32 %v308, 4294901760
    %v5343 = vsub.f32 %v308, %v5342
    %5344 = vmatprep.subr.mxu0 %v5343
    %v5345 = vand.u32 %v307, 4294901760
    %v5346 = vsub.f32 %v307, %v5345
    %5347 = vmatpush1.msra.mxu0 %v5346
    %5348 = vmatprep.subr.mxu0 0.0
    %5349 = vmatpush1.msra.mxu0 0.0
    %5350 = vmatprep.subr.mxu0 0.0
    %5351 = vmatpush1.msra.mxu0 0.0
    %5352 = vmatprep.subr.mxu0 0.0
    %5353 = vmatpush1.msra.mxu0 0.0
    %5354 = vmatprep.subr.mxu0 0.0
    %5355 = vmatpush1.msra.mxu0 0.0
    %5356 = vmatprep.subr.mxu0 0.0
    %5357 = vmatpush1.msra.mxu0 0.0
    %5358 = vmatprep.subr.mxu0 0.0
    %5359 = vmatpush1.msra.mxu0 0.0
    %5360 = vmatprep.subr.mxu0 0.0
    %5361 = vmatpush1.msra.mxu0 0.0
    %5362 = vmatprep.subr.mxu0 0.0
    %5363 = vmatpush1.msra.mxu0 0.0
    %5364 = vmatprep.subr.mxu0 0.0
    %5365 = vmatpush1.msra.mxu0 0.0
    %5366 = vmatprep.subr.mxu0 0.0
    %5367 = vmatpush1.msra.mxu0 0.0
    %5368 = vmatprep.subr.mxu0 0.0
    %5369 = vmatpush1.msra.mxu0 0.0
    %5370 = vmatprep.subr.mxu0 0.0
    %5371 = vmatpush1.msra.mxu0 0.0
    %5372 = vmatprep.subr.mxu0 0.0
    %5373 = vmatpush1.msra.mxu0 0.0
    %5374 = vmatprep.subr.mxu0 0.0
    %5375 = vmatpush1.msra.mxu0 0.0
    %5376 = vmatprep.subr.mxu0 0.0
    %5377 = vmatpush1.msra.mxu0 0.0
    %5378 = vmatprep.subr.mxu0 0.0
    %5379 = vmatpush1.msra.mxu0 0.0
    %5380 = vmatprep.subr.mxu0 0.0
    %5381 = vmatpush1.msra.mxu0 0.0
    %5382 = vmatprep.subr.mxu0 0.0
    %5383 = vmatpush1.msra.mxu0 0.0
    %5384 = vmatprep.subr.mxu0 0.0
    %5385 = vmatpush1.msra.mxu0 0.0
    %5386 = vmatprep.subr.mxu0 0.0
    %5387 = vmatpush1.msra.mxu0 0.0
    %5388 = vmatprep.subr.mxu0 0.0
    %5389 = vmatpush1.msra.mxu0 0.0
    %5390 = vmatprep.subr.mxu0 0.0
    %5391 = vmatpush1.msra.mxu0 0.0
    %5392 = vmatprep.subr.mxu0 0.0
    %5393 = vmatpush1.msra.mxu0 0.0
    %5394 = vmatprep.mubr.f32.mxu0 0.0
    %v5395 = vand.u32 %v325, 4294901760
    %v5396 = vsub.f32 %v325, %v5395
    %5397 = vmatmul.mubr.f32.gmra.mrb[0].mxu0 %v5396
    %v5398 = vpop.f32.mrb[0].mxu0
    %v5399 = vadd.f32 %v5290, %v5398
    %v5400 = vpop.f32.mrb[0].mxu0
    %v5401 = vadd.f32 %v5292, %v5400
    %5402 = vdwg.mxu0
    %v5403 = vand.u32 %v68, 4294901760
    %5404 = vmatprep.subr.mxu0 %v5403
    %v5405 = vand.u32 %v67, 4294901760
    %5406 = vmatpush1.msra.mxu0 %v5405
    %v5407 = vand.u32 %v98, 4294901760
    %5408 = vmatprep.subr.mxu0 %v5407
    %v5409 = vand.u32 %v97, 4294901760
    %5410 = vmatpush1.msra.mxu0 %v5409
    %v5411 = vand.u32 %v128, 4294901760
    %5412 = vmatprep.subr.mxu0 %v5411
    %v5413 = vand.u32 %v127, 4294901760
    %5414 = vmatpush1.msra.mxu0 %v5413
    %v5415 = vand.u32 %v158, 4294901760
    %5416 = vmatprep.subr.mxu0 %v5415
    %v5417 = vand.u32 %v157, 4294901760
    %5418 = vmatpush1.msra.mxu0 %v5417
    %v5419 = vand.u32 %v188, 4294901760
    %5420 = vmatprep.subr.mxu0 %v5419
    %v5421 = vand.u32 %v187, 4294901760
    %5422 = vmatpush1.msra.mxu0 %v5421
    %v5423 = vand.u32 %v218, 4294901760
    %5424 = vmatprep.subr.mxu0 %v5423
    %v5425 = vand.u32 %v217, 4294901760
    %5426 = vmatpush1.msra.mxu0 %v5425
    %v5427 = vand.u32 %v248, 4294901760
    %5428 = vmatprep.subr.mxu0 %v5427
    %v5429 = vand.u32 %v247, 4294901760
    %5430 = vmatpush1.msra.mxu0 %v5429
    %v5431 = vand.u32 %v278, 4294901760
    %5432 = vmatprep.subr.mxu0 %v5431
    %v5433 = vand.u32 %v277, 4294901760
    %5434 = vmatpush1.msra.mxu0 %v5433
    %v5435 = vand.u32 %v308, 4294901760
    %5436 = vmatprep.subr.mxu0 %v5435
    %v5437 = vand.u32 %v307, 4294901760
    %5438 = vmatpush1.msra.mxu0 %v5437
    %5439 = vmatprep.subr.mxu0 0.0
    %5440 = vmatpush1.msra.mxu0 0.0
    %5441 = vmatprep.subr.mxu0 0.0
    %5442 = vmatpush1.msra.mxu0 0.0
    %5443 = vmatprep.subr.mxu0 0.0
    %5444 = vmatpush1.msra.mxu0 0.0
    %5445 = vmatprep.subr.mxu0 0.0
    %5446 = vmatpush1.msra.mxu0 0.0
    %5447 = vmatprep.subr.mxu0 0.0
    %5448 = vmatpush1.msra.mxu0 0.0
    %5449 = vmatprep.subr.mxu0 0.0
    %5450 = vmatpush1.msra.mxu0 0.0
    %5451 = vmatprep.subr.mxu0 0.0
    %5452 = vmatpush1.msra.mxu0 0.0
    %5453 = vmatprep.subr.mxu0 0.0
    %5454 = vmatpush1.msra.mxu0 0.0
    %5455 = vmatprep.subr.mxu0 0.0
    %5456 = vmatpush1.msra.mxu0 0.0
    %5457 = vmatprep.subr.mxu0 0.0
    %5458 = vmatpush1.msra.mxu0 0.0
    %5459 = vmatprep.subr.mxu0 0.0
    %5460 = vmatpush1.msra.mxu0 0.0
    %5461 = vmatprep.subr.mxu0 0.0
    %5462 = vmatpush1.msra.mxu0 0.0
    %5463 = vmatprep.subr.mxu0 0.0
    %5464 = vmatpush1.msra.mxu0 0.0
    %5465 = vmatprep.subr.mxu0 0.0
    %5466 = vmatpush1.msra.mxu0 0.0
    %5467 = vmatprep.subr.mxu0 0.0
    %5468 = vmatpush1.msra.mxu0 0.0
    %5469 = vmatprep.subr.mxu0 0.0
    %5470 = vmatpush1.msra.mxu0 0.0
    %5471 = vmatprep.subr.mxu0 0.0
    %5472 = vmatpush1.msra.mxu0 0.0
    %5473 = vmatprep.subr.mxu0 0.0
    %5474 = vmatpush1.msra.mxu0 0.0
    %5475 = vmatprep.subr.mxu0 0.0
    %5476 = vmatpush1.msra.mxu0 0.0
    %5477 = vmatprep.subr.mxu0 0.0
    %5478 = vmatpush1.msra.mxu0 0.0
    %5479 = vmatprep.subr.mxu0 0.0
    %5480 = vmatpush1.msra.mxu0 0.0
    %5481 = vmatprep.subr.mxu0 0.0
    %5482 = vmatpush1.msra.mxu0 0.0
    %5483 = vmatprep.subr.mxu0 0.0
    %5484 = vmatpush1.msra.mxu0 0.0
    %5485 = vmatprep.mubr.f32.mxu0 0.0
    %v5486 = vand.u32 %v325, 4294901760
    %v5487 = vsub.f32 %v325, %v5486
    %v5488 = vand.u32 %v5487, 4294901760
    %5489 = vmatmul.mubr.f32.gmra.mrb[0].mxu0 %v5488
    %v5490 = vpop.f32.mrb[0].mxu0
    %v5491 = vadd.f32 %v5399, %v5490
    %v5492 = vpop.f32.mrb[0].mxu0
    %v5493 = vadd.f32 %v5401, %v5492
    %5494 = vdwg.mxu0
    %v5495 = vand.u32 %v68, 4294901760
    %v5496 = vsub.f32 %v68, %v5495
    %v5497 = vand.u32 %v5496, 4294901760
    %5498 = vmatprep.subr.mxu0 %v5497
    %v5499 = vand.u32 %v67, 4294901760
    %v5500 = vsub.f32 %v67, %v5499
    %v5501 = vand.u32 %v5500, 4294901760
    %5502 = vmatpush1.msra.mxu0 %v5501
    %v5503 = vand.u32 %v98, 4294901760
    %v5504 = vsub.f32 %v98, %v5503
    %v5505 = vand.u32 %v5504, 4294901760
    %5506 = vmatprep.subr.mxu0 %v5505
    %v5507 = vand.u32 %v97, 4294901760
    %v5508 = vsub.f32 %v97, %v5507
    %v5509 = vand.u32 %v5508, 4294901760
    %5510 = vmatpush1.msra.mxu0 %v5509
    %v5511 = vand.u32 %v128, 4294901760
    %v5512 = vsub.f32 %v128, %v5511
    %v5513 = vand.u32 %v5512, 4294901760
    %5514 = vmatprep.subr.mxu0 %v5513
    %v5515 = vand.u32 %v127, 4294901760
    %v5516 = vsub.f32 %v127, %v5515
    %v5517 = vand.u32 %v5516, 4294901760
    %5518 = vmatpush1.msra.mxu0 %v5517
    %v5519 = vand.u32 %v158, 4294901760
    %v5520 = vsub.f32 %v158, %v5519
    %v5521 = vand.u32 %v5520, 4294901760
    %5522 = vmatprep.subr.mxu0 %v5521
    %v5523 = vand.u32 %v157, 4294901760
    %v5524 = vsub.f32 %v157, %v5523
    %v5525 = vand.u32 %v5524, 4294901760
    %5526 = vmatpush1.msra.mxu0 %v5525
    %v5527 = vand.u32 %v188, 4294901760
    %v5528 = vsub.f32 %v188, %v5527
    %v5529 = vand.u32 %v5528, 4294901760
    %5530 = vmatprep.subr.mxu0 %v5529
    %v5531 = vand.u32 %v187, 4294901760
    %v5532 = vsub.f32 %v187, %v5531
    %v5533 = vand.u32 %v5532, 4294901760
    %5534 = vmatpush1.msra.mxu0 %v5533
    %v5535 = vand.u32 %v218, 4294901760
    %v5536 = vsub.f32 %v218, %v5535
    %v5537 = vand.u32 %v5536, 4294901760
    %5538 = vmatprep.subr.mxu0 %v5537
    %v5539 = vand.u32 %v217, 4294901760
    %v5540 = vsub.f32 %v217, %v5539
    %v5541 = vand.u32 %v5540, 4294901760
    %5542 = vmatpush1.msra.mxu0 %v5541
    %v5543 = vand.u32 %v248, 4294901760
    %v5544 = vsub.f32 %v248, %v5543
    %v5545 = vand.u32 %v5544, 4294901760
    %5546 = vmatprep.subr.mxu0 %v5545
    %v5547 = vand.u32 %v247, 4294901760
    %v5548 = vsub.f32 %v247, %v5547
    %v5549 = vand.u32 %v5548, 4294901760
    %5550 = vmatpush1.msra.mxu0 %v5549
    %v5551 = vand.u32 %v278, 4294901760
    %v5552 = vsub.f32 %v278, %v5551
    %v5553 = vand.u32 %v5552, 4294901760
    %5554 = vmatprep.subr.mxu0 %v5553
    %v5555 = vand.u32 %v277, 4294901760
    %v5556 = vsub.f32 %v277, %v5555
    %v5557 = vand.u32 %v5556, 4294901760
    %5558 = vmatpush1.msra.mxu0 %v5557
    %v5559 = vand.u32 %v308, 4294901760
    %v5560 = vsub.f32 %v308, %v5559
    %v5561 = vand.u32 %v5560, 4294901760
    %5562 = vmatprep.subr.mxu0 %v5561
    %v5563 = vand.u32 %v307, 4294901760
    %v5564 = vsub.f32 %v307, %v5563
    %v5565 = vand.u32 %v5564, 4294901760
    %5566 = vmatpush1.msra.mxu0 %v5565
    %5567 = vmatprep.subr.mxu0 0.0
    %5568 = vmatpush1.msra.mxu0 0.0
    %5569 = vmatprep.subr.mxu0 0.0
    %5570 = vmatpush1.msra.mxu0 0.0
    %5571 = vmatprep.subr.mxu0 0.0
    %5572 = vmatpush1.msra.mxu0 0.0
    %5573 = vmatprep.subr.mxu0 0.0
    %5574 = vmatpush1.msra.mxu0 0.0
    %5575 = vmatprep.subr.mxu0 0.0
    %5576 = vmatpush1.msra.mxu0 0.0
    %5577 = vmatprep.subr.mxu0 0.0
    %5578 = vmatpush1.msra.mxu0 0.0
    %5579 = vmatprep.subr.mxu0 0.0
    %5580 = vmatpush1.msra.mxu0 0.0
    %5581 = vmatprep.subr.mxu0 0.0
    %5582 = vmatpush1.msra.mxu0 0.0
    %5583 = vmatprep.subr.mxu0 0.0
    %5584 = vmatpush1.msra.mxu0 0.0
    %5585 = vmatprep.subr.mxu0 0.0
    %5586 = vmatpush1.msra.mxu0 0.0
    %5587 = vmatprep.subr.mxu0 0.0
    %5588 = vmatpush1.msra.mxu0 0.0
    %5589 = vmatprep.subr.mxu0 0.0
    %5590 = vmatpush1.msra.mxu0 0.0
    %5591 = vmatprep.subr.mxu0 0.0
    %5592 = vmatpush1.msra.mxu0 0.0
    %5593 = vmatprep.subr.mxu0 0.0
    %5594 = vmatpush1.msra.mxu0 0.0
    %5595 = vmatprep.subr.mxu0 0.0
    %5596 = vmatpush1.msra.mxu0 0.0
    %5597 = vmatprep.subr.mxu0 0.0
    %5598 = vmatpush1.msra.mxu0 0.0
    %5599 = vmatprep.subr.mxu0 0.0
    %5600 = vmatpush1.msra.mxu0 0.0
    %5601 = vmatprep.subr.mxu0 0.0
    %5602 = vmatpush1.msra.mxu0 0.0
    %5603 = vmatprep.subr.mxu0 0.0
    %5604 = vmatpush1.msra.mxu0 0.0
    %5605 = vmatprep.subr.mxu0 0.0
    %5606 = vmatpush1.msra.mxu0 0.0
    %5607 = vmatprep.subr.mxu0 0.0
    %5608 = vmatpush1.msra.mxu0 0.0
    %5609 = vmatprep.subr.mxu0 0.0
    %5610 = vmatpush1.msra.mxu0 0.0
    %5611 = vmatprep.subr.mxu0 0.0
    %5612 = vmatpush1.msra.mxu0 0.0
    %5613 = vmatprep.mubr.f32.mxu0 0.0
    %v5614 = vand.u32 %v325, 4294901760
    %5615 = vmatmul.mubr.f32.gmra.mrb[0].mxu0 %v5614
    %v5616 = vpop.f32.mrb[0].mxu0
    %v5617 = vadd.f32 %v5491, %v5616
    %v5618 = vpop.f32.mrb[0].mxu0
    %v5619 = vadd.f32 %v5493, %v5618
    %5620 = vdwg.mxu0
    %v5621 = vand.u32 %v68, 4294901760
    %5622 = vmatprep.subr.mxu0 %v5621
    %v5623 = vand.u32 %v67, 4294901760
    %5624 = vmatpush1.msra.mxu0 %v5623
    %v5625 = vand.u32 %v98, 4294901760
    %5626 = vmatprep.subr.mxu0 %v5625
    %v5627 = vand.u32 %v97, 4294901760
    %5628 = vmatpush1.msra.mxu0 %v5627
    %v5629 = vand.u32 %v128, 4294901760
    %5630 = vmatprep.subr.mxu0 %v5629
    %v5631 = vand.u32 %v127, 4294901760
    %5632 = vmatpush1.msra.mxu0 %v5631
    %v5633 = vand.u32 %v158, 4294901760
    %5634 = vmatprep.subr.mxu0 %v5633
    %v5635 = vand.u32 %v157, 4294901760
    %5636 = vmatpush1.msra.mxu0 %v5635
    %v5637 = vand.u32 %v188, 4294901760
    %5638 = vmatprep.subr.mxu0 %v5637
    %v5639 = vand.u32 %v187, 4294901760
    %5640 = vmatpush1.msra.mxu0 %v5639
    %v5641 = vand.u32 %v218, 4294901760
    %5642 = vmatprep.subr.mxu0 %v5641
    %v5643 = vand.u32 %v217, 4294901760
    %5644 = vmatpush1.msra.mxu0 %v5643
    %v5645 = vand.u32 %v248, 4294901760
    %5646 = vmatprep.subr.mxu0 %v5645
    %v5647 = vand.u32 %v247, 4294901760
    %5648 = vmatpush1.msra.mxu0 %v5647
    %v5649 = vand.u32 %v278, 4294901760
    %5650 = vmatprep.subr.mxu0 %v5649
    %v5651 = vand.u32 %v277, 4294901760
    %5652 = vmatpush1.msra.mxu0 %v5651
    %v5653 = vand.u32 %v308, 4294901760
    %5654 = vmatprep.subr.mxu0 %v5653
    %v5655 = vand.u32 %v307, 4294901760
    %5656 = vmatpush1.msra.mxu0 %v5655
    %5657 = vmatprep.subr.mxu0 0.0
    %5658 = vmatpush1.msra.mxu0 0.0
    %5659 = vmatprep.subr.mxu0 0.0
    %5660 = vmatpush1.msra.mxu0 0.0
    %5661 = vmatprep.subr.mxu0 0.0
    %5662 = vmatpush1.msra.mxu0 0.0
    %5663 = vmatprep.subr.mxu0 0.0
    %5664 = vmatpush1.msra.mxu0 0.0
    %5665 = vmatprep.subr.mxu0 0.0
    %5666 = vmatpush1.msra.mxu0 0.0
    %5667 = vmatprep.subr.mxu0 0.0
    %5668 = vmatpush1.msra.mxu0 0.0
    %5669 = vmatprep.subr.mxu0 0.0
    %5670 = vmatpush1.msra.mxu0 0.0
    %5671 = vmatprep.subr.mxu0 0.0
    %5672 = vmatpush1.msra.mxu0 0.0
    %5673 = vmatprep.subr.mxu0 0.0
    %5674 = vmatpush1.msra.mxu0 0.0
    %5675 = vmatprep.subr.mxu0 0.0
    %5676 = vmatpush1.msra.mxu0 0.0
    %5677 = vmatprep.subr.mxu0 0.0
    %5678 = vmatpush1.msra.mxu0 0.0
    %5679 = vmatprep.subr.mxu0 0.0
    %5680 = vmatpush1.msra.mxu0 0.0
    %5681 = vmatprep.subr.mxu0 0.0
    %5682 = vmatpush1.msra.mxu0 0.0
    %5683 = vmatprep.subr.mxu0 0.0
    %5684 = vmatpush1.msra.mxu0 0.0
    %5685 = vmatprep.subr.mxu0 0.0
    %5686 = vmatpush1.msra.mxu0 0.0
    %5687 = vmatprep.subr.mxu0 0.0
    %5688 = vmatpush1.msra.mxu0 0.0
    %5689 = vmatprep.subr.mxu0 0.0
    %5690 = vmatpush1.msra.mxu0 0.0
    %5691 = vmatprep.subr.mxu0 0.0
    %5692 = vmatpush1.msra.mxu0 0.0
    %5693 = vmatprep.subr.mxu0 0.0
    %5694 = vmatpush1.msra.mxu0 0.0
    %5695 = vmatprep.subr.mxu0 0.0
    %5696 = vmatpush1.msra.mxu0 0.0
    %5697 = vmatprep.subr.mxu0 0.0
    %5698 = vmatpush1.msra.mxu0 0.0
    %5699 = vmatprep.subr.mxu0 0.0
    %5700 = vmatpush1.msra.mxu0 0.0
    %5701 = vmatprep.subr.mxu0 0.0
    %5702 = vmatpush1.msra.mxu0 0.0
    %5703 = vmatprep.mubr.f32.mxu0 0.0
    %v5704 = vand.u32 %v325, 4294901760
    %5705 = vmatmul.mubr.f32.gmra.mrb[0].mxu0 %v5704
    %v5706 = vpop.f32.mrb[0].mxu0
    %v5707 = vadd.f32 %v5617, %v5706
    %v5708 = vpop.f32.mrb[0].mxu0
    %v5709 = vadd.f32 %v5619, %v5708
    %5710 = vdwg.mxu0
    %v5711 = vand.u32 %v70, 4294901760
    %5712 = vmatprep.subr.mxu0 %v5711
    %v5713 = vand.u32 %v69, 4294901760
    %5714 = vmatpush1.msra.mxu0 %v5713
    %v5715 = vand.u32 %v100, 4294901760
    %5716 = vmatprep.subr.mxu0 %v5715
    %v5717 = vand.u32 %v99, 4294901760
    %5718 = vmatpush1.msra.mxu0 %v5717
    %v5719 = vand.u32 %v130, 4294901760
    %5720 = vmatprep.subr.mxu0 %v5719
    %v5721 = vand.u32 %v129, 4294901760
    %5722 = vmatpush1.msra.mxu0 %v5721
    %v5723 = vand.u32 %v160, 4294901760
    %5724 = vmatprep.subr.mxu0 %v5723
    %v5725 = vand.u32 %v159, 4294901760
    %5726 = vmatpush1.msra.mxu0 %v5725
    %v5727 = vand.u32 %v190, 4294901760
    %5728 = vmatprep.subr.mxu0 %v5727
    %v5729 = vand.u32 %v189, 4294901760
    %5730 = vmatpush1.msra.mxu0 %v5729
    %v5731 = vand.u32 %v220, 4294901760
    %5732 = vmatprep.subr.mxu0 %v5731
    %v5733 = vand.u32 %v219, 4294901760
    %5734 = vmatpush1.msra.mxu0 %v5733
    %v5735 = vand.u32 %v250, 4294901760
    %5736 = vmatprep.subr.mxu0 %v5735
    %v5737 = vand.u32 %v249, 4294901760
    %5738 = vmatpush1.msra.mxu0 %v5737
    %v5739 = vand.u32 %v280, 4294901760
    %5740 = vmatprep.subr.mxu0 %v5739
    %v5741 = vand.u32 %v279, 4294901760
    %5742 = vmatpush1.msra.mxu0 %v5741
    %v5743 = vand.u32 %v310, 4294901760
    %5744 = vmatprep.subr.mxu0 %v5743
    %v5745 = vand.u32 %v309, 4294901760
    %5746 = vmatpush1.msra.mxu0 %v5745
    %5747 = vmatprep.subr.mxu0 0.0
    %5748 = vmatpush1.msra.mxu0 0.0
    %5749 = vmatprep.subr.mxu0 0.0
    %5750 = vmatpush1.msra.mxu0 0.0
    %5751 = vmatprep.subr.mxu0 0.0
    %5752 = vmatpush1.msra.mxu0 0.0
    %5753 = vmatprep.subr.mxu0 0.0
    %5754 = vmatpush1.msra.mxu0 0.0
    %5755 = vmatprep.subr.mxu0 0.0
    %5756 = vmatpush1.msra.mxu0 0.0
    %5757 = vmatprep.subr.mxu0 0.0
    %5758 = vmatpush1.msra.mxu0 0.0
    %5759 = vmatprep.subr.mxu0 0.0
    %5760 = vmatpush1.msra.mxu0 0.0
    %5761 = vmatprep.subr.mxu0 0.0
    %5762 = vmatpush1.msra.mxu0 0.0
    %5763 = vmatprep.subr.mxu0 0.0
    %5764 = vmatpush1.msra.mxu0 0.0
    %5765 = vmatprep.subr.mxu0 0.0
    %5766 = vmatpush1.msra.mxu0 0.0
    %5767 = vmatprep.subr.mxu0 0.0
    %5768 = vmatpush1.msra.mxu0 0.0
    %5769 = vmatprep.subr.mxu0 0.0
    %5770 = vmatpush1.msra.mxu0 0.0
    %5771 = vmatprep.subr.mxu0 0.0
    %5772 = vmatpush1.msra.mxu0 0.0
    %5773 = vmatprep.subr.mxu0 0.0
    %5774 = vmatpush1.msra.mxu0 0.0
    %5775 = vmatprep.subr.mxu0 0.0
    %5776 = vmatpush1.msra.mxu0 0.0
    %5777 = vmatprep.subr.mxu0 0.0
    %5778 = vmatpush1.msra.mxu0 0.0
    %5779 = vmatprep.subr.mxu0 0.0
    %5780 = vmatpush1.msra.mxu0 0.0
    %5781 = vmatprep.subr.mxu0 0.0
    %5782 = vmatpush1.msra.mxu0 0.0
    %5783 = vmatprep.subr.mxu0 0.0
    %5784 = vmatpush1.msra.mxu0 0.0
    %5785 = vmatprep.subr.mxu0 0.0
    %5786 = vmatpush1.msra.mxu0 0.0
    %5787 = vmatprep.subr.mxu0 0.0
    %5788 = vmatpush1.msra.mxu0 0.0
    %5789 = vmatprep.subr.mxu0 0.0
    %5790 = vmatpush1.msra.mxu0 0.0
    %5791 = vmatprep.subr.mxu0 0.0
    %5792 = vmatpush1.msra.mxu0 0.0
    %5793 = vmatprep.mubr.f32.mxu0 0.0
    %v5794 = vand.u32 %v325, 4294901760
    %v5795 = vsub.f32 %v325, %v5794
    %v5796 = vand.u32 %v5795, 4294901760
    %v5797 = vsub.f32 %v5795, %v5796
    %v5798 = vand.u32 %v5797, 4294901760
    %5799 = vmatmul.mubr.f32.gmra.mrb[0].mxu0 %v5798
    %v5800 = vpop.f32.mrb[0].mxu0
    %v5801 = vadd.f32 0.0, %v5800
    %v5802 = vpop.f32.mrb[0].mxu0
    %v5803 = vadd.f32 0.0, %v5802
    %5804 = vdwg.mxu0
    %v5805 = vand.u32 %v70, 4294901760
    %v5806 = vsub.f32 %v70, %v5805
    %v5807 = vand.u32 %v5806, 4294901760
    %v5808 = vsub.f32 %v5806, %v5807
    %v5809 = vand.u32 %v5808, 4294901760
    %5810 = vmatprep.subr.mxu0 %v5809
    %v5811 = vand.u32 %v69, 4294901760
    %v5812 = vsub.f32 %v69, %v5811
    %v5813 = vand.u32 %v5812, 4294901760
    %v5814 = vsub.f32 %v5812, %v5813
    %v5815 = vand.u32 %v5814, 4294901760
    %5816 = vmatpush1.msra.mxu0 %v5815
    %v5817 = vand.u32 %v100, 4294901760
    %v5818 = vsub.f32 %v100, %v5817
    %v5819 = vand.u32 %v5818, 4294901760
    %v5820 = vsub.f32 %v5818, %v5819
    %v5821 = vand.u32 %v5820, 4294901760
    %5822 = vmatprep.subr.mxu0 %v5821
    %v5823 = vand.u32 %v99, 4294901760
    %v5824 = vsub.f32 %v99, %v5823
    %v5825 = vand.u32 %v5824, 4294901760
    %v5826 = vsub.f32 %v5824, %v5825
    %v5827 = vand.u32 %v5826, 4294901760
    %5828 = vmatpush1.msra.mxu0 %v5827
    %v5829 = vand.u32 %v130, 4294901760
    %v5830 = vsub.f32 %v130, %v5829
    %v5831 = vand.u32 %v5830, 4294901760
    %v5832 = vsub.f32 %v5830, %v5831
    %v5833 = vand.u32 %v5832, 4294901760
    %5834 = vmatprep.subr.mxu0 %v5833
    %v5835 = vand.u32 %v129, 4294901760
    %v5836 = vsub.f32 %v129, %v5835
    %v5837 = vand.u32 %v5836, 4294901760
    %v5838 = vsub.f32 %v5836, %v5837
    %v5839 = vand.u32 %v5838, 4294901760
    %5840 = vmatpush1.msra.mxu0 %v5839
    %v5841 = vand.u32 %v160, 4294901760
    %v5842 = vsub.f32 %v160, %v5841
    %v5843 = vand.u32 %v5842, 4294901760
    %v5844 = vsub.f32 %v5842, %v5843
    %v5845 = vand.u32 %v5844, 4294901760
    %5846 = vmatprep.subr.mxu0 %v5845
    %v5847 = vand.u32 %v159, 4294901760
    %v5848 = vsub.f32 %v159, %v5847
    %v5849 = vand.u32 %v5848, 4294901760
    %v5850 = vsub.f32 %v5848, %v5849
    %v5851 = vand.u32 %v5850, 4294901760
    %5852 = vmatpush1.msra.mxu0 %v5851
    %v5853 = vand.u32 %v190, 4294901760
    %v5854 = vsub.f32 %v190, %v5853
    %v5855 = vand.u32 %v5854, 4294901760
    %v5856 = vsub.f32 %v5854, %v5855
    %v5857 = vand.u32 %v5856, 4294901760
    %5858 = vmatprep.subr.mxu0 %v5857
    %v5859 = vand.u32 %v189, 4294901760
    %v5860 = vsub.f32 %v189, %v5859
    %v5861 = vand.u32 %v5860, 4294901760
    %v5862 = vsub.f32 %v5860, %v5861
    %v5863 = vand.u32 %v5862, 4294901760
    %5864 = vmatpush1.msra.mxu0 %v5863
    %v5865 = vand.u32 %v220, 4294901760
    %v5866 = vsub.f32 %v220, %v5865
    %v5867 = vand.u32 %v5866, 4294901760
    %v5868 = vsub.f32 %v5866, %v5867
    %v5869 = vand.u32 %v5868, 4294901760
    %5870 = vmatprep.subr.mxu0 %v5869
    %v5871 = vand.u32 %v219, 4294901760
    %v5872 = vsub.f32 %v219, %v5871
    %v5873 = vand.u32 %v5872, 4294901760
    %v5874 = vsub.f32 %v5872, %v5873
    %v5875 = vand.u32 %v5874, 4294901760
    %5876 = vmatpush1.msra.mxu0 %v5875
    %v5877 = vand.u32 %v250, 4294901760
    %v5878 = vsub.f32 %v250, %v5877
    %v5879 = vand.u32 %v5878, 4294901760
    %v5880 = vsub.f32 %v5878, %v5879
    %v5881 = vand.u32 %v5880, 4294901760
    %5882 = vmatprep.subr.mxu0 %v5881
    %v5883 = vand.u32 %v249, 4294901760
    %v5884 = vsub.f32 %v249, %v5883
    %v5885 = vand.u32 %v5884, 4294901760
    %v5886 = vsub.f32 %v5884, %v5885
    %v5887 = vand.u32 %v5886, 4294901760
    %5888 = vmatpush1.msra.mxu0 %v5887
    %v5889 = vand.u32 %v280, 4294901760
    %v5890 = vsub.f32 %v280, %v5889
    %v5891 = vand.u32 %v5890, 4294901760
    %v5892 = vsub.f32 %v5890, %v5891
    %v5893 = vand.u32 %v5892, 4294901760
    %5894 = vmatprep.subr.mxu0 %v5893
    %v5895 = vand.u32 %v279, 4294901760
    %v5896 = vsub.f32 %v279, %v5895
    %v5897 = vand.u32 %v5896, 4294901760
    %v5898 = vsub.f32 %v5896, %v5897
    %v5899 = vand.u32 %v5898, 4294901760
    %5900 = vmatpush1.msra.mxu0 %v5899
    %v5901 = vand.u32 %v310, 4294901760
    %v5902 = vsub.f32 %v310, %v5901
    %v5903 = vand.u32 %v5902, 4294901760
    %v5904 = vsub.f32 %v5902, %v5903
    %v5905 = vand.u32 %v5904, 4294901760
    %5906 = vmatprep.subr.mxu0 %v5905
    %v5907 = vand.u32 %v309, 4294901760
    %v5908 = vsub.f32 %v309, %v5907
    %v5909 = vand.u32 %v5908, 4294901760
    %v5910 = vsub.f32 %v5908, %v5909
    %v5911 = vand.u32 %v5910, 4294901760
    %5912 = vmatpush1.msra.mxu0 %v5911
    %5913 = vmatprep.subr.mxu0 0.0
    %5914 = vmatpush1.msra.mxu0 0.0
    %5915 = vmatprep.subr.mxu0 0.0
    %5916 = vmatpush1.msra.mxu0 0.0
    %5917 = vmatprep.subr.mxu0 0.0
    %5918 = vmatpush1.msra.mxu0 0.0
    %5919 = vmatprep.subr.mxu0 0.0
    %5920 = vmatpush1.msra.mxu0 0.0
    %5921 = vmatprep.subr.mxu0 0.0
    %5922 = vmatpush1.msra.mxu0 0.0
    %5923 = vmatprep.subr.mxu0 0.0
    %5924 = vmatpush1.msra.mxu0 0.0
    %5925 = vmatprep.subr.mxu0 0.0
    %5926 = vmatpush1.msra.mxu0 0.0
    %5927 = vmatprep.subr.mxu0 0.0
    %5928 = vmatpush1.msra.mxu0 0.0
    %5929 = vmatprep.subr.mxu0 0.0
    %5930 = vmatpush1.msra.mxu0 0.0
    %5931 = vmatprep.subr.mxu0 0.0
    %5932 = vmatpush1.msra.mxu0 0.0
    %5933 = vmatprep.subr.mxu0 0.0
    %5934 = vmatpush1.msra.mxu0 0.0
    %5935 = vmatprep.subr.mxu0 0.0
    %5936 = vmatpush1.msra.mxu0 0.0
    %5937 = vmatprep.subr.mxu0 0.0
    %5938 = vmatpush1.msra.mxu0 0.0
    %5939 = vmatprep.subr.mxu0 0.0
    %5940 = vmatpush1.msra.mxu0 0.0
    %5941 = vmatprep.subr.mxu0 0.0
    %5942 = vmatpush1.msra.mxu0 0.0
    %5943 = vmatprep.subr.mxu0 0.0
    %5944 = vmatpush1.msra.mxu0 0.0
    %5945 = vmatprep.subr.mxu0 0.0
    %5946 = vmatpush1.msra.mxu0 0.0
    %5947 = vmatprep.subr.mxu0 0.0
    %5948 = vmatpush1.msra.mxu0 0.0
    %5949 = vmatprep.subr.mxu0 0.0
    %5950 = vmatpush1.msra.mxu0 0.0
    %5951 = vmatprep.subr.mxu0 0.0
    %5952 = vmatpush1.msra.mxu0 0.0
    %5953 = vmatprep.subr.mxu0 0.0
    %5954 = vmatpush1.msra.mxu0 0.0
    %5955 = vmatprep.subr.mxu0 0.0
    %5956 = vmatpush1.msra.mxu0 0.0
    %5957 = vmatprep.subr.mxu0 0.0
    %5958 = vmatpush1.msra.mxu0 0.0
    %5959 = vmatprep.mubr.f32.mxu0 0.0
    %v5960 = vand.u32 %v325, 4294901760
    %5961 = vmatmul.mubr.f32.gmra.mrb[0].mxu0 %v5960
    %v5962 = vpop.f32.mrb[0].mxu0
    %v5963 = vadd.f32 %v5801, %v5962
    %v5964 = vpop.f32.mrb[0].mxu0
    %v5965 = vadd.f32 %v5803, %v5964
    %5966 = vdwg.mxu0
    %v5967 = vand.u32 %v70, 4294901760
    %v5968 = vsub.f32 %v70, %v5967
    %5969 = vmatprep.subr.mxu0 %v5968
    %v5970 = vand.u32 %v69, 4294901760
    %v5971 = vsub.f32 %v69, %v5970
    %5972 = vmatpush1.msra.mxu0 %v5971
    %v5973 = vand.u32 %v100, 4294901760
    %v5974 = vsub.f32 %v100, %v5973
    %5975 = vmatprep.subr.mxu0 %v5974
    %v5976 = vand.u32 %v99, 4294901760
    %v5977 = vsub.f32 %v99, %v5976
    %5978 = vmatpush1.msra.mxu0 %v5977
    %v5979 = vand.u32 %v130, 4294901760
    %v5980 = vsub.f32 %v130, %v5979
    %5981 = vmatprep.subr.mxu0 %v5980
    %v5982 = vand.u32 %v129, 4294901760
    %v5983 = vsub.f32 %v129, %v5982
    %5984 = vmatpush1.msra.mxu0 %v5983
    %v5985 = vand.u32 %v160, 4294901760
    %v5986 = vsub.f32 %v160, %v5985
    %5987 = vmatprep.subr.mxu0 %v5986
    %v5988 = vand.u32 %v159, 4294901760
    %v5989 = vsub.f32 %v159, %v5988
    %5990 = vmatpush1.msra.mxu0 %v5989
    %v5991 = vand.u32 %v190, 4294901760
    %v5992 = vsub.f32 %v190, %v5991
    %5993 = vmatprep.subr.mxu0 %v5992
    %v5994 = vand.u32 %v189, 4294901760
    %v5995 = vsub.f32 %v189, %v5994
    %5996 = vmatpush1.msra.mxu0 %v5995
    %v5997 = vand.u32 %v220, 4294901760
    %v5998 = vsub.f32 %v220, %v5997
    %5999 = vmatprep.subr.mxu0 %v5998
    %v6000 = vand.u32 %v219, 4294901760
    %v6001 = vsub.f32 %v219, %v6000
    %6002 = vmatpush1.msra.mxu0 %v6001
    %v6003 = vand.u32 %v250, 4294901760
    %v6004 = vsub.f32 %v250, %v6003
    %6005 = vmatprep.subr.mxu0 %v6004
    %v6006 = vand.u32 %v249, 4294901760
    %v6007 = vsub.f32 %v249, %v6006
    %6008 = vmatpush1.msra.mxu0 %v6007
    %v6009 = vand.u32 %v280, 4294901760
    %v6010 = vsub.f32 %v280, %v6009
    %6011 = vmatprep.subr.mxu0 %v6010
    %v6012 = vand.u32 %v279, 4294901760
    %v6013 = vsub.f32 %v279, %v6012
    %6014 = vmatpush1.msra.mxu0 %v6013
    %v6015 = vand.u32 %v310, 4294901760
    %v6016 = vsub.f32 %v310, %v6015
    %6017 = vmatprep.subr.mxu0 %v6016
    %v6018 = vand.u32 %v309, 4294901760
    %v6019 = vsub.f32 %v309, %v6018
    %6020 = vmatpush1.msra.mxu0 %v6019
    %6021 = vmatprep.subr.mxu0 0.0
    %6022 = vmatpush1.msra.mxu0 0.0
    %6023 = vmatprep.subr.mxu0 0.0
    %6024 = vmatpush1.msra.mxu0 0.0
    %6025 = vmatprep.subr.mxu0 0.0
    %6026 = vmatpush1.msra.mxu0 0.0
    %6027 = vmatprep.subr.mxu0 0.0
    %6028 = vmatpush1.msra.mxu0 0.0
    %6029 = vmatprep.subr.mxu0 0.0
    %6030 = vmatpush1.msra.mxu0 0.0
    %6031 = vmatprep.subr.mxu0 0.0
    %6032 = vmatpush1.msra.mxu0 0.0
    %6033 = vmatprep.subr.mxu0 0.0
    %6034 = vmatpush1.msra.mxu0 0.0
    %6035 = vmatprep.subr.mxu0 0.0
    %6036 = vmatpush1.msra.mxu0 0.0
    %6037 = vmatprep.subr.mxu0 0.0
    %6038 = vmatpush1.msra.mxu0 0.0
    %6039 = vmatprep.subr.mxu0 0.0
    %6040 = vmatpush1.msra.mxu0 0.0
    %6041 = vmatprep.subr.mxu0 0.0
    %6042 = vmatpush1.msra.mxu0 0.0
    %6043 = vmatprep.subr.mxu0 0.0
    %6044 = vmatpush1.msra.mxu0 0.0
    %6045 = vmatprep.subr.mxu0 0.0
    %6046 = vmatpush1.msra.mxu0 0.0
    %6047 = vmatprep.subr.mxu0 0.0
    %6048 = vmatpush1.msra.mxu0 0.0
    %6049 = vmatprep.subr.mxu0 0.0
    %6050 = vmatpush1.msra.mxu0 0.0
    %6051 = vmatprep.subr.mxu0 0.0
    %6052 = vmatpush1.msra.mxu0 0.0
    %6053 = vmatprep.subr.mxu0 0.0
    %6054 = vmatpush1.msra.mxu0 0.0
    %6055 = vmatprep.subr.mxu0 0.0
    %6056 = vmatpush1.msra.mxu0 0.0
    %6057 = vmatprep.subr.mxu0 0.0
    %6058 = vmatpush1.msra.mxu0 0.0
    %6059 = vmatprep.subr.mxu0 0.0
    %6060 = vmatpush1.msra.mxu0 0.0
    %6061 = vmatprep.subr.mxu0 0.0
    %6062 = vmatpush1.msra.mxu0 0.0
    %6063 = vmatprep.subr.mxu0 0.0
    %6064 = vmatpush1.msra.mxu0 0.0
    %6065 = vmatprep.subr.mxu0 0.0
    %6066 = vmatpush1.msra.mxu0 0.0
    %6067 = vmatprep.mubr.f32.mxu0 0.0
    %v6068 = vand.u32 %v325, 4294901760
    %v6069 = vsub.f32 %v325, %v6068
    %6070 = vmatmul.mubr.f32.gmra.mrb[0].mxu0 %v6069
    %v6071 = vpop.f32.mrb[0].mxu0
    %v6072 = vadd.f32 %v5963, %v6071
    %v6073 = vpop.f32.mrb[0].mxu0
    %v6074 = vadd.f32 %v5965, %v6073
    %6075 = vdwg.mxu0
    %v6076 = vand.u32 %v70, 4294901760
    %6077 = vmatprep.subr.mxu0 %v6076
    %v6078 = vand.u32 %v69, 4294901760
    %6079 = vmatpush1.msra.mxu0 %v6078
    %v6080 = vand.u32 %v100, 4294901760
    %6081 = vmatprep.subr.mxu0 %v6080
    %v6082 = vand.u32 %v99, 4294901760
    %6083 = vmatpush1.msra.mxu0 %v6082
    %v6084 = vand.u32 %v130, 4294901760
    %6085 = vmatprep.subr.mxu0 %v6084
    %v6086 = vand.u32 %v129, 4294901760
    %6087 = vmatpush1.msra.mxu0 %v6086
    %v6088 = vand.u32 %v160, 4294901760
    %6089 = vmatprep.subr.mxu0 %v6088
    %v6090 = vand.u32 %v159, 4294901760
    %6091 = vmatpush1.msra.mxu0 %v6090
    %v6092 = vand.u32 %v190, 4294901760
    %6093 = vmatprep.subr.mxu0 %v6092
    %v6094 = vand.u32 %v189, 4294901760
    %6095 = vmatpush1.msra.mxu0 %v6094
    %v6096 = vand.u32 %v220, 4294901760
    %6097 = vmatprep.subr.mxu0 %v6096
    %v6098 = vand.u32 %v219, 4294901760
    %6099 = vmatpush1.msra.mxu0 %v6098
    %v6100 = vand.u32 %v250, 4294901760
    %6101 = vmatprep.subr.mxu0 %v6100
    %v6102 = vand.u32 %v249, 4294901760
    %6103 = vmatpush1.msra.mxu0 %v6102
    %v6104 = vand.u32 %v280, 4294901760
    %6105 = vmatprep.subr.mxu0 %v6104
    %v6106 = vand.u32 %v279, 4294901760
    %6107 = vmatpush1.msra.mxu0 %v6106
    %v6108 = vand.u32 %v310, 4294901760
    %6109 = vmatprep.subr.mxu0 %v6108
    %v6110 = vand.u32 %v309, 4294901760
    %6111 = vmatpush1.msra.mxu0 %v6110
    %6112 = vmatprep.subr.mxu0 0.0
    %6113 = vmatpush1.msra.mxu0 0.0
    %6114 = vmatprep.subr.mxu0 0.0
    %6115 = vmatpush1.msra.mxu0 0.0
    %6116 = vmatprep.subr.mxu0 0.0
    %6117 = vmatpush1.msra.mxu0 0.0
    %6118 = vmatprep.subr.mxu0 0.0
    %6119 = vmatpush1.msra.mxu0 0.0
    %6120 = vmatprep.subr.mxu0 0.0
    %6121 = vmatpush1.msra.mxu0 0.0
    %6122 = vmatprep.subr.mxu0 0.0
    %6123 = vmatpush1.msra.mxu0 0.0
    %6124 = vmatprep.subr.mxu0 0.0
    %6125 = vmatpush1.msra.mxu0 0.0
    %6126 = vmatprep.subr.mxu0 0.0
    %6127 = vmatpush1.msra.mxu0 0.0
    %6128 = vmatprep.subr.mxu0 0.0
    %6129 = vmatpush1.msra.mxu0 0.0
    %6130 = vmatprep.subr.mxu0 0.0
    %6131 = vmatpush1.msra.mxu0 0.0
    %6132 = vmatprep.subr.mxu0 0.0
    %6133 = vmatpush1.msra.mxu0 0.0
    %6134 = vmatprep.subr.mxu0 0.0
    %6135 = vmatpush1.msra.mxu0 0.0
    %6136 = vmatprep.subr.mxu0 0.0
    %6137 = vmatpush1.msra.mxu0 0.0
    %6138 = vmatprep.subr.mxu0 0.0
    %6139 = vmatpush1.msra.mxu0 0.0
    %6140 = vmatprep.subr.mxu0 0.0
    %6141 = vmatpush1.msra.mxu0 0.0
    %6142 = vmatprep.subr.mxu0 0.0
    %6143 = vmatpush1.msra.mxu0 0.0
    %6144 = vmatprep.subr.mxu0 0.0
    %6145 = vmatpush1.msra.mxu0 0.0
    %6146 = vmatprep.subr.mxu0 0.0
    %6147 = vmatpush1.msra.mxu0 0.0
    %6148 = vmatprep.subr.mxu0 0.0
    %6149 = vmatpush1.msra.mxu0 0.0
    %6150 = vmatprep.subr.mxu0 0.0
    %6151 = vmatpush1.msra.mxu0 0.0
    %6152 = vmatprep.subr.mxu0 0.0
    %6153 = vmatpush1.msra.mxu0 0.0
    %6154 = vmatprep.subr.mxu0 0.0
    %6155 = vmatpush1.msra.mxu0 0.0
    %6156 = vmatprep.subr.mxu0 0.0
    %6157 = vmatpush1.msra.mxu0 0.0
    %6158 = vmatprep.mubr.f32.mxu0 0.0
    %v6159 = vand.u32 %v325, 4294901760
    %v6160 = vsub.f32 %v325, %v6159
    %v6161 = vand.u32 %v6160, 4294901760
    %6162 = vmatmul.mubr.f32.gmra.mrb[0].mxu0 %v6161
    %v6163 = vpop.f32.mrb[0].mxu0
    %v6164 = vadd.f32 %v6072, %v6163
    %v6165 = vpop.f32.mrb[0].mxu0
    %v6166 = vadd.f32 %v6074, %v6165
    %6167 = vdwg.mxu0
    %v6168 = vand.u32 %v70, 4294901760
    %v6169 = vsub.f32 %v70, %v6168
    %v6170 = vand.u32 %v6169, 4294901760
    %6171 = vmatprep.subr.mxu0 %v6170
    %v6172 = vand.u32 %v69, 4294901760
    %v6173 = vsub.f32 %v69, %v6172
    %v6174 = vand.u32 %v6173, 4294901760
    %6175 = vmatpush1.msra.mxu0 %v6174
    %v6176 = vand.u32 %v100, 4294901760
    %v6177 = vsub.f32 %v100, %v6176
    %v6178 = vand.u32 %v6177, 4294901760
    %6179 = vmatprep.subr.mxu0 %v6178
    %v6180 = vand.u32 %v99, 4294901760
    %v6181 = vsub.f32 %v99, %v6180
    %v6182 = vand.u32 %v6181, 4294901760
    %6183 = vmatpush1.msra.mxu0 %v6182
    %v6184 = vand.u32 %v130, 4294901760
    %v6185 = vsub.f32 %v130, %v6184
    %v6186 = vand.u32 %v6185, 4294901760
    %6187 = vmatprep.subr.mxu0 %v6186
    %v6188 = vand.u32 %v129, 4294901760
    %v6189 = vsub.f32 %v129, %v6188
    %v6190 = vand.u32 %v6189, 4294901760
    %6191 = vmatpush1.msra.mxu0 %v6190
    %v6192 = vand.u32 %v160, 4294901760
    %v6193 = vsub.f32 %v160, %v6192
    %v6194 = vand.u32 %v6193, 4294901760
    %6195 = vmatprep.subr.mxu0 %v6194
    %v6196 = vand.u32 %v159, 4294901760
    %v6197 = vsub.f32 %v159, %v6196
    %v6198 = vand.u32 %v6197, 4294901760
    %6199 = vmatpush1.msra.mxu0 %v6198
    %v6200 = vand.u32 %v190, 4294901760
    %v6201 = vsub.f32 %v190, %v6200
    %v6202 = vand.u32 %v6201, 4294901760
    %6203 = vmatprep.subr.mxu0 %v6202
    %v6204 = vand.u32 %v189, 4294901760
    %v6205 = vsub.f32 %v189, %v6204
    %v6206 = vand.u32 %v6205, 4294901760
    %6207 = vmatpush1.msra.mxu0 %v6206
    %v6208 = vand.u32 %v220, 4294901760
    %v6209 = vsub.f32 %v220, %v6208
    %v6210 = vand.u32 %v6209, 4294901760
    %6211 = vmatprep.subr.mxu0 %v6210
    %v6212 = vand.u32 %v219, 4294901760
    %v6213 = vsub.f32 %v219, %v6212
    %v6214 = vand.u32 %v6213, 4294901760
    %6215 = vmatpush1.msra.mxu0 %v6214
    %v6216 = vand.u32 %v250, 4294901760
    %v6217 = vsub.f32 %v250, %v6216
    %v6218 = vand.u32 %v6217, 4294901760
    %6219 = vmatprep.subr.mxu0 %v6218
    %v6220 = vand.u32 %v249, 4294901760
    %v6221 = vsub.f32 %v249, %v6220
    %v6222 = vand.u32 %v6221, 4294901760
    %6223 = vmatpush1.msra.mxu0 %v6222
    %v6224 = vand.u32 %v280, 4294901760
    %v6225 = vsub.f32 %v280, %v6224
    %v6226 = vand.u32 %v6225, 4294901760
    %6227 = vmatprep.subr.mxu0 %v6226
    %v6228 = vand.u32 %v279, 4294901760
    %v6229 = vsub.f32 %v279, %v6228
    %v6230 = vand.u32 %v6229, 4294901760
    %6231 = vmatpush1.msra.mxu0 %v6230
    %v6232 = vand.u32 %v310, 4294901760
    %v6233 = vsub.f32 %v310, %v6232
    %v6234 = vand.u32 %v6233, 4294901760
    %6235 = vmatprep.subr.mxu0 %v6234
    %v6236 = vand.u32 %v309, 4294901760
    %v6237 = vsub.f32 %v309, %v6236
    %v6238 = vand.u32 %v6237, 4294901760
    %6239 = vmatpush1.msra.mxu0 %v6238
    %6240 = vmatprep.subr.mxu0 0.0
    %6241 = vmatpush1.msra.mxu0 0.0
    %6242 = vmatprep.subr.mxu0 0.0
    %6243 = vmatpush1.msra.mxu0 0.0
    %6244 = vmatprep.subr.mxu0 0.0
    %6245 = vmatpush1.msra.mxu0 0.0
    %6246 = vmatprep.subr.mxu0 0.0
    %6247 = vmatpush1.msra.mxu0 0.0
    %6248 = vmatprep.subr.mxu0 0.0
    %6249 = vmatpush1.msra.mxu0 0.0
    %6250 = vmatprep.subr.mxu0 0.0
    %6251 = vmatpush1.msra.mxu0 0.0
    %6252 = vmatprep.subr.mxu0 0.0
    %6253 = vmatpush1.msra.mxu0 0.0
    %6254 = vmatprep.subr.mxu0 0.0
    %6255 = vmatpush1.msra.mxu0 0.0
    %6256 = vmatprep.subr.mxu0 0.0
    %6257 = vmatpush1.msra.mxu0 0.0
    %6258 = vmatprep.subr.mxu0 0.0
    %6259 = vmatpush1.msra.mxu0 0.0
    %6260 = vmatprep.subr.mxu0 0.0
    %6261 = vmatpush1.msra.mxu0 0.0
    %6262 = vmatprep.subr.mxu0 0.0
    %6263 = vmatpush1.msra.mxu0 0.0
    %6264 = vmatprep.subr.mxu0 0.0
    %6265 = vmatpush1.msra.mxu0 0.0
    %6266 = vmatprep.subr.mxu0 0.0
    %6267 = vmatpush1.msra.mxu0 0.0
    %6268 = vmatprep.subr.mxu0 0.0
    %6269 = vmatpush1.msra.mxu0 0.0
    %6270 = vmatprep.subr.mxu0 0.0
    %6271 = vmatpush1.msra.mxu0 0.0
    %6272 = vmatprep.subr.mxu0 0.0
    %6273 = vmatpush1.msra.mxu0 0.0
    %6274 = vmatprep.subr.mxu0 0.0
    %6275 = vmatpush1.msra.mxu0 0.0
    %6276 = vmatprep.subr.mxu0 0.0
    %6277 = vmatpush1.msra.mxu0 0.0
    %6278 = vmatprep.subr.mxu0 0.0
    %6279 = vmatpush1.msra.mxu0 0.0
    %6280 = vmatprep.subr.mxu0 0.0
    %6281 = vmatpush1.msra.mxu0 0.0
    %6282 = vmatprep.subr.mxu0 0.0
    %6283 = vmatpush1.msra.mxu0 0.0
    %6284 = vmatprep.subr.mxu0 0.0
    %6285 = vmatpush1.msra.mxu0 0.0
    %6286 = vmatprep.mubr.f32.mxu0 0.0
    %v6287 = vand.u32 %v325, 4294901760
    %6288 = vmatmul.mubr.f32.gmra.mrb[0].mxu0 %v6287
    %v6289 = vpop.f32.mrb[0].mxu0
    %v6290 = vadd.f32 %v6164, %v6289
    %v6291 = vpop.f32.mrb[0].mxu0
    %v6292 = vadd.f32 %v6166, %v6291
    %6293 = vdwg.mxu0
    %v6294 = vand.u32 %v70, 4294901760
    %6295 = vmatprep.subr.mxu0 %v6294
    %v6296 = vand.u32 %v69, 4294901760
    %6297 = vmatpush1.msra.mxu0 %v6296
    %v6298 = vand.u32 %v100, 4294901760
    %6299 = vmatprep.subr.mxu0 %v6298
    %v6300 = vand.u32 %v99, 4294901760
    %6301 = vmatpush1.msra.mxu0 %v6300
    %v6302 = vand.u32 %v130, 4294901760
    %6303 = vmatprep.subr.mxu0 %v6302
    %v6304 = vand.u32 %v129, 4294901760
    %6305 = vmatpush1.msra.mxu0 %v6304
    %v6306 = vand.u32 %v160, 4294901760
    %6307 = vmatprep.subr.mxu0 %v6306
    %v6308 = vand.u32 %v159, 4294901760
    %6309 = vmatpush1.msra.mxu0 %v6308
    %v6310 = vand.u32 %v190, 4294901760
    %6311 = vmatprep.subr.mxu0 %v6310
    %v6312 = vand.u32 %v189, 4294901760
    %6313 = vmatpush1.msra.mxu0 %v6312
    %v6314 = vand.u32 %v220, 4294901760
    %6315 = vmatprep.subr.mxu0 %v6314
    %v6316 = vand.u32 %v219, 4294901760
    %6317 = vmatpush1.msra.mxu0 %v6316
    %v6318 = vand.u32 %v250, 4294901760
    %6319 = vmatprep.subr.mxu0 %v6318
    %v6320 = vand.u32 %v249, 4294901760
    %6321 = vmatpush1.msra.mxu0 %v6320
    %v6322 = vand.u32 %v280, 4294901760
    %6323 = vmatprep.subr.mxu0 %v6322
    %v6324 = vand.u32 %v279, 4294901760
    %6325 = vmatpush1.msra.mxu0 %v6324
    %v6326 = vand.u32 %v310, 4294901760
    %6327 = vmatprep.subr.mxu0 %v6326
    %v6328 = vand.u32 %v309, 4294901760
    %6329 = vmatpush1.msra.mxu0 %v6328
    %6330 = vmatprep.subr.mxu0 0.0
    %6331 = vmatpush1.msra.mxu0 0.0
    %6332 = vmatprep.subr.mxu0 0.0
    %6333 = vmatpush1.msra.mxu0 0.0
    %6334 = vmatprep.subr.mxu0 0.0
    %6335 = vmatpush1.msra.mxu0 0.0
    %6336 = vmatprep.subr.mxu0 0.0
    %6337 = vmatpush1.msra.mxu0 0.0
    %6338 = vmatprep.subr.mxu0 0.0
    %6339 = vmatpush1.msra.mxu0 0.0
    %6340 = vmatprep.subr.mxu0 0.0
    %6341 = vmatpush1.msra.mxu0 0.0
    %6342 = vmatprep.subr.mxu0 0.0
    %6343 = vmatpush1.msra.mxu0 0.0
    %6344 = vmatprep.subr.mxu0 0.0
    %6345 = vmatpush1.msra.mxu0 0.0
    %6346 = vmatprep.subr.mxu0 0.0
    %6347 = vmatpush1.msra.mxu0 0.0
    %6348 = vmatprep.subr.mxu0 0.0
    %6349 = vmatpush1.msra.mxu0 0.0
    %6350 = vmatprep.subr.mxu0 0.0
    %6351 = vmatpush1.msra.mxu0 0.0
    %6352 = vmatprep.subr.mxu0 0.0
    %6353 = vmatpush1.msra.mxu0 0.0
    %6354 = vmatprep.subr.mxu0 0.0
    %6355 = vmatpush1.msra.mxu0 0.0
    %6356 = vmatprep.subr.mxu0 0.0
    %6357 = vmatpush1.msra.mxu0 0.0
    %6358 = vmatprep.subr.mxu0 0.0
    %6359 = vmatpush1.msra.mxu0 0.0
    %6360 = vmatprep.subr.mxu0 0.0
    %6361 = vmatpush1.msra.mxu0 0.0
    %6362 = vmatprep.subr.mxu0 0.0
    %6363 = vmatpush1.msra.mxu0 0.0
    %6364 = vmatprep.subr.mxu0 0.0
    %6365 = vmatpush1.msra.mxu0 0.0
    %6366 = vmatprep.subr.mxu0 0.0
    %6367 = vmatpush1.msra.mxu0 0.0
    %6368 = vmatprep.subr.mxu0 0.0
    %6369 = vmatpush1.msra.mxu0 0.0
    %6370 = vmatprep.subr.mxu0 0.0
    %6371 = vmatpush1.msra.mxu0 0.0
    %6372 = vmatprep.subr.mxu0 0.0
    %6373 = vmatpush1.msra.mxu0 0.0
    %6374 = vmatprep.subr.mxu0 0.0
    %6375 = vmatpush1.msra.mxu0 0.0
    %6376 = vmatprep.mubr.f32.mxu0 0.0
    %v6377 = vand.u32 %v325, 4294901760
    %6378 = vmatmul.mubr.f32.gmra.mrb[0].mxu0 %v6377
    %v6379 = vpop.f32.mrb[0].mxu0
    %v6380 = vadd.f32 %v6290, %v6379
    %v6381 = vpop.f32.mrb[0].mxu0
    %v6382 = vadd.f32 %v6292, %v6381
    %6383 = vdwg.mxu0
    %v6384 = vand.u32 %v72, 4294901760
    %6385 = vmatprep.subr.mxu0 %v6384
    %v6386 = vand.u32 %v71, 4294901760
    %6387 = vmatpush1.msra.mxu0 %v6386
    %v6388 = vand.u32 %v102, 4294901760
    %6389 = vmatprep.subr.mxu0 %v6388
    %v6390 = vand.u32 %v101, 4294901760
    %6391 = vmatpush1.msra.mxu0 %v6390
    %v6392 = vand.u32 %v132, 4294901760
    %6393 = vmatprep.subr.mxu0 %v6392
    %v6394 = vand.u32 %v131, 4294901760
    %6395 = vmatpush1.msra.mxu0 %v6394
    %v6396 = vand.u32 %v162, 4294901760
    %6397 = vmatprep.subr.mxu0 %v6396
    %v6398 = vand.u32 %v161, 4294901760
    %6399 = vmatpush1.msra.mxu0 %v6398
    %v6400 = vand.u32 %v192, 4294901760
    %6401 = vmatprep.subr.mxu0 %v6400
    %v6402 = vand.u32 %v191, 4294901760
    %6403 = vmatpush1.msra.mxu0 %v6402
    %v6404 = vand.u32 %v222, 4294901760
    %6405 = vmatprep.subr.mxu0 %v6404
    %v6406 = vand.u32 %v221, 4294901760
    %6407 = vmatpush1.msra.mxu0 %v6406
    %v6408 = vand.u32 %v252, 4294901760
    %6409 = vmatprep.subr.mxu0 %v6408
    %v6410 = vand.u32 %v251, 4294901760
    %6411 = vmatpush1.msra.mxu0 %v6410
    %v6412 = vand.u32 %v282, 4294901760
    %6413 = vmatprep.subr.mxu0 %v6412
    %v6414 = vand.u32 %v281, 4294901760
    %6415 = vmatpush1.msra.mxu0 %v6414
    %v6416 = vand.u32 %v312, 4294901760
    %6417 = vmatprep.subr.mxu0 %v6416
    %v6418 = vand.u32 %v311, 4294901760
    %6419 = vmatpush1.msra.mxu0 %v6418
    %6420 = vmatprep.subr.mxu0 0.0
    %6421 = vmatpush1.msra.mxu0 0.0
    %6422 = vmatprep.subr.mxu0 0.0
    %6423 = vmatpush1.msra.mxu0 0.0
    %6424 = vmatprep.subr.mxu0 0.0
    %6425 = vmatpush1.msra.mxu0 0.0
    %6426 = vmatprep.subr.mxu0 0.0
    %6427 = vmatpush1.msra.mxu0 0.0
    %6428 = vmatprep.subr.mxu0 0.0
    %6429 = vmatpush1.msra.mxu0 0.0
    %6430 = vmatprep.subr.mxu0 0.0
    %6431 = vmatpush1.msra.mxu0 0.0
    %6432 = vmatprep.subr.mxu0 0.0
    %6433 = vmatpush1.msra.mxu0 0.0
    %6434 = vmatprep.subr.mxu0 0.0
    %6435 = vmatpush1.msra.mxu0 0.0
    %6436 = vmatprep.subr.mxu0 0.0
    %6437 = vmatpush1.msra.mxu0 0.0
    %6438 = vmatprep.subr.mxu0 0.0
    %6439 = vmatpush1.msra.mxu0 0.0
    %6440 = vmatprep.subr.mxu0 0.0
    %6441 = vmatpush1.msra.mxu0 0.0
    %6442 = vmatprep.subr.mxu0 0.0
    %6443 = vmatpush1.msra.mxu0 0.0
    %6444 = vmatprep.subr.mxu0 0.0
    %6445 = vmatpush1.msra.mxu0 0.0
    %6446 = vmatprep.subr.mxu0 0.0
    %6447 = vmatpush1.msra.mxu0 0.0
    %6448 = vmatprep.subr.mxu0 0.0
    %6449 = vmatpush1.msra.mxu0 0.0
    %6450 = vmatprep.subr.mxu0 0.0
    %6451 = vmatpush1.msra.mxu0 0.0
    %6452 = vmatprep.subr.mxu0 0.0
    %6453 = vmatpush1.msra.mxu0 0.0
    %6454 = vmatprep.subr.mxu0 0.0
    %6455 = vmatpush1.msra.mxu0 0.0
    %6456 = vmatprep.subr.mxu0 0.0
    %6457 = vmatpush1.msra.mxu0 0.0
    %6458 = vmatprep.subr.mxu0 0.0
    %6459 = vmatpush1.msra.mxu0 0.0
    %6460 = vmatprep.subr.mxu0 0.0
    %6461 = vmatpush1.msra.mxu0 0.0
    %6462 = vmatprep.subr.mxu0 0.0
    %6463 = vmatpush1.msra.mxu0 0.0
    %6464 = vmatprep.subr.mxu0 0.0
    %6465 = vmatpush1.msra.mxu0 0.0
    %6466 = vmatprep.mubr.f32.mxu0 0.0
    %v6467 = vand.u32 %v325, 4294901760
    %v6468 = vsub.f32 %v325, %v6467
    %v6469 = vand.u32 %v6468, 4294901760
    %v6470 = vsub.f32 %v6468, %v6469
    %v6471 = vand.u32 %v6470, 4294901760
    %6472 = vmatmul.mubr.f32.gmra.mrb[0].mxu0 %v6471
    %v6473 = vpop.f32.mrb[0].mxu0
    %v6474 = vadd.f32 0.0, %v6473
    %v6475 = vpop.f32.mrb[0].mxu0
    %v6476 = vadd.f32 0.0, %v6475
    %6477 = vdwg.mxu0
    %v6478 = vand.u32 %v72, 4294901760
    %v6479 = vsub.f32 %v72, %v6478
    %v6480 = vand.u32 %v6479, 4294901760
    %v6481 = vsub.f32 %v6479, %v6480
    %v6482 = vand.u32 %v6481, 4294901760
    %6483 = vmatprep.subr.mxu0 %v6482
    %v6484 = vand.u32 %v71, 4294901760
    %v6485 = vsub.f32 %v71, %v6484
    %v6486 = vand.u32 %v6485, 4294901760
    %v6487 = vsub.f32 %v6485, %v6486
    %v6488 = vand.u32 %v6487, 4294901760
    %6489 = vmatpush1.msra.mxu0 %v6488
    %v6490 = vand.u32 %v102, 4294901760
    %v6491 = vsub.f32 %v102, %v6490
    %v6492 = vand.u32 %v6491, 4294901760
    %v6493 = vsub.f32 %v6491, %v6492
    %v6494 = vand.u32 %v6493, 4294901760
    %6495 = vmatprep.subr.mxu0 %v6494
    %v6496 = vand.u32 %v101, 4294901760
    %v6497 = vsub.f32 %v101, %v6496
    %v6498 = vand.u32 %v6497, 4294901760
    %v6499 = vsub.f32 %v6497, %v6498
    %v6500 = vand.u32 %v6499, 4294901760
    %6501 = vmatpush1.msra.mxu0 %v6500
    %v6502 = vand.u32 %v132, 4294901760
    %v6503 = vsub.f32 %v132, %v6502
    %v6504 = vand.u32 %v6503, 4294901760
    %v6505 = vsub.f32 %v6503, %v6504
    %v6506 = vand.u32 %v6505, 4294901760
    %6507 = vmatprep.subr.mxu0 %v6506
    %v6508 = vand.u32 %v131, 4294901760
    %v6509 = vsub.f32 %v131, %v6508
    %v6510 = vand.u32 %v6509, 4294901760
    %v6511 = vsub.f32 %v6509, %v6510
    %v6512 = vand.u32 %v6511, 4294901760
    %6513 = vmatpush1.msra.mxu0 %v6512
    %v6514 = vand.u32 %v162, 4294901760
    %v6515 = vsub.f32 %v162, %v6514
    %v6516 = vand.u32 %v6515, 4294901760
    %v6517 = vsub.f32 %v6515, %v6516
    %v6518 = vand.u32 %v6517, 4294901760
    %6519 = vmatprep.subr.mxu0 %v6518
    %v6520 = vand.u32 %v161, 4294901760
    %v6521 = vsub.f32 %v161, %v6520
    %v6522 = vand.u32 %v6521, 4294901760
    %v6523 = vsub.f32 %v6521, %v6522
    %v6524 = vand.u32 %v6523, 4294901760
    %6525 = vmatpush1.msra.mxu0 %v6524
    %v6526 = vand.u32 %v192, 4294901760
    %v6527 = vsub.f32 %v192, %v6526
    %v6528 = vand.u32 %v6527, 4294901760
    %v6529 = vsub.f32 %v6527, %v6528
    %v6530 = vand.u32 %v6529, 4294901760
    %6531 = vmatprep.subr.mxu0 %v6530
    %v6532 = vand.u32 %v191, 4294901760
    %v6533 = vsub.f32 %v191, %v6532
    %v6534 = vand.u32 %v6533, 4294901760
    %v6535 = vsub.f32 %v6533, %v6534
    %v6536 = vand.u32 %v6535, 4294901760
    %6537 = vmatpush1.msra.mxu0 %v6536
    %v6538 = vand.u32 %v222, 4294901760
    %v6539 = vsub.f32 %v222, %v6538
    %v6540 = vand.u32 %v6539, 4294901760
    %v6541 = vsub.f32 %v6539, %v6540
    %v6542 = vand.u32 %v6541, 4294901760
    %6543 = vmatprep.subr.mxu0 %v6542
    %v6544 = vand.u32 %v221, 4294901760
    %v6545 = vsub.f32 %v221, %v6544
    %v6546 = vand.u32 %v6545, 4294901760
    %v6547 = vsub.f32 %v6545, %v6546
    %v6548 = vand.u32 %v6547, 4294901760
    %6549 = vmatpush1.msra.mxu0 %v6548
    %v6550 = vand.u32 %v252, 4294901760
    %v6551 = vsub.f32 %v252, %v6550
    %v6552 = vand.u32 %v6551, 4294901760
    %v6553 = vsub.f32 %v6551, %v6552
    %v6554 = vand.u32 %v6553, 4294901760
    %6555 = vmatprep.subr.mxu0 %v6554
    %v6556 = vand.u32 %v251, 4294901760
    %v6557 = vsub.f32 %v251, %v6556
    %v6558 = vand.u32 %v6557, 4294901760
    %v6559 = vsub.f32 %v6557, %v6558
    %v6560 = vand.u32 %v6559, 4294901760
    %6561 = vmatpush1.msra.mxu0 %v6560
    %v6562 = vand.u32 %v282, 4294901760
    %v6563 = vsub.f32 %v282, %v6562
    %v6564 = vand.u32 %v6563, 4294901760
    %v6565 = vsub.f32 %v6563, %v6564
    %v6566 = vand.u32 %v6565, 4294901760
    %6567 = vmatprep.subr.mxu0 %v6566
    %v6568 = vand.u32 %v281, 4294901760
    %v6569 = vsub.f32 %v281, %v6568
    %v6570 = vand.u32 %v6569, 4294901760
    %v6571 = vsub.f32 %v6569, %v6570
    %v6572 = vand.u32 %v6571, 4294901760
    %6573 = vmatpush1.msra.mxu0 %v6572
    %v6574 = vand.u32 %v312, 4294901760
    %v6575 = vsub.f32 %v312, %v6574
    %v6576 = vand.u32 %v6575, 4294901760
    %v6577 = vsub.f32 %v6575, %v6576
    %v6578 = vand.u32 %v6577, 4294901760
    %6579 = vmatprep.subr.mxu0 %v6578
    %v6580 = vand.u32 %v311, 4294901760
    %v6581 = vsub.f32 %v311, %v6580
    %v6582 = vand.u32 %v6581, 4294901760
    %v6583 = vsub.f32 %v6581, %v6582
    %v6584 = vand.u32 %v6583, 4294901760
    %6585 = vmatpush1.msra.mxu0 %v6584
    %6586 = vmatprep.subr.mxu0 0.0
    %6587 = vmatpush1.msra.mxu0 0.0
    %6588 = vmatprep.subr.mxu0 0.0
    %6589 = vmatpush1.msra.mxu0 0.0
    %6590 = vmatprep.subr.mxu0 0.0
    %6591 = vmatpush1.msra.mxu0 0.0
    %6592 = vmatprep.subr.mxu0 0.0
    %6593 = vmatpush1.msra.mxu0 0.0
    %6594 = vmatprep.subr.mxu0 0.0
    %6595 = vmatpush1.msra.mxu0 0.0
    %6596 = vmatprep.subr.mxu0 0.0
    %6597 = vmatpush1.msra.mxu0 0.0
    %6598 = vmatprep.subr.mxu0 0.0
    %6599 = vmatpush1.msra.mxu0 0.0
    %6600 = vmatprep.subr.mxu0 0.0
    %6601 = vmatpush1.msra.mxu0 0.0
    %6602 = vmatprep.subr.mxu0 0.0
    %6603 = vmatpush1.msra.mxu0 0.0
    %6604 = vmatprep.subr.mxu0 0.0
    %6605 = vmatpush1.msra.mxu0 0.0
    %6606 = vmatprep.subr.mxu0 0.0
    %6607 = vmatpush1.msra.mxu0 0.0
    %6608 = vmatprep.subr.mxu0 0.0
    %6609 = vmatpush1.msra.mxu0 0.0
    %6610 = vmatprep.subr.mxu0 0.0
    %6611 = vmatpush1.msra.mxu0 0.0
    %6612 = vmatprep.subr.mxu0 0.0
    %6613 = vmatpush1.msra.mxu0 0.0
    %6614 = vmatprep.subr.mxu0 0.0
    %6615 = vmatpush1.msra.mxu0 0.0
    %6616 = vmatprep.subr.mxu0 0.0
    %6617 = vmatpush1.msra.mxu0 0.0
    %6618 = vmatprep.subr.mxu0 0.0
    %6619 = vmatpush1.msra.mxu0 0.0
    %6620 = vmatprep.subr.mxu0 0.0
    %6621 = vmatpush1.msra.mxu0 0.0
    %6622 = vmatprep.subr.mxu0 0.0
    %6623 = vmatpush1.msra.mxu0 0.0
    %6624 = vmatprep.subr.mxu0 0.0
    %6625 = vmatpush1.msra.mxu0 0.0
    %6626 = vmatprep.subr.mxu0 0.0
    %6627 = vmatpush1.msra.mxu0 0.0
    %6628 = vmatprep.subr.mxu0 0.0
    %6629 = vmatpush1.msra.mxu0 0.0
    %6630 = vmatprep.subr.mxu0 0.0
    %6631 = vmatpush1.msra.mxu0 0.0
    %6632 = vmatprep.mubr.f32.mxu0 0.0
    %v6633 = vand.u32 %v325, 4294901760
    %6634 = vmatmul.mubr.f32.gmra.mrb[0].mxu0 %v6633
    %v6635 = vpop.f32.mrb[0].mxu0
    %v6636 = vadd.f32 %v6474, %v6635
    %v6637 = vpop.f32.mrb[0].mxu0
    %v6638 = vadd.f32 %v6476, %v6637
    %6639 = vdwg.mxu0
    %v6640 = vand.u32 %v72, 4294901760
    %v6641 = vsub.f32 %v72, %v6640
    %6642 = vmatprep.subr.mxu0 %v6641
    %v6643 = vand.u32 %v71, 4294901760
    %v6644 = vsub.f32 %v71, %v6643
    %6645 = vmatpush1.msra.mxu0 %v6644
    %v6646 = vand.u32 %v102, 4294901760
    %v6647 = vsub.f32 %v102, %v6646
    %6648 = vmatprep.subr.mxu0 %v6647
    %v6649 = vand.u32 %v101, 4294901760
    %v6650 = vsub.f32 %v101, %v6649
    %6651 = vmatpush1.msra.mxu0 %v6650
    %v6652 = vand.u32 %v132, 4294901760
    %v6653 = vsub.f32 %v132, %v6652
    %6654 = vmatprep.subr.mxu0 %v6653
    %v6655 = vand.u32 %v131, 4294901760
    %v6656 = vsub.f32 %v131, %v6655
    %6657 = vmatpush1.msra.mxu0 %v6656
    %v6658 = vand.u32 %v162, 4294901760
    %v6659 = vsub.f32 %v162, %v6658
    %6660 = vmatprep.subr.mxu0 %v6659
    %v6661 = vand.u32 %v161, 4294901760
    %v6662 = vsub.f32 %v161, %v6661
    %6663 = vmatpush1.msra.mxu0 %v6662
    %v6664 = vand.u32 %v192, 4294901760
    %v6665 = vsub.f32 %v192, %v6664
    %6666 = vmatprep.subr.mxu0 %v6665
    %v6667 = vand.u32 %v191, 4294901760
    %v6668 = vsub.f32 %v191, %v6667
    %6669 = vmatpush1.msra.mxu0 %v6668
    %v6670 = vand.u32 %v222, 4294901760
    %v6671 = vsub.f32 %v222, %v6670
    %6672 = vmatprep.subr.mxu0 %v6671
    %v6673 = vand.u32 %v221, 4294901760
    %v6674 = vsub.f32 %v221, %v6673
    %6675 = vmatpush1.msra.mxu0 %v6674
    %v6676 = vand.u32 %v252, 4294901760
    %v6677 = vsub.f32 %v252, %v6676
    %6678 = vmatprep.subr.mxu0 %v6677
    %v6679 = vand.u32 %v251, 4294901760
    %v6680 = vsub.f32 %v251, %v6679
    %6681 = vmatpush1.msra.mxu0 %v6680
    %v6682 = vand.u32 %v282, 4294901760
    %v6683 = vsub.f32 %v282, %v6682
    %6684 = vmatprep.subr.mxu0 %v6683
    %v6685 = vand.u32 %v281, 4294901760
    %v6686 = vsub.f32 %v281, %v6685
    %6687 = vmatpush1.msra.mxu0 %v6686
    %v6688 = vand.u32 %v312, 4294901760
    %v6689 = vsub.f32 %v312, %v6688
    %6690 = vmatprep.subr.mxu0 %v6689
    %v6691 = vand.u32 %v311, 4294901760
    %v6692 = vsub.f32 %v311, %v6691
    %6693 = vmatpush1.msra.mxu0 %v6692
    %6694 = vmatprep.subr.mxu0 0.0
    %6695 = vmatpush1.msra.mxu0 0.0
    %6696 = vmatprep.subr.mxu0 0.0
    %6697 = vmatpush1.msra.mxu0 0.0
    %6698 = vmatprep.subr.mxu0 0.0
    %6699 = vmatpush1.msra.mxu0 0.0
    %6700 = vmatprep.subr.mxu0 0.0
    %6701 = vmatpush1.msra.mxu0 0.0
    %6702 = vmatprep.subr.mxu0 0.0
    %6703 = vmatpush1.msra.mxu0 0.0
    %6704 = vmatprep.subr.mxu0 0.0
    %6705 = vmatpush1.msra.mxu0 0.0
    %6706 = vmatprep.subr.mxu0 0.0
    %6707 = vmatpush1.msra.mxu0 0.0
    %6708 = vmatprep.subr.mxu0 0.0
    %6709 = vmatpush1.msra.mxu0 0.0
    %6710 = vmatprep.subr.mxu0 0.0
    %6711 = vmatpush1.msra.mxu0 0.0
    %6712 = vmatprep.subr.mxu0 0.0
    %6713 = vmatpush1.msra.mxu0 0.0
    %6714 = vmatprep.subr.mxu0 0.0
    %6715 = vmatpush1.msra.mxu0 0.0
    %6716 = vmatprep.subr.mxu0 0.0
    %6717 = vmatpush1.msra.mxu0 0.0
    %6718 = vmatprep.subr.mxu0 0.0
    %6719 = vmatpush1.msra.mxu0 0.0
    %6720 = vmatprep.subr.mxu0 0.0
    %6721 = vmatpush1.msra.mxu0 0.0
    %6722 = vmatprep.subr.mxu0 0.0
    %6723 = vmatpush1.msra.mxu0 0.0
    %6724 = vmatprep.subr.mxu0 0.0
    %6725 = vmatpush1.msra.mxu0 0.0
    %6726 = vmatprep.subr.mxu0 0.0
    %6727 = vmatpush1.msra.mxu0 0.0
    %6728 = vmatprep.subr.mxu0 0.0
    %6729 = vmatpush1.msra.mxu0 0.0
    %6730 = vmatprep.subr.mxu0 0.0
    %6731 = vmatpush1.msra.mxu0 0.0
    %6732 = vmatprep.subr.mxu0 0.0
    %6733 = vmatpush1.msra.mxu0 0.0
    %6734 = vmatprep.subr.mxu0 0.0
    %6735 = vmatpush1.msra.mxu0 0.0
    %6736 = vmatprep.subr.mxu0 0.0
    %6737 = vmatpush1.msra.mxu0 0.0
    %6738 = vmatprep.subr.mxu0 0.0
    %6739 = vmatpush1.msra.mxu0 0.0
    %6740 = vmatprep.mubr.f32.mxu0 0.0
    %v6741 = vand.u32 %v325, 4294901760
    %v6742 = vsub.f32 %v325, %v6741
    %6743 = vmatmul.mubr.f32.gmra.mrb[0].mxu0 %v6742
    %v6744 = vpop.f32.mrb[0].mxu0
    %v6745 = vadd.f32 %v6636, %v6744
    %v6746 = vpop.f32.mrb[0].mxu0
    %v6747 = vadd.f32 %v6638, %v6746
    %6748 = vdwg.mxu0
    %v6749 = vand.u32 %v72, 4294901760
    %6750 = vmatprep.subr.mxu0 %v6749
    %v6751 = vand.u32 %v71, 4294901760
    %6752 = vmatpush1.msra.mxu0 %v6751
    %v6753 = vand.u32 %v102, 4294901760
    %6754 = vmatprep.subr.mxu0 %v6753
    %v6755 = vand.u32 %v101, 4294901760
    %6756 = vmatpush1.msra.mxu0 %v6755
    %v6757 = vand.u32 %v132, 4294901760
    %6758 = vmatprep.subr.mxu0 %v6757
    %v6759 = vand.u32 %v131, 4294901760
    %6760 = vmatpush1.msra.mxu0 %v6759
    %v6761 = vand.u32 %v162, 4294901760
    %6762 = vmatprep.subr.mxu0 %v6761
    %v6763 = vand.u32 %v161, 4294901760
    %6764 = vmatpush1.msra.mxu0 %v6763
    %v6765 = vand.u32 %v192, 4294901760
    %6766 = vmatprep.subr.mxu0 %v6765
    %v6767 = vand.u32 %v191, 4294901760
    %6768 = vmatpush1.msra.mxu0 %v6767
    %v6769 = vand.u32 %v222, 4294901760
    %6770 = vmatprep.subr.mxu0 %v6769
    %v6771 = vand.u32 %v221, 4294901760
    %6772 = vmatpush1.msra.mxu0 %v6771
    %v6773 = vand.u32 %v252, 4294901760
    %6774 = vmatprep.subr.mxu0 %v6773
    %v6775 = vand.u32 %v251, 4294901760
    %6776 = vmatpush1.msra.mxu0 %v6775
    %v6777 = vand.u32 %v282, 4294901760
    %6778 = vmatprep.subr.mxu0 %v6777
    %v6779 = vand.u32 %v281, 4294901760
    %6780 = vmatpush1.msra.mxu0 %v6779
    %v6781 = vand.u32 %v312, 4294901760
    %6782 = vmatprep.subr.mxu0 %v6781
    %v6783 = vand.u32 %v311, 4294901760
    %6784 = vmatpush1.msra.mxu0 %v6783
    %6785 = vmatprep.subr.mxu0 0.0
    %6786 = vmatpush1.msra.mxu0 0.0
    %6787 = vmatprep.subr.mxu0 0.0
    %6788 = vmatpush1.msra.mxu0 0.0
    %6789 = vmatprep.subr.mxu0 0.0
    %6790 = vmatpush1.msra.mxu0 0.0
    %6791 = vmatprep.subr.mxu0 0.0
    %6792 = vmatpush1.msra.mxu0 0.0
    %6793 = vmatprep.subr.mxu0 0.0
    %6794 = vmatpush1.msra.mxu0 0.0
    %6795 = vmatprep.subr.mxu0 0.0
    %6796 = vmatpush1.msra.mxu0 0.0
    %6797 = vmatprep.subr.mxu0 0.0
    %6798 = vmatpush1.msra.mxu0 0.0
    %6799 = vmatprep.subr.mxu0 0.0
    %6800 = vmatpush1.msra.mxu0 0.0
    %6801 = vmatprep.subr.mxu0 0.0
    %6802 = vmatpush1.msra.mxu0 0.0
    %6803 = vmatprep.subr.mxu0 0.0
    %6804 = vmatpush1.msra.mxu0 0.0
    %6805 = vmatprep.subr.mxu0 0.0
    %6806 = vmatpush1.msra.mxu0 0.0
    %6807 = vmatprep.subr.mxu0 0.0
    %6808 = vmatpush1.msra.mxu0 0.0
    %6809 = vmatprep.subr.mxu0 0.0
    %6810 = vmatpush1.msra.mxu0 0.0
    %6811 = vmatprep.subr.mxu0 0.0
    %6812 = vmatpush1.msra.mxu0 0.0
    %6813 = vmatprep.subr.mxu0 0.0
    %6814 = vmatpush1.msra.mxu0 0.0
    %6815 = vmatprep.subr.mxu0 0.0
    %6816 = vmatpush1.msra.mxu0 0.0
    %6817 = vmatprep.subr.mxu0 0.0
    %6818 = vmatpush1.msra.mxu0 0.0
    %6819 = vmatprep.subr.mxu0 0.0
    %6820 = vmatpush1.msra.mxu0 0.0
    %6821 = vmatprep.subr.mxu0 0.0
    %6822 = vmatpush1.msra.mxu0 0.0
    %6823 = vmatprep.subr.mxu0 0.0
    %6824 = vmatpush1.msra.mxu0 0.0
    %6825 = vmatprep.subr.mxu0 0.0
    %6826 = vmatpush1.msra.mxu0 0.0
    %6827 = vmatprep.subr.mxu0 0.0
    %6828 = vmatpush1.msra.mxu0 0.0
    %6829 = vmatprep.subr.mxu0 0.0
    %6830 = vmatpush1.msra.mxu0 0.0
    %6831 = vmatprep.mubr.f32.mxu0 0.0
    %v6832 = vand.u32 %v325, 4294901760
    %v6833 = vsub.f32 %v325, %v6832
    %v6834 = vand.u32 %v6833, 4294901760
    %6835 = vmatmul.mubr.f32.gmra.mrb[0].mxu0 %v6834
    %v6836 = vpop.f32.mrb[0].mxu0
    %v6837 = vadd.f32 %v6745, %v6836
    %v6838 = vpop.f32.mrb[0].mxu0
    %v6839 = vadd.f32 %v6747, %v6838
    %6840 = vdwg.mxu0
    %v6841 = vand.u32 %v72, 4294901760
    %v6842 = vsub.f32 %v72, %v6841
    %v6843 = vand.u32 %v6842, 4294901760
    %6844 = vmatprep.subr.mxu0 %v6843
    %v6845 = vand.u32 %v71, 4294901760
    %v6846 = vsub.f32 %v71, %v6845
    %v6847 = vand.u32 %v6846, 4294901760
    %6848 = vmatpush1.msra.mxu0 %v6847
    %v6849 = vand.u32 %v102, 4294901760
    %v6850 = vsub.f32 %v102, %v6849
    %v6851 = vand.u32 %v6850, 4294901760
    %6852 = vmatprep.subr.mxu0 %v6851
    %v6853 = vand.u32 %v101, 4294901760
    %v6854 = vsub.f32 %v101, %v6853
    %v6855 = vand.u32 %v6854, 4294901760
    %6856 = vmatpush1.msra.mxu0 %v6855
    %v6857 = vand.u32 %v132, 4294901760
    %v6858 = vsub.f32 %v132, %v6857
    %v6859 = vand.u32 %v6858, 4294901760
    %6860 = vmatprep.subr.mxu0 %v6859
    %v6861 = vand.u32 %v131, 4294901760
    %v6862 = vsub.f32 %v131, %v6861
    %v6863 = vand.u32 %v6862, 4294901760
    %6864 = vmatpush1.msra.mxu0 %v6863
    %v6865 = vand.u32 %v162, 4294901760
    %v6866 = vsub.f32 %v162, %v6865
    %v6867 = vand.u32 %v6866, 4294901760
    %6868 = vmatprep.subr.mxu0 %v6867
    %v6869 = vand.u32 %v161, 4294901760
    %v6870 = vsub.f32 %v161, %v6869
    %v6871 = vand.u32 %v6870, 4294901760
    %6872 = vmatpush1.msra.mxu0 %v6871
    %v6873 = vand.u32 %v192, 4294901760
    %v6874 = vsub.f32 %v192, %v6873
    %v6875 = vand.u32 %v6874, 4294901760
    %6876 = vmatprep.subr.mxu0 %v6875
    %v6877 = vand.u32 %v191, 4294901760
    %v6878 = vsub.f32 %v191, %v6877
    %v6879 = vand.u32 %v6878, 4294901760
    %6880 = vmatpush1.msra.mxu0 %v6879
    %v6881 = vand.u32 %v222, 4294901760
    %v6882 = vsub.f32 %v222, %v6881
    %v6883 = vand.u32 %v6882, 4294901760
    %6884 = vmatprep.subr.mxu0 %v6883
    %v6885 = vand.u32 %v221, 4294901760
    %v6886 = vsub.f32 %v221, %v6885
    %v6887 = vand.u32 %v6886, 4294901760
    %6888 = vmatpush1.msra.mxu0 %v6887
    %v6889 = vand.u32 %v252, 4294901760
    %v6890 = vsub.f32 %v252, %v6889
    %v6891 = vand.u32 %v6890, 4294901760
    %6892 = vmatprep.subr.mxu0 %v6891
    %v6893 = vand.u32 %v251, 4294901760
    %v6894 = vsub.f32 %v251, %v6893
    %v6895 = vand.u32 %v6894, 4294901760
    %6896 = vmatpush1.msra.mxu0 %v6895
    %v6897 = vand.u32 %v282, 4294901760
    %v6898 = vsub.f32 %v282, %v6897
    %v6899 = vand.u32 %v6898, 4294901760
    %6900 = vmatprep.subr.mxu0 %v6899
    %v6901 = vand.u32 %v281, 4294901760
    %v6902 = vsub.f32 %v281, %v6901
    %v6903 = vand.u32 %v6902, 4294901760
    %6904 = vmatpush1.msra.mxu0 %v6903
    %v6905 = vand.u32 %v312, 4294901760
    %v6906 = vsub.f32 %v312, %v6905
    %v6907 = vand.u32 %v6906, 4294901760
    %6908 = vmatprep.subr.mxu0 %v6907
    %v6909 = vand.u32 %v311, 4294901760
    %v6910 = vsub.f32 %v311, %v6909
    %v6911 = vand.u32 %v6910, 4294901760
    %6912 = vmatpush1.msra.mxu0 %v6911
    %6913 = vmatprep.subr.mxu0 0.0
    %6914 = vmatpush1.msra.mxu0 0.0
    %6915 = vmatprep.subr.mxu0 0.0
    %6916 = vmatpush1.msra.mxu0 0.0
    %6917 = vmatprep.subr.mxu0 0.0
    %6918 = vmatpush1.msra.mxu0 0.0
    %6919 = vmatprep.subr.mxu0 0.0
    %6920 = vmatpush1.msra.mxu0 0.0
    %6921 = vmatprep.subr.mxu0 0.0
    %6922 = vmatpush1.msra.mxu0 0.0
    %6923 = vmatprep.subr.mxu0 0.0
    %6924 = vmatpush1.msra.mxu0 0.0
    %6925 = vmatprep.subr.mxu0 0.0
    %6926 = vmatpush1.msra.mxu0 0.0
    %6927 = vmatprep.subr.mxu0 0.0
    %6928 = vmatpush1.msra.mxu0 0.0
    %6929 = vmatprep.subr.mxu0 0.0
    %6930 = vmatpush1.msra.mxu0 0.0
    %6931 = vmatprep.subr.mxu0 0.0
    %6932 = vmatpush1.msra.mxu0 0.0
    %6933 = vmatprep.subr.mxu0 0.0
    %6934 = vmatpush1.msra.mxu0 0.0
    %6935 = vmatprep.subr.mxu0 0.0
    %6936 = vmatpush1.msra.mxu0 0.0
    %6937 = vmatprep.subr.mxu0 0.0
    %6938 = vmatpush1.msra.mxu0 0.0
    %6939 = vmatprep.subr.mxu0 0.0
    %6940 = vmatpush1.msra.mxu0 0.0
    %6941 = vmatprep.subr.mxu0 0.0
    %6942 = vmatpush1.msra.mxu0 0.0
    %6943 = vmatprep.subr.mxu0 0.0
    %6944 = vmatpush1.msra.mxu0 0.0
    %6945 = vmatprep.subr.mxu0 0.0
    %6946 = vmatpush1.msra.mxu0 0.0
    %6947 = vmatprep.subr.mxu0 0.0
    %6948 = vmatpush1.msra.mxu0 0.0
    %6949 = vmatprep.subr.mxu0 0.0
    %6950 = vmatpush1.msra.mxu0 0.0
    %6951 = vmatprep.subr.mxu0 0.0
    %6952 = vmatpush1.msra.mxu0 0.0
    %6953 = vmatprep.subr.mxu0 0.0
    %6954 = vmatpush1.msra.mxu0 0.0
    %6955 = vmatprep.subr.mxu0 0.0
    %6956 = vmatpush1.msra.mxu0 0.0
    %6957 = vmatprep.subr.mxu0 0.0
    %6958 = vmatpush1.msra.mxu0 0.0
    %6959 = vmatprep.mubr.f32.mxu0 0.0
    %v6960 = vand.u32 %v325, 4294901760
    %6961 = vmatmul.mubr.f32.gmra.mrb[0].mxu0 %v6960
    %v6962 = vpop.f32.mrb[0].mxu0
    %v6963 = vadd.f32 %v6837, %v6962
    %v6964 = vpop.f32.mrb[0].mxu0
    %v6965 = vadd.f32 %v6839, %v6964
    %6966 = vdwg.mxu0
    %v6967 = vand.u32 %v72, 4294901760
    %6968 = vmatprep.subr.mxu0 %v6967
    %v6969 = vand.u32 %v71, 4294901760
    %6970 = vmatpush1.msra.mxu0 %v6969
    %v6971 = vand.u32 %v102, 4294901760
    %6972 = vmatprep.subr.mxu0 %v6971
    %v6973 = vand.u32 %v101, 4294901760
    %6974 = vmatpush1.msra.mxu0 %v6973
    %v6975 = vand.u32 %v132, 4294901760
    %6976 = vmatprep.subr.mxu0 %v6975
    %v6977 = vand.u32 %v131, 4294901760
    %6978 = vmatpush1.msra.mxu0 %v6977
    %v6979 = vand.u32 %v162, 4294901760
    %6980 = vmatprep.subr.mxu0 %v6979
    %v6981 = vand.u32 %v161, 4294901760
    %6982 = vmatpush1.msra.mxu0 %v6981
    %v6983 = vand.u32 %v192, 4294901760
    %6984 = vmatprep.subr.mxu0 %v6983
    %v6985 = vand.u32 %v191, 4294901760
    %6986 = vmatpush1.msra.mxu0 %v6985
    %v6987 = vand.u32 %v222, 4294901760
    %6988 = vmatprep.subr.mxu0 %v6987
    %v6989 = vand.u32 %v221, 4294901760
    %6990 = vmatpush1.msra.mxu0 %v6989
    %v6991 = vand.u32 %v252, 4294901760
    %6992 = vmatprep.subr.mxu0 %v6991
    %v6993 = vand.u32 %v251, 4294901760
    %6994 = vmatpush1.msra.mxu0 %v6993
    %v6995 = vand.u32 %v282, 4294901760
    %6996 = vmatprep.subr.mxu0 %v6995
    %v6997 = vand.u32 %v281, 4294901760
    %6998 = vmatpush1.msra.mxu0 %v6997
    %v6999 = vand.u32 %v312, 4294901760
    %7000 = vmatprep.subr.mxu0 %v6999
    %v7001 = vand.u32 %v311, 4294901760
    %7002 = vmatpush1.msra.mxu0 %v7001
    %7003 = vmatprep.subr.mxu0 0.0
    %7004 = vmatpush1.msra.mxu0 0.0
    %7005 = vmatprep.subr.mxu0 0.0
    %7006 = vmatpush1.msra.mxu0 0.0
    %7007 = vmatprep.subr.mxu0 0.0
    %7008 = vmatpush1.msra.mxu0 0.0
    %7009 = vmatprep.subr.mxu0 0.0
    %7010 = vmatpush1.msra.mxu0 0.0
    %7011 = vmatprep.subr.mxu0 0.0
    %7012 = vmatpush1.msra.mxu0 0.0
    %7013 = vmatprep.subr.mxu0 0.0
    %7014 = vmatpush1.msra.mxu0 0.0
    %7015 = vmatprep.subr.mxu0 0.0
    %7016 = vmatpush1.msra.mxu0 0.0
    %7017 = vmatprep.subr.mxu0 0.0
    %7018 = vmatpush1.msra.mxu0 0.0
    %7019 = vmatprep.subr.mxu0 0.0
    %7020 = vmatpush1.msra.mxu0 0.0
    %7021 = vmatprep.subr.mxu0 0.0
    %7022 = vmatpush1.msra.mxu0 0.0
    %7023 = vmatprep.subr.mxu0 0.0
    %7024 = vmatpush1.msra.mxu0 0.0
    %7025 = vmatprep.subr.mxu0 0.0
    %7026 = vmatpush1.msra.mxu0 0.0
    %7027 = vmatprep.subr.mxu0 0.0
    %7028 = vmatpush1.msra.mxu0 0.0
    %7029 = vmatprep.subr.mxu0 0.0
    %7030 = vmatpush1.msra.mxu0 0.0
    %7031 = vmatprep.subr.mxu0 0.0
    %7032 = vmatpush1.msra.mxu0 0.0
    %7033 = vmatprep.subr.mxu0 0.0
    %7034 = vmatpush1.msra.mxu0 0.0
    %7035 = vmatprep.subr.mxu0 0.0
    %7036 = vmatpush1.msra.mxu0 0.0
    %7037 = vmatprep.subr.mxu0 0.0
    %7038 = vmatpush1.msra.mxu0 0.0
    %7039 = vmatprep.subr.mxu0 0.0
    %7040 = vmatpush1.msra.mxu0 0.0
    %7041 = vmatprep.subr.mxu0 0.0
    %7042 = vmatpush1.msra.mxu0 0.0
    %7043 = vmatprep.subr.mxu0 0.0
    %7044 = vmatpush1.msra.mxu0 0.0
    %7045 = vmatprep.subr.mxu0 0.0
    %7046 = vmatpush1.msra.mxu0 0.0
    %7047 = vmatprep.subr.mxu0 0.0
    %7048 = vmatpush1.msra.mxu0 0.0
    %7049 = vmatprep.mubr.f32.mxu0 0.0
    %v7050 = vand.u32 %v325, 4294901760
    %7051 = vmatmul.mubr.f32.gmra.mrb[0].mxu0 %v7050
    %v7052 = vpop.f32.mrb[0].mxu0
    %v7053 = vadd.f32 %v6963, %v7052
    %v7054 = vpop.f32.mrb[0].mxu0
    %v7055 = vadd.f32 %v6965, %v7054
    %7056 = vdwg.mxu0
    %v7057 = vand.u32 %v74, 4294901760
    %7058 = vmatprep.subr.mxu0 %v7057
    %v7059 = vand.u32 %v73, 4294901760
    %7060 = vmatpush1.msra.mxu0 %v7059
    %v7061 = vand.u32 %v104, 4294901760
    %7062 = vmatprep.subr.mxu0 %v7061
    %v7063 = vand.u32 %v103, 4294901760
    %7064 = vmatpush1.msra.mxu0 %v7063
    %v7065 = vand.u32 %v134, 4294901760
    %7066 = vmatprep.subr.mxu0 %v7065
    %v7067 = vand.u32 %v133, 4294901760
    %7068 = vmatpush1.msra.mxu0 %v7067
    %v7069 = vand.u32 %v164, 4294901760
    %7070 = vmatprep.subr.mxu0 %v7069
    %v7071 = vand.u32 %v163, 4294901760
    %7072 = vmatpush1.msra.mxu0 %v7071
    %v7073 = vand.u32 %v194, 4294901760
    %7074 = vmatprep.subr.mxu0 %v7073
    %v7075 = vand.u32 %v193, 4294901760
    %7076 = vmatpush1.msra.mxu0 %v7075
    %v7077 = vand.u32 %v224, 4294901760
    %7078 = vmatprep.subr.mxu0 %v7077
    %v7079 = vand.u32 %v223, 4294901760
    %7080 = vmatpush1.msra.mxu0 %v7079
    %v7081 = vand.u32 %v254, 4294901760
    %7082 = vmatprep.subr.mxu0 %v7081
    %v7083 = vand.u32 %v253, 4294901760
    %7084 = vmatpush1.msra.mxu0 %v7083
    %v7085 = vand.u32 %v284, 4294901760
    %7086 = vmatprep.subr.mxu0 %v7085
    %v7087 = vand.u32 %v283, 4294901760
    %7088 = vmatpush1.msra.mxu0 %v7087
    %v7089 = vand.u32 %v314, 4294901760
    %7090 = vmatprep.subr.mxu0 %v7089
    %v7091 = vand.u32 %v313, 4294901760
    %7092 = vmatpush1.msra.mxu0 %v7091
    %7093 = vmatprep.subr.mxu0 0.0
    %7094 = vmatpush1.msra.mxu0 0.0
    %7095 = vmatprep.subr.mxu0 0.0
    %7096 = vmatpush1.msra.mxu0 0.0
    %7097 = vmatprep.subr.mxu0 0.0
    %7098 = vmatpush1.msra.mxu0 0.0
    %7099 = vmatprep.subr.mxu0 0.0
    %7100 = vmatpush1.msra.mxu0 0.0
    %7101 = vmatprep.subr.mxu0 0.0
    %7102 = vmatpush1.msra.mxu0 0.0
    %7103 = vmatprep.subr.mxu0 0.0
    %7104 = vmatpush1.msra.mxu0 0.0
    %7105 = vmatprep.subr.mxu0 0.0
    %7106 = vmatpush1.msra.mxu0 0.0
    %7107 = vmatprep.subr.mxu0 0.0
    %7108 = vmatpush1.msra.mxu0 0.0
    %7109 = vmatprep.subr.mxu0 0.0
    %7110 = vmatpush1.msra.mxu0 0.0
    %7111 = vmatprep.subr.mxu0 0.0
    %7112 = vmatpush1.msra.mxu0 0.0
    %7113 = vmatprep.subr.mxu0 0.0
    %7114 = vmatpush1.msra.mxu0 0.0
    %7115 = vmatprep.subr.mxu0 0.0
    %7116 = vmatpush1.msra.mxu0 0.0
    %7117 = vmatprep.subr.mxu0 0.0
    %7118 = vmatpush1.msra.mxu0 0.0
    %7119 = vmatprep.subr.mxu0 0.0
    %7120 = vmatpush1.msra.mxu0 0.0
    %7121 = vmatprep.subr.mxu0 0.0
    %7122 = vmatpush1.msra.mxu0 0.0
    %7123 = vmatprep.subr.mxu0 0.0
    %7124 = vmatpush1.msra.mxu0 0.0
    %7125 = vmatprep.subr.mxu0 0.0
    %7126 = vmatpush1.msra.mxu0 0.0
    %7127 = vmatprep.subr.mxu0 0.0
    %7128 = vmatpush1.msra.mxu0 0.0
    %7129 = vmatprep.subr.mxu0 0.0
    %7130 = vmatpush1.msra.mxu0 0.0
    %7131 = vmatprep.subr.mxu0 0.0
    %7132 = vmatpush1.msra.mxu0 0.0
    %7133 = vmatprep.subr.mxu0 0.0
    %7134 = vmatpush1.msra.mxu0 0.0
    %7135 = vmatprep.subr.mxu0 0.0
    %7136 = vmatpush1.msra.mxu0 0.0
    %7137 = vmatprep.subr.mxu0 0.0
    %7138 = vmatpush1.msra.mxu0 0.0
    %7139 = vmatprep.mubr.f32.mxu0 0.0
    %v7140 = vand.u32 %v325, 4294901760
    %v7141 = vsub.f32 %v325, %v7140
    %v7142 = vand.u32 %v7141, 4294901760
    %v7143 = vsub.f32 %v7141, %v7142
    %v7144 = vand.u32 %v7143, 4294901760
    %7145 = vmatmul.mubr.f32.gmra.mrb[0].mxu0 %v7144
    %v7146 = vpop.f32.mrb[0].mxu0
    %v7147 = vadd.f32 0.0, %v7146
    %v7148 = vpop.f32.mrb[0].mxu0
    %v7149 = vadd.f32 0.0, %v7148
    %7150 = vdwg.mxu0
    %v7151 = vand.u32 %v74, 4294901760
    %v7152 = vsub.f32 %v74, %v7151
    %v7153 = vand.u32 %v7152, 4294901760
    %v7154 = vsub.f32 %v7152, %v7153
    %v7155 = vand.u32 %v7154, 4294901760
    %7156 = vmatprep.subr.mxu0 %v7155
    %v7157 = vand.u32 %v73, 4294901760
    %v7158 = vsub.f32 %v73, %v7157
    %v7159 = vand.u32 %v7158, 4294901760
    %v7160 = vsub.f32 %v7158, %v7159
    %v7161 = vand.u32 %v7160, 4294901760
    %7162 = vmatpush1.msra.mxu0 %v7161
    %v7163 = vand.u32 %v104, 4294901760
    %v7164 = vsub.f32 %v104, %v7163
    %v7165 = vand.u32 %v7164, 4294901760
    %v7166 = vsub.f32 %v7164, %v7165
    %v7167 = vand.u32 %v7166, 4294901760
    %7168 = vmatprep.subr.mxu0 %v7167
    %v7169 = vand.u32 %v103, 4294901760
    %v7170 = vsub.f32 %v103, %v7169
    %v7171 = vand.u32 %v7170, 4294901760
    %v7172 = vsub.f32 %v7170, %v7171
    %v7173 = vand.u32 %v7172, 4294901760
    %7174 = vmatpush1.msra.mxu0 %v7173
    %v7175 = vand.u32 %v134, 4294901760
    %v7176 = vsub.f32 %v134, %v7175
    %v7177 = vand.u32 %v7176, 4294901760
    %v7178 = vsub.f32 %v7176, %v7177
    %v7179 = vand.u32 %v7178, 4294901760
    %7180 = vmatprep.subr.mxu0 %v7179
    %v7181 = vand.u32 %v133, 4294901760
    %v7182 = vsub.f32 %v133, %v7181
    %v7183 = vand.u32 %v7182, 4294901760
    %v7184 = vsub.f32 %v7182, %v7183
    %v7185 = vand.u32 %v7184, 4294901760
    %7186 = vmatpush1.msra.mxu0 %v7185
    %v7187 = vand.u32 %v164, 4294901760
    %v7188 = vsub.f32 %v164, %v7187
    %v7189 = vand.u32 %v7188, 4294901760
    %v7190 = vsub.f32 %v7188, %v7189
    %v7191 = vand.u32 %v7190, 4294901760
    %7192 = vmatprep.subr.mxu0 %v7191
    %v7193 = vand.u32 %v163, 4294901760
    %v7194 = vsub.f32 %v163, %v7193
    %v7195 = vand.u32 %v7194, 4294901760
    %v7196 = vsub.f32 %v7194, %v7195
    %v7197 = vand.u32 %v7196, 4294901760
    %7198 = vmatpush1.msra.mxu0 %v7197
    %v7199 = vand.u32 %v194, 4294901760
    %v7200 = vsub.f32 %v194, %v7199
    %v7201 = vand.u32 %v7200, 4294901760
    %v7202 = vsub.f32 %v7200, %v7201
    %v7203 = vand.u32 %v7202, 4294901760
    %7204 = vmatprep.subr.mxu0 %v7203
    %v7205 = vand.u32 %v193, 4294901760
    %v7206 = vsub.f32 %v193, %v7205
    %v7207 = vand.u32 %v7206, 4294901760
    %v7208 = vsub.f32 %v7206, %v7207
    %v7209 = vand.u32 %v7208, 4294901760
    %7210 = vmatpush1.msra.mxu0 %v7209
    %v7211 = vand.u32 %v224, 4294901760
    %v7212 = vsub.f32 %v224, %v7211
    %v7213 = vand.u32 %v7212, 4294901760
    %v7214 = vsub.f32 %v7212, %v7213
    %v7215 = vand.u32 %v7214, 4294901760
    %7216 = vmatprep.subr.mxu0 %v7215
    %v7217 = vand.u32 %v223, 4294901760
    %v7218 = vsub.f32 %v223, %v7217
    %v7219 = vand.u32 %v7218, 4294901760
    %v7220 = vsub.f32 %v7218, %v7219
    %v7221 = vand.u32 %v7220, 4294901760
    %7222 = vmatpush1.msra.mxu0 %v7221
    %v7223 = vand.u32 %v254, 4294901760
    %v7224 = vsub.f32 %v254, %v7223
    %v7225 = vand.u32 %v7224, 4294901760
    %v7226 = vsub.f32 %v7224, %v7225
    %v7227 = vand.u32 %v7226, 4294901760
    %7228 = vmatprep.subr.mxu0 %v7227
    %v7229 = vand.u32 %v253, 4294901760
    %v7230 = vsub.f32 %v253, %v7229
    %v7231 = vand.u32 %v7230, 4294901760
    %v7232 = vsub.f32 %v7230, %v7231
    %v7233 = vand.u32 %v7232, 4294901760
    %7234 = vmatpush1.msra.mxu0 %v7233
    %v7235 = vand.u32 %v284, 4294901760
    %v7236 = vsub.f32 %v284, %v7235
    %v7237 = vand.u32 %v7236, 4294901760
    %v7238 = vsub.f32 %v7236, %v7237
    %v7239 = vand.u32 %v7238, 4294901760
    %7240 = vmatprep.subr.mxu0 %v7239
    %v7241 = vand.u32 %v283, 4294901760
    %v7242 = vsub.f32 %v283, %v7241
    %v7243 = vand.u32 %v7242, 4294901760
    %v7244 = vsub.f32 %v7242, %v7243
    %v7245 = vand.u32 %v7244, 4294901760
    %7246 = vmatpush1.msra.mxu0 %v7245
    %v7247 = vand.u32 %v314, 4294901760
    %v7248 = vsub.f32 %v314, %v7247
    %v7249 = vand.u32 %v7248, 4294901760
    %v7250 = vsub.f32 %v7248, %v7249
    %v7251 = vand.u32 %v7250, 4294901760
    %7252 = vmatprep.subr.mxu0 %v7251
    %v7253 = vand.u32 %v313, 4294901760
    %v7254 = vsub.f32 %v313, %v7253
    %v7255 = vand.u32 %v7254, 4294901760
    %v7256 = vsub.f32 %v7254, %v7255
    %v7257 = vand.u32 %v7256, 4294901760
    %7258 = vmatpush1.msra.mxu0 %v7257
    %7259 = vmatprep.subr.mxu0 0.0
    %7260 = vmatpush1.msra.mxu0 0.0
    %7261 = vmatprep.subr.mxu0 0.0
    %7262 = vmatpush1.msra.mxu0 0.0
    %7263 = vmatprep.subr.mxu0 0.0
    %7264 = vmatpush1.msra.mxu0 0.0
    %7265 = vmatprep.subr.mxu0 0.0
    %7266 = vmatpush1.msra.mxu0 0.0
    %7267 = vmatprep.subr.mxu0 0.0
    %7268 = vmatpush1.msra.mxu0 0.0
    %7269 = vmatprep.subr.mxu0 0.0
    %7270 = vmatpush1.msra.mxu0 0.0
    %7271 = vmatprep.subr.mxu0 0.0
    %7272 = vmatpush1.msra.mxu0 0.0
    %7273 = vmatprep.subr.mxu0 0.0
    %7274 = vmatpush1.msra.mxu0 0.0
    %7275 = vmatprep.subr.mxu0 0.0
    %7276 = vmatpush1.msra.mxu0 0.0
    %7277 = vmatprep.subr.mxu0 0.0
    %7278 = vmatpush1.msra.mxu0 0.0
    %7279 = vmatprep.subr.mxu0 0.0
    %7280 = vmatpush1.msra.mxu0 0.0
    %7281 = vmatprep.subr.mxu0 0.0
    %7282 = vmatpush1.msra.mxu0 0.0
    %7283 = vmatprep.subr.mxu0 0.0
    %7284 = vmatpush1.msra.mxu0 0.0
    %7285 = vmatprep.subr.mxu0 0.0
    %7286 = vmatpush1.msra.mxu0 0.0
    %7287 = vmatprep.subr.mxu0 0.0
    %7288 = vmatpush1.msra.mxu0 0.0
    %7289 = vmatprep.subr.mxu0 0.0
    %7290 = vmatpush1.msra.mxu0 0.0
    %7291 = vmatprep.subr.mxu0 0.0
    %7292 = vmatpush1.msra.mxu0 0.0
    %7293 = vmatprep.subr.mxu0 0.0
    %7294 = vmatpush1.msra.mxu0 0.0
    %7295 = vmatprep.subr.mxu0 0.0
    %7296 = vmatpush1.msra.mxu0 0.0
    %7297 = vmatprep.subr.mxu0 0.0
    %7298 = vmatpush1.msra.mxu0 0.0
    %7299 = vmatprep.subr.mxu0 0.0
    %7300 = vmatpush1.msra.mxu0 0.0
    %7301 = vmatprep.subr.mxu0 0.0
    %7302 = vmatpush1.msra.mxu0 0.0
    %7303 = vmatprep.subr.mxu0 0.0
    %7304 = vmatpush1.msra.mxu0 0.0
    %7305 = vmatprep.mubr.f32.mxu0 0.0
    %v7306 = vand.u32 %v325, 4294901760
    %7307 = vmatmul.mubr.f32.gmra.mrb[0].mxu0 %v7306
    %v7308 = vpop.f32.mrb[0].mxu0
    %v7309 = vadd.f32 %v7147, %v7308
    %v7310 = vpop.f32.mrb[0].mxu0
    %v7311 = vadd.f32 %v7149, %v7310
    %7312 = vdwg.mxu0
    %v7313 = vand.u32 %v74, 4294901760
    %v7314 = vsub.f32 %v74, %v7313
    %7315 = vmatprep.subr.mxu0 %v7314
    %v7316 = vand.u32 %v73, 4294901760
    %v7317 = vsub.f32 %v73, %v7316
    %7318 = vmatpush1.msra.mxu0 %v7317
    %v7319 = vand.u32 %v104, 4294901760
    %v7320 = vsub.f32 %v104, %v7319
    %7321 = vmatprep.subr.mxu0 %v7320
    %v7322 = vand.u32 %v103, 4294901760
    %v7323 = vsub.f32 %v103, %v7322
    %7324 = vmatpush1.msra.mxu0 %v7323
    %v7325 = vand.u32 %v134, 4294901760
    %v7326 = vsub.f32 %v134, %v7325
    %7327 = vmatprep.subr.mxu0 %v7326
    %v7328 = vand.u32 %v133, 4294901760
    %v7329 = vsub.f32 %v133, %v7328
    %7330 = vmatpush1.msra.mxu0 %v7329
    %v7331 = vand.u32 %v164, 4294901760
    %v7332 = vsub.f32 %v164, %v7331
    %7333 = vmatprep.subr.mxu0 %v7332
    %v7334 = vand.u32 %v163, 4294901760
    %v7335 = vsub.f32 %v163, %v7334
    %7336 = vmatpush1.msra.mxu0 %v7335
    %v7337 = vand.u32 %v194, 4294901760
    %v7338 = vsub.f32 %v194, %v7337
    %7339 = vmatprep.subr.mxu0 %v7338
    %v7340 = vand.u32 %v193, 4294901760
    %v7341 = vsub.f32 %v193, %v7340
    %7342 = vmatpush1.msra.mxu0 %v7341
    %v7343 = vand.u32 %v224, 4294901760
    %v7344 = vsub.f32 %v224, %v7343
    %7345 = vmatprep.subr.mxu0 %v7344
    %v7346 = vand.u32 %v223, 4294901760
    %v7347 = vsub.f32 %v223, %v7346
    %7348 = vmatpush1.msra.mxu0 %v7347
    %v7349 = vand.u32 %v254, 4294901760
    %v7350 = vsub.f32 %v254, %v7349
    %7351 = vmatprep.subr.mxu0 %v7350
    %v7352 = vand.u32 %v253, 4294901760
    %v7353 = vsub.f32 %v253, %v7352
    %7354 = vmatpush1.msra.mxu0 %v7353
    %v7355 = vand.u32 %v284, 4294901760
    %v7356 = vsub.f32 %v284, %v7355
    %7357 = vmatprep.subr.mxu0 %v7356
    %v7358 = vand.u32 %v283, 4294901760
    %v7359 = vsub.f32 %v283, %v7358
    %7360 = vmatpush1.msra.mxu0 %v7359
    %v7361 = vand.u32 %v314, 4294901760
    %v7362 = vsub.f32 %v314, %v7361
    %7363 = vmatprep.subr.mxu0 %v7362
    %v7364 = vand.u32 %v313, 4294901760
    %v7365 = vsub.f32 %v313, %v7364
    %7366 = vmatpush1.msra.mxu0 %v7365
    %7367 = vmatprep.subr.mxu0 0.0
    %7368 = vmatpush1.msra.mxu0 0.0
    %7369 = vmatprep.subr.mxu0 0.0
    %7370 = vmatpush1.msra.mxu0 0.0
    %7371 = vmatprep.subr.mxu0 0.0
    %7372 = vmatpush1.msra.mxu0 0.0
    %7373 = vmatprep.subr.mxu0 0.0
    %7374 = vmatpush1.msra.mxu0 0.0
    %7375 = vmatprep.subr.mxu0 0.0
    %7376 = vmatpush1.msra.mxu0 0.0
    %7377 = vmatprep.subr.mxu0 0.0
    %7378 = vmatpush1.msra.mxu0 0.0
    %7379 = vmatprep.subr.mxu0 0.0
    %7380 = vmatpush1.msra.mxu0 0.0
    %7381 = vmatprep.subr.mxu0 0.0
    %7382 = vmatpush1.msra.mxu0 0.0
    %7383 = vmatprep.subr.mxu0 0.0
    %7384 = vmatpush1.msra.mxu0 0.0
    %7385 = vmatprep.subr.mxu0 0.0
    %7386 = vmatpush1.msra.mxu0 0.0
    %7387 = vmatprep.subr.mxu0 0.0
    %7388 = vmatpush1.msra.mxu0 0.0
    %7389 = vmatprep.subr.mxu0 0.0
    %7390 = vmatpush1.msra.mxu0 0.0
    %7391 = vmatprep.subr.mxu0 0.0
    %7392 = vmatpush1.msra.mxu0 0.0
    %7393 = vmatprep.subr.mxu0 0.0
    %7394 = vmatpush1.msra.mxu0 0.0
    %7395 = vmatprep.subr.mxu0 0.0
    %7396 = vmatpush1.msra.mxu0 0.0
    %7397 = vmatprep.subr.mxu0 0.0
    %7398 = vmatpush1.msra.mxu0 0.0
    %7399 = vmatprep.subr.mxu0 0.0
    %7400 = vmatpush1.msra.mxu0 0.0
    %7401 = vmatprep.subr.mxu0 0.0
    %7402 = vmatpush1.msra.mxu0 0.0
    %7403 = vmatprep.subr.mxu0 0.0
    %7404 = vmatpush1.msra.mxu0 0.0
    %7405 = vmatprep.subr.mxu0 0.0
    %7406 = vmatpush1.msra.mxu0 0.0
    %7407 = vmatprep.subr.mxu0 0.0
    %7408 = vmatpush1.msra.mxu0 0.0
    %7409 = vmatprep.subr.mxu0 0.0
    %7410 = vmatpush1.msra.mxu0 0.0
    %7411 = vmatprep.subr.mxu0 0.0
    %7412 = vmatpush1.msra.mxu0 0.0
    %7413 = vmatprep.mubr.f32.mxu0 0.0
    %v7414 = vand.u32 %v325, 4294901760
    %v7415 = vsub.f32 %v325, %v7414
    %7416 = vmatmul.mubr.f32.gmra.mrb[0].mxu0 %v7415
    %v7417 = vpop.f32.mrb[0].mxu0
    %v7418 = vadd.f32 %v7309, %v7417
    %v7419 = vpop.f32.mrb[0].mxu0
    %v7420 = vadd.f32 %v7311, %v7419
    %7421 = vdwg.mxu0
    %v7422 = vand.u32 %v74, 4294901760
    %7423 = vmatprep.subr.mxu0 %v7422
    %v7424 = vand.u32 %v73, 4294901760
    %7425 = vmatpush1.msra.mxu0 %v7424
    %v7426 = vand.u32 %v104, 4294901760
    %7427 = vmatprep.subr.mxu0 %v7426
    %v7428 = vand.u32 %v103, 4294901760
    %7429 = vmatpush1.msra.mxu0 %v7428
    %v7430 = vand.u32 %v134, 4294901760
    %7431 = vmatprep.subr.mxu0 %v7430
    %v7432 = vand.u32 %v133, 4294901760
    %7433 = vmatpush1.msra.mxu0 %v7432
    %v7434 = vand.u32 %v164, 4294901760
    %7435 = vmatprep.subr.mxu0 %v7434
    %v7436 = vand.u32 %v163, 4294901760
    %7437 = vmatpush1.msra.mxu0 %v7436
    %v7438 = vand.u32 %v194, 4294901760
    %7439 = vmatprep.subr.mxu0 %v7438
    %v7440 = vand.u32 %v193, 4294901760
    %7441 = vmatpush1.msra.mxu0 %v7440
    %v7442 = vand.u32 %v224, 4294901760
    %7443 = vmatprep.subr.mxu0 %v7442
    %v7444 = vand.u32 %v223, 4294901760
    %7445 = vmatpush1.msra.mxu0 %v7444
    %v7446 = vand.u32 %v254, 4294901760
    %7447 = vmatprep.subr.mxu0 %v7446
    %v7448 = vand.u32 %v253, 4294901760
    %7449 = vmatpush1.msra.mxu0 %v7448
    %v7450 = vand.u32 %v284, 4294901760
    %7451 = vmatprep.subr.mxu0 %v7450
    %v7452 = vand.u32 %v283, 4294901760
    %7453 = vmatpush1.msra.mxu0 %v7452
    %v7454 = vand.u32 %v314, 4294901760
    %7455 = vmatprep.subr.mxu0 %v7454
    %v7456 = vand.u32 %v313, 4294901760
    %7457 = vmatpush1.msra.mxu0 %v7456
    %7458 = vmatprep.subr.mxu0 0.0
    %7459 = vmatpush1.msra.mxu0 0.0
    %7460 = vmatprep.subr.mxu0 0.0
    %7461 = vmatpush1.msra.mxu0 0.0
    %7462 = vmatprep.subr.mxu0 0.0
    %7463 = vmatpush1.msra.mxu0 0.0
    %7464 = vmatprep.subr.mxu0 0.0
    %7465 = vmatpush1.msra.mxu0 0.0
    %7466 = vmatprep.subr.mxu0 0.0
    %7467 = vmatpush1.msra.mxu0 0.0
    %7468 = vmatprep.subr.mxu0 0.0
    %7469 = vmatpush1.msra.mxu0 0.0
    %7470 = vmatprep.subr.mxu0 0.0
    %7471 = vmatpush1.msra.mxu0 0.0
    %7472 = vmatprep.subr.mxu0 0.0
    %7473 = vmatpush1.msra.mxu0 0.0
    %7474 = vmatprep.subr.mxu0 0.0
    %7475 = vmatpush1.msra.mxu0 0.0
    %7476 = vmatprep.subr.mxu0 0.0
    %7477 = vmatpush1.msra.mxu0 0.0
    %7478 = vmatprep.subr.mxu0 0.0
    %7479 = vmatpush1.msra.mxu0 0.0
    %7480 = vmatprep.subr.mxu0 0.0
    %7481 = vmatpush1.msra.mxu0 0.0
    %7482 = vmatprep.subr.mxu0 0.0
    %7483 = vmatpush1.msra.mxu0 0.0
    %7484 = vmatprep.subr.mxu0 0.0
    %7485 = vmatpush1.msra.mxu0 0.0
    %7486 = vmatprep.subr.mxu0 0.0
    %7487 = vmatpush1.msra.mxu0 0.0
    %7488 = vmatprep.subr.mxu0 0.0
    %7489 = vmatpush1.msra.mxu0 0.0
    %7490 = vmatprep.subr.mxu0 0.0
    %7491 = vmatpush1.msra.mxu0 0.0
    %7492 = vmatprep.subr.mxu0 0.0
    %7493 = vmatpush1.msra.mxu0 0.0
    %7494 = vmatprep.subr.mxu0 0.0
    %7495 = vmatpush1.msra.mxu0 0.0
    %7496 = vmatprep.subr.mxu0 0.0
    %7497 = vmatpush1.msra.mxu0 0.0
    %7498 = vmatprep.subr.mxu0 0.0
    %7499 = vmatpush1.msra.mxu0 0.0
    %7500 = vmatprep.subr.mxu0 0.0
    %7501 = vmatpush1.msra.mxu0 0.0
    %7502 = vmatprep.subr.mxu0 0.0
    %7503 = vmatpush1.msra.mxu0 0.0
    %7504 = vmatprep.mubr.f32.mxu0 0.0
    %v7505 = vand.u32 %v325, 4294901760
    %v7506 = vsub.f32 %v325, %v7505
    %v7507 = vand.u32 %v7506, 4294901760
    %7508 = vmatmul.mubr.f32.gmra.mrb[0].mxu0 %v7507
    %v7509 = vpop.f32.mrb[0].mxu0
    %v7510 = vadd.f32 %v7418, %v7509
    %v7511 = vpop.f32.mrb[0].mxu0
    %v7512 = vadd.f32 %v7420, %v7511
    %7513 = vdwg.mxu0
    %v7514 = vand.u32 %v74, 4294901760
    %v7515 = vsub.f32 %v74, %v7514
    %v7516 = vand.u32 %v7515, 4294901760
    %7517 = vmatprep.subr.mxu0 %v7516
    %v7518 = vand.u32 %v73, 4294901760
    %v7519 = vsub.f32 %v73, %v7518
    %v7520 = vand.u32 %v7519, 4294901760
    %7521 = vmatpush1.msra.mxu0 %v7520
    %v7522 = vand.u32 %v104, 4294901760
    %v7523 = vsub.f32 %v104, %v7522
    %v7524 = vand.u32 %v7523, 4294901760
    %7525 = vmatprep.subr.mxu0 %v7524
    %v7526 = vand.u32 %v103, 4294901760
    %v7527 = vsub.f32 %v103, %v7526
    %v7528 = vand.u32 %v7527, 4294901760
    %7529 = vmatpush1.msra.mxu0 %v7528
    %v7530 = vand.u32 %v134, 4294901760
    %v7531 = vsub.f32 %v134, %v7530
    %v7532 = vand.u32 %v7531, 4294901760
    %7533 = vmatprep.subr.mxu0 %v7532
    %v7534 = vand.u32 %v133, 4294901760
    %v7535 = vsub.f32 %v133, %v7534
    %v7536 = vand.u32 %v7535, 4294901760
    %7537 = vmatpush1.msra.mxu0 %v7536
    %v7538 = vand.u32 %v164, 4294901760
    %v7539 = vsub.f32 %v164, %v7538
    %v7540 = vand.u32 %v7539, 4294901760
    %7541 = vmatprep.subr.mxu0 %v7540
    %v7542 = vand.u32 %v163, 4294901760
    %v7543 = vsub.f32 %v163, %v7542
    %v7544 = vand.u32 %v7543, 4294901760
    %7545 = vmatpush1.msra.mxu0 %v7544
    %v7546 = vand.u32 %v194, 4294901760
    %v7547 = vsub.f32 %v194, %v7546
    %v7548 = vand.u32 %v7547, 4294901760
    %7549 = vmatprep.subr.mxu0 %v7548
    %v7550 = vand.u32 %v193, 4294901760
    %v7551 = vsub.f32 %v193, %v7550
    %v7552 = vand.u32 %v7551, 4294901760
    %7553 = vmatpush1.msra.mxu0 %v7552
    %v7554 = vand.u32 %v224, 4294901760
    %v7555 = vsub.f32 %v224, %v7554
    %v7556 = vand.u32 %v7555, 4294901760
    %7557 = vmatprep.subr.mxu0 %v7556
    %v7558 = vand.u32 %v223, 4294901760
    %v7559 = vsub.f32 %v223, %v7558
    %v7560 = vand.u32 %v7559, 4294901760
    %7561 = vmatpush1.msra.mxu0 %v7560
    %v7562 = vand.u32 %v254, 4294901760
    %v7563 = vsub.f32 %v254, %v7562
    %v7564 = vand.u32 %v7563, 4294901760
    %7565 = vmatprep.subr.mxu0 %v7564
    %v7566 = vand.u32 %v253, 4294901760
    %v7567 = vsub.f32 %v253, %v7566
    %v7568 = vand.u32 %v7567, 4294901760
    %7569 = vmatpush1.msra.mxu0 %v7568
    %v7570 = vand.u32 %v284, 4294901760
    %v7571 = vsub.f32 %v284, %v7570
    %v7572 = vand.u32 %v7571, 4294901760
    %7573 = vmatprep.subr.mxu0 %v7572
    %v7574 = vand.u32 %v283, 4294901760
    %v7575 = vsub.f32 %v283, %v7574
    %v7576 = vand.u32 %v7575, 4294901760
    %7577 = vmatpush1.msra.mxu0 %v7576
    %v7578 = vand.u32 %v314, 4294901760
    %v7579 = vsub.f32 %v314, %v7578
    %v7580 = vand.u32 %v7579, 4294901760
    %7581 = vmatprep.subr.mxu0 %v7580
    %v7582 = vand.u32 %v313, 4294901760
    %v7583 = vsub.f32 %v313, %v7582
    %v7584 = vand.u32 %v7583, 4294901760
    %7585 = vmatpush1.msra.mxu0 %v7584
    %7586 = vmatprep.subr.mxu0 0.0
    %7587 = vmatpush1.msra.mxu0 0.0
    %7588 = vmatprep.subr.mxu0 0.0
    %7589 = vmatpush1.msra.mxu0 0.0
    %7590 = vmatprep.subr.mxu0 0.0
    %7591 = vmatpush1.msra.mxu0 0.0
    %7592 = vmatprep.subr.mxu0 0.0
    %7593 = vmatpush1.msra.mxu0 0.0
    %7594 = vmatprep.subr.mxu0 0.0
    %7595 = vmatpush1.msra.mxu0 0.0
    %7596 = vmatprep.subr.mxu0 0.0
    %7597 = vmatpush1.msra.mxu0 0.0
    %7598 = vmatprep.subr.mxu0 0.0
    %7599 = vmatpush1.msra.mxu0 0.0
    %7600 = vmatprep.subr.mxu0 0.0
    %7601 = vmatpush1.msra.mxu0 0.0
    %7602 = vmatprep.subr.mxu0 0.0
    %7603 = vmatpush1.msra.mxu0 0.0
    %7604 = vmatprep.subr.mxu0 0.0
    %7605 = vmatpush1.msra.mxu0 0.0
    %7606 = vmatprep.subr.mxu0 0.0
    %7607 = vmatpush1.msra.mxu0 0.0
    %7608 = vmatprep.subr.mxu0 0.0
    %7609 = vmatpush1.msra.mxu0 0.0
    %7610 = vmatprep.subr.mxu0 0.0
    %7611 = vmatpush1.msra.mxu0 0.0
    %7612 = vmatprep.subr.mxu0 0.0
    %7613 = vmatpush1.msra.mxu0 0.0
    %7614 = vmatprep.subr.mxu0 0.0
    %7615 = vmatpush1.msra.mxu0 0.0
    %7616 = vmatprep.subr.mxu0 0.0
    %7617 = vmatpush1.msra.mxu0 0.0
    %7618 = vmatprep.subr.mxu0 0.0
    %7619 = vmatpush1.msra.mxu0 0.0
    %7620 = vmatprep.subr.mxu0 0.0
    %7621 = vmatpush1.msra.mxu0 0.0
    %7622 = vmatprep.subr.mxu0 0.0
    %7623 = vmatpush1.msra.mxu0 0.0
    %7624 = vmatprep.subr.mxu0 0.0
    %7625 = vmatpush1.msra.mxu0 0.0
    %7626 = vmatprep.subr.mxu0 0.0
    %7627 = vmatpush1.msra.mxu0 0.0
    %7628 = vmatprep.subr.mxu0 0.0
    %7629 = vmatpush1.msra.mxu0 0.0
    %7630 = vmatprep.subr.mxu0 0.0
    %7631 = vmatpush1.msra.mxu0 0.0
    %7632 = vmatprep.mubr.f32.mxu0 0.0
    %v7633 = vand.u32 %v325, 4294901760
    %7634 = vmatmul.mubr.f32.gmra.mrb[0].mxu0 %v7633
    %v7635 = vpop.f32.mrb[0].mxu0
    %v7636 = vadd.f32 %v7510, %v7635
    %v7637 = vpop.f32.mrb[0].mxu0
    %v7638 = vadd.f32 %v7512, %v7637
    %7639 = vdwg.mxu0
    %v7640 = vand.u32 %v74, 4294901760
    %7641 = vmatprep.subr.mxu0 %v7640
    %v7642 = vand.u32 %v73, 4294901760
    %7643 = vmatpush1.msra.mxu0 %v7642
    %v7644 = vand.u32 %v104, 4294901760
    %7645 = vmatprep.subr.mxu0 %v7644
    %v7646 = vand.u32 %v103, 4294901760
    %7647 = vmatpush1.msra.mxu0 %v7646
    %v7648 = vand.u32 %v134, 4294901760
    %7649 = vmatprep.subr.mxu0 %v7648
    %v7650 = vand.u32 %v133, 4294901760
    %7651 = vmatpush1.msra.mxu0 %v7650
    %v7652 = vand.u32 %v164, 4294901760
    %7653 = vmatprep.subr.mxu0 %v7652
    %v7654 = vand.u32 %v163, 4294901760
    %7655 = vmatpush1.msra.mxu0 %v7654
    %v7656 = vand.u32 %v194, 4294901760
    %7657 = vmatprep.subr.mxu0 %v7656
    %v7658 = vand.u32 %v193, 4294901760
    %7659 = vmatpush1.msra.mxu0 %v7658
    %v7660 = vand.u32 %v224, 4294901760
    %7661 = vmatprep.subr.mxu0 %v7660
    %v7662 = vand.u32 %v223, 4294901760
    %7663 = vmatpush1.msra.mxu0 %v7662
    %v7664 = vand.u32 %v254, 4294901760
    %7665 = vmatprep.subr.mxu0 %v7664
    %v7666 = vand.u32 %v253, 4294901760
    %7667 = vmatpush1.msra.mxu0 %v7666
    %v7668 = vand.u32 %v284, 4294901760
    %7669 = vmatprep.subr.mxu0 %v7668
    %v7670 = vand.u32 %v283, 4294901760
    %7671 = vmatpush1.msra.mxu0 %v7670
    %v7672 = vand.u32 %v314, 4294901760
    %7673 = vmatprep.subr.mxu0 %v7672
    %v7674 = vand.u32 %v313, 4294901760
    %7675 = vmatpush1.msra.mxu0 %v7674
    %7676 = vmatprep.subr.mxu0 0.0
    %7677 = vmatpush1.msra.mxu0 0.0
    %7678 = vmatprep.subr.mxu0 0.0
    %7679 = vmatpush1.msra.mxu0 0.0
    %7680 = vmatprep.subr.mxu0 0.0
    %7681 = vmatpush1.msra.mxu0 0.0
    %7682 = vmatprep.subr.mxu0 0.0
    %7683 = vmatpush1.msra.mxu0 0.0
    %7684 = vmatprep.subr.mxu0 0.0
    %7685 = vmatpush1.msra.mxu0 0.0
    %7686 = vmatprep.subr.mxu0 0.0
    %7687 = vmatpush1.msra.mxu0 0.0
    %7688 = vmatprep.subr.mxu0 0.0
    %7689 = vmatpush1.msra.mxu0 0.0
    %7690 = vmatprep.subr.mxu0 0.0
    %7691 = vmatpush1.msra.mxu0 0.0
    %7692 = vmatprep.subr.mxu0 0.0
    %7693 = vmatpush1.msra.mxu0 0.0
    %7694 = vmatprep.subr.mxu0 0.0
    %7695 = vmatpush1.msra.mxu0 0.0
    %7696 = vmatprep.subr.mxu0 0.0
    %7697 = vmatpush1.msra.mxu0 0.0
    %7698 = vmatprep.subr.mxu0 0.0
    %7699 = vmatpush1.msra.mxu0 0.0
    %7700 = vmatprep.subr.mxu0 0.0
    %7701 = vmatpush1.msra.mxu0 0.0
    %7702 = vmatprep.subr.mxu0 0.0
    %7703 = vmatpush1.msra.mxu0 0.0
    %7704 = vmatprep.subr.mxu0 0.0
    %7705 = vmatpush1.msra.mxu0 0.0
    %7706 = vmatprep.subr.mxu0 0.0
    %7707 = vmatpush1.msra.mxu0 0.0
    %7708 = vmatprep.subr.mxu0 0.0
    %7709 = vmatpush1.msra.mxu0 0.0
    %7710 = vmatprep.subr.mxu0 0.0
    %7711 = vmatpush1.msra.mxu0 0.0
    %7712 = vmatprep.subr.mxu0 0.0
    %7713 = vmatpush1.msra.mxu0 0.0
    %7714 = vmatprep.subr.mxu0 0.0
    %7715 = vmatpush1.msra.mxu0 0.0
    %7716 = vmatprep.subr.mxu0 0.0
    %7717 = vmatpush1.msra.mxu0 0.0
    %7718 = vmatprep.subr.mxu0 0.0
    %7719 = vmatpush1.msra.mxu0 0.0
    %7720 = vmatprep.subr.mxu0 0.0
    %7721 = vmatpush1.msra.mxu0 0.0
    %7722 = vmatprep.mubr.f32.mxu0 0.0
    %v7723 = vand.u32 %v325, 4294901760
    %7724 = vmatmul.mubr.f32.gmra.mrb[0].mxu0 %v7723
    %v7725 = vpop.f32.mrb[0].mxu0
    %v7726 = vadd.f32 %v7636, %v7725
    %v7727 = vpop.f32.mrb[0].mxu0
    %v7728 = vadd.f32 %v7638, %v7727
    %7729 = vdwg.mxu0
    %v7730 = vand.u32 %v76, 4294901760
    %7731 = vmatprep.subr.mxu0 %v7730
    %v7732 = vand.u32 %v75, 4294901760
    %7733 = vmatpush1.msra.mxu0 %v7732
    %v7734 = vand.u32 %v106, 4294901760
    %7735 = vmatprep.subr.mxu0 %v7734
    %v7736 = vand.u32 %v105, 4294901760
    %7737 = vmatpush1.msra.mxu0 %v7736
    %v7738 = vand.u32 %v136, 4294901760
    %7739 = vmatprep.subr.mxu0 %v7738
    %v7740 = vand.u32 %v135, 4294901760
    %7741 = vmatpush1.msra.mxu0 %v7740
    %v7742 = vand.u32 %v166, 4294901760
    %7743 = vmatprep.subr.mxu0 %v7742
    %v7744 = vand.u32 %v165, 4294901760
    %7745 = vmatpush1.msra.mxu0 %v7744
    %v7746 = vand.u32 %v196, 4294901760
    %7747 = vmatprep.subr.mxu0 %v7746
    %v7748 = vand.u32 %v195, 4294901760
    %7749 = vmatpush1.msra.mxu0 %v7748
    %v7750 = vand.u32 %v226, 4294901760
    %7751 = vmatprep.subr.mxu0 %v7750
    %v7752 = vand.u32 %v225, 4294901760
    %7753 = vmatpush1.msra.mxu0 %v7752
    %v7754 = vand.u32 %v256, 4294901760
    %7755 = vmatprep.subr.mxu0 %v7754
    %v7756 = vand.u32 %v255, 4294901760
    %7757 = vmatpush1.msra.mxu0 %v7756
    %v7758 = vand.u32 %v286, 4294901760
    %7759 = vmatprep.subr.mxu0 %v7758
    %v7760 = vand.u32 %v285, 4294901760
    %7761 = vmatpush1.msra.mxu0 %v7760
    %v7762 = vand.u32 %v316, 4294901760
    %7763 = vmatprep.subr.mxu0 %v7762
    %v7764 = vand.u32 %v315, 4294901760
    %7765 = vmatpush1.msra.mxu0 %v7764
    %7766 = vmatprep.subr.mxu0 0.0
    %7767 = vmatpush1.msra.mxu0 0.0
    %7768 = vmatprep.subr.mxu0 0.0
    %7769 = vmatpush1.msra.mxu0 0.0
    %7770 = vmatprep.subr.mxu0 0.0
    %7771 = vmatpush1.msra.mxu0 0.0
    %7772 = vmatprep.subr.mxu0 0.0
    %7773 = vmatpush1.msra.mxu0 0.0
    %7774 = vmatprep.subr.mxu0 0.0
    %7775 = vmatpush1.msra.mxu0 0.0
    %7776 = vmatprep.subr.mxu0 0.0
    %7777 = vmatpush1.msra.mxu0 0.0
    %7778 = vmatprep.subr.mxu0 0.0
    %7779 = vmatpush1.msra.mxu0 0.0
    %7780 = vmatprep.subr.mxu0 0.0
    %7781 = vmatpush1.msra.mxu0 0.0
    %7782 = vmatprep.subr.mxu0 0.0
    %7783 = vmatpush1.msra.mxu0 0.0
    %7784 = vmatprep.subr.mxu0 0.0
    %7785 = vmatpush1.msra.mxu0 0.0
    %7786 = vmatprep.subr.mxu0 0.0
    %7787 = vmatpush1.msra.mxu0 0.0
    %7788 = vmatprep.subr.mxu0 0.0
    %7789 = vmatpush1.msra.mxu0 0.0
    %7790 = vmatprep.subr.mxu0 0.0
    %7791 = vmatpush1.msra.mxu0 0.0
    %7792 = vmatprep.subr.mxu0 0.0
    %7793 = vmatpush1.msra.mxu0 0.0
    %7794 = vmatprep.subr.mxu0 0.0
    %7795 = vmatpush1.msra.mxu0 0.0
    %7796 = vmatprep.subr.mxu0 0.0
    %7797 = vmatpush1.msra.mxu0 0.0
    %7798 = vmatprep.subr.mxu0 0.0
    %7799 = vmatpush1.msra.mxu0 0.0
    %7800 = vmatprep.subr.mxu0 0.0
    %7801 = vmatpush1.msra.mxu0 0.0
    %7802 = vmatprep.subr.mxu0 0.0
    %7803 = vmatpush1.msra.mxu0 0.0
    %7804 = vmatprep.subr.mxu0 0.0
    %7805 = vmatpush1.msra.mxu0 0.0
    %7806 = vmatprep.subr.mxu0 0.0
    %7807 = vmatpush1.msra.mxu0 0.0
    %7808 = vmatprep.subr.mxu0 0.0
    %7809 = vmatpush1.msra.mxu0 0.0
    %7810 = vmatprep.subr.mxu0 0.0
    %7811 = vmatpush1.msra.mxu0 0.0
    %7812 = vmatprep.mubr.f32.mxu0 0.0
    %v7813 = vand.u32 %v325, 4294901760
    %v7814 = vsub.f32 %v325, %v7813
    %v7815 = vand.u32 %v7814, 4294901760
    %v7816 = vsub.f32 %v7814, %v7815
    %v7817 = vand.u32 %v7816, 4294901760
    %7818 = vmatmul.mubr.f32.gmra.mrb[0].mxu0 %v7817
    %v7819 = vpop.f32.mrb[0].mxu0
    %v7820 = vadd.f32 0.0, %v7819
    %v7821 = vpop.f32.mrb[0].mxu0
    %v7822 = vadd.f32 0.0, %v7821
    %7823 = vdwg.mxu0
    %v7824 = vand.u32 %v76, 4294901760
    %v7825 = vsub.f32 %v76, %v7824
    %v7826 = vand.u32 %v7825, 4294901760
    %v7827 = vsub.f32 %v7825, %v7826
    %v7828 = vand.u32 %v7827, 4294901760
    %7829 = vmatprep.subr.mxu0 %v7828
    %v7830 = vand.u32 %v75, 4294901760
    %v7831 = vsub.f32 %v75, %v7830
    %v7832 = vand.u32 %v7831, 4294901760
    %v7833 = vsub.f32 %v7831, %v7832
    %v7834 = vand.u32 %v7833, 4294901760
    %7835 = vmatpush1.msra.mxu0 %v7834
    %v7836 = vand.u32 %v106, 4294901760
    %v7837 = vsub.f32 %v106, %v7836
    %v7838 = vand.u32 %v7837, 4294901760
    %v7839 = vsub.f32 %v7837, %v7838
    %v7840 = vand.u32 %v7839, 4294901760
    %7841 = vmatprep.subr.mxu0 %v7840
    %v7842 = vand.u32 %v105, 4294901760
    %v7843 = vsub.f32 %v105, %v7842
    %v7844 = vand.u32 %v7843, 4294901760
    %v7845 = vsub.f32 %v7843, %v7844
    %v7846 = vand.u32 %v7845, 4294901760
    %7847 = vmatpush1.msra.mxu0 %v7846
    %v7848 = vand.u32 %v136, 4294901760
    %v7849 = vsub.f32 %v136, %v7848
    %v7850 = vand.u32 %v7849, 4294901760
    %v7851 = vsub.f32 %v7849, %v7850
    %v7852 = vand.u32 %v7851, 4294901760
    %7853 = vmatprep.subr.mxu0 %v7852
    %v7854 = vand.u32 %v135, 4294901760
    %v7855 = vsub.f32 %v135, %v7854
    %v7856 = vand.u32 %v7855, 4294901760
    %v7857 = vsub.f32 %v7855, %v7856
    %v7858 = vand.u32 %v7857, 4294901760
    %7859 = vmatpush1.msra.mxu0 %v7858
    %v7860 = vand.u32 %v166, 4294901760
    %v7861 = vsub.f32 %v166, %v7860
    %v7862 = vand.u32 %v7861, 4294901760
    %v7863 = vsub.f32 %v7861, %v7862
    %v7864 = vand.u32 %v7863, 4294901760
    %7865 = vmatprep.subr.mxu0 %v7864
    %v7866 = vand.u32 %v165, 4294901760
    %v7867 = vsub.f32 %v165, %v7866
    %v7868 = vand.u32 %v7867, 4294901760
    %v7869 = vsub.f32 %v7867, %v7868
    %v7870 = vand.u32 %v7869, 4294901760
    %7871 = vmatpush1.msra.mxu0 %v7870
    %v7872 = vand.u32 %v196, 4294901760
    %v7873 = vsub.f32 %v196, %v7872
    %v7874 = vand.u32 %v7873, 4294901760
    %v7875 = vsub.f32 %v7873, %v7874
    %v7876 = vand.u32 %v7875, 4294901760
    %7877 = vmatprep.subr.mxu0 %v7876
    %v7878 = vand.u32 %v195, 4294901760
    %v7879 = vsub.f32 %v195, %v7878
    %v7880 = vand.u32 %v7879, 4294901760
    %v7881 = vsub.f32 %v7879, %v7880
    %v7882 = vand.u32 %v7881, 4294901760
    %7883 = vmatpush1.msra.mxu0 %v7882
    %v7884 = vand.u32 %v226, 4294901760
    %v7885 = vsub.f32 %v226, %v7884
    %v7886 = vand.u32 %v7885, 4294901760
    %v7887 = vsub.f32 %v7885, %v7886
    %v7888 = vand.u32 %v7887, 4294901760
    %7889 = vmatprep.subr.mxu0 %v7888
    %v7890 = vand.u32 %v225, 4294901760
    %v7891 = vsub.f32 %v225, %v7890
    %v7892 = vand.u32 %v7891, 4294901760
    %v7893 = vsub.f32 %v7891, %v7892
    %v7894 = vand.u32 %v7893, 4294901760
    %7895 = vmatpush1.msra.mxu0 %v7894
    %v7896 = vand.u32 %v256, 4294901760
    %v7897 = vsub.f32 %v256, %v7896
    %v7898 = vand.u32 %v7897, 4294901760
    %v7899 = vsub.f32 %v7897, %v7898
    %v7900 = vand.u32 %v7899, 4294901760
    %7901 = vmatprep.subr.mxu0 %v7900
    %v7902 = vand.u32 %v255, 4294901760
    %v7903 = vsub.f32 %v255, %v7902
    %v7904 = vand.u32 %v7903, 4294901760
    %v7905 = vsub.f32 %v7903, %v7904
    %v7906 = vand.u32 %v7905, 4294901760
    %7907 = vmatpush1.msra.mxu0 %v7906
    %v7908 = vand.u32 %v286, 4294901760
    %v7909 = vsub.f32 %v286, %v7908
    %v7910 = vand.u32 %v7909, 4294901760
    %v7911 = vsub.f32 %v7909, %v7910
    %v7912 = vand.u32 %v7911, 4294901760
    %7913 = vmatprep.subr.mxu0 %v7912
    %v7914 = vand.u32 %v285, 4294901760
    %v7915 = vsub.f32 %v285, %v7914
    %v7916 = vand.u32 %v7915, 4294901760
    %v7917 = vsub.f32 %v7915, %v7916
    %v7918 = vand.u32 %v7917, 4294901760
    %7919 = vmatpush1.msra.mxu0 %v7918
    %v7920 = vand.u32 %v316, 4294901760
    %v7921 = vsub.f32 %v316, %v7920
    %v7922 = vand.u32 %v7921, 4294901760
    %v7923 = vsub.f32 %v7921, %v7922
    %v7924 = vand.u32 %v7923, 4294901760
    %7925 = vmatprep.subr.mxu0 %v7924
    %v7926 = vand.u32 %v315, 4294901760
    %v7927 = vsub.f32 %v315, %v7926
    %v7928 = vand.u32 %v7927, 4294901760
    %v7929 = vsub.f32 %v7927, %v7928
    %v7930 = vand.u32 %v7929, 4294901760
    %7931 = vmatpush1.msra.mxu0 %v7930
    %7932 = vmatprep.subr.mxu0 0.0
    %7933 = vmatpush1.msra.mxu0 0.0
    %7934 = vmatprep.subr.mxu0 0.0
    %7935 = vmatpush1.msra.mxu0 0.0
    %7936 = vmatprep.subr.mxu0 0.0
    %7937 = vmatpush1.msra.mxu0 0.0
    %7938 = vmatprep.subr.mxu0 0.0
    %7939 = vmatpush1.msra.mxu0 0.0
    %7940 = vmatprep.subr.mxu0 0.0
    %7941 = vmatpush1.msra.mxu0 0.0
    %7942 = vmatprep.subr.mxu0 0.0
    %7943 = vmatpush1.msra.mxu0 0.0
    %7944 = vmatprep.subr.mxu0 0.0
    %7945 = vmatpush1.msra.mxu0 0.0
    %7946 = vmatprep.subr.mxu0 0.0
    %7947 = vmatpush1.msra.mxu0 0.0
    %7948 = vmatprep.subr.mxu0 0.0
    %7949 = vmatpush1.msra.mxu0 0.0
    %7950 = vmatprep.subr.mxu0 0.0
    %7951 = vmatpush1.msra.mxu0 0.0
    %7952 = vmatprep.subr.mxu0 0.0
    %7953 = vmatpush1.msra.mxu0 0.0
    %7954 = vmatprep.subr.mxu0 0.0
    %7955 = vmatpush1.msra.mxu0 0.0
    %7956 = vmatprep.subr.mxu0 0.0
    %7957 = vmatpush1.msra.mxu0 0.0
    %7958 = vmatprep.subr.mxu0 0.0
    %7959 = vmatpush1.msra.mxu0 0.0
    %7960 = vmatprep.subr.mxu0 0.0
    %7961 = vmatpush1.msra.mxu0 0.0
    %7962 = vmatprep.subr.mxu0 0.0
    %7963 = vmatpush1.msra.mxu0 0.0
    %7964 = vmatprep.subr.mxu0 0.0
    %7965 = vmatpush1.msra.mxu0 0.0
    %7966 = vmatprep.subr.mxu0 0.0
    %7967 = vmatpush1.msra.mxu0 0.0
    %7968 = vmatprep.subr.mxu0 0.0
    %7969 = vmatpush1.msra.mxu0 0.0
    %7970 = vmatprep.subr.mxu0 0.0
    %7971 = vmatpush1.msra.mxu0 0.0
    %7972 = vmatprep.subr.mxu0 0.0
    %7973 = vmatpush1.msra.mxu0 0.0
    %7974 = vmatprep.subr.mxu0 0.0
    %7975 = vmatpush1.msra.mxu0 0.0
    %7976 = vmatprep.subr.mxu0 0.0
    %7977 = vmatpush1.msra.mxu0 0.0
    %7978 = vmatprep.mubr.f32.mxu0 0.0
    %v7979 = vand.u32 %v325, 4294901760
    %7980 = vmatmul.mubr.f32.gmra.mrb[0].mxu0 %v7979
    %v7981 = vpop.f32.mrb[0].mxu0
    %v7982 = vadd.f32 %v7820, %v7981
    %v7983 = vpop.f32.mrb[0].mxu0
    %v7984 = vadd.f32 %v7822, %v7983
    %7985 = vdwg.mxu0
    %v7986 = vand.u32 %v76, 4294901760
    %v7987 = vsub.f32 %v76, %v7986
    %7988 = vmatprep.subr.mxu0 %v7987
    %v7989 = vand.u32 %v75, 4294901760
    %v7990 = vsub.f32 %v75, %v7989
    %7991 = vmatpush1.msra.mxu0 %v7990
    %v7992 = vand.u32 %v106, 4294901760
    %v7993 = vsub.f32 %v106, %v7992
    %7994 = vmatprep.subr.mxu0 %v7993
    %v7995 = vand.u32 %v105, 4294901760
    %v7996 = vsub.f32 %v105, %v7995
    %7997 = vmatpush1.msra.mxu0 %v7996
    %v7998 = vand.u32 %v136, 4294901760
    %v7999 = vsub.f32 %v136, %v7998
    %8000 = vmatprep.subr.mxu0 %v7999
    %v8001 = vand.u32 %v135, 4294901760
    %v8002 = vsub.f32 %v135, %v8001
    %8003 = vmatpush1.msra.mxu0 %v8002
    %v8004 = vand.u32 %v166, 4294901760
    %v8005 = vsub.f32 %v166, %v8004
    %8006 = vmatprep.subr.mxu0 %v8005
    %v8007 = vand.u32 %v165, 4294901760
    %v8008 = vsub.f32 %v165, %v8007
    %8009 = vmatpush1.msra.mxu0 %v8008
    %v8010 = vand.u32 %v196, 4294901760
    %v8011 = vsub.f32 %v196, %v8010
    %8012 = vmatprep.subr.mxu0 %v8011
    %v8013 = vand.u32 %v195, 4294901760
    %v8014 = vsub.f32 %v195, %v8013
    %8015 = vmatpush1.msra.mxu0 %v8014
    %v8016 = vand.u32 %v226, 4294901760
    %v8017 = vsub.f32 %v226, %v8016
    %8018 = vmatprep.subr.mxu0 %v8017
    %v8019 = vand.u32 %v225, 4294901760
    %v8020 = vsub.f32 %v225, %v8019
    %8021 = vmatpush1.msra.mxu0 %v8020
    %v8022 = vand.u32 %v256, 4294901760
    %v8023 = vsub.f32 %v256, %v8022
    %8024 = vmatprep.subr.mxu0 %v8023
    %v8025 = vand.u32 %v255, 4294901760
    %v8026 = vsub.f32 %v255, %v8025
    %8027 = vmatpush1.msra.mxu0 %v8026
    %v8028 = vand.u32 %v286, 4294901760
    %v8029 = vsub.f32 %v286, %v8028
    %8030 = vmatprep.subr.mxu0 %v8029
    %v8031 = vand.u32 %v285, 4294901760
    %v8032 = vsub.f32 %v285, %v8031
    %8033 = vmatpush1.msra.mxu0 %v8032
    %v8034 = vand.u32 %v316, 4294901760
    %v8035 = vsub.f32 %v316, %v8034
    %8036 = vmatprep.subr.mxu0 %v8035
    %v8037 = vand.u32 %v315, 4294901760
    %v8038 = vsub.f32 %v315, %v8037
    %8039 = vmatpush1.msra.mxu0 %v8038
    %8040 = vmatprep.subr.mxu0 0.0
    %8041 = vmatpush1.msra.mxu0 0.0
    %8042 = vmatprep.subr.mxu0 0.0
    %8043 = vmatpush1.msra.mxu0 0.0
    %8044 = vmatprep.subr.mxu0 0.0
    %8045 = vmatpush1.msra.mxu0 0.0
    %8046 = vmatprep.subr.mxu0 0.0
    %8047 = vmatpush1.msra.mxu0 0.0
    %8048 = vmatprep.subr.mxu0 0.0
    %8049 = vmatpush1.msra.mxu0 0.0
    %8050 = vmatprep.subr.mxu0 0.0
    %8051 = vmatpush1.msra.mxu0 0.0
    %8052 = vmatprep.subr.mxu0 0.0
    %8053 = vmatpush1.msra.mxu0 0.0
    %8054 = vmatprep.subr.mxu0 0.0
    %8055 = vmatpush1.msra.mxu0 0.0
    %8056 = vmatprep.subr.mxu0 0.0
    %8057 = vmatpush1.msra.mxu0 0.0
    %8058 = vmatprep.subr.mxu0 0.0
    %8059 = vmatpush1.msra.mxu0 0.0
    %8060 = vmatprep.subr.mxu0 0.0
    %8061 = vmatpush1.msra.mxu0 0.0
    %8062 = vmatprep.subr.mxu0 0.0
    %8063 = vmatpush1.msra.mxu0 0.0
    %8064 = vmatprep.subr.mxu0 0.0
    %8065 = vmatpush1.msra.mxu0 0.0
    %8066 = vmatprep.subr.mxu0 0.0
    %8067 = vmatpush1.msra.mxu0 0.0
    %8068 = vmatprep.subr.mxu0 0.0
    %8069 = vmatpush1.msra.mxu0 0.0
    %8070 = vmatprep.subr.mxu0 0.0
    %8071 = vmatpush1.msra.mxu0 0.0
    %8072 = vmatprep.subr.mxu0 0.0
    %8073 = vmatpush1.msra.mxu0 0.0
    %8074 = vmatprep.subr.mxu0 0.0
    %8075 = vmatpush1.msra.mxu0 0.0
    %8076 = vmatprep.subr.mxu0 0.0
    %8077 = vmatpush1.msra.mxu0 0.0
    %8078 = vmatprep.subr.mxu0 0.0
    %8079 = vmatpush1.msra.mxu0 0.0
    %8080 = vmatprep.subr.mxu0 0.0
    %8081 = vmatpush1.msra.mxu0 0.0
    %8082 = vmatprep.subr.mxu0 0.0
    %8083 = vmatpush1.msra.mxu0 0.0
    %8084 = vmatprep.subr.mxu0 0.0
    %8085 = vmatpush1.msra.mxu0 0.0
    %8086 = vmatprep.mubr.f32.mxu0 0.0
    %v8087 = vand.u32 %v325, 4294901760
    %v8088 = vsub.f32 %v325, %v8087
    %8089 = vmatmul.mubr.f32.gmra.mrb[0].mxu0 %v8088
    %v8090 = vpop.f32.mrb[0].mxu0
    %v8091 = vadd.f32 %v7982, %v8090
    %v8092 = vpop.f32.mrb[0].mxu0
    %v8093 = vadd.f32 %v7984, %v8092
    %8094 = vdwg.mxu0
    %v8095 = vand.u32 %v76, 4294901760
    %8096 = vmatprep.subr.mxu0 %v8095
    %v8097 = vand.u32 %v75, 4294901760
    %8098 = vmatpush1.msra.mxu0 %v8097
    %v8099 = vand.u32 %v106, 4294901760
    %8100 = vmatprep.subr.mxu0 %v8099
    %v8101 = vand.u32 %v105, 4294901760
    %8102 = vmatpush1.msra.mxu0 %v8101
    %v8103 = vand.u32 %v136, 4294901760
    %8104 = vmatprep.subr.mxu0 %v8103
    %v8105 = vand.u32 %v135, 4294901760
    %8106 = vmatpush1.msra.mxu0 %v8105
    %v8107 = vand.u32 %v166, 4294901760
    %8108 = vmatprep.subr.mxu0 %v8107
    %v8109 = vand.u32 %v165, 4294901760
    %8110 = vmatpush1.msra.mxu0 %v8109
    %v8111 = vand.u32 %v196, 4294901760
    %8112 = vmatprep.subr.mxu0 %v8111
    %v8113 = vand.u32 %v195, 4294901760
    %8114 = vmatpush1.msra.mxu0 %v8113
    %v8115 = vand.u32 %v226, 4294901760
    %8116 = vmatprep.subr.mxu0 %v8115
    %v8117 = vand.u32 %v225, 4294901760
    %8118 = vmatpush1.msra.mxu0 %v8117
    %v8119 = vand.u32 %v256, 4294901760
    %8120 = vmatprep.subr.mxu0 %v8119
    %v8121 = vand.u32 %v255, 4294901760
    %8122 = vmatpush1.msra.mxu0 %v8121
    %v8123 = vand.u32 %v286, 4294901760
    %8124 = vmatprep.subr.mxu0 %v8123
    %v8125 = vand.u32 %v285, 4294901760
    %8126 = vmatpush1.msra.mxu0 %v8125
    %v8127 = vand.u32 %v316, 4294901760
    %8128 = vmatprep.subr.mxu0 %v8127
    %v8129 = vand.u32 %v315, 4294901760
    %8130 = vmatpush1.msra.mxu0 %v8129
    %8131 = vmatprep.subr.mxu0 0.0
    %8132 = vmatpush1.msra.mxu0 0.0
    %8133 = vmatprep.subr.mxu0 0.0
    %8134 = vmatpush1.msra.mxu0 0.0
    %8135 = vmatprep.subr.mxu0 0.0
    %8136 = vmatpush1.msra.mxu0 0.0
    %8137 = vmatprep.subr.mxu0 0.0
    %8138 = vmatpush1.msra.mxu0 0.0
    %8139 = vmatprep.subr.mxu0 0.0
    %8140 = vmatpush1.msra.mxu0 0.0
    %8141 = vmatprep.subr.mxu0 0.0
    %8142 = vmatpush1.msra.mxu0 0.0
    %8143 = vmatprep.subr.mxu0 0.0
    %8144 = vmatpush1.msra.mxu0 0.0
    %8145 = vmatprep.subr.mxu0 0.0
    %8146 = vmatpush1.msra.mxu0 0.0
    %8147 = vmatprep.subr.mxu0 0.0
    %8148 = vmatpush1.msra.mxu0 0.0
    %8149 = vmatprep.subr.mxu0 0.0
    %8150 = vmatpush1.msra.mxu0 0.0
    %8151 = vmatprep.subr.mxu0 0.0
    %8152 = vmatpush1.msra.mxu0 0.0
    %8153 = vmatprep.subr.mxu0 0.0
    %8154 = vmatpush1.msra.mxu0 0.0
    %8155 = vmatprep.subr.mxu0 0.0
    %8156 = vmatpush1.msra.mxu0 0.0
    %8157 = vmatprep.subr.mxu0 0.0
    %8158 = vmatpush1.msra.mxu0 0.0
    %8159 = vmatprep.subr.mxu0 0.0
    %8160 = vmatpush1.msra.mxu0 0.0
    %8161 = vmatprep.subr.mxu0 0.0
    %8162 = vmatpush1.msra.mxu0 0.0
    %8163 = vmatprep.subr.mxu0 0.0
    %8164 = vmatpush1.msra.mxu0 0.0
    %8165 = vmatprep.subr.mxu0 0.0
    %8166 = vmatpush1.msra.mxu0 0.0
    %8167 = vmatprep.subr.mxu0 0.0
    %8168 = vmatpush1.msra.mxu0 0.0
    %8169 = vmatprep.subr.mxu0 0.0
    %8170 = vmatpush1.msra.mxu0 0.0
    %8171 = vmatprep.subr.mxu0 0.0
    %8172 = vmatpush1.msra.mxu0 0.0
    %8173 = vmatprep.subr.mxu0 0.0
    %8174 = vmatpush1.msra.mxu0 0.0
    %8175 = vmatprep.subr.mxu0 0.0
    %8176 = vmatpush1.msra.mxu0 0.0
    %8177 = vmatprep.mubr.f32.mxu0 0.0
    %v8178 = vand.u32 %v325, 4294901760
    %v8179 = vsub.f32 %v325, %v8178
    %v8180 = vand.u32 %v8179, 4294901760
    %8181 = vmatmul.mubr.f32.gmra.mrb[0].mxu0 %v8180
    %v8182 = vpop.f32.mrb[0].mxu0
    %v8183 = vadd.f32 %v8091, %v8182
    %v8184 = vpop.f32.mrb[0].mxu0
    %v8185 = vadd.f32 %v8093, %v8184
    %8186 = vdwg.mxu0
    %v8187 = vand.u32 %v76, 4294901760
    %v8188 = vsub.f32 %v76, %v8187
    %v8189 = vand.u32 %v8188, 4294901760
    %8190 = vmatprep.subr.mxu0 %v8189
    %v8191 = vand.u32 %v75, 4294901760
    %v8192 = vsub.f32 %v75, %v8191
    %v8193 = vand.u32 %v8192, 4294901760
    %8194 = vmatpush1.msra.mxu0 %v8193
    %v8195 = vand.u32 %v106, 4294901760
    %v8196 = vsub.f32 %v106, %v8195
    %v8197 = vand.u32 %v8196, 4294901760
    %8198 = vmatprep.subr.mxu0 %v8197
    %v8199 = vand.u32 %v105, 4294901760
    %v8200 = vsub.f32 %v105, %v8199
    %v8201 = vand.u32 %v8200, 4294901760
    %8202 = vmatpush1.msra.mxu0 %v8201
    %v8203 = vand.u32 %v136, 4294901760
    %v8204 = vsub.f32 %v136, %v8203
    %v8205 = vand.u32 %v8204, 4294901760
    %8206 = vmatprep.subr.mxu0 %v8205
    %v8207 = vand.u32 %v135, 4294901760
    %v8208 = vsub.f32 %v135, %v8207
    %v8209 = vand.u32 %v8208, 4294901760
    %8210 = vmatpush1.msra.mxu0 %v8209
    %v8211 = vand.u32 %v166, 4294901760
    %v8212 = vsub.f32 %v166, %v8211
    %v8213 = vand.u32 %v8212, 4294901760
    %8214 = vmatprep.subr.mxu0 %v8213
    %v8215 = vand.u32 %v165, 4294901760
    %v8216 = vsub.f32 %v165, %v8215
    %v8217 = vand.u32 %v8216, 4294901760
    %8218 = vmatpush1.msra.mxu0 %v8217
    %v8219 = vand.u32 %v196, 4294901760
    %v8220 = vsub.f32 %v196, %v8219
    %v8221 = vand.u32 %v8220, 4294901760
    %8222 = vmatprep.subr.mxu0 %v8221
    %v8223 = vand.u32 %v195, 4294901760
    %v8224 = vsub.f32 %v195, %v8223
    %v8225 = vand.u32 %v8224, 4294901760
    %8226 = vmatpush1.msra.mxu0 %v8225
    %v8227 = vand.u32 %v226, 4294901760
    %v8228 = vsub.f32 %v226, %v8227
    %v8229 = vand.u32 %v8228, 4294901760
    %8230 = vmatprep.subr.mxu0 %v8229
    %v8231 = vand.u32 %v225, 4294901760
    %v8232 = vsub.f32 %v225, %v8231
    %v8233 = vand.u32 %v8232, 4294901760
    %8234 = vmatpush1.msra.mxu0 %v8233
    %v8235 = vand.u32 %v256, 4294901760
    %v8236 = vsub.f32 %v256, %v8235
    %v8237 = vand.u32 %v8236, 4294901760
    %8238 = vmatprep.subr.mxu0 %v8237
    %v8239 = vand.u32 %v255, 4294901760
    %v8240 = vsub.f32 %v255, %v8239
    %v8241 = vand.u32 %v8240, 4294901760
    %8242 = vmatpush1.msra.mxu0 %v8241
    %v8243 = vand.u32 %v286, 4294901760
    %v8244 = vsub.f32 %v286, %v8243
    %v8245 = vand.u32 %v8244, 4294901760
    %8246 = vmatprep.subr.mxu0 %v8245
    %v8247 = vand.u32 %v285, 4294901760
    %v8248 = vsub.f32 %v285, %v8247
    %v8249 = vand.u32 %v8248, 4294901760
    %8250 = vmatpush1.msra.mxu0 %v8249
    %v8251 = vand.u32 %v316, 4294901760
    %v8252 = vsub.f32 %v316, %v8251
    %v8253 = vand.u32 %v8252, 4294901760
    %8254 = vmatprep.subr.mxu0 %v8253
    %v8255 = vand.u32 %v315, 4294901760
    %v8256 = vsub.f32 %v315, %v8255
    %v8257 = vand.u32 %v8256, 4294901760
    %8258 = vmatpush1.msra.mxu0 %v8257
    %8259 = vmatprep.subr.mxu0 0.0
    %8260 = vmatpush1.msra.mxu0 0.0
    %8261 = vmatprep.subr.mxu0 0.0
    %8262 = vmatpush1.msra.mxu0 0.0
    %8263 = vmatprep.subr.mxu0 0.0
    %8264 = vmatpush1.msra.mxu0 0.0
    %8265 = vmatprep.subr.mxu0 0.0
    %8266 = vmatpush1.msra.mxu0 0.0
    %8267 = vmatprep.subr.mxu0 0.0
    %8268 = vmatpush1.msra.mxu0 0.0
    %8269 = vmatprep.subr.mxu0 0.0
    %8270 = vmatpush1.msra.mxu0 0.0
    %8271 = vmatprep.subr.mxu0 0.0
    %8272 = vmatpush1.msra.mxu0 0.0
    %8273 = vmatprep.subr.mxu0 0.0
    %8274 = vmatpush1.msra.mxu0 0.0
    %8275 = vmatprep.subr.mxu0 0.0
    %8276 = vmatpush1.msra.mxu0 0.0
    %8277 = vmatprep.subr.mxu0 0.0
    %8278 = vmatpush1.msra.mxu0 0.0
    %8279 = vmatprep.subr.mxu0 0.0
    %8280 = vmatpush1.msra.mxu0 0.0
    %8281 = vmatprep.subr.mxu0 0.0
    %8282 = vmatpush1.msra.mxu0 0.0
    %8283 = vmatprep.subr.mxu0 0.0
    %8284 = vmatpush1.msra.mxu0 0.0
    %8285 = vmatprep.subr.mxu0 0.0
    %8286 = vmatpush1.msra.mxu0 0.0
    %8287 = vmatprep.subr.mxu0 0.0
    %8288 = vmatpush1.msra.mxu0 0.0
    %8289 = vmatprep.subr.mxu0 0.0
    %8290 = vmatpush1.msra.mxu0 0.0
    %8291 = vmatprep.subr.mxu0 0.0
    %8292 = vmatpush1.msra.mxu0 0.0
    %8293 = vmatprep.subr.mxu0 0.0
    %8294 = vmatpush1.msra.mxu0 0.0
    %8295 = vmatprep.subr.mxu0 0.0
    %8296 = vmatpush1.msra.mxu0 0.0
    %8297 = vmatprep.subr.mxu0 0.0
    %8298 = vmatpush1.msra.mxu0 0.0
    %8299 = vmatprep.subr.mxu0 0.0
    %8300 = vmatpush1.msra.mxu0 0.0
    %8301 = vmatprep.subr.mxu0 0.0
    %8302 = vmatpush1.msra.mxu0 0.0
    %8303 = vmatprep.subr.mxu0 0.0
    %8304 = vmatpush1.msra.mxu0 0.0
    %8305 = vmatprep.mubr.f32.mxu0 0.0
    %v8306 = vand.u32 %v325, 4294901760
    %8307 = vmatmul.mubr.f32.gmra.mrb[0].mxu0 %v8306
    %v8308 = vpop.f32.mrb[0].mxu0
    %v8309 = vadd.f32 %v8183, %v8308
    %v8310 = vpop.f32.mrb[0].mxu0
    %v8311 = vadd.f32 %v8185, %v8310
    %8312 = vdwg.mxu0
    %v8313 = vand.u32 %v76, 4294901760
    %8314 = vmatprep.subr.mxu0 %v8313
    %v8315 = vand.u32 %v75, 4294901760
    %8316 = vmatpush1.msra.mxu0 %v8315
    %v8317 = vand.u32 %v106, 4294901760
    %8318 = vmatprep.subr.mxu0 %v8317
    %v8319 = vand.u32 %v105, 4294901760
    %8320 = vmatpush1.msra.mxu0 %v8319
    %v8321 = vand.u32 %v136, 4294901760
    %8322 = vmatprep.subr.mxu0 %v8321
    %v8323 = vand.u32 %v135, 4294901760
    %8324 = vmatpush1.msra.mxu0 %v8323
    %v8325 = vand.u32 %v166, 4294901760
    %8326 = vmatprep.subr.mxu0 %v8325
    %v8327 = vand.u32 %v165, 4294901760
    %8328 = vmatpush1.msra.mxu0 %v8327
    %v8329 = vand.u32 %v196, 4294901760
    %8330 = vmatprep.subr.mxu0 %v8329
    %v8331 = vand.u32 %v195, 4294901760
    %8332 = vmatpush1.msra.mxu0 %v8331
    %v8333 = vand.u32 %v226, 4294901760
    %8334 = vmatprep.subr.mxu0 %v8333
    %v8335 = vand.u32 %v225, 4294901760
    %8336 = vmatpush1.msra.mxu0 %v8335
    %v8337 = vand.u32 %v256, 4294901760
    %8338 = vmatprep.subr.mxu0 %v8337
    %v8339 = vand.u32 %v255, 4294901760
    %8340 = vmatpush1.msra.mxu0 %v8339
    %v8341 = vand.u32 %v286, 4294901760
    %8342 = vmatprep.subr.mxu0 %v8341
    %v8343 = vand.u32 %v285, 4294901760
    %8344 = vmatpush1.msra.mxu0 %v8343
    %v8345 = vand.u32 %v316, 4294901760
    %8346 = vmatprep.subr.mxu0 %v8345
    %v8347 = vand.u32 %v315, 4294901760
    %8348 = vmatpush1.msra.mxu0 %v8347
    %8349 = vmatprep.subr.mxu0 0.0
    %8350 = vmatpush1.msra.mxu0 0.0
    %8351 = vmatprep.subr.mxu0 0.0
    %8352 = vmatpush1.msra.mxu0 0.0
    %8353 = vmatprep.subr.mxu0 0.0
    %8354 = vmatpush1.msra.mxu0 0.0
    %8355 = vmatprep.subr.mxu0 0.0
    %8356 = vmatpush1.msra.mxu0 0.0
    %8357 = vmatprep.subr.mxu0 0.0
    %8358 = vmatpush1.msra.mxu0 0.0
    %8359 = vmatprep.subr.mxu0 0.0
    %8360 = vmatpush1.msra.mxu0 0.0
    %8361 = vmatprep.subr.mxu0 0.0
    %8362 = vmatpush1.msra.mxu0 0.0
    %8363 = vmatprep.subr.mxu0 0.0
    %8364 = vmatpush1.msra.mxu0 0.0
    %8365 = vmatprep.subr.mxu0 0.0
    %8366 = vmatpush1.msra.mxu0 0.0
    %8367 = vmatprep.subr.mxu0 0.0
    %8368 = vmatpush1.msra.mxu0 0.0
    %8369 = vmatprep.subr.mxu0 0.0
    %8370 = vmatpush1.msra.mxu0 0.0
    %8371 = vmatprep.subr.mxu0 0.0
    %8372 = vmatpush1.msra.mxu0 0.0
    %8373 = vmatprep.subr.mxu0 0.0
    %8374 = vmatpush1.msra.mxu0 0.0
    %8375 = vmatprep.subr.mxu0 0.0
    %8376 = vmatpush1.msra.mxu0 0.0
    %8377 = vmatprep.subr.mxu0 0.0
    %8378 = vmatpush1.msra.mxu0 0.0
    %8379 = vmatprep.subr.mxu0 0.0
    %8380 = vmatpush1.msra.mxu0 0.0
    %8381 = vmatprep.subr.mxu0 0.0
    %8382 = vmatpush1.msra.mxu0 0.0
    %8383 = vmatprep.subr.mxu0 0.0
    %8384 = vmatpush1.msra.mxu0 0.0
    %8385 = vmatprep.subr.mxu0 0.0
    %8386 = vmatpush1.msra.mxu0 0.0
    %8387 = vmatprep.subr.mxu0 0.0
    %8388 = vmatpush1.msra.mxu0 0.0
    %8389 = vmatprep.subr.mxu0 0.0
    %8390 = vmatpush1.msra.mxu0 0.0
    %8391 = vmatprep.subr.mxu0 0.0
    %8392 = vmatpush1.msra.mxu0 0.0
    %8393 = vmatprep.subr.mxu0 0.0
    %8394 = vmatpush1.msra.mxu0 0.0
    %8395 = vmatprep.mubr.f32.mxu0 0.0
    %v8396 = vand.u32 %v325, 4294901760
    %8397 = vmatmul.mubr.f32.gmra.mrb[0].mxu0 %v8396
    %v8398 = vpop.f32.mrb[0].mxu0
    %v8399 = vadd.f32 %v8309, %v8398
    %v8400 = vpop.f32.mrb[0].mxu0
    %v8401 = vadd.f32 %v8311, %v8400
    %8402 = vdwg.mxu0
    %v8403 = vand.u32 %v78, 4294901760
    %8404 = vmatprep.subr.mxu0 %v8403
    %v8405 = vand.u32 %v77, 4294901760
    %8406 = vmatpush1.msra.mxu0 %v8405
    %v8407 = vand.u32 %v108, 4294901760
    %8408 = vmatprep.subr.mxu0 %v8407
    %v8409 = vand.u32 %v107, 4294901760
    %8410 = vmatpush1.msra.mxu0 %v8409
    %v8411 = vand.u32 %v138, 4294901760
    %8412 = vmatprep.subr.mxu0 %v8411
    %v8413 = vand.u32 %v137, 4294901760
    %8414 = vmatpush1.msra.mxu0 %v8413
    %v8415 = vand.u32 %v168, 4294901760
    %8416 = vmatprep.subr.mxu0 %v8415
    %v8417 = vand.u32 %v167, 4294901760
    %8418 = vmatpush1.msra.mxu0 %v8417
    %v8419 = vand.u32 %v198, 4294901760
    %8420 = vmatprep.subr.mxu0 %v8419
    %v8421 = vand.u32 %v197, 4294901760
    %8422 = vmatpush1.msra.mxu0 %v8421
    %v8423 = vand.u32 %v228, 4294901760
    %8424 = vmatprep.subr.mxu0 %v8423
    %v8425 = vand.u32 %v227, 4294901760
    %8426 = vmatpush1.msra.mxu0 %v8425
    %v8427 = vand.u32 %v258, 4294901760
    %8428 = vmatprep.subr.mxu0 %v8427
    %v8429 = vand.u32 %v257, 4294901760
    %8430 = vmatpush1.msra.mxu0 %v8429
    %v8431 = vand.u32 %v288, 4294901760
    %8432 = vmatprep.subr.mxu0 %v8431
    %v8433 = vand.u32 %v287, 4294901760
    %8434 = vmatpush1.msra.mxu0 %v8433
    %v8435 = vand.u32 %v318, 4294901760
    %8436 = vmatprep.subr.mxu0 %v8435
    %v8437 = vand.u32 %v317, 4294901760
    %8438 = vmatpush1.msra.mxu0 %v8437
    %8439 = vmatprep.subr.mxu0 0.0
    %8440 = vmatpush1.msra.mxu0 0.0
    %8441 = vmatprep.subr.mxu0 0.0
    %8442 = vmatpush1.msra.mxu0 0.0
    %8443 = vmatprep.subr.mxu0 0.0
    %8444 = vmatpush1.msra.mxu0 0.0
    %8445 = vmatprep.subr.mxu0 0.0
    %8446 = vmatpush1.msra.mxu0 0.0
    %8447 = vmatprep.subr.mxu0 0.0
    %8448 = vmatpush1.msra.mxu0 0.0
    %8449 = vmatprep.subr.mxu0 0.0
    %8450 = vmatpush1.msra.mxu0 0.0
    %8451 = vmatprep.subr.mxu0 0.0
    %8452 = vmatpush1.msra.mxu0 0.0
    %8453 = vmatprep.subr.mxu0 0.0
    %8454 = vmatpush1.msra.mxu0 0.0
    %8455 = vmatprep.subr.mxu0 0.0
    %8456 = vmatpush1.msra.mxu0 0.0
    %8457 = vmatprep.subr.mxu0 0.0
    %8458 = vmatpush1.msra.mxu0 0.0
    %8459 = vmatprep.subr.mxu0 0.0
    %8460 = vmatpush1.msra.mxu0 0.0
    %8461 = vmatprep.subr.mxu0 0.0
    %8462 = vmatpush1.msra.mxu0 0.0
    %8463 = vmatprep.subr.mxu0 0.0
    %8464 = vmatpush1.msra.mxu0 0.0
    %8465 = vmatprep.subr.mxu0 0.0
    %8466 = vmatpush1.msra.mxu0 0.0
    %8467 = vmatprep.subr.mxu0 0.0
    %8468 = vmatpush1.msra.mxu0 0.0
    %8469 = vmatprep.subr.mxu0 0.0
    %8470 = vmatpush1.msra.mxu0 0.0
    %8471 = vmatprep.subr.mxu0 0.0
    %8472 = vmatpush1.msra.mxu0 0.0
    %8473 = vmatprep.subr.mxu0 0.0
    %8474 = vmatpush1.msra.mxu0 0.0
    %8475 = vmatprep.subr.mxu0 0.0
    %8476 = vmatpush1.msra.mxu0 0.0
    %8477 = vmatprep.subr.mxu0 0.0
    %8478 = vmatpush1.msra.mxu0 0.0
    %8479 = vmatprep.subr.mxu0 0.0
    %8480 = vmatpush1.msra.mxu0 0.0
    %8481 = vmatprep.subr.mxu0 0.0
    %8482 = vmatpush1.msra.mxu0 0.0
    %8483 = vmatprep.subr.mxu0 0.0
    %8484 = vmatpush1.msra.mxu0 0.0
    %8485 = vmatprep.mubr.f32.mxu0 0.0
    %v8486 = vand.u32 %v325, 4294901760
    %v8487 = vsub.f32 %v325, %v8486
    %v8488 = vand.u32 %v8487, 4294901760
    %v8489 = vsub.f32 %v8487, %v8488
    %v8490 = vand.u32 %v8489, 4294901760
    %8491 = vmatmul.mubr.f32.gmra.mrb[0].mxu0 %v8490
    %v8492 = vpop.f32.mrb[0].mxu0
    %v8493 = vadd.f32 0.0, %v8492
    %v8494 = vpop.f32.mrb[0].mxu0
    %v8495 = vadd.f32 0.0, %v8494
    %8496 = vdwg.mxu0
    %v8497 = vand.u32 %v78, 4294901760
    %v8498 = vsub.f32 %v78, %v8497
    %v8499 = vand.u32 %v8498, 4294901760
    %v8500 = vsub.f32 %v8498, %v8499
    %v8501 = vand.u32 %v8500, 4294901760
    %8502 = vmatprep.subr.mxu0 %v8501
    %v8503 = vand.u32 %v77, 4294901760
    %v8504 = vsub.f32 %v77, %v8503
    %v8505 = vand.u32 %v8504, 4294901760
    %v8506 = vsub.f32 %v8504, %v8505
    %v8507 = vand.u32 %v8506, 4294901760
    %8508 = vmatpush1.msra.mxu0 %v8507
    %v8509 = vand.u32 %v108, 4294901760
    %v8510 = vsub.f32 %v108, %v8509
    %v8511 = vand.u32 %v8510, 4294901760
    %v8512 = vsub.f32 %v8510, %v8511
    %v8513 = vand.u32 %v8512, 4294901760
    %8514 = vmatprep.subr.mxu0 %v8513
    %v8515 = vand.u32 %v107, 4294901760
    %v8516 = vsub.f32 %v107, %v8515
    %v8517 = vand.u32 %v8516, 4294901760
    %v8518 = vsub.f32 %v8516, %v8517
    %v8519 = vand.u32 %v8518, 4294901760
    %8520 = vmatpush1.msra.mxu0 %v8519
    %v8521 = vand.u32 %v138, 4294901760
    %v8522 = vsub.f32 %v138, %v8521
    %v8523 = vand.u32 %v8522, 4294901760
    %v8524 = vsub.f32 %v8522, %v8523
    %v8525 = vand.u32 %v8524, 4294901760
    %8526 = vmatprep.subr.mxu0 %v8525
    %v8527 = vand.u32 %v137, 4294901760
    %v8528 = vsub.f32 %v137, %v8527
    %v8529 = vand.u32 %v8528, 4294901760
    %v8530 = vsub.f32 %v8528, %v8529
    %v8531 = vand.u32 %v8530, 4294901760
    %8532 = vmatpush1.msra.mxu0 %v8531
    %v8533 = vand.u32 %v168, 4294901760
    %v8534 = vsub.f32 %v168, %v8533
    %v8535 = vand.u32 %v8534, 4294901760
    %v8536 = vsub.f32 %v8534, %v8535
    %v8537 = vand.u32 %v8536, 4294901760
    %8538 = vmatprep.subr.mxu0 %v8537
    %v8539 = vand.u32 %v167, 4294901760
    %v8540 = vsub.f32 %v167, %v8539
    %v8541 = vand.u32 %v8540, 4294901760
    %v8542 = vsub.f32 %v8540, %v8541
    %v8543 = vand.u32 %v8542, 4294901760
    %8544 = vmatpush1.msra.mxu0 %v8543
    %v8545 = vand.u32 %v198, 4294901760
    %v8546 = vsub.f32 %v198, %v8545
    %v8547 = vand.u32 %v8546, 4294901760
    %v8548 = vsub.f32 %v8546, %v8547
    %v8549 = vand.u32 %v8548, 4294901760
    %8550 = vmatprep.subr.mxu0 %v8549
    %v8551 = vand.u32 %v197, 4294901760
    %v8552 = vsub.f32 %v197, %v8551
    %v8553 = vand.u32 %v8552, 4294901760
    %v8554 = vsub.f32 %v8552, %v8553
    %v8555 = vand.u32 %v8554, 4294901760
    %8556 = vmatpush1.msra.mxu0 %v8555
    %v8557 = vand.u32 %v228, 4294901760
    %v8558 = vsub.f32 %v228, %v8557
    %v8559 = vand.u32 %v8558, 4294901760
    %v8560 = vsub.f32 %v8558, %v8559
    %v8561 = vand.u32 %v8560, 4294901760
    %8562 = vmatprep.subr.mxu0 %v8561
    %v8563 = vand.u32 %v227, 4294901760
    %v8564 = vsub.f32 %v227, %v8563
    %v8565 = vand.u32 %v8564, 4294901760
    %v8566 = vsub.f32 %v8564, %v8565
    %v8567 = vand.u32 %v8566, 4294901760
    %8568 = vmatpush1.msra.mxu0 %v8567
    %v8569 = vand.u32 %v258, 4294901760
    %v8570 = vsub.f32 %v258, %v8569
    %v8571 = vand.u32 %v8570, 4294901760
    %v8572 = vsub.f32 %v8570, %v8571
    %v8573 = vand.u32 %v8572, 4294901760
    %8574 = vmatprep.subr.mxu0 %v8573
    %v8575 = vand.u32 %v257, 4294901760
    %v8576 = vsub.f32 %v257, %v8575
    %v8577 = vand.u32 %v8576, 4294901760
    %v8578 = vsub.f32 %v8576, %v8577
    %v8579 = vand.u32 %v8578, 4294901760
    %8580 = vmatpush1.msra.mxu0 %v8579
    %v8581 = vand.u32 %v288, 4294901760
    %v8582 = vsub.f32 %v288, %v8581
    %v8583 = vand.u32 %v8582, 4294901760
    %v8584 = vsub.f32 %v8582, %v8583
    %v8585 = vand.u32 %v8584, 4294901760
    %8586 = vmatprep.subr.mxu0 %v8585
    %v8587 = vand.u32 %v287, 4294901760
    %v8588 = vsub.f32 %v287, %v8587
    %v8589 = vand.u32 %v8588, 4294901760
    %v8590 = vsub.f32 %v8588, %v8589
    %v8591 = vand.u32 %v8590, 4294901760
    %8592 = vmatpush1.msra.mxu0 %v8591
    %v8593 = vand.u32 %v318, 4294901760
    %v8594 = vsub.f32 %v318, %v8593
    %v8595 = vand.u32 %v8594, 4294901760
    %v8596 = vsub.f32 %v8594, %v8595
    %v8597 = vand.u32 %v8596, 4294901760
    %8598 = vmatprep.subr.mxu0 %v8597
    %v8599 = vand.u32 %v317, 4294901760
    %v8600 = vsub.f32 %v317, %v8599
    %v8601 = vand.u32 %v8600, 4294901760
    %v8602 = vsub.f32 %v8600, %v8601
    %v8603 = vand.u32 %v8602, 4294901760
    %8604 = vmatpush1.msra.mxu0 %v8603
    %8605 = vmatprep.subr.mxu0 0.0
    %8606 = vmatpush1.msra.mxu0 0.0
    %8607 = vmatprep.subr.mxu0 0.0
    %8608 = vmatpush1.msra.mxu0 0.0
    %8609 = vmatprep.subr.mxu0 0.0
    %8610 = vmatpush1.msra.mxu0 0.0
    %8611 = vmatprep.subr.mxu0 0.0
    %8612 = vmatpush1.msra.mxu0 0.0
    %8613 = vmatprep.subr.mxu0 0.0
    %8614 = vmatpush1.msra.mxu0 0.0
    %8615 = vmatprep.subr.mxu0 0.0
    %8616 = vmatpush1.msra.mxu0 0.0
    %8617 = vmatprep.subr.mxu0 0.0
    %8618 = vmatpush1.msra.mxu0 0.0
    %8619 = vmatprep.subr.mxu0 0.0
    %8620 = vmatpush1.msra.mxu0 0.0
    %8621 = vmatprep.subr.mxu0 0.0
    %8622 = vmatpush1.msra.mxu0 0.0
    %8623 = vmatprep.subr.mxu0 0.0
    %8624 = vmatpush1.msra.mxu0 0.0
    %8625 = vmatprep.subr.mxu0 0.0
    %8626 = vmatpush1.msra.mxu0 0.0
    %8627 = vmatprep.subr.mxu0 0.0
    %8628 = vmatpush1.msra.mxu0 0.0
    %8629 = vmatprep.subr.mxu0 0.0
    %8630 = vmatpush1.msra.mxu0 0.0
    %8631 = vmatprep.subr.mxu0 0.0
    %8632 = vmatpush1.msra.mxu0 0.0
    %8633 = vmatprep.subr.mxu0 0.0
    %8634 = vmatpush1.msra.mxu0 0.0
    %8635 = vmatprep.subr.mxu0 0.0
    %8636 = vmatpush1.msra.mxu0 0.0
    %8637 = vmatprep.subr.mxu0 0.0
    %8638 = vmatpush1.msra.mxu0 0.0
    %8639 = vmatprep.subr.mxu0 0.0
    %8640 = vmatpush1.msra.mxu0 0.0
    %8641 = vmatprep.subr.mxu0 0.0
    %8642 = vmatpush1.msra.mxu0 0.0
    %8643 = vmatprep.subr.mxu0 0.0
    %8644 = vmatpush1.msra.mxu0 0.0
    %8645 = vmatprep.subr.mxu0 0.0
    %8646 = vmatpush1.msra.mxu0 0.0
    %8647 = vmatprep.subr.mxu0 0.0
    %8648 = vmatpush1.msra.mxu0 0.0
    %8649 = vmatprep.subr.mxu0 0.0
    %8650 = vmatpush1.msra.mxu0 0.0
    %8651 = vmatprep.mubr.f32.mxu0 0.0
    %v8652 = vand.u32 %v325, 4294901760
    %8653 = vmatmul.mubr.f32.gmra.mrb[0].mxu0 %v8652
    %v8654 = vpop.f32.mrb[0].mxu0
    %v8655 = vadd.f32 %v8493, %v8654
    %v8656 = vpop.f32.mrb[0].mxu0
    %v8657 = vadd.f32 %v8495, %v8656
    %8658 = vdwg.mxu0
    %v8659 = vand.u32 %v78, 4294901760
    %v8660 = vsub.f32 %v78, %v8659
    %8661 = vmatprep.subr.mxu0 %v8660
    %v8662 = vand.u32 %v77, 4294901760
    %v8663 = vsub.f32 %v77, %v8662
    %8664 = vmatpush1.msra.mxu0 %v8663
    %v8665 = vand.u32 %v108, 4294901760
    %v8666 = vsub.f32 %v108, %v8665
    %8667 = vmatprep.subr.mxu0 %v8666
    %v8668 = vand.u32 %v107, 4294901760
    %v8669 = vsub.f32 %v107, %v8668
    %8670 = vmatpush1.msra.mxu0 %v8669
    %v8671 = vand.u32 %v138, 4294901760
    %v8672 = vsub.f32 %v138, %v8671
    %8673 = vmatprep.subr.mxu0 %v8672
    %v8674 = vand.u32 %v137, 4294901760
    %v8675 = vsub.f32 %v137, %v8674
    %8676 = vmatpush1.msra.mxu0 %v8675
    %v8677 = vand.u32 %v168, 4294901760
    %v8678 = vsub.f32 %v168, %v8677
    %8679 = vmatprep.subr.mxu0 %v8678
    %v8680 = vand.u32 %v167, 4294901760
    %v8681 = vsub.f32 %v167, %v8680
    %8682 = vmatpush1.msra.mxu0 %v8681
    %v8683 = vand.u32 %v198, 4294901760
    %v8684 = vsub.f32 %v198, %v8683
    %8685 = vmatprep.subr.mxu0 %v8684
    %v8686 = vand.u32 %v197, 4294901760
    %v8687 = vsub.f32 %v197, %v8686
    %8688 = vmatpush1.msra.mxu0 %v8687
    %v8689 = vand.u32 %v228, 4294901760
    %v8690 = vsub.f32 %v228, %v8689
    %8691 = vmatprep.subr.mxu0 %v8690
    %v8692 = vand.u32 %v227, 4294901760
    %v8693 = vsub.f32 %v227, %v8692
    %8694 = vmatpush1.msra.mxu0 %v8693
    %v8695 = vand.u32 %v258, 4294901760
    %v8696 = vsub.f32 %v258, %v8695
    %8697 = vmatprep.subr.mxu0 %v8696
    %v8698 = vand.u32 %v257, 4294901760
    %v8699 = vsub.f32 %v257, %v8698
    %8700 = vmatpush1.msra.mxu0 %v8699
    %v8701 = vand.u32 %v288, 4294901760
    %v8702 = vsub.f32 %v288, %v8701
    %8703 = vmatprep.subr.mxu0 %v8702
    %v8704 = vand.u32 %v287, 4294901760
    %v8705 = vsub.f32 %v287, %v8704
    %8706 = vmatpush1.msra.mxu0 %v8705
    %v8707 = vand.u32 %v318, 4294901760
    %v8708 = vsub.f32 %v318, %v8707
    %8709 = vmatprep.subr.mxu0 %v8708
    %v8710 = vand.u32 %v317, 4294901760
    %v8711 = vsub.f32 %v317, %v8710
    %8712 = vmatpush1.msra.mxu0 %v8711
    %8713 = vmatprep.subr.mxu0 0.0
    %8714 = vmatpush1.msra.mxu0 0.0
    %8715 = vmatprep.subr.mxu0 0.0
    %8716 = vmatpush1.msra.mxu0 0.0
    %8717 = vmatprep.subr.mxu0 0.0
    %8718 = vmatpush1.msra.mxu0 0.0
    %8719 = vmatprep.subr.mxu0 0.0
    %8720 = vmatpush1.msra.mxu0 0.0
    %8721 = vmatprep.subr.mxu0 0.0
    %8722 = vmatpush1.msra.mxu0 0.0
    %8723 = vmatprep.subr.mxu0 0.0
    %8724 = vmatpush1.msra.mxu0 0.0
    %8725 = vmatprep.subr.mxu0 0.0
    %8726 = vmatpush1.msra.mxu0 0.0
    %8727 = vmatprep.subr.mxu0 0.0
    %8728 = vmatpush1.msra.mxu0 0.0
    %8729 = vmatprep.subr.mxu0 0.0
    %8730 = vmatpush1.msra.mxu0 0.0
    %8731 = vmatprep.subr.mxu0 0.0
    %8732 = vmatpush1.msra.mxu0 0.0
    %8733 = vmatprep.subr.mxu0 0.0
    %8734 = vmatpush1.msra.mxu0 0.0
    %8735 = vmatprep.subr.mxu0 0.0
    %8736 = vmatpush1.msra.mxu0 0.0
    %8737 = vmatprep.subr.mxu0 0.0
    %8738 = vmatpush1.msra.mxu0 0.0
    %8739 = vmatprep.subr.mxu0 0.0
    %8740 = vmatpush1.msra.mxu0 0.0
    %8741 = vmatprep.subr.mxu0 0.0
    %8742 = vmatpush1.msra.mxu0 0.0
    %8743 = vmatprep.subr.mxu0 0.0
    %8744 = vmatpush1.msra.mxu0 0.0
    %8745 = vmatprep.subr.mxu0 0.0
    %8746 = vmatpush1.msra.mxu0 0.0
    %8747 = vmatprep.subr.mxu0 0.0
    %8748 = vmatpush1.msra.mxu0 0.0
    %8749 = vmatprep.subr.mxu0 0.0
    %8750 = vmatpush1.msra.mxu0 0.0
    %8751 = vmatprep.subr.mxu0 0.0
    %8752 = vmatpush1.msra.mxu0 0.0
    %8753 = vmatprep.subr.mxu0 0.0
    %8754 = vmatpush1.msra.mxu0 0.0
    %8755 = vmatprep.subr.mxu0 0.0
    %8756 = vmatpush1.msra.mxu0 0.0
    %8757 = vmatprep.subr.mxu0 0.0
    %8758 = vmatpush1.msra.mxu0 0.0
    %8759 = vmatprep.mubr.f32.mxu0 0.0
    %v8760 = vand.u32 %v325, 4294901760
    %v8761 = vsub.f32 %v325, %v8760
    %8762 = vmatmul.mubr.f32.gmra.mrb[0].mxu0 %v8761
    %v8763 = vpop.f32.mrb[0].mxu0
    %v8764 = vadd.f32 %v8655, %v8763
    %v8765 = vpop.f32.mrb[0].mxu0
    %v8766 = vadd.f32 %v8657, %v8765
    %8767 = vdwg.mxu0
    %v8768 = vand.u32 %v78, 4294901760
    %8769 = vmatprep.subr.mxu0 %v8768
    %v8770 = vand.u32 %v77, 4294901760
    %8771 = vmatpush1.msra.mxu0 %v8770
    %v8772 = vand.u32 %v108, 4294901760
    %8773 = vmatprep.subr.mxu0 %v8772
    %v8774 = vand.u32 %v107, 4294901760
    %8775 = vmatpush1.msra.mxu0 %v8774
    %v8776 = vand.u32 %v138, 4294901760
    %8777 = vmatprep.subr.mxu0 %v8776
    %v8778 = vand.u32 %v137, 4294901760
    %8779 = vmatpush1.msra.mxu0 %v8778
    %v8780 = vand.u32 %v168, 4294901760
    %8781 = vmatprep.subr.mxu0 %v8780
    %v8782 = vand.u32 %v167, 4294901760
    %8783 = vmatpush1.msra.mxu0 %v8782
    %v8784 = vand.u32 %v198, 4294901760
    %8785 = vmatprep.subr.mxu0 %v8784
    %v8786 = vand.u32 %v197, 4294901760
    %8787 = vmatpush1.msra.mxu0 %v8786
    %v8788 = vand.u32 %v228, 4294901760
    %8789 = vmatprep.subr.mxu0 %v8788
    %v8790 = vand.u32 %v227, 4294901760
    %8791 = vmatpush1.msra.mxu0 %v8790
    %v8792 = vand.u32 %v258, 4294901760
    %8793 = vmatprep.subr.mxu0 %v8792
    %v8794 = vand.u32 %v257, 4294901760
    %8795 = vmatpush1.msra.mxu0 %v8794
    %v8796 = vand.u32 %v288, 4294901760
    %8797 = vmatprep.subr.mxu0 %v8796
    %v8798 = vand.u32 %v287, 4294901760
    %8799 = vmatpush1.msra.mxu0 %v8798
    %v8800 = vand.u32 %v318, 4294901760
    %8801 = vmatprep.subr.mxu0 %v8800
    %v8802 = vand.u32 %v317, 4294901760
    %8803 = vmatpush1.msra.mxu0 %v8802
    %8804 = vmatprep.subr.mxu0 0.0
    %8805 = vmatpush1.msra.mxu0 0.0
    %8806 = vmatprep.subr.mxu0 0.0
    %8807 = vmatpush1.msra.mxu0 0.0
    %8808 = vmatprep.subr.mxu0 0.0
    %8809 = vmatpush1.msra.mxu0 0.0
    %8810 = vmatprep.subr.mxu0 0.0
    %8811 = vmatpush1.msra.mxu0 0.0
    %8812 = vmatprep.subr.mxu0 0.0
    %8813 = vmatpush1.msra.mxu0 0.0
    %8814 = vmatprep.subr.mxu0 0.0
    %8815 = vmatpush1.msra.mxu0 0.0
    %8816 = vmatprep.subr.mxu0 0.0
    %8817 = vmatpush1.msra.mxu0 0.0
    %8818 = vmatprep.subr.mxu0 0.0
    %8819 = vmatpush1.msra.mxu0 0.0
    %8820 = vmatprep.subr.mxu0 0.0
    %8821 = vmatpush1.msra.mxu0 0.0
    %8822 = vmatprep.subr.mxu0 0.0
    %8823 = vmatpush1.msra.mxu0 0.0
    %8824 = vmatprep.subr.mxu0 0.0
    %8825 = vmatpush1.msra.mxu0 0.0
    %8826 = vmatprep.subr.mxu0 0.0
    %8827 = vmatpush1.msra.mxu0 0.0
    %8828 = vmatprep.subr.mxu0 0.0
    %8829 = vmatpush1.msra.mxu0 0.0
    %8830 = vmatprep.subr.mxu0 0.0
    %8831 = vmatpush1.msra.mxu0 0.0
    %8832 = vmatprep.subr.mxu0 0.0
    %8833 = vmatpush1.msra.mxu0 0.0
    %8834 = vmatprep.subr.mxu0 0.0
    %8835 = vmatpush1.msra.mxu0 0.0
    %8836 = vmatprep.subr.mxu0 0.0
    %8837 = vmatpush1.msra.mxu0 0.0
    %8838 = vmatprep.subr.mxu0 0.0
    %8839 = vmatpush1.msra.mxu0 0.0
    %8840 = vmatprep.subr.mxu0 0.0
    %8841 = vmatpush1.msra.mxu0 0.0
    %8842 = vmatprep.subr.mxu0 0.0
    %8843 = vmatpush1.msra.mxu0 0.0
    %8844 = vmatprep.subr.mxu0 0.0
    %8845 = vmatpush1.msra.mxu0 0.0
    %8846 = vmatprep.subr.mxu0 0.0
    %8847 = vmatpush1.msra.mxu0 0.0
    %8848 = vmatprep.subr.mxu0 0.0
    %8849 = vmatpush1.msra.mxu0 0.0
    %8850 = vmatprep.mubr.f32.mxu0 0.0
    %v8851 = vand.u32 %v325, 4294901760
    %v8852 = vsub.f32 %v325, %v8851
    %v8853 = vand.u32 %v8852, 4294901760
    %8854 = vmatmul.mubr.f32.gmra.mrb[0].mxu0 %v8853
    %v8855 = vpop.f32.mrb[0].mxu0
    %v8856 = vadd.f32 %v8764, %v8855
    %v8857 = vpop.f32.mrb[0].mxu0
    %v8858 = vadd.f32 %v8766, %v8857
    %8859 = vdwg.mxu0
    %v8860 = vand.u32 %v78, 4294901760
    %v8861 = vsub.f32 %v78, %v8860
    %v8862 = vand.u32 %v8861, 4294901760
    %8863 = vmatprep.subr.mxu0 %v8862
    %v8864 = vand.u32 %v77, 4294901760
    %v8865 = vsub.f32 %v77, %v8864
    %v8866 = vand.u32 %v8865, 4294901760
    %8867 = vmatpush1.msra.mxu0 %v8866
    %v8868 = vand.u32 %v108, 4294901760
    %v8869 = vsub.f32 %v108, %v8868
    %v8870 = vand.u32 %v8869, 4294901760
    %8871 = vmatprep.subr.mxu0 %v8870
    %v8872 = vand.u32 %v107, 4294901760
    %v8873 = vsub.f32 %v107, %v8872
    %v8874 = vand.u32 %v8873, 4294901760
    %8875 = vmatpush1.msra.mxu0 %v8874
    %v8876 = vand.u32 %v138, 4294901760
    %v8877 = vsub.f32 %v138, %v8876
    %v8878 = vand.u32 %v8877, 4294901760
    %8879 = vmatprep.subr.mxu0 %v8878
    %v8880 = vand.u32 %v137, 4294901760
    %v8881 = vsub.f32 %v137, %v8880
    %v8882 = vand.u32 %v8881, 4294901760
    %8883 = vmatpush1.msra.mxu0 %v8882
    %v8884 = vand.u32 %v168, 4294901760
    %v8885 = vsub.f32 %v168, %v8884
    %v8886 = vand.u32 %v8885, 4294901760
    %8887 = vmatprep.subr.mxu0 %v8886
    %v8888 = vand.u32 %v167, 4294901760
    %v8889 = vsub.f32 %v167, %v8888
    %v8890 = vand.u32 %v8889, 4294901760
    %8891 = vmatpush1.msra.mxu0 %v8890
    %v8892 = vand.u32 %v198, 4294901760
    %v8893 = vsub.f32 %v198, %v8892
    %v8894 = vand.u32 %v8893, 4294901760
    %8895 = vmatprep.subr.mxu0 %v8894
    %v8896 = vand.u32 %v197, 4294901760
    %v8897 = vsub.f32 %v197, %v8896
    %v8898 = vand.u32 %v8897, 4294901760
    %8899 = vmatpush1.msra.mxu0 %v8898
    %v8900 = vand.u32 %v228, 4294901760
    %v8901 = vsub.f32 %v228, %v8900
    %v8902 = vand.u32 %v8901, 4294901760
    %8903 = vmatprep.subr.mxu0 %v8902
    %v8904 = vand.u32 %v227, 4294901760
    %v8905 = vsub.f32 %v227, %v8904
    %v8906 = vand.u32 %v8905, 4294901760
    %8907 = vmatpush1.msra.mxu0 %v8906
    %v8908 = vand.u32 %v258, 4294901760
    %v8909 = vsub.f32 %v258, %v8908
    %v8910 = vand.u32 %v8909, 4294901760
    %8911 = vmatprep.subr.mxu0 %v8910
    %v8912 = vand.u32 %v257, 4294901760
    %v8913 = vsub.f32 %v257, %v8912
    %v8914 = vand.u32 %v8913, 4294901760
    %8915 = vmatpush1.msra.mxu0 %v8914
    %v8916 = vand.u32 %v288, 4294901760
    %v8917 = vsub.f32 %v288, %v8916
    %v8918 = vand.u32 %v8917, 4294901760
    %8919 = vmatprep.subr.mxu0 %v8918
    %v8920 = vand.u32 %v287, 4294901760
    %v8921 = vsub.f32 %v287, %v8920
    %v8922 = vand.u32 %v8921, 4294901760
    %8923 = vmatpush1.msra.mxu0 %v8922
    %v8924 = vand.u32 %v318, 4294901760
    %v8925 = vsub.f32 %v318, %v8924
    %v8926 = vand.u32 %v8925, 4294901760
    %8927 = vmatprep.subr.mxu0 %v8926
    %v8928 = vand.u32 %v317, 4294901760
    %v8929 = vsub.f32 %v317, %v8928
    %v8930 = vand.u32 %v8929, 4294901760
    %8931 = vmatpush1.msra.mxu0 %v8930
    %8932 = vmatprep.subr.mxu0 0.0
    %8933 = vmatpush1.msra.mxu0 0.0
    %8934 = vmatprep.subr.mxu0 0.0
    %8935 = vmatpush1.msra.mxu0 0.0
    %8936 = vmatprep.subr.mxu0 0.0
    %8937 = vmatpush1.msra.mxu0 0.0
    %8938 = vmatprep.subr.mxu0 0.0
    %8939 = vmatpush1.msra.mxu0 0.0
    %8940 = vmatprep.subr.mxu0 0.0
    %8941 = vmatpush1.msra.mxu0 0.0
    %8942 = vmatprep.subr.mxu0 0.0
    %8943 = vmatpush1.msra.mxu0 0.0
    %8944 = vmatprep.subr.mxu0 0.0
    %8945 = vmatpush1.msra.mxu0 0.0
    %8946 = vmatprep.subr.mxu0 0.0
    %8947 = vmatpush1.msra.mxu0 0.0
    %8948 = vmatprep.subr.mxu0 0.0
    %8949 = vmatpush1.msra.mxu0 0.0
    %8950 = vmatprep.subr.mxu0 0.0
    %8951 = vmatpush1.msra.mxu0 0.0
    %8952 = vmatprep.subr.mxu0 0.0
    %8953 = vmatpush1.msra.mxu0 0.0
    %8954 = vmatprep.subr.mxu0 0.0
    %8955 = vmatpush1.msra.mxu0 0.0
    %8956 = vmatprep.subr.mxu0 0.0
    %8957 = vmatpush1.msra.mxu0 0.0
    %8958 = vmatprep.subr.mxu0 0.0
    %8959 = vmatpush1.msra.mxu0 0.0
    %8960 = vmatprep.subr.mxu0 0.0
    %8961 = vmatpush1.msra.mxu0 0.0
    %8962 = vmatprep.subr.mxu0 0.0
    %8963 = vmatpush1.msra.mxu0 0.0
    %8964 = vmatprep.subr.mxu0 0.0
    %8965 = vmatpush1.msra.mxu0 0.0
    %8966 = vmatprep.subr.mxu0 0.0
    %8967 = vmatpush1.msra.mxu0 0.0
    %8968 = vmatprep.subr.mxu0 0.0
    %8969 = vmatpush1.msra.mxu0 0.0
    %8970 = vmatprep.subr.mxu0 0.0
    %8971 = vmatpush1.msra.mxu0 0.0
    %8972 = vmatprep.subr.mxu0 0.0
    %8973 = vmatpush1.msra.mxu0 0.0
    %8974 = vmatprep.subr.mxu0 0.0
    %8975 = vmatpush1.msra.mxu0 0.0
    %8976 = vmatprep.subr.mxu0 0.0
    %8977 = vmatpush1.msra.mxu0 0.0
    %8978 = vmatprep.mubr.f32.mxu0 0.0
    %v8979 = vand.u32 %v325, 4294901760
    %8980 = vmatmul.mubr.f32.gmra.mrb[0].mxu0 %v8979
    %v8981 = vpop.f32.mrb[0].mxu0
    %v8982 = vadd.f32 %v8856, %v8981
    %v8983 = vpop.f32.mrb[0].mxu0
    %v8984 = vadd.f32 %v8858, %v8983
    %8985 = vdwg.mxu0
    %v8986 = vand.u32 %v78, 4294901760
    %8987 = vmatprep.subr.mxu0 %v8986
    %v8988 = vand.u32 %v77, 4294901760
    %8989 = vmatpush1.msra.mxu0 %v8988
    %v8990 = vand.u32 %v108, 4294901760
    %8991 = vmatprep.subr.mxu0 %v8990
    %v8992 = vand.u32 %v107, 4294901760
    %8993 = vmatpush1.msra.mxu0 %v8992
    %v8994 = vand.u32 %v138, 4294901760
    %8995 = vmatprep.subr.mxu0 %v8994
    %v8996 = vand.u32 %v137, 4294901760
    %8997 = vmatpush1.msra.mxu0 %v8996
    %v8998 = vand.u32 %v168, 4294901760
    %8999 = vmatprep.subr.mxu0 %v8998
    %v9000 = vand.u32 %v167, 4294901760
    %9001 = vmatpush1.msra.mxu0 %v9000
    %v9002 = vand.u32 %v198, 4294901760
    %9003 = vmatprep.subr.mxu0 %v9002
    %v9004 = vand.u32 %v197, 4294901760
    %9005 = vmatpush1.msra.mxu0 %v9004
    %v9006 = vand.u32 %v228, 4294901760
    %9007 = vmatprep.subr.mxu0 %v9006
    %v9008 = vand.u32 %v227, 4294901760
    %9009 = vmatpush1.msra.mxu0 %v9008
    %v9010 = vand.u32 %v258, 4294901760
    %9011 = vmatprep.subr.mxu0 %v9010
    %v9012 = vand.u32 %v257, 4294901760
    %9013 = vmatpush1.msra.mxu0 %v9012
    %v9014 = vand.u32 %v288, 4294901760
    %9015 = vmatprep.subr.mxu0 %v9014
    %v9016 = vand.u32 %v287, 4294901760
    %9017 = vmatpush1.msra.mxu0 %v9016
    %v9018 = vand.u32 %v318, 4294901760
    %9019 = vmatprep.subr.mxu0 %v9018
    %v9020 = vand.u32 %v317, 4294901760
    %9021 = vmatpush1.msra.mxu0 %v9020
    %9022 = vmatprep.subr.mxu0 0.0
    %9023 = vmatpush1.msra.mxu0 0.0
    %9024 = vmatprep.subr.mxu0 0.0
    %9025 = vmatpush1.msra.mxu0 0.0
    %9026 = vmatprep.subr.mxu0 0.0
    %9027 = vmatpush1.msra.mxu0 0.0
    %9028 = vmatprep.subr.mxu0 0.0
    %9029 = vmatpush1.msra.mxu0 0.0
    %9030 = vmatprep.subr.mxu0 0.0
    %9031 = vmatpush1.msra.mxu0 0.0
    %9032 = vmatprep.subr.mxu0 0.0
    %9033 = vmatpush1.msra.mxu0 0.0
    %9034 = vmatprep.subr.mxu0 0.0
    %9035 = vmatpush1.msra.mxu0 0.0
    %9036 = vmatprep.subr.mxu0 0.0
    %9037 = vmatpush1.msra.mxu0 0.0
    %9038 = vmatprep.subr.mxu0 0.0
    %9039 = vmatpush1.msra.mxu0 0.0
    %9040 = vmatprep.subr.mxu0 0.0
    %9041 = vmatpush1.msra.mxu0 0.0
    %9042 = vmatprep.subr.mxu0 0.0
    %9043 = vmatpush1.msra.mxu0 0.0
    %9044 = vmatprep.subr.mxu0 0.0
    %9045 = vmatpush1.msra.mxu0 0.0
    %9046 = vmatprep.subr.mxu0 0.0
    %9047 = vmatpush1.msra.mxu0 0.0
    %9048 = vmatprep.subr.mxu0 0.0
    %9049 = vmatpush1.msra.mxu0 0.0
    %9050 = vmatprep.subr.mxu0 0.0
    %9051 = vmatpush1.msra.mxu0 0.0
    %9052 = vmatprep.subr.mxu0 0.0
    %9053 = vmatpush1.msra.mxu0 0.0
    %9054 = vmatprep.subr.mxu0 0.0
    %9055 = vmatpush1.msra.mxu0 0.0
    %9056 = vmatprep.subr.mxu0 0.0
    %9057 = vmatpush1.msra.mxu0 0.0
    %9058 = vmatprep.subr.mxu0 0.0
    %9059 = vmatpush1.msra.mxu0 0.0
    %9060 = vmatprep.subr.mxu0 0.0
    %9061 = vmatpush1.msra.mxu0 0.0
    %9062 = vmatprep.subr.mxu0 0.0
    %9063 = vmatpush1.msra.mxu0 0.0
    %9064 = vmatprep.subr.mxu0 0.0
    %9065 = vmatpush1.msra.mxu0 0.0
    %9066 = vmatprep.subr.mxu0 0.0
    %9067 = vmatpush1.msra.mxu0 0.0
    %9068 = vmatprep.mubr.f32.mxu0 0.0
    %v9069 = vand.u32 %v325, 4294901760
    %9070 = vmatmul.mubr.f32.gmra.mrb[0].mxu0 %v9069
    %v9071 = vpop.f32.mrb[0].mxu0
    %v9072 = vadd.f32 %v8982, %v9071
    %v9073 = vpop.f32.mrb[0].mxu0
    %v9074 = vadd.f32 %v8984, %v9073
    %9075 = vdwg.mxu0
    %v9076 = vand.u32 %v80, 4294901760
    %9077 = vmatprep.subr.mxu0 %v9076
    %v9078 = vand.u32 %v79, 4294901760
    %9079 = vmatpush1.msra.mxu0 %v9078
    %v9080 = vand.u32 %v110, 4294901760
    %9081 = vmatprep.subr.mxu0 %v9080
    %v9082 = vand.u32 %v109, 4294901760
    %9083 = vmatpush1.msra.mxu0 %v9082
    %v9084 = vand.u32 %v140, 4294901760
    %9085 = vmatprep.subr.mxu0 %v9084
    %v9086 = vand.u32 %v139, 4294901760
    %9087 = vmatpush1.msra.mxu0 %v9086
    %v9088 = vand.u32 %v170, 4294901760
    %9089 = vmatprep.subr.mxu0 %v9088
    %v9090 = vand.u32 %v169, 4294901760
    %9091 = vmatpush1.msra.mxu0 %v9090
    %v9092 = vand.u32 %v200, 4294901760
    %9093 = vmatprep.subr.mxu0 %v9092
    %v9094 = vand.u32 %v199, 4294901760
    %9095 = vmatpush1.msra.mxu0 %v9094
    %v9096 = vand.u32 %v230, 4294901760
    %9097 = vmatprep.subr.mxu0 %v9096
    %v9098 = vand.u32 %v229, 4294901760
    %9099 = vmatpush1.msra.mxu0 %v9098
    %v9100 = vand.u32 %v260, 4294901760
    %9101 = vmatprep.subr.mxu0 %v9100
    %v9102 = vand.u32 %v259, 4294901760
    %9103 = vmatpush1.msra.mxu0 %v9102
    %v9104 = vand.u32 %v290, 4294901760
    %9105 = vmatprep.subr.mxu0 %v9104
    %v9106 = vand.u32 %v289, 4294901760
    %9107 = vmatpush1.msra.mxu0 %v9106
    %v9108 = vand.u32 %v320, 4294901760
    %9109 = vmatprep.subr.mxu0 %v9108
    %v9110 = vand.u32 %v319, 4294901760
    %9111 = vmatpush1.msra.mxu0 %v9110
    %9112 = vmatprep.subr.mxu0 0.0
    %9113 = vmatpush1.msra.mxu0 0.0
    %9114 = vmatprep.subr.mxu0 0.0
    %9115 = vmatpush1.msra.mxu0 0.0
    %9116 = vmatprep.subr.mxu0 0.0
    %9117 = vmatpush1.msra.mxu0 0.0
    %9118 = vmatprep.subr.mxu0 0.0
    %9119 = vmatpush1.msra.mxu0 0.0
    %9120 = vmatprep.subr.mxu0 0.0
    %9121 = vmatpush1.msra.mxu0 0.0
    %9122 = vmatprep.subr.mxu0 0.0
    %9123 = vmatpush1.msra.mxu0 0.0
    %9124 = vmatprep.subr.mxu0 0.0
    %9125 = vmatpush1.msra.mxu0 0.0
    %9126 = vmatprep.subr.mxu0 0.0
    %9127 = vmatpush1.msra.mxu0 0.0
    %9128 = vmatprep.subr.mxu0 0.0
    %9129 = vmatpush1.msra.mxu0 0.0
    %9130 = vmatprep.subr.mxu0 0.0
    %9131 = vmatpush1.msra.mxu0 0.0
    %9132 = vmatprep.subr.mxu0 0.0
    %9133 = vmatpush1.msra.mxu0 0.0
    %9134 = vmatprep.subr.mxu0 0.0
    %9135 = vmatpush1.msra.mxu0 0.0
    %9136 = vmatprep.subr.mxu0 0.0
    %9137 = vmatpush1.msra.mxu0 0.0
    %9138 = vmatprep.subr.mxu0 0.0
    %9139 = vmatpush1.msra.mxu0 0.0
    %9140 = vmatprep.subr.mxu0 0.0
    %9141 = vmatpush1.msra.mxu0 0.0
    %9142 = vmatprep.subr.mxu0 0.0
    %9143 = vmatpush1.msra.mxu0 0.0
    %9144 = vmatprep.subr.mxu0 0.0
    %9145 = vmatpush1.msra.mxu0 0.0
    %9146 = vmatprep.subr.mxu0 0.0
    %9147 = vmatpush1.msra.mxu0 0.0
    %9148 = vmatprep.subr.mxu0 0.0
    %9149 = vmatpush1.msra.mxu0 0.0
    %9150 = vmatprep.subr.mxu0 0.0
    %9151 = vmatpush1.msra.mxu0 0.0
    %9152 = vmatprep.subr.mxu0 0.0
    %9153 = vmatpush1.msra.mxu0 0.0
    %9154 = vmatprep.subr.mxu0 0.0
    %9155 = vmatpush1.msra.mxu0 0.0
    %9156 = vmatprep.subr.mxu0 0.0
    %9157 = vmatpush1.msra.mxu0 0.0
    %9158 = vmatprep.mubr.f32.mxu0 0.0
    %v9159 = vand.u32 %v325, 4294901760
    %v9160 = vsub.f32 %v325, %v9159
    %v9161 = vand.u32 %v9160, 4294901760
    %v9162 = vsub.f32 %v9160, %v9161
    %v9163 = vand.u32 %v9162, 4294901760
    %9164 = vmatmul.mubr.f32.gmra.mrb[0].mxu0 %v9163
    %v9165 = vpop.f32.mrb[0].mxu0
    %v9166 = vadd.f32 0.0, %v9165
    %v9167 = vpop.f32.mrb[0].mxu0
    %v9168 = vadd.f32 0.0, %v9167
    %9169 = vdwg.mxu0
    %v9170 = vand.u32 %v80, 4294901760
    %v9171 = vsub.f32 %v80, %v9170
    %v9172 = vand.u32 %v9171, 4294901760
    %v9173 = vsub.f32 %v9171, %v9172
    %v9174 = vand.u32 %v9173, 4294901760
    %9175 = vmatprep.subr.mxu0 %v9174
    %v9176 = vand.u32 %v79, 4294901760
    %v9177 = vsub.f32 %v79, %v9176
    %v9178 = vand.u32 %v9177, 4294901760
    %v9179 = vsub.f32 %v9177, %v9178
    %v9180 = vand.u32 %v9179, 4294901760
    %9181 = vmatpush1.msra.mxu0 %v9180
    %v9182 = vand.u32 %v110, 4294901760
    %v9183 = vsub.f32 %v110, %v9182
    %v9184 = vand.u32 %v9183, 4294901760
    %v9185 = vsub.f32 %v9183, %v9184
    %v9186 = vand.u32 %v9185, 4294901760
    %9187 = vmatprep.subr.mxu0 %v9186
    %v9188 = vand.u32 %v109, 4294901760
    %v9189 = vsub.f32 %v109, %v9188
    %v9190 = vand.u32 %v9189, 4294901760
    %v9191 = vsub.f32 %v9189, %v9190
    %v9192 = vand.u32 %v9191, 4294901760
    %9193 = vmatpush1.msra.mxu0 %v9192
    %v9194 = vand.u32 %v140, 4294901760
    %v9195 = vsub.f32 %v140, %v9194
    %v9196 = vand.u32 %v9195, 4294901760
    %v9197 = vsub.f32 %v9195, %v9196
    %v9198 = vand.u32 %v9197, 4294901760
    %9199 = vmatprep.subr.mxu0 %v9198
    %v9200 = vand.u32 %v139, 4294901760
    %v9201 = vsub.f32 %v139, %v9200
    %v9202 = vand.u32 %v9201, 4294901760
    %v9203 = vsub.f32 %v9201, %v9202
    %v9204 = vand.u32 %v9203, 4294901760
    %9205 = vmatpush1.msra.mxu0 %v9204
    %v9206 = vand.u32 %v170, 4294901760
    %v9207 = vsub.f32 %v170, %v9206
    %v9208 = vand.u32 %v9207, 4294901760
    %v9209 = vsub.f32 %v9207, %v9208
    %v9210 = vand.u32 %v9209, 4294901760
    %9211 = vmatprep.subr.mxu0 %v9210
    %v9212 = vand.u32 %v169, 4294901760
    %v9213 = vsub.f32 %v169, %v9212
    %v9214 = vand.u32 %v9213, 4294901760
    %v9215 = vsub.f32 %v9213, %v9214
    %v9216 = vand.u32 %v9215, 4294901760
    %9217 = vmatpush1.msra.mxu0 %v9216
    %v9218 = vand.u32 %v200, 4294901760
    %v9219 = vsub.f32 %v200, %v9218
    %v9220 = vand.u32 %v9219, 4294901760
    %v9221 = vsub.f32 %v9219, %v9220
    %v9222 = vand.u32 %v9221, 4294901760
    %9223 = vmatprep.subr.mxu0 %v9222
    %v9224 = vand.u32 %v199, 4294901760
    %v9225 = vsub.f32 %v199, %v9224
    %v9226 = vand.u32 %v9225, 4294901760
    %v9227 = vsub.f32 %v9225, %v9226
    %v9228 = vand.u32 %v9227, 4294901760
    %9229 = vmatpush1.msra.mxu0 %v9228
    %v9230 = vand.u32 %v230, 4294901760
    %v9231 = vsub.f32 %v230, %v9230
    %v9232 = vand.u32 %v9231, 4294901760
    %v9233 = vsub.f32 %v9231, %v9232
    %v9234 = vand.u32 %v9233, 4294901760
    %9235 = vmatprep.subr.mxu0 %v9234
    %v9236 = vand.u32 %v229, 4294901760
    %v9237 = vsub.f32 %v229, %v9236
    %v9238 = vand.u32 %v9237, 4294901760
    %v9239 = vsub.f32 %v9237, %v9238
    %v9240 = vand.u32 %v9239, 4294901760
    %9241 = vmatpush1.msra.mxu0 %v9240
    %v9242 = vand.u32 %v260, 4294901760
    %v9243 = vsub.f32 %v260, %v9242
    %v9244 = vand.u32 %v9243, 4294901760
    %v9245 = vsub.f32 %v9243, %v9244
    %v9246 = vand.u32 %v9245, 4294901760
    %9247 = vmatprep.subr.mxu0 %v9246
    %v9248 = vand.u32 %v259, 4294901760
    %v9249 = vsub.f32 %v259, %v9248
    %v9250 = vand.u32 %v9249, 4294901760
    %v9251 = vsub.f32 %v9249, %v9250
    %v9252 = vand.u32 %v9251, 4294901760
    %9253 = vmatpush1.msra.mxu0 %v9252
    %v9254 = vand.u32 %v290, 4294901760
    %v9255 = vsub.f32 %v290, %v9254
    %v9256 = vand.u32 %v9255, 4294901760
    %v9257 = vsub.f32 %v9255, %v9256
    %v9258 = vand.u32 %v9257, 4294901760
    %9259 = vmatprep.subr.mxu0 %v9258
    %v9260 = vand.u32 %v289, 4294901760
    %v9261 = vsub.f32 %v289, %v9260
    %v9262 = vand.u32 %v9261, 4294901760
    %v9263 = vsub.f32 %v9261, %v9262
    %v9264 = vand.u32 %v9263, 4294901760
    %9265 = vmatpush1.msra.mxu0 %v9264
    %v9266 = vand.u32 %v320, 4294901760
    %v9267 = vsub.f32 %v320, %v9266
    %v9268 = vand.u32 %v9267, 4294901760
    %v9269 = vsub.f32 %v9267, %v9268
    %v9270 = vand.u32 %v9269, 4294901760
    %9271 = vmatprep.subr.mxu0 %v9270
    %v9272 = vand.u32 %v319, 4294901760
    %v9273 = vsub.f32 %v319, %v9272
    %v9274 = vand.u32 %v9273, 4294901760
    %v9275 = vsub.f32 %v9273, %v9274
    %v9276 = vand.u32 %v9275, 4294901760
    %9277 = vmatpush1.msra.mxu0 %v9276
    %9278 = vmatprep.subr.mxu0 0.0
    %9279 = vmatpush1.msra.mxu0 0.0
    %9280 = vmatprep.subr.mxu0 0.0
    %9281 = vmatpush1.msra.mxu0 0.0
    %9282 = vmatprep.subr.mxu0 0.0
    %9283 = vmatpush1.msra.mxu0 0.0
    %9284 = vmatprep.subr.mxu0 0.0
    %9285 = vmatpush1.msra.mxu0 0.0
    %9286 = vmatprep.subr.mxu0 0.0
    %9287 = vmatpush1.msra.mxu0 0.0
    %9288 = vmatprep.subr.mxu0 0.0
    %9289 = vmatpush1.msra.mxu0 0.0
    %9290 = vmatprep.subr.mxu0 0.0
    %9291 = vmatpush1.msra.mxu0 0.0
    %9292 = vmatprep.subr.mxu0 0.0
    %9293 = vmatpush1.msra.mxu0 0.0
    %9294 = vmatprep.subr.mxu0 0.0
    %9295 = vmatpush1.msra.mxu0 0.0
    %9296 = vmatprep.subr.mxu0 0.0
    %9297 = vmatpush1.msra.mxu0 0.0
    %9298 = vmatprep.subr.mxu0 0.0
    %9299 = vmatpush1.msra.mxu0 0.0
    %9300 = vmatprep.subr.mxu0 0.0
    %9301 = vmatpush1.msra.mxu0 0.0
    %9302 = vmatprep.subr.mxu0 0.0
    %9303 = vmatpush1.msra.mxu0 0.0
    %9304 = vmatprep.subr.mxu0 0.0
    %9305 = vmatpush1.msra.mxu0 0.0
    %9306 = vmatprep.subr.mxu0 0.0
    %9307 = vmatpush1.msra.mxu0 0.0
    %9308 = vmatprep.subr.mxu0 0.0
    %9309 = vmatpush1.msra.mxu0 0.0
    %9310 = vmatprep.subr.mxu0 0.0
    %9311 = vmatpush1.msra.mxu0 0.0
    %9312 = vmatprep.subr.mxu0 0.0
    %9313 = vmatpush1.msra.mxu0 0.0
    %9314 = vmatprep.subr.mxu0 0.0
    %9315 = vmatpush1.msra.mxu0 0.0
    %9316 = vmatprep.subr.mxu0 0.0
    %9317 = vmatpush1.msra.mxu0 0.0
    %9318 = vmatprep.subr.mxu0 0.0
    %9319 = vmatpush1.msra.mxu0 0.0
    %9320 = vmatprep.subr.mxu0 0.0
    %9321 = vmatpush1.msra.mxu0 0.0
    %9322 = vmatprep.subr.mxu0 0.0
    %9323 = vmatpush1.msra.mxu0 0.0
    %9324 = vmatprep.mubr.f32.mxu0 0.0
    %v9325 = vand.u32 %v325, 4294901760
    %9326 = vmatmul.mubr.f32.gmra.mrb[0].mxu0 %v9325
    %v9327 = vpop.f32.mrb[0].mxu0
    %v9328 = vadd.f32 %v9166, %v9327
    %v9329 = vpop.f32.mrb[0].mxu0
    %v9330 = vadd.f32 %v9168, %v9329
    %9331 = vdwg.mxu0
    %v9332 = vand.u32 %v80, 4294901760
    %v9333 = vsub.f32 %v80, %v9332
    %9334 = vmatprep.subr.mxu0 %v9333
    %v9335 = vand.u32 %v79, 4294901760
    %v9336 = vsub.f32 %v79, %v9335
    %9337 = vmatpush1.msra.mxu0 %v9336
    %v9338 = vand.u32 %v110, 4294901760
    %v9339 = vsub.f32 %v110, %v9338
    %9340 = vmatprep.subr.mxu0 %v9339
    %v9341 = vand.u32 %v109, 4294901760
    %v9342 = vsub.f32 %v109, %v9341
    %9343 = vmatpush1.msra.mxu0 %v9342
    %v9344 = vand.u32 %v140, 4294901760
    %v9345 = vsub.f32 %v140, %v9344
    %9346 = vmatprep.subr.mxu0 %v9345
    %v9347 = vand.u32 %v139, 4294901760
    %v9348 = vsub.f32 %v139, %v9347
    %9349 = vmatpush1.msra.mxu0 %v9348
    %v9350 = vand.u32 %v170, 4294901760
    %v9351 = vsub.f32 %v170, %v9350
    %9352 = vmatprep.subr.mxu0 %v9351
    %v9353 = vand.u32 %v169, 4294901760
    %v9354 = vsub.f32 %v169, %v9353
    %9355 = vmatpush1.msra.mxu0 %v9354
    %v9356 = vand.u32 %v200, 4294901760
    %v9357 = vsub.f32 %v200, %v9356
    %9358 = vmatprep.subr.mxu0 %v9357
    %v9359 = vand.u32 %v199, 4294901760
    %v9360 = vsub.f32 %v199, %v9359
    %9361 = vmatpush1.msra.mxu0 %v9360
    %v9362 = vand.u32 %v230, 4294901760
    %v9363 = vsub.f32 %v230, %v9362
    %9364 = vmatprep.subr.mxu0 %v9363
    %v9365 = vand.u32 %v229, 4294901760
    %v9366 = vsub.f32 %v229, %v9365
    %9367 = vmatpush1.msra.mxu0 %v9366
    %v9368 = vand.u32 %v260, 4294901760
    %v9369 = vsub.f32 %v260, %v9368
    %9370 = vmatprep.subr.mxu0 %v9369
    %v9371 = vand.u32 %v259, 4294901760
    %v9372 = vsub.f32 %v259, %v9371
    %9373 = vmatpush1.msra.mxu0 %v9372
    %v9374 = vand.u32 %v290, 4294901760
    %v9375 = vsub.f32 %v290, %v9374
    %9376 = vmatprep.subr.mxu0 %v9375
    %v9377 = vand.u32 %v289, 4294901760
    %v9378 = vsub.f32 %v289, %v9377
    %9379 = vmatpush1.msra.mxu0 %v9378
    %v9380 = vand.u32 %v320, 4294901760
    %v9381 = vsub.f32 %v320, %v9380
    %9382 = vmatprep.subr.mxu0 %v9381
    %v9383 = vand.u32 %v319, 4294901760
    %v9384 = vsub.f32 %v319, %v9383
    %9385 = vmatpush1.msra.mxu0 %v9384
    %9386 = vmatprep.subr.mxu0 0.0
    %9387 = vmatpush1.msra.mxu0 0.0
    %9388 = vmatprep.subr.mxu0 0.0
    %9389 = vmatpush1.msra.mxu0 0.0
    %9390 = vmatprep.subr.mxu0 0.0
    %9391 = vmatpush1.msra.mxu0 0.0
    %9392 = vmatprep.subr.mxu0 0.0
    %9393 = vmatpush1.msra.mxu0 0.0
    %9394 = vmatprep.subr.mxu0 0.0
    %9395 = vmatpush1.msra.mxu0 0.0
    %9396 = vmatprep.subr.mxu0 0.0
    %9397 = vmatpush1.msra.mxu0 0.0
    %9398 = vmatprep.subr.mxu0 0.0
    %9399 = vmatpush1.msra.mxu0 0.0
    %9400 = vmatprep.subr.mxu0 0.0
    %9401 = vmatpush1.msra.mxu0 0.0
    %9402 = vmatprep.subr.mxu0 0.0
    %9403 = vmatpush1.msra.mxu0 0.0
    %9404 = vmatprep.subr.mxu0 0.0
    %9405 = vmatpush1.msra.mxu0 0.0
    %9406 = vmatprep.subr.mxu0 0.0
    %9407 = vmatpush1.msra.mxu0 0.0
    %9408 = vmatprep.subr.mxu0 0.0
    %9409 = vmatpush1.msra.mxu0 0.0
    %9410 = vmatprep.subr.mxu0 0.0
    %9411 = vmatpush1.msra.mxu0 0.0
    %9412 = vmatprep.subr.mxu0 0.0
    %9413 = vmatpush1.msra.mxu0 0.0
    %9414 = vmatprep.subr.mxu0 0.0
    %9415 = vmatpush1.msra.mxu0 0.0
    %9416 = vmatprep.subr.mxu0 0.0
    %9417 = vmatpush1.msra.mxu0 0.0
    %9418 = vmatprep.subr.mxu0 0.0
    %9419 = vmatpush1.msra.mxu0 0.0
    %9420 = vmatprep.subr.mxu0 0.0
    %9421 = vmatpush1.msra.mxu0 0.0
    %9422 = vmatprep.subr.mxu0 0.0
    %9423 = vmatpush1.msra.mxu0 0.0
    %9424 = vmatprep.subr.mxu0 0.0
    %9425 = vmatpush1.msra.mxu0 0.0
    %9426 = vmatprep.subr.mxu0 0.0
    %9427 = vmatpush1.msra.mxu0 0.0
    %9428 = vmatprep.subr.mxu0 0.0
    %9429 = vmatpush1.msra.mxu0 0.0
    %9430 = vmatprep.subr.mxu0 0.0
    %9431 = vmatpush1.msra.mxu0 0.0
    %9432 = vmatprep.mubr.f32.mxu0 0.0
    %v9433 = vand.u32 %v325, 4294901760
    %v9434 = vsub.f32 %v325, %v9433
    %9435 = vmatmul.mubr.f32.gmra.mrb[0].mxu0 %v9434
    %v9436 = vpop.f32.mrb[0].mxu0
    %v9437 = vadd.f32 %v9328, %v9436
    %v9438 = vpop.f32.mrb[0].mxu0
    %v9439 = vadd.f32 %v9330, %v9438
    %9440 = vdwg.mxu0
    %v9441 = vand.u32 %v80, 4294901760
    %9442 = vmatprep.subr.mxu0 %v9441
    %v9443 = vand.u32 %v79, 4294901760
    %9444 = vmatpush1.msra.mxu0 %v9443
    %v9445 = vand.u32 %v110, 4294901760
    %9446 = vmatprep.subr.mxu0 %v9445
    %v9447 = vand.u32 %v109, 4294901760
    %9448 = vmatpush1.msra.mxu0 %v9447
    %v9449 = vand.u32 %v140, 4294901760
    %9450 = vmatprep.subr.mxu0 %v9449
    %v9451 = vand.u32 %v139, 4294901760
    %9452 = vmatpush1.msra.mxu0 %v9451
    %v9453 = vand.u32 %v170, 4294901760
    %9454 = vmatprep.subr.mxu0 %v9453
    %v9455 = vand.u32 %v169, 4294901760
    %9456 = vmatpush1.msra.mxu0 %v9455
    %v9457 = vand.u32 %v200, 4294901760
    %9458 = vmatprep.subr.mxu0 %v9457
    %v9459 = vand.u32 %v199, 4294901760
    %9460 = vmatpush1.msra.mxu0 %v9459
    %v9461 = vand.u32 %v230, 4294901760
    %9462 = vmatprep.subr.mxu0 %v9461
    %v9463 = vand.u32 %v229, 4294901760
    %9464 = vmatpush1.msra.mxu0 %v9463
    %v9465 = vand.u32 %v260, 4294901760
    %9466 = vmatprep.subr.mxu0 %v9465
    %v9467 = vand.u32 %v259, 4294901760
    %9468 = vmatpush1.msra.mxu0 %v9467
    %v9469 = vand.u32 %v290, 4294901760
    %9470 = vmatprep.subr.mxu0 %v9469
    %v9471 = vand.u32 %v289, 4294901760
    %9472 = vmatpush1.msra.mxu0 %v9471
    %v9473 = vand.u32 %v320, 4294901760
    %9474 = vmatprep.subr.mxu0 %v9473
    %v9475 = vand.u32 %v319, 4294901760
    %9476 = vmatpush1.msra.mxu0 %v9475
    %9477 = vmatprep.subr.mxu0 0.0
    %9478 = vmatpush1.msra.mxu0 0.0
    %9479 = vmatprep.subr.mxu0 0.0
    %9480 = vmatpush1.msra.mxu0 0.0
    %9481 = vmatprep.subr.mxu0 0.0
    %9482 = vmatpush1.msra.mxu0 0.0
    %9483 = vmatprep.subr.mxu0 0.0
    %9484 = vmatpush1.msra.mxu0 0.0
    %9485 = vmatprep.subr.mxu0 0.0
    %9486 = vmatpush1.msra.mxu0 0.0
    %9487 = vmatprep.subr.mxu0 0.0
    %9488 = vmatpush1.msra.mxu0 0.0
    %9489 = vmatprep.subr.mxu0 0.0
    %9490 = vmatpush1.msra.mxu0 0.0
    %9491 = vmatprep.subr.mxu0 0.0
    %9492 = vmatpush1.msra.mxu0 0.0
    %9493 = vmatprep.subr.mxu0 0.0
    %9494 = vmatpush1.msra.mxu0 0.0
    %9495 = vmatprep.subr.mxu0 0.0
    %9496 = vmatpush1.msra.mxu0 0.0
    %9497 = vmatprep.subr.mxu0 0.0
    %9498 = vmatpush1.msra.mxu0 0.0
    %9499 = vmatprep.subr.mxu0 0.0
    %9500 = vmatpush1.msra.mxu0 0.0
    %9501 = vmatprep.subr.mxu0 0.0
    %9502 = vmatpush1.msra.mxu0 0.0
    %9503 = vmatprep.subr.mxu0 0.0
    %9504 = vmatpush1.msra.mxu0 0.0
    %9505 = vmatprep.subr.mxu0 0.0
    %9506 = vmatpush1.msra.mxu0 0.0
    %9507 = vmatprep.subr.mxu0 0.0
    %9508 = vmatpush1.msra.mxu0 0.0
    %9509 = vmatprep.subr.mxu0 0.0
    %9510 = vmatpush1.msra.mxu0 0.0
    %9511 = vmatprep.subr.mxu0 0.0
    %9512 = vmatpush1.msra.mxu0 0.0
    %9513 = vmatprep.subr.mxu0 0.0
    %9514 = vmatpush1.msra.mxu0 0.0
    %9515 = vmatprep.subr.mxu0 0.0
    %9516 = vmatpush1.msra.mxu0 0.0
    %9517 = vmatprep.subr.mxu0 0.0
    %9518 = vmatpush1.msra.mxu0 0.0
    %9519 = vmatprep.subr.mxu0 0.0
    %9520 = vmatpush1.msra.mxu0 0.0
    %9521 = vmatprep.subr.mxu0 0.0
    %9522 = vmatpush1.msra.mxu0 0.0
    %9523 = vmatprep.mubr.f32.mxu0 0.0
    %v9524 = vand.u32 %v325, 4294901760
    %v9525 = vsub.f32 %v325, %v9524
    %v9526 = vand.u32 %v9525, 4294901760
    %9527 = vmatmul.mubr.f32.gmra.mrb[0].mxu0 %v9526
    %v9528 = vpop.f32.mrb[0].mxu0
    %v9529 = vadd.f32 %v9437, %v9528
    %v9530 = vpop.f32.mrb[0].mxu0
    %v9531 = vadd.f32 %v9439, %v9530
    %9532 = vdwg.mxu0
    %v9533 = vand.u32 %v80, 4294901760
    %v9534 = vsub.f32 %v80, %v9533
    %v9535 = vand.u32 %v9534, 4294901760
    %9536 = vmatprep.subr.mxu0 %v9535
    %v9537 = vand.u32 %v79, 4294901760
    %v9538 = vsub.f32 %v79, %v9537
    %v9539 = vand.u32 %v9538, 4294901760
    %9540 = vmatpush1.msra.mxu0 %v9539
    %v9541 = vand.u32 %v110, 4294901760
    %v9542 = vsub.f32 %v110, %v9541
    %v9543 = vand.u32 %v9542, 4294901760
    %9544 = vmatprep.subr.mxu0 %v9543
    %v9545 = vand.u32 %v109, 4294901760
    %v9546 = vsub.f32 %v109, %v9545
    %v9547 = vand.u32 %v9546, 4294901760
    %9548 = vmatpush1.msra.mxu0 %v9547
    %v9549 = vand.u32 %v140, 4294901760
    %v9550 = vsub.f32 %v140, %v9549
    %v9551 = vand.u32 %v9550, 4294901760
    %9552 = vmatprep.subr.mxu0 %v9551
    %v9553 = vand.u32 %v139, 4294901760
    %v9554 = vsub.f32 %v139, %v9553
    %v9555 = vand.u32 %v9554, 4294901760
    %9556 = vmatpush1.msra.mxu0 %v9555
    %v9557 = vand.u32 %v170, 4294901760
    %v9558 = vsub.f32 %v170, %v9557
    %v9559 = vand.u32 %v9558, 4294901760
    %9560 = vmatprep.subr.mxu0 %v9559
    %v9561 = vand.u32 %v169, 4294901760
    %v9562 = vsub.f32 %v169, %v9561
    %v9563 = vand.u32 %v9562, 4294901760
    %9564 = vmatpush1.msra.mxu0 %v9563
    %v9565 = vand.u32 %v200, 4294901760
    %v9566 = vsub.f32 %v200, %v9565
    %v9567 = vand.u32 %v9566, 4294901760
    %9568 = vmatprep.subr.mxu0 %v9567
    %v9569 = vand.u32 %v199, 4294901760
    %v9570 = vsub.f32 %v199, %v9569
    %v9571 = vand.u32 %v9570, 4294901760
    %9572 = vmatpush1.msra.mxu0 %v9571
    %v9573 = vand.u32 %v230, 4294901760
    %v9574 = vsub.f32 %v230, %v9573
    %v9575 = vand.u32 %v9574, 4294901760
    %9576 = vmatprep.subr.mxu0 %v9575
    %v9577 = vand.u32 %v229, 4294901760
    %v9578 = vsub.f32 %v229, %v9577
    %v9579 = vand.u32 %v9578, 4294901760
    %9580 = vmatpush1.msra.mxu0 %v9579
    %v9581 = vand.u32 %v260, 4294901760
    %v9582 = vsub.f32 %v260, %v9581
    %v9583 = vand.u32 %v9582, 4294901760
    %9584 = vmatprep.subr.mxu0 %v9583
    %v9585 = vand.u32 %v259, 4294901760
    %v9586 = vsub.f32 %v259, %v9585
    %v9587 = vand.u32 %v9586, 4294901760
    %9588 = vmatpush1.msra.mxu0 %v9587
    %v9589 = vand.u32 %v290, 4294901760
    %v9590 = vsub.f32 %v290, %v9589
    %v9591 = vand.u32 %v9590, 4294901760
    %9592 = vmatprep.subr.mxu0 %v9591
    %v9593 = vand.u32 %v289, 4294901760
    %v9594 = vsub.f32 %v289, %v9593
    %v9595 = vand.u32 %v9594, 4294901760
    %9596 = vmatpush1.msra.mxu0 %v9595
    %v9597 = vand.u32 %v320, 4294901760
    %v9598 = vsub.f32 %v320, %v9597
    %v9599 = vand.u32 %v9598, 4294901760
    %9600 = vmatprep.subr.mxu0 %v9599
    %v9601 = vand.u32 %v319, 4294901760
    %v9602 = vsub.f32 %v319, %v9601
    %v9603 = vand.u32 %v9602, 4294901760
    %9604 = vmatpush1.msra.mxu0 %v9603
    %9605 = vmatprep.subr.mxu0 0.0
    %9606 = vmatpush1.msra.mxu0 0.0
    %9607 = vmatprep.subr.mxu0 0.0
    %9608 = vmatpush1.msra.mxu0 0.0
    %9609 = vmatprep.subr.mxu0 0.0
    %9610 = vmatpush1.msra.mxu0 0.0
    %9611 = vmatprep.subr.mxu0 0.0
    %9612 = vmatpush1.msra.mxu0 0.0
    %9613 = vmatprep.subr.mxu0 0.0
    %9614 = vmatpush1.msra.mxu0 0.0
    %9615 = vmatprep.subr.mxu0 0.0
    %9616 = vmatpush1.msra.mxu0 0.0
    %9617 = vmatprep.subr.mxu0 0.0
    %9618 = vmatpush1.msra.mxu0 0.0
    %9619 = vmatprep.subr.mxu0 0.0
    %9620 = vmatpush1.msra.mxu0 0.0
    %9621 = vmatprep.subr.mxu0 0.0
    %9622 = vmatpush1.msra.mxu0 0.0
    %9623 = vmatprep.subr.mxu0 0.0
    %9624 = vmatpush1.msra.mxu0 0.0
    %9625 = vmatprep.subr.mxu0 0.0
    %9626 = vmatpush1.msra.mxu0 0.0
    %9627 = vmatprep.subr.mxu0 0.0
    %9628 = vmatpush1.msra.mxu0 0.0
    %9629 = vmatprep.subr.mxu0 0.0
    %9630 = vmatpush1.msra.mxu0 0.0
    %9631 = vmatprep.subr.mxu0 0.0
    %9632 = vmatpush1.msra.mxu0 0.0
    %9633 = vmatprep.subr.mxu0 0.0
    %9634 = vmatpush1.msra.mxu0 0.0
    %9635 = vmatprep.subr.mxu0 0.0
    %9636 = vmatpush1.msra.mxu0 0.0
    %9637 = vmatprep.subr.mxu0 0.0
    %9638 = vmatpush1.msra.mxu0 0.0
    %9639 = vmatprep.subr.mxu0 0.0
    %9640 = vmatpush1.msra.mxu0 0.0
    %9641 = vmatprep.subr.mxu0 0.0
    %9642 = vmatpush1.msra.mxu0 0.0
    %9643 = vmatprep.subr.mxu0 0.0
    %9644 = vmatpush1.msra.mxu0 0.0
    %9645 = vmatprep.subr.mxu0 0.0
    %9646 = vmatpush1.msra.mxu0 0.0
    %9647 = vmatprep.subr.mxu0 0.0
    %9648 = vmatpush1.msra.mxu0 0.0
    %9649 = vmatprep.subr.mxu0 0.0
    %9650 = vmatpush1.msra.mxu0 0.0
    %9651 = vmatprep.mubr.f32.mxu0 0.0
    %v9652 = vand.u32 %v325, 4294901760
    %9653 = vmatmul.mubr.f32.gmra.mrb[0].mxu0 %v9652
    %v9654 = vpop.f32.mrb[0].mxu0
    %v9655 = vadd.f32 %v9529, %v9654
    %v9656 = vpop.f32.mrb[0].mxu0
    %v9657 = vadd.f32 %v9531, %v9656
    %9658 = vdwg.mxu0
    %v9659 = vand.u32 %v80, 4294901760
    %9660 = vmatprep.subr.mxu0 %v9659
    %v9661 = vand.u32 %v79, 4294901760
    %9662 = vmatpush1.msra.mxu0 %v9661
    %v9663 = vand.u32 %v110, 4294901760
    %9664 = vmatprep.subr.mxu0 %v9663
    %v9665 = vand.u32 %v109, 4294901760
    %9666 = vmatpush1.msra.mxu0 %v9665
    %v9667 = vand.u32 %v140, 4294901760
    %9668 = vmatprep.subr.mxu0 %v9667
    %v9669 = vand.u32 %v139, 4294901760
    %9670 = vmatpush1.msra.mxu0 %v9669
    %v9671 = vand.u32 %v170, 4294901760
    %9672 = vmatprep.subr.mxu0 %v9671
    %v9673 = vand.u32 %v169, 4294901760
    %9674 = vmatpush1.msra.mxu0 %v9673
    %v9675 = vand.u32 %v200, 4294901760
    %9676 = vmatprep.subr.mxu0 %v9675
    %v9677 = vand.u32 %v199, 4294901760
    %9678 = vmatpush1.msra.mxu0 %v9677
    %v9679 = vand.u32 %v230, 4294901760
    %9680 = vmatprep.subr.mxu0 %v9679
    %v9681 = vand.u32 %v229, 4294901760
    %9682 = vmatpush1.msra.mxu0 %v9681
    %v9683 = vand.u32 %v260, 4294901760
    %9684 = vmatprep.subr.mxu0 %v9683
    %v9685 = vand.u32 %v259, 4294901760
    %9686 = vmatpush1.msra.mxu0 %v9685
    %v9687 = vand.u32 %v290, 4294901760
    %9688 = vmatprep.subr.mxu0 %v9687
    %v9689 = vand.u32 %v289, 4294901760
    %9690 = vmatpush1.msra.mxu0 %v9689
    %v9691 = vand.u32 %v320, 4294901760
    %9692 = vmatprep.subr.mxu0 %v9691
    %v9693 = vand.u32 %v319, 4294901760
    %9694 = vmatpush1.msra.mxu0 %v9693
    %9695 = vmatprep.subr.mxu0 0.0
    %9696 = vmatpush1.msra.mxu0 0.0
    %9697 = vmatprep.subr.mxu0 0.0
    %9698 = vmatpush1.msra.mxu0 0.0
    %9699 = vmatprep.subr.mxu0 0.0
    %9700 = vmatpush1.msra.mxu0 0.0
    %9701 = vmatprep.subr.mxu0 0.0
    %9702 = vmatpush1.msra.mxu0 0.0
    %9703 = vmatprep.subr.mxu0 0.0
    %9704 = vmatpush1.msra.mxu0 0.0
    %9705 = vmatprep.subr.mxu0 0.0
    %9706 = vmatpush1.msra.mxu0 0.0
    %9707 = vmatprep.subr.mxu0 0.0
    %9708 = vmatpush1.msra.mxu0 0.0
    %9709 = vmatprep.subr.mxu0 0.0
    %9710 = vmatpush1.msra.mxu0 0.0
    %9711 = vmatprep.subr.mxu0 0.0
    %9712 = vmatpush1.msra.mxu0 0.0
    %9713 = vmatprep.subr.mxu0 0.0
    %9714 = vmatpush1.msra.mxu0 0.0
    %9715 = vmatprep.subr.mxu0 0.0
    %9716 = vmatpush1.msra.mxu0 0.0
    %9717 = vmatprep.subr.mxu0 0.0
    %9718 = vmatpush1.msra.mxu0 0.0
    %9719 = vmatprep.subr.mxu0 0.0
    %9720 = vmatpush1.msra.mxu0 0.0
    %9721 = vmatprep.subr.mxu0 0.0
    %9722 = vmatpush1.msra.mxu0 0.0
    %9723 = vmatprep.subr.mxu0 0.0
    %9724 = vmatpush1.msra.mxu0 0.0
    %9725 = vmatprep.subr.mxu0 0.0
    %9726 = vmatpush1.msra.mxu0 0.0
    %9727 = vmatprep.subr.mxu0 0.0
    %9728 = vmatpush1.msra.mxu0 0.0
    %9729 = vmatprep.subr.mxu0 0.0
    %9730 = vmatpush1.msra.mxu0 0.0
    %9731 = vmatprep.subr.mxu0 0.0
    %9732 = vmatpush1.msra.mxu0 0.0
    %9733 = vmatprep.subr.mxu0 0.0
    %9734 = vmatpush1.msra.mxu0 0.0
    %9735 = vmatprep.subr.mxu0 0.0
    %9736 = vmatpush1.msra.mxu0 0.0
    %9737 = vmatprep.subr.mxu0 0.0
    %9738 = vmatpush1.msra.mxu0 0.0
    %9739 = vmatprep.subr.mxu0 0.0
    %9740 = vmatpush1.msra.mxu0 0.0
    %9741 = vmatprep.mubr.f32.mxu0 0.0
    %v9742 = vand.u32 %v325, 4294901760
    %9743 = vmatmul.mubr.f32.gmra.mrb[0].mxu0 %v9742
    %v9744 = vpop.f32.mrb[0].mxu0
    %v9745 = vadd.f32 %v9655, %v9744
    %v9746 = vpop.f32.mrb[0].mxu0
    %v9747 = vadd.f32 %v9657, %v9746
    %9748 = vdwg.mxu0
    %v9749 = vand.u32 %v82, 4294901760
    %9750 = vmatprep.subr.mxu0 %v9749
    %v9751 = vand.u32 %v81, 4294901760
    %9752 = vmatpush1.msra.mxu0 %v9751
    %v9753 = vand.u32 %v112, 4294901760
    %9754 = vmatprep.subr.mxu0 %v9753
    %v9755 = vand.u32 %v111, 4294901760
    %9756 = vmatpush1.msra.mxu0 %v9755
    %v9757 = vand.u32 %v142, 4294901760
    %9758 = vmatprep.subr.mxu0 %v9757
    %v9759 = vand.u32 %v141, 4294901760
    %9760 = vmatpush1.msra.mxu0 %v9759
    %v9761 = vand.u32 %v172, 4294901760
    %9762 = vmatprep.subr.mxu0 %v9761
    %v9763 = vand.u32 %v171, 4294901760
    %9764 = vmatpush1.msra.mxu0 %v9763
    %v9765 = vand.u32 %v202, 4294901760
    %9766 = vmatprep.subr.mxu0 %v9765
    %v9767 = vand.u32 %v201, 4294901760
    %9768 = vmatpush1.msra.mxu0 %v9767
    %v9769 = vand.u32 %v232, 4294901760
    %9770 = vmatprep.subr.mxu0 %v9769
    %v9771 = vand.u32 %v231, 4294901760
    %9772 = vmatpush1.msra.mxu0 %v9771
    %v9773 = vand.u32 %v262, 4294901760
    %9774 = vmatprep.subr.mxu0 %v9773
    %v9775 = vand.u32 %v261, 4294901760
    %9776 = vmatpush1.msra.mxu0 %v9775
    %v9777 = vand.u32 %v292, 4294901760
    %9778 = vmatprep.subr.mxu0 %v9777
    %v9779 = vand.u32 %v291, 4294901760
    %9780 = vmatpush1.msra.mxu0 %v9779
    %v9781 = vand.u32 %v322, 4294901760
    %9782 = vmatprep.subr.mxu0 %v9781
    %v9783 = vand.u32 %v321, 4294901760
    %9784 = vmatpush1.msra.mxu0 %v9783
    %9785 = vmatprep.subr.mxu0 0.0
    %9786 = vmatpush1.msra.mxu0 0.0
    %9787 = vmatprep.subr.mxu0 0.0
    %9788 = vmatpush1.msra.mxu0 0.0
    %9789 = vmatprep.subr.mxu0 0.0
    %9790 = vmatpush1.msra.mxu0 0.0
    %9791 = vmatprep.subr.mxu0 0.0
    %9792 = vmatpush1.msra.mxu0 0.0
    %9793 = vmatprep.subr.mxu0 0.0
    %9794 = vmatpush1.msra.mxu0 0.0
    %9795 = vmatprep.subr.mxu0 0.0
    %9796 = vmatpush1.msra.mxu0 0.0
    %9797 = vmatprep.subr.mxu0 0.0
    %9798 = vmatpush1.msra.mxu0 0.0
    %9799 = vmatprep.subr.mxu0 0.0
    %9800 = vmatpush1.msra.mxu0 0.0
    %9801 = vmatprep.subr.mxu0 0.0
    %9802 = vmatpush1.msra.mxu0 0.0
    %9803 = vmatprep.subr.mxu0 0.0
    %9804 = vmatpush1.msra.mxu0 0.0
    %9805 = vmatprep.subr.mxu0 0.0
    %9806 = vmatpush1.msra.mxu0 0.0
    %9807 = vmatprep.subr.mxu0 0.0
    %9808 = vmatpush1.msra.mxu0 0.0
    %9809 = vmatprep.subr.mxu0 0.0
    %9810 = vmatpush1.msra.mxu0 0.0
    %9811 = vmatprep.subr.mxu0 0.0
    %9812 = vmatpush1.msra.mxu0 0.0
    %9813 = vmatprep.subr.mxu0 0.0
    %9814 = vmatpush1.msra.mxu0 0.0
    %9815 = vmatprep.subr.mxu0 0.0
    %9816 = vmatpush1.msra.mxu0 0.0
    %9817 = vmatprep.subr.mxu0 0.0
    %9818 = vmatpush1.msra.mxu0 0.0
    %9819 = vmatprep.subr.mxu0 0.0
    %9820 = vmatpush1.msra.mxu0 0.0
    %9821 = vmatprep.subr.mxu0 0.0
    %9822 = vmatpush1.msra.mxu0 0.0
    %9823 = vmatprep.subr.mxu0 0.0
    %9824 = vmatpush1.msra.mxu0 0.0
    %9825 = vmatprep.subr.mxu0 0.0
    %9826 = vmatpush1.msra.mxu0 0.0
    %9827 = vmatprep.subr.mxu0 0.0
    %9828 = vmatpush1.msra.mxu0 0.0
    %9829 = vmatprep.subr.mxu0 0.0
    %9830 = vmatpush1.msra.mxu0 0.0
    %9831 = vmatprep.mubr.f32.mxu0 0.0
    %v9832 = vand.u32 %v325, 4294901760
    %v9833 = vsub.f32 %v325, %v9832
    %v9834 = vand.u32 %v9833, 4294901760
    %v9835 = vsub.f32 %v9833, %v9834
    %v9836 = vand.u32 %v9835, 4294901760
    %9837 = vmatmul.mubr.f32.gmra.mrb[0].mxu0 %v9836
    %v9838 = vpop.f32.mrb[0].mxu0
    %v9839 = vadd.f32 0.0, %v9838
    %v9840 = vpop.f32.mrb[0].mxu0
    %v9841 = vadd.f32 0.0, %v9840
    %9842 = vdwg.mxu0
    %v9843 = vand.u32 %v82, 4294901760
    %v9844 = vsub.f32 %v82, %v9843
    %v9845 = vand.u32 %v9844, 4294901760
    %v9846 = vsub.f32 %v9844, %v9845
    %v9847 = vand.u32 %v9846, 4294901760
    %9848 = vmatprep.subr.mxu0 %v9847
    %v9849 = vand.u32 %v81, 4294901760
    %v9850 = vsub.f32 %v81, %v9849
    %v9851 = vand.u32 %v9850, 4294901760
    %v9852 = vsub.f32 %v9850, %v9851
    %v9853 = vand.u32 %v9852, 4294901760
    %9854 = vmatpush1.msra.mxu0 %v9853
    %v9855 = vand.u32 %v112, 4294901760
    %v9856 = vsub.f32 %v112, %v9855
    %v9857 = vand.u32 %v9856, 4294901760
    %v9858 = vsub.f32 %v9856, %v9857
    %v9859 = vand.u32 %v9858, 4294901760
    %9860 = vmatprep.subr.mxu0 %v9859
    %v9861 = vand.u32 %v111, 4294901760
    %v9862 = vsub.f32 %v111, %v9861
    %v9863 = vand.u32 %v9862, 4294901760
    %v9864 = vsub.f32 %v9862, %v9863
    %v9865 = vand.u32 %v9864, 4294901760
    %9866 = vmatpush1.msra.mxu0 %v9865
    %v9867 = vand.u32 %v142, 4294901760
    %v9868 = vsub.f32 %v142, %v9867
    %v9869 = vand.u32 %v9868, 4294901760
    %v9870 = vsub.f32 %v9868, %v9869
    %v9871 = vand.u32 %v9870, 4294901760
    %9872 = vmatprep.subr.mxu0 %v9871
    %v9873 = vand.u32 %v141, 4294901760
    %v9874 = vsub.f32 %v141, %v9873
    %v9875 = vand.u32 %v9874, 4294901760
    %v9876 = vsub.f32 %v9874, %v9875
    %v9877 = vand.u32 %v9876, 4294901760
    %9878 = vmatpush1.msra.mxu0 %v9877
    %v9879 = vand.u32 %v172, 4294901760
    %v9880 = vsub.f32 %v172, %v9879
    %v9881 = vand.u32 %v9880, 4294901760
    %v9882 = vsub.f32 %v9880, %v9881
    %v9883 = vand.u32 %v9882, 4294901760
    %9884 = vmatprep.subr.mxu0 %v9883
    %v9885 = vand.u32 %v171, 4294901760
    %v9886 = vsub.f32 %v171, %v9885
    %v9887 = vand.u32 %v9886, 4294901760
    %v9888 = vsub.f32 %v9886, %v9887
    %v9889 = vand.u32 %v9888, 4294901760
    %9890 = vmatpush1.msra.mxu0 %v9889
    %v9891 = vand.u32 %v202, 4294901760
    %v9892 = vsub.f32 %v202, %v9891
    %v9893 = vand.u32 %v9892, 4294901760
    %v9894 = vsub.f32 %v9892, %v9893
    %v9895 = vand.u32 %v9894, 4294901760
    %9896 = vmatprep.subr.mxu0 %v9895
    %v9897 = vand.u32 %v201, 4294901760
    %v9898 = vsub.f32 %v201, %v9897
    %v9899 = vand.u32 %v9898, 4294901760
    %v9900 = vsub.f32 %v9898, %v9899
    %v9901 = vand.u32 %v9900, 4294901760
    %9902 = vmatpush1.msra.mxu0 %v9901
    %v9903 = vand.u32 %v232, 4294901760
    %v9904 = vsub.f32 %v232, %v9903
    %v9905 = vand.u32 %v9904, 4294901760
    %v9906 = vsub.f32 %v9904, %v9905
    %v9907 = vand.u32 %v9906, 4294901760
    %9908 = vmatprep.subr.mxu0 %v9907
    %v9909 = vand.u32 %v231, 4294901760
    %v9910 = vsub.f32 %v231, %v9909
    %v9911 = vand.u32 %v9910, 4294901760
    %v9912 = vsub.f32 %v9910, %v9911
    %v9913 = vand.u32 %v9912, 4294901760
    %9914 = vmatpush1.msra.mxu0 %v9913
    %v9915 = vand.u32 %v262, 4294901760
    %v9916 = vsub.f32 %v262, %v9915
    %v9917 = vand.u32 %v9916, 4294901760
    %v9918 = vsub.f32 %v9916, %v9917
    %v9919 = vand.u32 %v9918, 4294901760
    %9920 = vmatprep.subr.mxu0 %v9919
    %v9921 = vand.u32 %v261, 4294901760
    %v9922 = vsub.f32 %v261, %v9921
    %v9923 = vand.u32 %v9922, 4294901760
    %v9924 = vsub.f32 %v9922, %v9923
    %v9925 = vand.u32 %v9924, 4294901760
    %9926 = vmatpush1.msra.mxu0 %v9925
    %v9927 = vand.u32 %v292, 4294901760
    %v9928 = vsub.f32 %v292, %v9927
    %v9929 = vand.u32 %v9928, 4294901760
    %v9930 = vsub.f32 %v9928, %v9929
    %v9931 = vand.u32 %v9930, 4294901760
    %9932 = vmatprep.subr.mxu0 %v9931
    %v9933 = vand.u32 %v291, 4294901760
    %v9934 = vsub.f32 %v291, %v9933
    %v9935 = vand.u32 %v9934, 4294901760
    %v9936 = vsub.f32 %v9934, %v9935
    %v9937 = vand.u32 %v9936, 4294901760
    %9938 = vmatpush1.msra.mxu0 %v9937
    %v9939 = vand.u32 %v322, 4294901760
    %v9940 = vsub.f32 %v322, %v9939
    %v9941 = vand.u32 %v9940, 4294901760
    %v9942 = vsub.f32 %v9940, %v9941
    %v9943 = vand.u32 %v9942, 4294901760
    %9944 = vmatprep.subr.mxu0 %v9943
    %v9945 = vand.u32 %v321, 4294901760
    %v9946 = vsub.f32 %v321, %v9945
    %v9947 = vand.u32 %v9946, 4294901760
    %v9948 = vsub.f32 %v9946, %v9947
    %v9949 = vand.u32 %v9948, 4294901760
    %9950 = vmatpush1.msra.mxu0 %v9949
    %9951 = vmatprep.subr.mxu0 0.0
    %9952 = vmatpush1.msra.mxu0 0.0
    %9953 = vmatprep.subr.mxu0 0.0
    %9954 = vmatpush1.msra.mxu0 0.0
    %9955 = vmatprep.subr.mxu0 0.0
    %9956 = vmatpush1.msra.mxu0 0.0
    %9957 = vmatprep.subr.mxu0 0.0
    %9958 = vmatpush1.msra.mxu0 0.0
    %9959 = vmatprep.subr.mxu0 0.0
    %9960 = vmatpush1.msra.mxu0 0.0
    %9961 = vmatprep.subr.mxu0 0.0
    %9962 = vmatpush1.msra.mxu0 0.0
    %9963 = vmatprep.subr.mxu0 0.0
    %9964 = vmatpush1.msra.mxu0 0.0
    %9965 = vmatprep.subr.mxu0 0.0
    %9966 = vmatpush1.msra.mxu0 0.0
    %9967 = vmatprep.subr.mxu0 0.0
    %9968 = vmatpush1.msra.mxu0 0.0
    %9969 = vmatprep.subr.mxu0 0.0
    %9970 = vmatpush1.msra.mxu0 0.0
    %9971 = vmatprep.subr.mxu0 0.0
    %9972 = vmatpush1.msra.mxu0 0.0
    %9973 = vmatprep.subr.mxu0 0.0
    %9974 = vmatpush1.msra.mxu0 0.0
    %9975 = vmatprep.subr.mxu0 0.0
    %9976 = vmatpush1.msra.mxu0 0.0
    %9977 = vmatprep.subr.mxu0 0.0
    %9978 = vmatpush1.msra.mxu0 0.0
    %9979 = vmatprep.subr.mxu0 0.0
    %9980 = vmatpush1.msra.mxu0 0.0
    %9981 = vmatprep.subr.mxu0 0.0
    %9982 = vmatpush1.msra.mxu0 0.0
    %9983 = vmatprep.subr.mxu0 0.0
    %9984 = vmatpush1.msra.mxu0 0.0
    %9985 = vmatprep.subr.mxu0 0.0
    %9986 = vmatpush1.msra.mxu0 0.0
    %9987 = vmatprep.subr.mxu0 0.0
    %9988 = vmatpush1.msra.mxu0 0.0
    %9989 = vmatprep.subr.mxu0 0.0
    %9990 = vmatpush1.msra.mxu0 0.0
    %9991 = vmatprep.subr.mxu0 0.0
    %9992 = vmatpush1.msra.mxu0 0.0
    %9993 = vmatprep.subr.mxu0 0.0
    %9994 = vmatpush1.msra.mxu0 0.0
    %9995 = vmatprep.subr.mxu0 0.0
    %9996 = vmatpush1.msra.mxu0 0.0
    %9997 = vmatprep.mubr.f32.mxu0 0.0
    %v9998 = vand.u32 %v325, 4294901760
    %9999 = vmatmul.mubr.f32.gmra.mrb[0].mxu0 %v9998
    %v10000 = vpop.f32.mrb[0].mxu0
    %v10001 = vadd.f32 %v9839, %v10000
    %v10002 = vpop.f32.mrb[0].mxu0
    %v10003 = vadd.f32 %v9841, %v10002
    %10004 = vdwg.mxu0
    %v10005 = vand.u32 %v82, 4294901760
    %v10006 = vsub.f32 %v82, %v10005
    %10007 = vmatprep.subr.mxu0 %v10006
    %v10008 = vand.u32 %v81, 4294901760
    %v10009 = vsub.f32 %v81, %v10008
    %10010 = vmatpush1.msra.mxu0 %v10009
    %v10011 = vand.u32 %v112, 4294901760
    %v10012 = vsub.f32 %v112, %v10011
    %10013 = vmatprep.subr.mxu0 %v10012
    %v10014 = vand.u32 %v111, 4294901760
    %v10015 = vsub.f32 %v111, %v10014
    %10016 = vmatpush1.msra.mxu0 %v10015
    %v10017 = vand.u32 %v142, 4294901760
    %v10018 = vsub.f32 %v142, %v10017
    %10019 = vmatprep.subr.mxu0 %v10018
    %v10020 = vand.u32 %v141, 4294901760
    %v10021 = vsub.f32 %v141, %v10020
    %10022 = vmatpush1.msra.mxu0 %v10021
    %v10023 = vand.u32 %v172, 4294901760
    %v10024 = vsub.f32 %v172, %v10023
    %10025 = vmatprep.subr.mxu0 %v10024
    %v10026 = vand.u32 %v171, 4294901760
    %v10027 = vsub.f32 %v171, %v10026
    %10028 = vmatpush1.msra.mxu0 %v10027
    %v10029 = vand.u32 %v202, 4294901760
    %v10030 = vsub.f32 %v202, %v10029
    %10031 = vmatprep.subr.mxu0 %v10030
    %v10032 = vand.u32 %v201, 4294901760
    %v10033 = vsub.f32 %v201, %v10032
    %10034 = vmatpush1.msra.mxu0 %v10033
    %v10035 = vand.u32 %v232, 4294901760
    %v10036 = vsub.f32 %v232, %v10035
    %10037 = vmatprep.subr.mxu0 %v10036
    %v10038 = vand.u32 %v231, 4294901760
    %v10039 = vsub.f32 %v231, %v10038
    %10040 = vmatpush1.msra.mxu0 %v10039
    %v10041 = vand.u32 %v262, 4294901760
    %v10042 = vsub.f32 %v262, %v10041
    %10043 = vmatprep.subr.mxu0 %v10042
    %v10044 = vand.u32 %v261, 4294901760
    %v10045 = vsub.f32 %v261, %v10044
    %10046 = vmatpush1.msra.mxu0 %v10045
    %v10047 = vand.u32 %v292, 4294901760
    %v10048 = vsub.f32 %v292, %v10047
    %10049 = vmatprep.subr.mxu0 %v10048
    %v10050 = vand.u32 %v291, 4294901760
    %v10051 = vsub.f32 %v291, %v10050
    %10052 = vmatpush1.msra.mxu0 %v10051
    %v10053 = vand.u32 %v322, 4294901760
    %v10054 = vsub.f32 %v322, %v10053
    %10055 = vmatprep.subr.mxu0 %v10054
    %v10056 = vand.u32 %v321, 4294901760
    %v10057 = vsub.f32 %v321, %v10056
    %10058 = vmatpush1.msra.mxu0 %v10057
    %10059 = vmatprep.subr.mxu0 0.0
    %10060 = vmatpush1.msra.mxu0 0.0
    %10061 = vmatprep.subr.mxu0 0.0
    %10062 = vmatpush1.msra.mxu0 0.0
    %10063 = vmatprep.subr.mxu0 0.0
    %10064 = vmatpush1.msra.mxu0 0.0
    %10065 = vmatprep.subr.mxu0 0.0
    %10066 = vmatpush1.msra.mxu0 0.0
    %10067 = vmatprep.subr.mxu0 0.0
    %10068 = vmatpush1.msra.mxu0 0.0
    %10069 = vmatprep.subr.mxu0 0.0
    %10070 = vmatpush1.msra.mxu0 0.0
    %10071 = vmatprep.subr.mxu0 0.0
    %10072 = vmatpush1.msra.mxu0 0.0
    %10073 = vmatprep.subr.mxu0 0.0
    %10074 = vmatpush1.msra.mxu0 0.0
    %10075 = vmatprep.subr.mxu0 0.0
    %10076 = vmatpush1.msra.mxu0 0.0
    %10077 = vmatprep.subr.mxu0 0.0
    %10078 = vmatpush1.msra.mxu0 0.0
    %10079 = vmatprep.subr.mxu0 0.0
    %10080 = vmatpush1.msra.mxu0 0.0
    %10081 = vmatprep.subr.mxu0 0.0
    %10082 = vmatpush1.msra.mxu0 0.0
    %10083 = vmatprep.subr.mxu0 0.0
    %10084 = vmatpush1.msra.mxu0 0.0
    %10085 = vmatprep.subr.mxu0 0.0
    %10086 = vmatpush1.msra.mxu0 0.0
    %10087 = vmatprep.subr.mxu0 0.0
    %10088 = vmatpush1.msra.mxu0 0.0
    %10089 = vmatprep.subr.mxu0 0.0
    %10090 = vmatpush1.msra.mxu0 0.0
    %10091 = vmatprep.subr.mxu0 0.0
    %10092 = vmatpush1.msra.mxu0 0.0
    %10093 = vmatprep.subr.mxu0 0.0
    %10094 = vmatpush1.msra.mxu0 0.0
    %10095 = vmatprep.subr.mxu0 0.0
    %10096 = vmatpush1.msra.mxu0 0.0
    %10097 = vmatprep.subr.mxu0 0.0
    %10098 = vmatpush1.msra.mxu0 0.0
    %10099 = vmatprep.subr.mxu0 0.0
    %10100 = vmatpush1.msra.mxu0 0.0
    %10101 = vmatprep.subr.mxu0 0.0
    %10102 = vmatpush1.msra.mxu0 0.0
    %10103 = vmatprep.subr.mxu0 0.0
    %10104 = vmatpush1.msra.mxu0 0.0
    %10105 = vmatprep.mubr.f32.mxu0 0.0
    %v10106 = vand.u32 %v325, 4294901760
    %v10107 = vsub.f32 %v325, %v10106
    %10108 = vmatmul.mubr.f32.gmra.mrb[0].mxu0 %v10107
    %v10109 = vpop.f32.mrb[0].mxu0
    %v10110 = vadd.f32 %v10001, %v10109
    %v10111 = vpop.f32.mrb[0].mxu0
    %v10112 = vadd.f32 %v10003, %v10111
    %10113 = vdwg.mxu0
    %v10114 = vand.u32 %v82, 4294901760
    %10115 = vmatprep.subr.mxu0 %v10114
    %v10116 = vand.u32 %v81, 4294901760
    %10117 = vmatpush1.msra.mxu0 %v10116
    %v10118 = vand.u32 %v112, 4294901760
    %10119 = vmatprep.subr.mxu0 %v10118
    %v10120 = vand.u32 %v111, 4294901760
    %10121 = vmatpush1.msra.mxu0 %v10120
    %v10122 = vand.u32 %v142, 4294901760
    %10123 = vmatprep.subr.mxu0 %v10122
    %v10124 = vand.u32 %v141, 4294901760
    %10125 = vmatpush1.msra.mxu0 %v10124
    %v10126 = vand.u32 %v172, 4294901760
    %10127 = vmatprep.subr.mxu0 %v10126
    %v10128 = vand.u32 %v171, 4294901760
    %10129 = vmatpush1.msra.mxu0 %v10128
    %v10130 = vand.u32 %v202, 4294901760
    %10131 = vmatprep.subr.mxu0 %v10130
    %v10132 = vand.u32 %v201, 4294901760
    %10133 = vmatpush1.msra.mxu0 %v10132
    %v10134 = vand.u32 %v232, 4294901760
    %10135 = vmatprep.subr.mxu0 %v10134
    %v10136 = vand.u32 %v231, 4294901760
    %10137 = vmatpush1.msra.mxu0 %v10136
    %v10138 = vand.u32 %v262, 4294901760
    %10139 = vmatprep.subr.mxu0 %v10138
    %v10140 = vand.u32 %v261, 4294901760
    %10141 = vmatpush1.msra.mxu0 %v10140
    %v10142 = vand.u32 %v292, 4294901760
    %10143 = vmatprep.subr.mxu0 %v10142
    %v10144 = vand.u32 %v291, 4294901760
    %10145 = vmatpush1.msra.mxu0 %v10144
    %v10146 = vand.u32 %v322, 4294901760
    %10147 = vmatprep.subr.mxu0 %v10146
    %v10148 = vand.u32 %v321, 4294901760
    %10149 = vmatpush1.msra.mxu0 %v10148
    %10150 = vmatprep.subr.mxu0 0.0
    %10151 = vmatpush1.msra.mxu0 0.0
    %10152 = vmatprep.subr.mxu0 0.0
    %10153 = vmatpush1.msra.mxu0 0.0
    %10154 = vmatprep.subr.mxu0 0.0
    %10155 = vmatpush1.msra.mxu0 0.0
    %10156 = vmatprep.subr.mxu0 0.0
    %10157 = vmatpush1.msra.mxu0 0.0
    %10158 = vmatprep.subr.mxu0 0.0
    %10159 = vmatpush1.msra.mxu0 0.0
    %10160 = vmatprep.subr.mxu0 0.0
    %10161 = vmatpush1.msra.mxu0 0.0
    %10162 = vmatprep.subr.mxu0 0.0
    %10163 = vmatpush1.msra.mxu0 0.0
    %10164 = vmatprep.subr.mxu0 0.0
    %10165 = vmatpush1.msra.mxu0 0.0
    %10166 = vmatprep.subr.mxu0 0.0
    %10167 = vmatpush1.msra.mxu0 0.0
    %10168 = vmatprep.subr.mxu0 0.0
    %10169 = vmatpush1.msra.mxu0 0.0
    %10170 = vmatprep.subr.mxu0 0.0
    %10171 = vmatpush1.msra.mxu0 0.0
    %10172 = vmatprep.subr.mxu0 0.0
    %10173 = vmatpush1.msra.mxu0 0.0
    %10174 = vmatprep.subr.mxu0 0.0
    %10175 = vmatpush1.msra.mxu0 0.0
    %10176 = vmatprep.subr.mxu0 0.0
    %10177 = vmatpush1.msra.mxu0 0.0
    %10178 = vmatprep.subr.mxu0 0.0
    %10179 = vmatpush1.msra.mxu0 0.0
    %10180 = vmatprep.subr.mxu0 0.0
    %10181 = vmatpush1.msra.mxu0 0.0
    %10182 = vmatprep.subr.mxu0 0.0
    %10183 = vmatpush1.msra.mxu0 0.0
    %10184 = vmatprep.subr.mxu0 0.0
    %10185 = vmatpush1.msra.mxu0 0.0
    %10186 = vmatprep.subr.mxu0 0.0
    %10187 = vmatpush1.msra.mxu0 0.0
    %10188 = vmatprep.subr.mxu0 0.0
    %10189 = vmatpush1.msra.mxu0 0.0
    %10190 = vmatprep.subr.mxu0 0.0
    %10191 = vmatpush1.msra.mxu0 0.0
    %10192 = vmatprep.subr.mxu0 0.0
    %10193 = vmatpush1.msra.mxu0 0.0
    %10194 = vmatprep.subr.mxu0 0.0
    %10195 = vmatpush1.msra.mxu0 0.0
    %10196 = vmatprep.mubr.f32.mxu0 0.0
    %v10197 = vand.u32 %v325, 4294901760
    %v10198 = vsub.f32 %v325, %v10197
    %v10199 = vand.u32 %v10198, 4294901760
    %10200 = vmatmul.mubr.f32.gmra.mrb[0].mxu0 %v10199
    %v10201 = vpop.f32.mrb[0].mxu0
    %v10202 = vadd.f32 %v10110, %v10201
    %v10203 = vpop.f32.mrb[0].mxu0
    %v10204 = vadd.f32 %v10112, %v10203
    %10205 = vdwg.mxu0
    %v10206 = vand.u32 %v82, 4294901760
    %v10207 = vsub.f32 %v82, %v10206
    %v10208 = vand.u32 %v10207, 4294901760
    %10209 = vmatprep.subr.mxu0 %v10208
    %v10210 = vand.u32 %v81, 4294901760
    %v10211 = vsub.f32 %v81, %v10210
    %v10212 = vand.u32 %v10211, 4294901760
    %10213 = vmatpush1.msra.mxu0 %v10212
    %v10214 = vand.u32 %v112, 4294901760
    %v10215 = vsub.f32 %v112, %v10214
    %v10216 = vand.u32 %v10215, 4294901760
    %10217 = vmatprep.subr.mxu0 %v10216
    %v10218 = vand.u32 %v111, 4294901760
    %v10219 = vsub.f32 %v111, %v10218
    %v10220 = vand.u32 %v10219, 4294901760
    %10221 = vmatpush1.msra.mxu0 %v10220
    %v10222 = vand.u32 %v142, 4294901760
    %v10223 = vsub.f32 %v142, %v10222
    %v10224 = vand.u32 %v10223, 4294901760
    %10225 = vmatprep.subr.mxu0 %v10224
    %v10226 = vand.u32 %v141, 4294901760
    %v10227 = vsub.f32 %v141, %v10226
    %v10228 = vand.u32 %v10227, 4294901760
    %10229 = vmatpush1.msra.mxu0 %v10228
    %v10230 = vand.u32 %v172, 4294901760
    %v10231 = vsub.f32 %v172, %v10230
    %v10232 = vand.u32 %v10231, 4294901760
    %10233 = vmatprep.subr.mxu0 %v10232
    %v10234 = vand.u32 %v171, 4294901760
    %v10235 = vsub.f32 %v171, %v10234
    %v10236 = vand.u32 %v10235, 4294901760
    %10237 = vmatpush1.msra.mxu0 %v10236
    %v10238 = vand.u32 %v202, 4294901760
    %v10239 = vsub.f32 %v202, %v10238
    %v10240 = vand.u32 %v10239, 4294901760
    %10241 = vmatprep.subr.mxu0 %v10240
    %v10242 = vand.u32 %v201, 4294901760
    %v10243 = vsub.f32 %v201, %v10242
    %v10244 = vand.u32 %v10243, 4294901760
    %10245 = vmatpush1.msra.mxu0 %v10244
    %v10246 = vand.u32 %v232, 4294901760
    %v10247 = vsub.f32 %v232, %v10246
    %v10248 = vand.u32 %v10247, 4294901760
    %10249 = vmatprep.subr.mxu0 %v10248
    %v10250 = vand.u32 %v231, 4294901760
    %v10251 = vsub.f32 %v231, %v10250
    %v10252 = vand.u32 %v10251, 4294901760
    %10253 = vmatpush1.msra.mxu0 %v10252
    %v10254 = vand.u32 %v262, 4294901760
    %v10255 = vsub.f32 %v262, %v10254
    %v10256 = vand.u32 %v10255, 4294901760
    %10257 = vmatprep.subr.mxu0 %v10256
    %v10258 = vand.u32 %v261, 4294901760
    %v10259 = vsub.f32 %v261, %v10258
    %v10260 = vand.u32 %v10259, 4294901760
    %10261 = vmatpush1.msra.mxu0 %v10260
    %v10262 = vand.u32 %v292, 4294901760
    %v10263 = vsub.f32 %v292, %v10262
    %v10264 = vand.u32 %v10263, 4294901760
    %10265 = vmatprep.subr.mxu0 %v10264
    %v10266 = vand.u32 %v291, 4294901760
    %v10267 = vsub.f32 %v291, %v10266
    %v10268 = vand.u32 %v10267, 4294901760
    %10269 = vmatpush1.msra.mxu0 %v10268
    %v10270 = vand.u32 %v322, 4294901760
    %v10271 = vsub.f32 %v322, %v10270
    %v10272 = vand.u32 %v10271, 4294901760
    %10273 = vmatprep.subr.mxu0 %v10272
    %v10274 = vand.u32 %v321, 4294901760
    %v10275 = vsub.f32 %v321, %v10274
    %v10276 = vand.u32 %v10275, 4294901760
    %10277 = vmatpush1.msra.mxu0 %v10276
    %10278 = vmatprep.subr.mxu0 0.0
    %10279 = vmatpush1.msra.mxu0 0.0
    %10280 = vmatprep.subr.mxu0 0.0
    %10281 = vmatpush1.msra.mxu0 0.0
    %10282 = vmatprep.subr.mxu0 0.0
    %10283 = vmatpush1.msra.mxu0 0.0
    %10284 = vmatprep.subr.mxu0 0.0
    %10285 = vmatpush1.msra.mxu0 0.0
    %10286 = vmatprep.subr.mxu0 0.0
    %10287 = vmatpush1.msra.mxu0 0.0
    %10288 = vmatprep.subr.mxu0 0.0
    %10289 = vmatpush1.msra.mxu0 0.0
    %10290 = vmatprep.subr.mxu0 0.0
    %10291 = vmatpush1.msra.mxu0 0.0
    %10292 = vmatprep.subr.mxu0 0.0
    %10293 = vmatpush1.msra.mxu0 0.0
    %10294 = vmatprep.subr.mxu0 0.0
    %10295 = vmatpush1.msra.mxu0 0.0
    %10296 = vmatprep.subr.mxu0 0.0
    %10297 = vmatpush1.msra.mxu0 0.0
    %10298 = vmatprep.subr.mxu0 0.0
    %10299 = vmatpush1.msra.mxu0 0.0
    %10300 = vmatprep.subr.mxu0 0.0
    %10301 = vmatpush1.msra.mxu0 0.0
    %10302 = vmatprep.subr.mxu0 0.0
    %10303 = vmatpush1.msra.mxu0 0.0
    %10304 = vmatprep.subr.mxu0 0.0
    %10305 = vmatpush1.msra.mxu0 0.0
    %10306 = vmatprep.subr.mxu0 0.0
    %10307 = vmatpush1.msra.mxu0 0.0
    %10308 = vmatprep.subr.mxu0 0.0
    %10309 = vmatpush1.msra.mxu0 0.0
    %10310 = vmatprep.subr.mxu0 0.0
    %10311 = vmatpush1.msra.mxu0 0.0
    %10312 = vmatprep.subr.mxu0 0.0
    %10313 = vmatpush1.msra.mxu0 0.0
    %10314 = vmatprep.subr.mxu0 0.0
    %10315 = vmatpush1.msra.mxu0 0.0
    %10316 = vmatprep.subr.mxu0 0.0
    %10317 = vmatpush1.msra.mxu0 0.0
    %10318 = vmatprep.subr.mxu0 0.0
    %10319 = vmatpush1.msra.mxu0 0.0
    %10320 = vmatprep.subr.mxu0 0.0
    %10321 = vmatpush1.msra.mxu0 0.0
    %10322 = vmatprep.subr.mxu0 0.0
    %10323 = vmatpush1.msra.mxu0 0.0
    %10324 = vmatprep.mubr.f32.mxu0 0.0
    %v10325 = vand.u32 %v325, 4294901760
    %10326 = vmatmul.mubr.f32.gmra.mrb[0].mxu0 %v10325
    %v10327 = vpop.f32.mrb[0].mxu0
    %v10328 = vadd.f32 %v10202, %v10327
    %v10329 = vpop.f32.mrb[0].mxu0
    %v10330 = vadd.f32 %v10204, %v10329
    %10331 = vdwg.mxu0
    %v10332 = vand.u32 %v82, 4294901760
    %10333 = vmatprep.subr.mxu0 %v10332
    %v10334 = vand.u32 %v81, 4294901760
    %10335 = vmatpush1.msra.mxu0 %v10334
    %v10336 = vand.u32 %v112, 4294901760
    %10337 = vmatprep.subr.mxu0 %v10336
    %v10338 = vand.u32 %v111, 4294901760
    %10339 = vmatpush1.msra.mxu0 %v10338
    %v10340 = vand.u32 %v142, 4294901760
    %10341 = vmatprep.subr.mxu0 %v10340
    %v10342 = vand.u32 %v141, 4294901760
    %10343 = vmatpush1.msra.mxu0 %v10342
    %v10344 = vand.u32 %v172, 4294901760
    %10345 = vmatprep.subr.mxu0 %v10344
    %v10346 = vand.u32 %v171, 4294901760
    %10347 = vmatpush1.msra.mxu0 %v10346
    %v10348 = vand.u32 %v202, 4294901760
    %10349 = vmatprep.subr.mxu0 %v10348
    %v10350 = vand.u32 %v201, 4294901760
    %10351 = vmatpush1.msra.mxu0 %v10350
    %v10352 = vand.u32 %v232, 4294901760
    %10353 = vmatprep.subr.mxu0 %v10352
    %v10354 = vand.u32 %v231, 4294901760
    %10355 = vmatpush1.msra.mxu0 %v10354
    %v10356 = vand.u32 %v262, 4294901760
    %10357 = vmatprep.subr.mxu0 %v10356
    %v10358 = vand.u32 %v261, 4294901760
    %10359 = vmatpush1.msra.mxu0 %v10358
    %v10360 = vand.u32 %v292, 4294901760
    %10361 = vmatprep.subr.mxu0 %v10360
    %v10362 = vand.u32 %v291, 4294901760
    %10363 = vmatpush1.msra.mxu0 %v10362
    %v10364 = vand.u32 %v322, 4294901760
    %10365 = vmatprep.subr.mxu0 %v10364
    %v10366 = vand.u32 %v321, 4294901760
    %10367 = vmatpush1.msra.mxu0 %v10366
    %10368 = vmatprep.subr.mxu0 0.0
    %10369 = vmatpush1.msra.mxu0 0.0
    %10370 = vmatprep.subr.mxu0 0.0
    %10371 = vmatpush1.msra.mxu0 0.0
    %10372 = vmatprep.subr.mxu0 0.0
    %10373 = vmatpush1.msra.mxu0 0.0
    %10374 = vmatprep.subr.mxu0 0.0
    %10375 = vmatpush1.msra.mxu0 0.0
    %10376 = vmatprep.subr.mxu0 0.0
    %10377 = vmatpush1.msra.mxu0 0.0
    %10378 = vmatprep.subr.mxu0 0.0
    %10379 = vmatpush1.msra.mxu0 0.0
    %10380 = vmatprep.subr.mxu0 0.0
    %10381 = vmatpush1.msra.mxu0 0.0
    %10382 = vmatprep.subr.mxu0 0.0
    %10383 = vmatpush1.msra.mxu0 0.0
    %10384 = vmatprep.subr.mxu0 0.0
    %10385 = vmatpush1.msra.mxu0 0.0
    %10386 = vmatprep.subr.mxu0 0.0
    %10387 = vmatpush1.msra.mxu0 0.0
    %10388 = vmatprep.subr.mxu0 0.0
    %10389 = vmatpush1.msra.mxu0 0.0
    %10390 = vmatprep.subr.mxu0 0.0
    %10391 = vmatpush1.msra.mxu0 0.0
    %10392 = vmatprep.subr.mxu0 0.0
    %10393 = vmatpush1.msra.mxu0 0.0
    %10394 = vmatprep.subr.mxu0 0.0
    %10395 = vmatpush1.msra.mxu0 0.0
    %10396 = vmatprep.subr.mxu0 0.0
    %10397 = vmatpush1.msra.mxu0 0.0
    %10398 = vmatprep.subr.mxu0 0.0
    %10399 = vmatpush1.msra.mxu0 0.0
    %10400 = vmatprep.subr.mxu0 0.0
    %10401 = vmatpush1.msra.mxu0 0.0
    %10402 = vmatprep.subr.mxu0 0.0
    %10403 = vmatpush1.msra.mxu0 0.0
    %10404 = vmatprep.subr.mxu0 0.0
    %10405 = vmatpush1.msra.mxu0 0.0
    %10406 = vmatprep.subr.mxu0 0.0
    %10407 = vmatpush1.msra.mxu0 0.0
    %10408 = vmatprep.subr.mxu0 0.0
    %10409 = vmatpush1.msra.mxu0 0.0
    %10410 = vmatprep.subr.mxu0 0.0
    %10411 = vmatpush1.msra.mxu0 0.0
    %10412 = vmatprep.subr.mxu0 0.0
    %10413 = vmatpush1.msra.mxu0 0.0
    %10414 = vmatprep.mubr.f32.mxu0 0.0
    %v10415 = vand.u32 %v325, 4294901760
    %10416 = vmatmul.mubr.f32.gmra.mrb[0].mxu0 %v10415
    %v10417 = vpop.f32.mrb[0].mxu0
    %v10418 = vadd.f32 %v10328, %v10417
    %v10419 = vpop.f32.mrb[0].mxu0
    %v10420 = vadd.f32 %v10330, %v10419
    %10421 = vdwg.mxu0
    %v10422 = vmax.f32 %v996, %v1669
    %v10423 = vmax.f32 %v998, %v1671
    %v10424 = vmax.f32 %v1669, %v2342
    %v10425 = vmax.f32 %v1671, %v2344
    %v10426 = vmax.f32 %v2342, %v3015
    %v10427 = vmax.f32 %v2344, %v3017
    %v10428 = vmax.f32 %v3015, %v3688
    %v10429 = vmax.f32 %v3017, %v3690
    %v10430 = vmax.f32 %v3688, %v4361
    %v10431 = vmax.f32 %v3690, %v4363
    %v10432 = vmax.f32 %v4361, %v5034
    %v10433 = vmax.f32 %v4363, %v5036
    %v10434 = vmax.f32 %v5034, %v5707
    %v10435 = vmax.f32 %v5036, %v5709
    %v10436 = vmax.f32 %v5707, %v6380
    %v10437 = vmax.f32 %v5709, %v6382
    %v10438 = vmax.f32 %v6380, %v7053
    %v10439 = vmax.f32 %v6382, %v7055
    %v10440 = vmax.f32 %v7053, %v7726
    %v10441 = vmax.f32 %v7055, %v7728
    %v10442 = vmax.f32 %v7726, %v8399
    %v10443 = vmax.f32 %v7728, %v8401
    %v10444 = vmax.f32 %v8399, %v9072
    %v10445 = vmax.f32 %v8401, %v9074
    %v10446 = vmax.f32 %v9072, %v9745
    %v10447 = vmax.f32 %v9074, %v9747
    %v10448 = vmax.f32 %v10422, %v2342
    %v10449 = vmax.f32 %v10423, %v2344
    %v10450 = vmax.f32 %v10424, %v3015
    %v10451 = vmax.f32 %v10425, %v3017
    %v10452 = vmax.f32 %v10426, %v3688
    %v10453 = vmax.f32 %v10427, %v3690
    %v10454 = vmax.f32 %v10428, %v4361
    %v10455 = vmax.f32 %v10429, %v4363
    %v10456 = vmax.f32 %v10430, %v5034
    %v10457 = vmax.f32 %v10431, %v5036
    %v10458 = vmax.f32 %v10432, %v5707
    %v10459 = vmax.f32 %v10433, %v5709
    %v10460 = vmax.f32 %v10434, %v6380
    %v10461 = vmax.f32 %v10435, %v6382
    %v10462 = vmax.f32 %v10436, %v7053
    %v10463 = vmax.f32 %v10437, %v7055
    %v10464 = vmax.f32 %v10438, %v7726
    %v10465 = vmax.f32 %v10439, %v7728
    %v10466 = vmax.f32 %v10440, %v8399
    %v10467 = vmax.f32 %v10441, %v8401
    %v10468 = vmax.f32 %v10442, %v9072
    %v10469 = vmax.f32 %v10443, %v9074
    %v10470 = vmax.f32 %v10444, %v9745
    %v10471 = vmax.f32 %v10445, %v9747
    %v10472 = vmax.f32 %v10446, %v10418
    %v10473 = vmax.f32 %v10447, %v10420
    %v10474 = vmax.f32 %v10448, 0.0
    %v10475 = vmax.f32 %v10449, 0.0
    %v10476 = vmax.f32 %v10450, 0.0
    %v10477 = vmax.f32 %v10451, 0.0
    %v10478 = vmax.f32 %v10452, 0.0
    %v10479 = vmax.f32 %v10453, 0.0
    %v10480 = vmax.f32 %v10454, 0.0
    %v10481 = vmax.f32 %v10455, 0.0
    %v10482 = vmax.f32 %v10456, 0.0
    %v10483 = vmax.f32 %v10457, 0.0
    %v10484 = vmax.f32 %v10458, 0.0
    %v10485 = vmax.f32 %v10459, 0.0
    %v10486 = vmax.f32 %v10460, 0.0
    %v10487 = vmax.f32 %v10461, 0.0
    %v10488 = vmax.f32 %v10462, 0.0
    %v10489 = vmax.f32 %v10463, 0.0
    %v10490 = vmax.f32 %v10464, 0.0
    %v10491 = vmax.f32 %v10465, 0.0
    %v10492 = vmax.f32 %v10466, 0.0
    %v10493 = vmax.f32 %v10467, 0.0
    %v10494 = vmax.f32 %v10468, 0.0
    %v10495 = vmax.f32 %v10469, 0.0
    %v10496 = vmax.f32 %v10470, 0.0
    %v10497 = vmax.f32 %v10471, 0.0
    %v10498 = vmax.f32 %v10472, 0.0
    %v10499 = vmax.f32 %v10473, 0.0
    %v10500 = vld [vmem:[#allocation7] sm:$0xff]
    %v10501 = vld [vmem:[#allocation7 + $0x8] sm:$0xff]
    %v10502 = vld [vmem:[#allocation7 + $0x10] sm:$0xff]
    %v10503 = vld [vmem:[#allocation7 + $0x18] sm:$0x3]
    %v10508 = vlaneseq
    %v10509 = vshrl.u32 %v10508, 7
    %v10510 = vsub.s32 0, %v10509
    %v10511 = vrot.slane %v10500, %v10510
    %v10512 = vlaneseq
    %v10513 = vshrl.u32 %v10512, 7
    %v10514 = vsub.s32 1, %v10513
    %v10515 = vrot.slane %v10500, %v10514
    %v10516 = vlaneseq
    %v10517 = vshrl.u32 %v10516, 7
    %v10518 = vsub.s32 2, %v10517
    %v10519 = vrot.slane %v10500, %v10518
    %v10520 = vlaneseq
    %v10521 = vshrl.u32 %v10520, 7
    %v10522 = vsub.s32 3, %v10521
    %v10523 = vrot.slane %v10500, %v10522
    %v10524 = vlaneseq
    %v10525 = vshrl.u32 %v10524, 7
    %v10526 = vsub.s32 4, %v10525
    %v10527 = vrot.slane %v10500, %v10526
    %v10528 = vlaneseq
    %v10529 = vshrl.u32 %v10528, 7
    %v10530 = vsub.s32 5, %v10529
    %v10531 = vrot.slane %v10500, %v10530
    %v10532 = vlaneseq
    %v10533 = vshrl.u32 %v10532, 7
    %v10534 = vsub.s32 6, %v10533
    %v10535 = vrot.slane %v10500, %v10534
    %v10536 = vlaneseq
    %v10537 = vshrl.u32 %v10536, 7
    %v10538 = vsub.s32 7, %v10537
    %v10539 = vrot.slane %v10500, %v10538
    %v10540 = vlaneseq
    %v10541 = vshrl.u32 %v10540, 7
    %v10542 = vsub.s32 0, %v10541
    %v10543 = vrot.slane %v10501, %v10542
    %v10544 = vlaneseq
    %v10545 = vshrl.u32 %v10544, 7
    %v10546 = vsub.s32 1, %v10545
    %v10547 = vrot.slane %v10501, %v10546
    %v10548 = vlaneseq
    %v10549 = vshrl.u32 %v10548, 7
    %v10550 = vsub.s32 2, %v10549
    %v10551 = vrot.slane %v10501, %v10550
    %v10552 = vlaneseq
    %v10553 = vshrl.u32 %v10552, 7
    %v10554 = vsub.s32 3, %v10553
    %v10555 = vrot.slane %v10501, %v10554
    %v10556 = vlaneseq
    %v10557 = vshrl.u32 %v10556, 7
    %v10558 = vsub.s32 4, %v10557
    %v10559 = vrot.slane %v10501, %v10558
    %v10560 = vlaneseq
    %v10561 = vshrl.u32 %v10560, 7
    %v10562 = vsub.s32 5, %v10561
    %v10563 = vrot.slane %v10501, %v10562
    %v10564 = vlaneseq
    %v10565 = vshrl.u32 %v10564, 7
    %v10566 = vsub.s32 6, %v10565
    %v10567 = vrot.slane %v10501, %v10566
    %v10568 = vlaneseq
    %v10569 = vshrl.u32 %v10568, 7
    %v10570 = vsub.s32 7, %v10569
    %v10571 = vrot.slane %v10501, %v10570
    %v10572 = vlaneseq
    %v10573 = vshrl.u32 %v10572, 7
    %v10574 = vsub.s32 0, %v10573
    %v10575 = vrot.slane %v10502, %v10574
    %v10576 = vlaneseq
    %v10577 = vshrl.u32 %v10576, 7
    %v10578 = vsub.s32 1, %v10577
    %v10579 = vrot.slane %v10502, %v10578
    %v10580 = vlaneseq
    %v10581 = vshrl.u32 %v10580, 7
    %v10582 = vsub.s32 2, %v10581
    %v10583 = vrot.slane %v10502, %v10582
    %v10584 = vlaneseq
    %v10585 = vshrl.u32 %v10584, 7
    %v10586 = vsub.s32 3, %v10585
    %v10587 = vrot.slane %v10502, %v10586
    %v10588 = vlaneseq
    %v10589 = vshrl.u32 %v10588, 7
    %v10590 = vsub.s32 4, %v10589
    %v10591 = vrot.slane %v10502, %v10590
    %v10592 = vlaneseq
    %v10593 = vshrl.u32 %v10592, 7
    %v10594 = vsub.s32 5, %v10593
    %v10595 = vrot.slane %v10502, %v10594
    %v10596 = vlaneseq
    %v10597 = vshrl.u32 %v10596, 7
    %v10598 = vsub.s32 6, %v10597
    %v10599 = vrot.slane %v10502, %v10598
    %v10600 = vlaneseq
    %v10601 = vshrl.u32 %v10600, 7
    %v10602 = vsub.s32 7, %v10601
    %v10603 = vrot.slane %v10502, %v10602
    %v10604 = vlaneseq
    %v10605 = vshrl.u32 %v10604, 7
    %v10606 = vsub.s32 0, %v10605
    %v10607 = vrot.slane %v10503, %v10606
    %v10608 = vlaneseq
    %v10609 = vshrl.u32 %v10608, 7
    %v10610 = vsub.s32 1, %v10609
    %v10611 = vrot.slane %v10503, %v10610
    %v10638 = vmul.f32 %v10474, %v10511
    %v10639 = vmul.f32 %v10475, %v10515
    %v10640 = vmul.f32 %v10476, %v10519
    %v10641 = vmul.f32 %v10477, %v10523
    %v10642 = vmul.f32 %v10478, %v10527
    %v10643 = vmul.f32 %v10479, %v10531
    %v10644 = vmul.f32 %v10480, %v10535
    %v10645 = vmul.f32 %v10481, %v10539
    %v10646 = vmul.f32 %v10482, %v10543
    %v10647 = vmul.f32 %v10483, %v10547
    %v10648 = vmul.f32 %v10484, %v10551
    %v10649 = vmul.f32 %v10485, %v10555
    %v10650 = vmul.f32 %v10486, %v10559
    %v10651 = vmul.f32 %v10487, %v10563
    %v10652 = vmul.f32 %v10488, %v10567
    %v10653 = vmul.f32 %v10489, %v10571
    %v10654 = vmul.f32 %v10490, %v10575
    %v10655 = vmul.f32 %v10491, %v10579
    %v10656 = vmul.f32 %v10492, %v10583
    %v10657 = vmul.f32 %v10493, %v10587
    %v10658 = vmul.f32 %v10494, %v10591
    %v10659 = vmul.f32 %v10495, %v10595
    %v10660 = vmul.f32 %v10496, %v10599
    %v10661 = vmul.f32 %v10497, %v10603
    %v10662 = vmul.f32 %v10498, %v10607
    %v10663 = vmul.f32 %v10499, %v10611
    %v10664 = vmul.f32 %v10638, %v10638
    %v10665 = vmul.f32 %v10639, %v10639
    %v10666 = vmul.f32 %v10640, %v10640
    %v10667 = vmul.f32 %v10641, %v10641
    %v10668 = vmul.f32 %v10642, %v10642
    %v10669 = vmul.f32 %v10643, %v10643
    %v10670 = vmul.f32 %v10644, %v10644
    %v10671 = vmul.f32 %v10645, %v10645
    %v10672 = vmul.f32 %v10646, %v10646
    %v10673 = vmul.f32 %v10647, %v10647
    %v10674 = vmul.f32 %v10648, %v10648
    %v10675 = vmul.f32 %v10649, %v10649
    %v10676 = vmul.f32 %v10650, %v10650
    %v10677 = vmul.f32 %v10651, %v10651
    %v10678 = vmul.f32 %v10652, %v10652
    %v10679 = vmul.f32 %v10653, %v10653
    %v10680 = vmul.f32 %v10654, %v10654
    %v10681 = vmul.f32 %v10655, %v10655
    %v10682 = vmul.f32 %v10656, %v10656
    %v10683 = vmul.f32 %v10657, %v10657
    %v10684 = vmul.f32 %v10658, %v10658
    %v10685 = vmul.f32 %v10659, %v10659
    %v10686 = vmul.f32 %v10660, %v10660
    %v10687 = vmul.f32 %v10661, %v10661
    %v10688 = vmul.f32 %v10662, %v10662
    %v10689 = vmul.f32 %v10663, %v10663
    %v10690 = vadd.f32 %v10664, %v10665
    %v10691 = vadd.f32 %v10690, %v10666
    %v10692 = vadd.f32 %v10691, %v10667
    %v10693 = vadd.f32 %v10692, %v10668
    %v10694 = vadd.f32 %v10693, %v10669
    %v10695 = vadd.f32 %v10694, %v10670
    %v10696 = vadd.f32 %v10695, %v10671
    %v10697 = vadd.f32 %v10696, %v10672
    %v10698 = vadd.f32 %v10697, %v10673
    %v10699 = vadd.f32 %v10698, %v10674
    %v10700 = vadd.f32 %v10699, %v10675
    %v10701 = vadd.f32 %v10700, %v10676
    %v10702 = vadd.f32 %v10701, %v10677
    %v10703 = vadd.f32 %v10702, %v10678
    %v10704 = vadd.f32 %v10703, %v10679
    %v10705 = vadd.f32 %v10704, %v10680
    %v10706 = vadd.f32 %v10705, %v10681
    %v10707 = vadd.f32 %v10706, %v10682
    %v10708 = vadd.f32 %v10707, %v10683
    %v10709 = vadd.f32 %v10708, %v10684
    %v10710 = vadd.f32 %v10709, %v10685
    %v10711 = vadd.f32 %v10710, %v10686
    %v10712 = vadd.f32 %v10711, %v10687
    %v10713 = vadd.f32 %v10712, %v10688
    %v10714 = vadd.f32 %v10713, %v10689
    %10715 = vadd.xlane.f32.xlu0 %v10714
    %v10716 = vpop.xlane.xlu0 %10715
    %v10717 = vmax.f32 %v10716, 1e-24
    %v10718 = vrsqrt.pop %v10717
    %v10719 = vmul.f32 %v10638, %v10718
    %v10720 = vmul.f32 %v10639, %v10718
    %v10721 = vmul.f32 %v10640, %v10718
    %v10722 = vmul.f32 %v10641, %v10718
    %v10723 = vmul.f32 %v10642, %v10718
    %v10724 = vmul.f32 %v10643, %v10718
    %v10725 = vmul.f32 %v10644, %v10718
    %v10726 = vmul.f32 %v10645, %v10718
    %v10727 = vmul.f32 %v10646, %v10718
    %v10728 = vmul.f32 %v10647, %v10718
    %v10729 = vmul.f32 %v10648, %v10718
    %v10730 = vmul.f32 %v10649, %v10718
    %v10731 = vmul.f32 %v10650, %v10718
    %v10732 = vmul.f32 %v10651, %v10718
    %v10733 = vmul.f32 %v10652, %v10718
    %v10734 = vmul.f32 %v10653, %v10718
    %v10735 = vmul.f32 %v10654, %v10718
    %v10736 = vmul.f32 %v10655, %v10718
    %v10737 = vmul.f32 %v10656, %v10718
    %v10738 = vmul.f32 %v10657, %v10718
    %v10739 = vmul.f32 %v10658, %v10718
    %v10740 = vmul.f32 %v10659, %v10718
    %v10741 = vmul.f32 %v10660, %v10718
    %v10742 = vmul.f32 %v10661, %v10718
    %v10743 = vmul.f32 %v10662, %v10718
    %v10744 = vmul.f32 %v10663, %v10718
    %10745 = vst [vmem:[#allocation8] sm:$0xff] %v10719
    %10746 = vst [vmem:[#allocation8 + $0x8] sm:$0xff] %v10720
    %10747 = vst [vmem:[#allocation8 + $0x10] sm:$0xff] %v10721
    %10748 = vst [vmem:[#allocation8 + $0x18] sm:$0xff] %v10722
    %10749 = vst [vmem:[#allocation8 + $0x20] sm:$0xff] %v10723
    %10750 = vst [vmem:[#allocation8 + $0x28] sm:$0xff] %v10724
    %10751 = vst [vmem:[#allocation8 + $0x30] sm:$0xff] %v10725
    %10752 = vst [vmem:[#allocation8 + $0x38] sm:$0xff] %v10726
    %10753 = vst [vmem:[#allocation8 + $0x40] sm:$0xff] %v10727
    %10754 = vst [vmem:[#allocation8 + $0x48] sm:$0xff] %v10728
    %10755 = vst [vmem:[#allocation8 + $0x50] sm:$0xff] %v10729
    %10756 = vst [vmem:[#allocation8 + $0x58] sm:$0xff] %v10730
    %10757 = vst [vmem:[#allocation8 + $0x60] sm:$0xff] %v10731
    %10758 = vst [vmem:[#allocation8 + $0x68] sm:$0xff] %v10732
    %10759 = vst [vmem:[#allocation8 + $0x70] sm:$0xff] %v10733
    %10760 = vst [vmem:[#allocation8 + $0x78] sm:$0xff] %v10734
    %10761 = vst [vmem:[#allocation8 + $0x80] sm:$0xff] %v10735
    %10762 = vst [vmem:[#allocation8 + $0x88] sm:$0xff] %v10736
    %10763 = vst [vmem:[#allocation8 + $0x90] sm:$0xff] %v10737
    %10764 = vst [vmem:[#allocation8 + $0x98] sm:$0xff] %v10738
    %10765 = vst [vmem:[#allocation8 + $0xa0] sm:$0xff] %v10739
    %10766 = vst [vmem:[#allocation8 + $0xa8] sm:$0xff] %v10740
    %10767 = vst [vmem:[#allocation8 + $0xb0] sm:$0xff] %v10741
    %10768 = vst [vmem:[#allocation8 + $0xb8] sm:$0xff] %v10742
    %10769 = vst [vmem:[#allocation8 + $0xc0] sm:$0xff] %v10743
    %10770 = vst [vmem:[#allocation8 + $0xc8] sm:$0xff] %v10744
    // Predicated region
    $region26: #{tpu_custom_call.1} parent=1 // pred_check
      _
    $region27: #{tpu_custom_call.1} parent=1 // pred_check_branch
      %10772 = sbr.rel (0) target = $region29
    $region28: #{tpu_custom_call.1} parent=1 // pred_region
      %s10774 = ssub.s32 3328, 3328
      %10775 = vsyncadd [#allocation4], %s10774
      %s10777 = sshll.u32 [#allocation8], 4
      %s10778 = int_to_ptr.vmem [resolvable:$true] %s10777
      %10780 = dma.vmem_to_hbm [thread:$0]  %s10778, 3328, %s3, [#allocation4]
    $region29: #{tpu_custom_call.1} parent=1 // pred_fallthru
      _
    // Predicated region
    $region30: #{tpu_custom_call.1} parent=1 // pred_check
      _
    $region31: #{tpu_custom_call.1} parent=1 // pred_check_branch
      %10782 = sbr.rel (0) target = $region33
    $region32: #{tpu_custom_call.1} parent=1 // pred_region
      %10783 = dma.done [#allocation4], 3328
    $region33: #{tpu_custom_call.1} parent=1 // pred_fallthru
      _
    %10784 = vsyncpa [#allocation3], 1
    %10785 = vsyncpa [#allocation6], 1
    %10786 = vsyncpa [#allocation4], 1

</llo_original>
